<compile_context>
chip_gen: v7x
topology: tpu7x:2x2x1
jax: 0.10.0
libtpu: 0.0.40
codegen_flags: <defaults>
</compile_context>

<pallas_src>
import math

import jax
import jax.numpy as jnp
from jax.experimental import pallas as pl
from jax.experimental.pallas import tpu as pltpu


def _rank_kernel(c_tile_ref, c_dist_ref, rank_ref):
    # c_tile_ref: (1, T)     content element tile (lane-dense)
    # c_dist_ref: (C, 1)     chunk of the full content distribution (sublanes)
    # rank_ref:   (1, T) i32 ranks; the block is resident across the chunk
    #                        axis (its index_map ignores j), so it doubles as
    #                        the accumulator -- no VMEM scratch needed.
    j = pl.program_id(1)

    @pl.when(j == 0)
    def _init():
        rank_ref[...] = jnp.zeros_like(rank_ref)

    c_tile = c_tile_ref[...]                                # (1, T)
    c_dist = c_dist_ref[...]                                # (C, 1)
    less = (c_dist < c_tile).astype(jnp.int32)              # (C, T)  VPU compares
    rank_ref[...] += jnp.sum(less, axis=0, keepdims=True)   # sublane reduce -> (1, T)


def _content_ranks_pairwise(c_flat, tile=1024, chunk=2048):
    """rank_c[i] = #{j : c_flat[j] < c_flat[i]} via a tiled pairwise Pallas pass."""
    n = c_flat.shape[0]
    dtype = c_flat.dtype

    # Pad with +inf so the grid divides evenly; +inf entries never count as
    # "less than" any real element, and their own (bogus) ranks are discarded.
    step = math.lcm(tile, chunk)
    n_pad = ((n + step - 1) // step) * step
    if n_pad != n:
        c_flat = jnp.concatenate(
            [c_flat, jnp.full((n_pad - n,), jnp.inf, dtype=dtype)])

    c_row = c_flat.reshape(1, n_pad)   # element tiles live on the lane axis
    c_col = c_flat.reshape(n_pad, 1)   # distribution chunks live on sublanes

    itemsize = jnp.dtype(dtype).itemsize
    rank = pl.pallas_call(
        _rank_kernel,
        out_shape=jax.ShapeDtypeStruct((1, n_pad), jnp.int32),
        grid_spec=pltpu.PrefetchScalarGridSpec(
            num_scalar_prefetch=0,
            grid=(n_pad // tile, n_pad // chunk),
            in_specs=[
                pl.BlockSpec((1, tile), lambda i, j: (0, i)),
                pl.BlockSpec((chunk, 1), lambda i, j: (j, 0)),
            ],
            out_specs=pl.BlockSpec((1, tile), lambda i, j: (0, i)),
        ),
        compiler_params=pltpu.CompilerParams(
            dimension_semantics=("parallel", "arbitrary"),
            vmem_limit_bytes=32 * 1024 * 1024,
        ),
        cost_estimate=pl.CostEstimate(
            flops=2 * n_pad * n_pad,
            transcendentals=0,
            # The distribution column is re-streamed once per element tile.
            bytes_accessed=itemsize * n_pad * (n_pad // tile)
                           + itemsize * n_pad + 4 * n_pad),
    )(c_row, c_col)
    return rank.reshape(n_pad)[:n]


# Beyond this size the O(N log N) sort-based rank (identical strict-less
# semantics) beats the O(N^2) pairwise kernel on every TPU generation.
_PAIRWISE_MAX_N = 1 << 16


def hm_forward(content_feat, style_feat):
    assert content_feat.shape == style_feat.shape
    b, c, w, h = content_feat.shape
    n = b * c * w * h
    out_dtype = content_feat.dtype

    # Compare in bf16 only when the features are natively bf16 (v6e/v7x have
    # bf16 VALUs); never down-cast f32 inputs (that would create ties).
    cmp_dtype = jnp.bfloat16 if content_feat.dtype == jnp.bfloat16 else jnp.float32
    c_flat = content_feat.reshape(n).astype(cmp_dtype)
    s_flat = style_feat.reshape(n).astype(jnp.float32)

    if n <= _PAIRWISE_MAX_N:
        rank_c = _content_ranks_pairwise(c_flat)
    else:
        # TODO(synk): production-size rank path is plain XLA (sort-based); the
        # Pallas pairwise kernel only wins for small N.
        rank_c = jnp.searchsorted(jnp.sort(c_flat), c_flat, side="left")

    # Sorted style values gathered by content rank (XLA sort + gather).
    s_sorted = jnp.sort(s_flat)
    matched = jnp.take(s_sorted, rank_c, axis=0)

    # Forward value of `c + (matched - c).detach()` is exactly `matched`.
    return matched.reshape(b, c, w, h).astype(out_dtype)


if __name__ == "__main__":
    key = jax.random.PRNGKey(0)
    k1, k2 = jax.random.split(key)

    content = jax.random.normal(k1, (2, 4, 16, 16), dtype=jnp.float32)
    style = jax.random.normal(k2, (2, 4, 16, 16), dtype=jnp.float32) * 2.0 + 1.0

    out = jax.block_until_ready(hm_forward(content, style))

    def _ref(cf, sf):
        # Pure-JAX reference: sorted style gathered by argsort-of-argsort ranks.
        ranks = jnp.argsort(jnp.argsort(cf.reshape(-1)))
        return jnp.sort(sf.reshape(-1))[ranks].reshape(cf.shape)

    ref = _ref(content, style)
    assert out.shape == content.shape and out.dtype == content.dtype
    assert jnp.allclose(out, ref, atol=1e-6), "mismatch vs reference"

    # Non-divisible flattened size exercises the +inf padding path.
    c2 = jax.random.normal(jax.random.PRNGKey(3), (1, 3, 5, 7), dtype=jnp.float32)
    s2 = jax.random.normal(jax.random.PRNGKey(4), (1, 3, 5, 7), dtype=jnp.float32)
    out2 = jax.block_until_ready(hm_forward(c2, s2))
    assert jnp.allclose(out2, _ref(c2, s2), atol=1e-6), "mismatch (padded case)"

    print("KERNEL_OK")
</pallas_src>

<mosaic_0001>
module attributes {stable_mosaic.version = 11 : i64} {
  func.func @_rank_kernel(%arg0: i32, %arg1: i32, %arg2: memref<1x1024xf32, #tpu.memory_space<vmem>>, %arg3: memref<2048x1xf32, #tpu.memory_space<vmem>>, %arg4: memref<1x1024xi32, #tpu.memory_space<vmem>>) attributes {dimension_semantics = [#tpu.dimension_semantics<parallel>, #tpu.dimension_semantics<arbitrary>], iteration_bounds = array<i64: 2, 1>, scalar_prefetch = 0 : i64, scratch_operands = 0 : i64, tpu.core_type = #tpu.core_type<tc>, window_params = [{transform_indices = @transform_0, window_bounds = array<i64: 1, 1024>}, {transform_indices = @transform_1, window_bounds = array<i64: 2048, 1>}, {transform_indices = @transform_2, window_bounds = array<i64: 1, 1024>}]} {
    %c0_i32 = arith.constant 0 : i32
    %0 = arith.cmpi eq, %arg1, %c0_i32 : i32
    %1 = arith.extui %0 : i1 to i32
    %c0_i32_0 = arith.constant 0 : i32
    %2 = arith.cmpi ne, %1, %c0_i32_0 : i32
    scf.if %2 {
      %c0_i32_8 = arith.constant 0 : i32
      %14 = vector.broadcast %c0_i32_8 : i32 to vector<1x1024xi32>
      %c0_9 = arith.constant 0 : index
      %c0_10 = arith.constant 0 : index
      %15 = vector.load %arg4[%c0_9, %c0_10] : memref<1x1024xi32, #tpu.memory_space<vmem>>, vector<1x1024xi32>
      tpu.vector_store %arg4[%c0_9, %c0_10], %14 {strides = array<i32>} : memref<1x1024xi32, #tpu.memory_space<vmem>>, vector<1x1024xi32>,
    } else {
    }
    %c0 = arith.constant 0 : index
    %c0_1 = arith.constant 0 : index
    %3 = vector.load %arg2[%c0, %c0_1] : memref<1x1024xf32, #tpu.memory_space<vmem>>, vector<1x1024xf32>
    %c0_2 = arith.constant 0 : index
    %c0_3 = arith.constant 0 : index
    %4 = vector.load %arg3[%c0_2, %c0_3] : memref<2048x1xf32, #tpu.memory_space<vmem>>, vector<2048x1xf32>
    %5 = vector.broadcast %4 : vector<2048x1xf32> to vector<2048x1024xf32>
    %6 = vector.broadcast %3 : vector<1x1024xf32> to vector<2048x1024xf32>
    %7 = arith.cmpf olt, %5, %6 : vector<2048x1024xf32>
    %8 = arith.extui %7 : vector<2048x1024xi1> to vector<2048x1024xi32>
    %c0_4 = arith.constant 0 : index
    %c0_5 = arith.constant 0 : index
    %9 = vector.load %arg4[%c0_4, %c0_5] : memref<1x1024xi32, #tpu.memory_space<vmem>>, vector<1x1024xi32>
    %cst = arith.constant dense<0> : vector<1024xi32>
    %10 = vector.multi_reduction <add>, %8, %cst [0] : vector<2048x1024xi32> to vector<1024xi32>
    %11 = vector.shape_cast %10 : vector<1024xi32> to vector<1x1024xi32>
    %12 = arith.addi %9, %11 : vector<1x1024xi32>
    %c0_6 = arith.constant 0 : index
    %c0_7 = arith.constant 0 : index
    %13 = vector.load %arg4[%c0_6, %c0_7] : memref<1x1024xi32, #tpu.memory_space<vmem>>, vector<1x1024xi32>
    tpu.vector_store %arg4[%c0_6, %c0_7], %12 {strides = array<i32>} : memref<1x1024xi32, #tpu.memory_space<vmem>>, vector<1x1024xi32>,
    return
  }
  func.func @transform_0(%arg0: i32, %arg1: i32) -> (i32, i32) {
    %c0_i32 = arith.constant 0 : i32
    %c0_i32_0 = arith.constant 0 : i32
    return %c0_i32, %arg0 : i32, i32
  }
  func.func @transform_1(%arg0: i32, %arg1: i32) -> (i32, i32) {
    %c0_i32 = arith.constant 0 : i32
    %c0_i32_0 = arith.constant 0 : i32
    return %arg1, %c0_i32 : i32, i32
  }
  func.func @transform_2(%arg0: i32, %arg1: i32) -> (i32, i32) {
    %c0_i32 = arith.constant 0 : i32
    %c0_i32_0 = arith.constant 0 : i32
    return %c0_i32, %arg0 : i32, i32
  }
}

</mosaic_0001>

<llo_original>
// kernel: tpu_custom_call.1
$region0: #{tpu_custom_call.1}
  #allocation0 [shape = 'u32[]', space=smem, size = 0x4, offset = 0x4, fixed_abs, tag = 'smem constant byte address 0x4 - core index']
  #allocation1 [shape = 'u32[144,128]{1,0:T(1,128)}', space=vmem, size = 0x12000, scoped, tag = 'internal scratch']
  %s0 = inlined_call_operand.vmem [shape: f32[1,2048], index: 0, kind: input, shape index: {}]
  %s1 = inlined_call_operand.vmem [shape: f32[2048,1], index: 1, kind: input, shape index: {}]
  %s2 = inlined_call_operand.hbm [shape: s32[1,2048], index: 2, kind: output, shape index: {}]
  %s3 = sld [smem:[#allocation0]]
  $region45: #{tpu_custom_call.1} parent=0
    _
  %s5 = ssub.s32 1, %s3
  %s6 = scalar_select 0, %s5, %s3
  $region1: #{tpu_custom_call.1} parent=0
    #allocation2 [shape = 'u8[8192]{0}', space=vmem, size = 0x2000, scoped, tag = 'output window, operand 0']
    #allocation3 [shape = 's32[2]{0}', space=sflag, size = 0x8, scoped, tag = 'scoped memory for tpu_custom_call.1']
    %7 = vsyncpa [#allocation3], 0
    %s8 = scalar_lea.sflag [#allocation3], 1
    %9 = vsyncpa %s8, 0
    loop: start=0, step=1, limit=4
    $region2: #{tpu_custom_call.1} parent=1 // loop_pre_header
      _
    $region3: #{tpu_custom_call.1} parent=1 // loop_header
      %s11 = sphi 0, %s15
      %p12 = scmp.ge.s32.totalorder %s11, 4
      %s18 = sphi 0, %s30
      %s19 = sphi 0, %s26
      %s20 = sphi 0, %s18
      %s21 = sphi 0, %s19
      %s22 = sphi 0, %s20
      %s23 = sphi 0, %s21
      %s33 = sphi 0, %s35
      %s36 = sphi 0, %s33
      %s37 = sphi 0, %s36
      %s53 = sphi 0, %s37
      %s59 = sphi 0, %s61
      %s62 = sphi 0, %s59
      %s63 = sphi 0, %s62
      %s79 = sphi 0, %s63
      %s85 = sphi 0, %s87
      %s88 = sphi 0, %s85
      %s89 = sphi 0, %s88
      %s105 = sphi 0, %s89
    $region4: #{tpu_custom_call.1} parent=1 // loop_header_branch
      %14 = sbr.rel (%p12) target = $region8
    $region5: #{tpu_custom_call.1} parent=1 // loop_body
      %s16 = ssub.s32 %s11, 1
      %s17 = ssub.s32 %s11, 2
      %s24 = sadd.s32 1, %s19
      %p25 = scmp.ge.s32.totalorder %s24, 1
      %s26 = scalar_select %p25, 0, %s24
      %s27 = sadd.s32 1, %s18
      %s28 = scalar_select %p25, %s27, %s18
      %p29 = scmp.ge.s32.totalorder %s28, 2
      %s30 = scalar_select %p29, 0, %s28
      %s31 = ssub.s32 %s18, %s30
      %p32 = scmp.eq.s32.totalorder %s31, 0
      %s34 = sadd.s32 %s33, 1
      %s35 = scalar_select %p32, %s33, %s34
      %p38 = pneg %p32
      %p39 = scmp.eq.s32.totalorder %s11, 1
      %p40 = por %p38, %p39
      %p41 = scmp.ne.s32.totalorder %s33, %s36
      %p42 = scmp.eq.s32.totalorder %s11, 0
      %p43 = por %p41, %p42
      %p44 = scmp.ne.s32.totalorder %s33, %s36
      %p45 = scmp.eq.s32.totalorder %s16, 1
      %p46 = por %p44, %p45
      %p47 = scmp.ne.s32.totalorder %s36, %s37
      %p48 = scmp.eq.s32.totalorder %s16, 0
      %p49 = por %p47, %p48
      %p50 = scmp.ne.s32.totalorder %s36, %s37
      %p51 = scmp.eq.s32.totalorder %s17, 1
      %p52 = por %p50, %p51
      %p54 = scmp.ne.s32.totalorder %s37, %s53
      %p55 = scmp.eq.s32.totalorder %s17, 0
      %p56 = por %p54, %p55
      %s57 = ssub.s32 %s19, %s26
      %p58 = scmp.eq.s32.totalorder %s57, 0
      %s60 = sadd.s32 %s59, 1
      %s61 = scalar_select %p58, %s59, %s60
      %p64 = pneg %p58
      %p65 = scmp.eq.s32.totalorder %s11, 1
      %p66 = por %p64, %p65
      %p67 = scmp.ne.s32.totalorder %s59, %s62
      %p68 = scmp.eq.s32.totalorder %s11, 0
      %p69 = por %p67, %p68
      %p70 = scmp.ne.s32.totalorder %s59, %s62
      %p71 = scmp.eq.s32.totalorder %s16, 1
      %p72 = por %p70, %p71
      %p73 = scmp.ne.s32.totalorder %s62, %s63
      %p74 = scmp.eq.s32.totalorder %s16, 0
      %p75 = por %p73, %p74
      %p76 = scmp.ne.s32.totalorder %s62, %s63
      %p77 = scmp.eq.s32.totalorder %s17, 1
      %p78 = por %p76, %p77
      %p80 = scmp.ne.s32.totalorder %s63, %s79
      %p81 = scmp.eq.s32.totalorder %s17, 0
      %p82 = por %p80, %p81
      %s83 = ssub.s32 %s18, %s30
      %p84 = scmp.eq.s32.totalorder %s83, 0
      %s86 = sadd.s32 %s85, 1
      %s87 = scalar_select %p84, %s85, %s86
      %p90 = pneg %p84
      %p91 = scmp.eq.s32.totalorder %s11, 1
      %p92 = por %p90, %p91
      %p93 = scmp.ne.s32.totalorder %s85, %s88
      %p94 = scmp.eq.s32.totalorder %s11, 0
      %p95 = por %p93, %p94
      %p96 = scmp.ne.s32.totalorder %s85, %s88
      %p97 = scmp.eq.s32.totalorder %s16, 1
      %p98 = por %p96, %p97
      %p99 = scmp.ne.s32.totalorder %s88, %s89
      %p100 = scmp.eq.s32.totalorder %s16, 0
      %p101 = por %p99, %p100
      %p102 = scmp.ne.s32.totalorder %s88, %s89
      %p103 = scmp.eq.s32.totalorder %s17, 1
      %p104 = por %p102, %p103
      %p106 = scmp.ne.s32.totalorder %s89, %s105
      %p107 = scmp.eq.s32.totalorder %s17, 0
      %p108 = por %p106, %p107
      %p109 = scmp.le.s32.totalorder 1, %s11
      %p110 = scmp.lt.s32.totalorder %s11, 3
      %p111 = pnand %p109, %p110
      %p112 = pneg %p111
      // Predicated region
      $region9: #{tpu_custom_call.1} parent=5 // pred_check
        _
      $region10: #{tpu_custom_call.1} parent=5 // pred_check_branch
        %114 = sbr.rel (%p111) target = $region12
      $region11: #{tpu_custom_call.1} parent=5 // pred_region
        %s115 = ssub.s32 %s11, 1
        // Predicated region
        $region13: #{tpu_custom_call.1} parent=11 // pred_check
          %p116 = pneg %p75
        $region14: #{tpu_custom_call.1} parent=11 // pred_check_branch
          %118 = sbr.rel (%p116) target = $region16
        $region15: #{tpu_custom_call.1} parent=11 // pred_region
          %s119 = smul.u32 256, %s21
          %p120 = scmp.lt.s32.totalorder %s119, 255
          %s121 = scalar_select %p120, %s119, 255
          %s122 = smul.addr %s121, 8
          %s123 = scalar_lea.vmem %s1, %s122
          %s124 = smul.u32 256, %s21
        $region16: #{tpu_custom_call.1} parent=11 // pred_fallthru
          _
      $region12: #{tpu_custom_call.1} parent=5 // pred_fallthru
        _
      %p125 = scmp.lt.s32.totalorder %s11, 2
      // Predicated region
      $region17: #{tpu_custom_call.1} parent=5 // pred_check
        %p126 = pneg %p125
      $region18: #{tpu_custom_call.1} parent=5 // pred_check_branch
        %128 = sbr.rel (%p126) target = $region20
      $region19: #{tpu_custom_call.1} parent=5 // pred_region
        // Predicated region
        $region21: #{tpu_custom_call.1} parent=19 // pred_check
          %p129 = pneg %p43
        $region22: #{tpu_custom_call.1} parent=19 // pred_check_branch
          %131 = sbr.rel (%p129) target = $region24
        $region23: #{tpu_custom_call.1} parent=19 // pred_region
          %s132 = smul.u32 8, %s18
          %p133 = scmp.lt.s32.totalorder %s132, 15
          %s134 = scalar_select %p133, %s132, 15
          %s135 = scalar_lea.vmem %s0, %s134
          %s136 = smul.u32 8, %s18
        $region24: #{tpu_custom_call.1} parent=19 // pred_fallthru
          _
      $region20: #{tpu_custom_call.1} parent=5 // pred_fallthru
        _
      %p137 = scmp.le.s32.totalorder 1, %s11
      %p138 = scmp.lt.s32.totalorder %s11, 3
      %p139 = pnand %p137, %p138
      %p140 = pneg %p139
      // Predicated region
      $region25: #{tpu_custom_call.1} parent=5 // pred_check
        _
      $region26: #{tpu_custom_call.1} parent=5 // pred_check_branch
        %142 = sbr.rel (%p139) target = $region28
      $region27: #{tpu_custom_call.1} parent=5 // pred_region
        %s143 = ssub.s32 %s11, 1
        %s144 = smul.u32 8, %s20
        %p145 = scmp.lt.s32.totalorder %s144, 15
        %s146 = scalar_select %p145, %s144, 15
        %s147 = scalar_lea.vmem %s0, %s146
        %p148 = pneg %p49
        %p149 = pneg %p46
        %s150 = smul.u32 256, %s21
        %p151 = scmp.lt.s32.totalorder %s150, 255
        %s152 = scalar_select %p151, %s150, 255
        %s153 = smul.addr %s152, 8
        %s154 = scalar_lea.vmem %s1, %s153
        %p155 = pneg %p75
        %p156 = pneg %p72
        %p157 = pneg %p101
        %p158 = pneg %p98
        %s159 = sand.u32 %s88, 1
        %s160 = scalar_lea.sflag [#allocation3], %s159
        %s161 = sand.u32 %s88, 1
        %s162 = smul.addr %s161, 8
        %s163 = scalar_lea.vmem [#allocation2], %s162
        %s164 = smul.u32 8, %s20
        %p165 = scmp.lt.s32.totalorder %s164, 15
        %s166 = scalar_select %p165, %s164, 15
        %s167 = scalar_lea.vmem %s0, %s166
        %s168 = smul.u32 8, %s20
        %s169 = smul.u32 256, %s21
        %p170 = scmp.lt.s32.totalorder %s169, 255
        %s171 = scalar_select %p170, %s169, 255
        %s172 = smul.addr %s171, 8
        %s173 = scalar_lea.vmem %s1, %s172
        %s174 = smul.u32 256, %s21
        %s175 = smul.u32 8, %s20
        %p176 = scmp.eq.s32.totalorder %s21, 0
        // Predicated region
        $region29: #{tpu_custom_call.1} parent=27 // pred_check
          %p177 = pneg %p176
        $region30: #{tpu_custom_call.1} parent=27 // pred_check_branch
          %179 = sbr.rel (%p177) target = $region32
        $region31: #{tpu_custom_call.1} parent=27 // pred_region
          %180 = vst [vmem:[%s163] sm:$0xff] 0
        $region32: #{tpu_custom_call.1} parent=27 // pred_fallthru
          _
        %v181 = vld [vmem:[%s167] sm:$0xff]
        %v182 = vld [vmem:[%s173] sm:$0xff]
        %v183 = vld [vmem:[%s173 + $0x8] sm:$0xff]
        %v184 = vld [vmem:[%s173 + $0x10] sm:$0xff]
        %v185 = vld [vmem:[%s173 + $0x18] sm:$0xff]
        %v186 = vld [vmem:[%s173 + $0x20] sm:$0xff]
        %v187 = vld [vmem:[%s173 + $0x28] sm:$0xff]
        %v188 = vld [vmem:[%s173 + $0x30] sm:$0xff]
        %v189 = vld [vmem:[%s173 + $0x38] sm:$0xff]
        %v190 = vld [vmem:[%s173 + $0x40] sm:$0xff]
        %v191 = vld [vmem:[%s173 + $0x48] sm:$0xff]
        %v192 = vld [vmem:[%s173 + $0x50] sm:$0xff]
        %v193 = vld [vmem:[%s173 + $0x58] sm:$0xff]
        %v194 = vld [vmem:[%s173 + $0x60] sm:$0xff]
        %v195 = vld [vmem:[%s173 + $0x68] sm:$0xff]
        %v196 = vld [vmem:[%s173 + $0x70] sm:$0xff]
        %v197 = vld [vmem:[%s173 + $0x78] sm:$0xff]
        %v198 = vld [vmem:[%s173 + $0x80] sm:$0xff]
        %v199 = vld [vmem:[%s173 + $0x88] sm:$0xff]
        %v200 = vld [vmem:[%s173 + $0x90] sm:$0xff]
        %v201 = vld [vmem:[%s173 + $0x98] sm:$0xff]
        %v202 = vld [vmem:[%s173 + $0xa0] sm:$0xff]
        %v203 = vld [vmem:[%s173 + $0xa8] sm:$0xff]
        %v204 = vld [vmem:[%s173 + $0xb0] sm:$0xff]
        %v205 = vld [vmem:[%s173 + $0xb8] sm:$0xff]
        %v206 = vld [vmem:[%s173 + $0xc0] sm:$0xff]
        %v207 = vld [vmem:[%s173 + $0xc8] sm:$0xff]
        %v208 = vld [vmem:[%s173 + $0xd0] sm:$0xff]
        %v209 = vld [vmem:[%s173 + $0xd8] sm:$0xff]
        %v210 = vld [vmem:[%s173 + $0xe0] sm:$0xff]
        %v211 = vld [vmem:[%s173 + $0xe8] sm:$0xff]
        %v212 = vld [vmem:[%s173 + $0xf0] sm:$0xff]
        %v213 = vld [vmem:[%s173 + $0xf8] sm:$0xff]
        %v214 = vld [vmem:[%s173 + $0x100] sm:$0xff]
        %v215 = vld [vmem:[%s173 + $0x108] sm:$0xff]
        %v216 = vld [vmem:[%s173 + $0x110] sm:$0xff]
        %v217 = vld [vmem:[%s173 + $0x118] sm:$0xff]
        %v218 = vld [vmem:[%s173 + $0x120] sm:$0xff]
        %v219 = vld [vmem:[%s173 + $0x128] sm:$0xff]
        %v220 = vld [vmem:[%s173 + $0x130] sm:$0xff]
        %v221 = vld [vmem:[%s173 + $0x138] sm:$0xff]
        %v222 = vld [vmem:[%s173 + $0x140] sm:$0xff]
        %v223 = vld [vmem:[%s173 + $0x148] sm:$0xff]
        %v224 = vld [vmem:[%s173 + $0x150] sm:$0xff]
        %v225 = vld [vmem:[%s173 + $0x158] sm:$0xff]
        %v226 = vld [vmem:[%s173 + $0x160] sm:$0xff]
        %v227 = vld [vmem:[%s173 + $0x168] sm:$0xff]
        %v228 = vld [vmem:[%s173 + $0x170] sm:$0xff]
        %v229 = vld [vmem:[%s173 + $0x178] sm:$0xff]
        %v230 = vld [vmem:[%s173 + $0x180] sm:$0xff]
        %v231 = vld [vmem:[%s173 + $0x188] sm:$0xff]
        %v232 = vld [vmem:[%s173 + $0x190] sm:$0xff]
        %v233 = vld [vmem:[%s173 + $0x198] sm:$0xff]
        %v234 = vld [vmem:[%s173 + $0x1a0] sm:$0xff]
        %v235 = vld [vmem:[%s173 + $0x1a8] sm:$0xff]
        %v236 = vld [vmem:[%s173 + $0x1b0] sm:$0xff]
        %v237 = vld [vmem:[%s173 + $0x1b8] sm:$0xff]
        %v238 = vld [vmem:[%s173 + $0x1c0] sm:$0xff]
        %v239 = vld [vmem:[%s173 + $0x1c8] sm:$0xff]
        %v240 = vld [vmem:[%s173 + $0x1d0] sm:$0xff]
        %v241 = vld [vmem:[%s173 + $0x1d8] sm:$0xff]
        %v242 = vld [vmem:[%s173 + $0x1e0] sm:$0xff]
        %v243 = vld [vmem:[%s173 + $0x1e8] sm:$0xff]
        %v244 = vld [vmem:[%s173 + $0x1f0] sm:$0xff]
        %v245 = vld [vmem:[%s173 + $0x1f8] sm:$0xff]
        %v246 = vld [vmem:[%s173 + $0x200] sm:$0xff]
        %v247 = vld [vmem:[%s173 + $0x208] sm:$0xff]
        %v248 = vld [vmem:[%s173 + $0x210] sm:$0xff]
        %v249 = vld [vmem:[%s173 + $0x218] sm:$0xff]
        %v250 = vld [vmem:[%s173 + $0x220] sm:$0xff]
        %v251 = vld [vmem:[%s173 + $0x228] sm:$0xff]
        %v252 = vld [vmem:[%s173 + $0x230] sm:$0xff]
        %v253 = vld [vmem:[%s173 + $0x238] sm:$0xff]
        %v254 = vld [vmem:[%s173 + $0x240] sm:$0xff]
        %v255 = vld [vmem:[%s173 + $0x248] sm:$0xff]
        %v256 = vld [vmem:[%s173 + $0x250] sm:$0xff]
        %v257 = vld [vmem:[%s173 + $0x258] sm:$0xff]
        %v258 = vld [vmem:[%s173 + $0x260] sm:$0xff]
        %v259 = vld [vmem:[%s173 + $0x268] sm:$0xff]
        %v260 = vld [vmem:[%s173 + $0x270] sm:$0xff]
        %v261 = vld [vmem:[%s173 + $0x278] sm:$0xff]
        %v262 = vld [vmem:[%s173 + $0x280] sm:$0xff]
        %v263 = vld [vmem:[%s173 + $0x288] sm:$0xff]
        %v264 = vld [vmem:[%s173 + $0x290] sm:$0xff]
        %v265 = vld [vmem:[%s173 + $0x298] sm:$0xff]
        %v266 = vld [vmem:[%s173 + $0x2a0] sm:$0xff]
        %v267 = vld [vmem:[%s173 + $0x2a8] sm:$0xff]
        %v268 = vld [vmem:[%s173 + $0x2b0] sm:$0xff]
        %v269 = vld [vmem:[%s173 + $0x2b8] sm:$0xff]
        %v270 = vld [vmem:[%s173 + $0x2c0] sm:$0xff]
        %v271 = vld [vmem:[%s173 + $0x2c8] sm:$0xff]
        %v272 = vld [vmem:[%s173 + $0x2d0] sm:$0xff]
        %v273 = vld [vmem:[%s173 + $0x2d8] sm:$0xff]
        %v274 = vld [vmem:[%s173 + $0x2e0] sm:$0xff]
        %v275 = vld [vmem:[%s173 + $0x2e8] sm:$0xff]
        %v276 = vld [vmem:[%s173 + $0x2f0] sm:$0xff]
        %v277 = vld [vmem:[%s173 + $0x2f8] sm:$0xff]
        %v278 = vld [vmem:[%s173 + $0x300] sm:$0xff]
        %v279 = vld [vmem:[%s173 + $0x308] sm:$0xff]
        %v280 = vld [vmem:[%s173 + $0x310] sm:$0xff]
        %v281 = vld [vmem:[%s173 + $0x318] sm:$0xff]
        %v282 = vld [vmem:[%s173 + $0x320] sm:$0xff]
        %v283 = vld [vmem:[%s173 + $0x328] sm:$0xff]
        %v284 = vld [vmem:[%s173 + $0x330] sm:$0xff]
        %v285 = vld [vmem:[%s173 + $0x338] sm:$0xff]
        %v286 = vld [vmem:[%s173 + $0x340] sm:$0xff]
        %v287 = vld [vmem:[%s173 + $0x348] sm:$0xff]
        %v288 = vld [vmem:[%s173 + $0x350] sm:$0xff]
        %v289 = vld [vmem:[%s173 + $0x358] sm:$0xff]
        %v290 = vld [vmem:[%s173 + $0x360] sm:$0xff]
        %v291 = vld [vmem:[%s173 + $0x368] sm:$0xff]
        %v292 = vld [vmem:[%s173 + $0x370] sm:$0xff]
        %v293 = vld [vmem:[%s173 + $0x378] sm:$0xff]
        %v294 = vld [vmem:[%s173 + $0x380] sm:$0xff]
        %v295 = vld [vmem:[%s173 + $0x388] sm:$0xff]
        %v296 = vld [vmem:[%s173 + $0x390] sm:$0xff]
        %v297 = vld [vmem:[%s173 + $0x398] sm:$0xff]
        %v298 = vld [vmem:[%s173 + $0x3a0] sm:$0xff]
        %v299 = vld [vmem:[%s173 + $0x3a8] sm:$0xff]
        %v300 = vld [vmem:[%s173 + $0x3b0] sm:$0xff]
        %v301 = vld [vmem:[%s173 + $0x3b8] sm:$0xff]
        %v302 = vld [vmem:[%s173 + $0x3c0] sm:$0xff]
        %v303 = vld [vmem:[%s173 + $0x3c8] sm:$0xff]
        %v304 = vld [vmem:[%s173 + $0x3d0] sm:$0xff]
        %v305 = vld [vmem:[%s173 + $0x3d8] sm:$0xff]
        %v306 = vld [vmem:[%s173 + $0x3e0] sm:$0xff]
        %v307 = vld [vmem:[%s173 + $0x3e8] sm:$0xff]
        %v308 = vld [vmem:[%s173 + $0x3f0] sm:$0xff]
        %v309 = vld [vmem:[%s173 + $0x3f8] sm:$0xff]
        %v310 = vld [vmem:[%s173 + $0x400] sm:$0xff]
        %v311 = vld [vmem:[%s173 + $0x408] sm:$0xff]
        %v312 = vld [vmem:[%s173 + $0x410] sm:$0xff]
        %v313 = vld [vmem:[%s173 + $0x418] sm:$0xff]
        %v314 = vld [vmem:[%s173 + $0x420] sm:$0xff]
        %v315 = vld [vmem:[%s173 + $0x428] sm:$0xff]
        %v316 = vld [vmem:[%s173 + $0x430] sm:$0xff]
        %v317 = vld [vmem:[%s173 + $0x438] sm:$0xff]
        %v318 = vld [vmem:[%s173 + $0x440] sm:$0xff]
        %v319 = vld [vmem:[%s173 + $0x448] sm:$0xff]
        %v320 = vld [vmem:[%s173 + $0x450] sm:$0xff]
        %v321 = vld [vmem:[%s173 + $0x458] sm:$0xff]
        %v322 = vld [vmem:[%s173 + $0x460] sm:$0xff]
        %v323 = vld [vmem:[%s173 + $0x468] sm:$0xff]
        %v324 = vld [vmem:[%s173 + $0x470] sm:$0xff]
        %v325 = vld [vmem:[%s173 + $0x478] sm:$0xff]
        %v326 = vld [vmem:[%s173 + $0x480] sm:$0xff]
        %v327 = vld [vmem:[%s173 + $0x488] sm:$0xff]
        %v328 = vld [vmem:[%s173 + $0x490] sm:$0xff]
        %v329 = vld [vmem:[%s173 + $0x498] sm:$0xff]
        %v330 = vld [vmem:[%s173 + $0x4a0] sm:$0xff]
        %v331 = vld [vmem:[%s173 + $0x4a8] sm:$0xff]
        %v332 = vld [vmem:[%s173 + $0x4b0] sm:$0xff]
        %v333 = vld [vmem:[%s173 + $0x4b8] sm:$0xff]
        %v334 = vld [vmem:[%s173 + $0x4c0] sm:$0xff]
        %v335 = vld [vmem:[%s173 + $0x4c8] sm:$0xff]
        %v336 = vld [vmem:[%s173 + $0x4d0] sm:$0xff]
        %v337 = vld [vmem:[%s173 + $0x4d8] sm:$0xff]
        %v338 = vld [vmem:[%s173 + $0x4e0] sm:$0xff]
        %v339 = vld [vmem:[%s173 + $0x4e8] sm:$0xff]
        %v340 = vld [vmem:[%s173 + $0x4f0] sm:$0xff]
        %v341 = vld [vmem:[%s173 + $0x4f8] sm:$0xff]
        %v342 = vld [vmem:[%s173 + $0x500] sm:$0xff]
        %v343 = vld [vmem:[%s173 + $0x508] sm:$0xff]
        %v344 = vld [vmem:[%s173 + $0x510] sm:$0xff]
        %v345 = vld [vmem:[%s173 + $0x518] sm:$0xff]
        %v346 = vld [vmem:[%s173 + $0x520] sm:$0xff]
        %v347 = vld [vmem:[%s173 + $0x528] sm:$0xff]
        %v348 = vld [vmem:[%s173 + $0x530] sm:$0xff]
        %v349 = vld [vmem:[%s173 + $0x538] sm:$0xff]
        %v350 = vld [vmem:[%s173 + $0x540] sm:$0xff]
        %v351 = vld [vmem:[%s173 + $0x548] sm:$0xff]
        %v352 = vld [vmem:[%s173 + $0x550] sm:$0xff]
        %v353 = vld [vmem:[%s173 + $0x558] sm:$0xff]
        %v354 = vld [vmem:[%s173 + $0x560] sm:$0xff]
        %v355 = vld [vmem:[%s173 + $0x568] sm:$0xff]
        %v356 = vld [vmem:[%s173 + $0x570] sm:$0xff]
        %v357 = vld [vmem:[%s173 + $0x578] sm:$0xff]
        %v358 = vld [vmem:[%s173 + $0x580] sm:$0xff]
        %v359 = vld [vmem:[%s173 + $0x588] sm:$0xff]
        %v360 = vld [vmem:[%s173 + $0x590] sm:$0xff]
        %v361 = vld [vmem:[%s173 + $0x598] sm:$0xff]
        %v362 = vld [vmem:[%s173 + $0x5a0] sm:$0xff]
        %v363 = vld [vmem:[%s173 + $0x5a8] sm:$0xff]
        %v364 = vld [vmem:[%s173 + $0x5b0] sm:$0xff]
        %v365 = vld [vmem:[%s173 + $0x5b8] sm:$0xff]
        %v366 = vld [vmem:[%s173 + $0x5c0] sm:$0xff]
        %v367 = vld [vmem:[%s173 + $0x5c8] sm:$0xff]
        %v368 = vld [vmem:[%s173 + $0x5d0] sm:$0xff]
        %v369 = vld [vmem:[%s173 + $0x5d8] sm:$0xff]
        %v370 = vld [vmem:[%s173 + $0x5e0] sm:$0xff]
        %v371 = vld [vmem:[%s173 + $0x5e8] sm:$0xff]
        %v372 = vld [vmem:[%s173 + $0x5f0] sm:$0xff]
        %v373 = vld [vmem:[%s173 + $0x5f8] sm:$0xff]
        %v374 = vld [vmem:[%s173 + $0x600] sm:$0xff]
        %v375 = vld [vmem:[%s173 + $0x608] sm:$0xff]
        %v376 = vld [vmem:[%s173 + $0x610] sm:$0xff]
        %v377 = vld [vmem:[%s173 + $0x618] sm:$0xff]
        %v378 = vld [vmem:[%s173 + $0x620] sm:$0xff]
        %v379 = vld [vmem:[%s173 + $0x628] sm:$0xff]
        %v380 = vld [vmem:[%s173 + $0x630] sm:$0xff]
        %v381 = vld [vmem:[%s173 + $0x638] sm:$0xff]
        %v382 = vld [vmem:[%s173 + $0x640] sm:$0xff]
        %v383 = vld [vmem:[%s173 + $0x648] sm:$0xff]
        %v384 = vld [vmem:[%s173 + $0x650] sm:$0xff]
        %v385 = vld [vmem:[%s173 + $0x658] sm:$0xff]
        %v386 = vld [vmem:[%s173 + $0x660] sm:$0xff]
        %v387 = vld [vmem:[%s173 + $0x668] sm:$0xff]
        %v388 = vld [vmem:[%s173 + $0x670] sm:$0xff]
        %v389 = vld [vmem:[%s173 + $0x678] sm:$0xff]
        %v390 = vld [vmem:[%s173 + $0x680] sm:$0xff]
        %v391 = vld [vmem:[%s173 + $0x688] sm:$0xff]
        %v392 = vld [vmem:[%s173 + $0x690] sm:$0xff]
        %v393 = vld [vmem:[%s173 + $0x698] sm:$0xff]
        %v394 = vld [vmem:[%s173 + $0x6a0] sm:$0xff]
        %v395 = vld [vmem:[%s173 + $0x6a8] sm:$0xff]
        %v396 = vld [vmem:[%s173 + $0x6b0] sm:$0xff]
        %v397 = vld [vmem:[%s173 + $0x6b8] sm:$0xff]
        %v398 = vld [vmem:[%s173 + $0x6c0] sm:$0xff]
        %v399 = vld [vmem:[%s173 + $0x6c8] sm:$0xff]
        %v400 = vld [vmem:[%s173 + $0x6d0] sm:$0xff]
        %v401 = vld [vmem:[%s173 + $0x6d8] sm:$0xff]
        %v402 = vld [vmem:[%s173 + $0x6e0] sm:$0xff]
        %v403 = vld [vmem:[%s173 + $0x6e8] sm:$0xff]
        %v404 = vld [vmem:[%s173 + $0x6f0] sm:$0xff]
        %v405 = vld [vmem:[%s173 + $0x6f8] sm:$0xff]
        %v406 = vld [vmem:[%s173 + $0x700] sm:$0xff]
        %v407 = vld [vmem:[%s173 + $0x708] sm:$0xff]
        %v408 = vld [vmem:[%s173 + $0x710] sm:$0xff]
        %v409 = vld [vmem:[%s173 + $0x718] sm:$0xff]
        %v410 = vld [vmem:[%s173 + $0x720] sm:$0xff]
        %v411 = vld [vmem:[%s173 + $0x728] sm:$0xff]
        %v412 = vld [vmem:[%s173 + $0x730] sm:$0xff]
        %v413 = vld [vmem:[%s173 + $0x738] sm:$0xff]
        %v414 = vld [vmem:[%s173 + $0x740] sm:$0xff]
        %v415 = vld [vmem:[%s173 + $0x748] sm:$0xff]
        %v416 = vld [vmem:[%s173 + $0x750] sm:$0xff]
        %v417 = vld [vmem:[%s173 + $0x758] sm:$0xff]
        %v418 = vld [vmem:[%s173 + $0x760] sm:$0xff]
        %v419 = vld [vmem:[%s173 + $0x768] sm:$0xff]
        %v420 = vld [vmem:[%s173 + $0x770] sm:$0xff]
        %v421 = vld [vmem:[%s173 + $0x778] sm:$0xff]
        %v422 = vld [vmem:[%s173 + $0x780] sm:$0xff]
        %v423 = vld [vmem:[%s173 + $0x788] sm:$0xff]
        %v424 = vld [vmem:[%s173 + $0x790] sm:$0xff]
        %v425 = vld [vmem:[%s173 + $0x798] sm:$0xff]
        %v426 = vld [vmem:[%s173 + $0x7a0] sm:$0xff]
        %v427 = vld [vmem:[%s173 + $0x7a8] sm:$0xff]
        %v428 = vld [vmem:[%s173 + $0x7b0] sm:$0xff]
        %v429 = vld [vmem:[%s173 + $0x7b8] sm:$0xff]
        %v430 = vld [vmem:[%s173 + $0x7c0] sm:$0xff]
        %v431 = vld [vmem:[%s173 + $0x7c8] sm:$0xff]
        %v432 = vld [vmem:[%s173 + $0x7d0] sm:$0xff]
        %v433 = vld [vmem:[%s173 + $0x7d8] sm:$0xff]
        %v434 = vld [vmem:[%s173 + $0x7e0] sm:$0xff]
        %v435 = vld [vmem:[%s173 + $0x7e8] sm:$0xff]
        %v436 = vld [vmem:[%s173 + $0x7f0] sm:$0xff]
        %v437 = vld [vmem:[%s173 + $0x7f8] sm:$0xff]
        %439 = vset.pattern.permute.xlu0 0
        %440 = vperm.xlu0 %439, %v182
        %v441 = vpop.permute.xlu0 %440
        %444 = vset.pattern.permute.xlu0 0
        %445 = vperm.xlu0 %444, %v183
        %v446 = vpop.permute.xlu0 %445
        %449 = vset.pattern.permute.xlu0 0
        %450 = vperm.xlu0 %449, %v184
        %v451 = vpop.permute.xlu0 %450
        %454 = vset.pattern.permute.xlu0 0
        %455 = vperm.xlu0 %454, %v185
        %v456 = vpop.permute.xlu0 %455
        %459 = vset.pattern.permute.xlu0 0
        %460 = vperm.xlu0 %459, %v186
        %v461 = vpop.permute.xlu0 %460
        %464 = vset.pattern.permute.xlu0 0
        %465 = vperm.xlu0 %464, %v187
        %v466 = vpop.permute.xlu0 %465
        %469 = vset.pattern.permute.xlu0 0
        %470 = vperm.xlu0 %469, %v188
        %v471 = vpop.permute.xlu0 %470
        %474 = vset.pattern.permute.xlu0 0
        %475 = vperm.xlu0 %474, %v189
        %v476 = vpop.permute.xlu0 %475
        %479 = vset.pattern.permute.xlu0 0
        %480 = vperm.xlu0 %479, %v190
        %v481 = vpop.permute.xlu0 %480
        %484 = vset.pattern.permute.xlu0 0
        %485 = vperm.xlu0 %484, %v191
        %v486 = vpop.permute.xlu0 %485
        %489 = vset.pattern.permute.xlu0 0
        %490 = vperm.xlu0 %489, %v192
        %v491 = vpop.permute.xlu0 %490
        %494 = vset.pattern.permute.xlu0 0
        %495 = vperm.xlu0 %494, %v193
        %v496 = vpop.permute.xlu0 %495
        %499 = vset.pattern.permute.xlu0 0
        %500 = vperm.xlu0 %499, %v194
        %v501 = vpop.permute.xlu0 %500
        %504 = vset.pattern.permute.xlu0 0
        %505 = vperm.xlu0 %504, %v195
        %v506 = vpop.permute.xlu0 %505
        %509 = vset.pattern.permute.xlu0 0
        %510 = vperm.xlu0 %509, %v196
        %v511 = vpop.permute.xlu0 %510
        %514 = vset.pattern.permute.xlu0 0
        %515 = vperm.xlu0 %514, %v197
        %v516 = vpop.permute.xlu0 %515
        %519 = vset.pattern.permute.xlu0 0
        %520 = vperm.xlu0 %519, %v198
        %v521 = vpop.permute.xlu0 %520
        %524 = vset.pattern.permute.xlu0 0
        %525 = vperm.xlu0 %524, %v199
        %v526 = vpop.permute.xlu0 %525
        %529 = vset.pattern.permute.xlu0 0
        %530 = vperm.xlu0 %529, %v200
        %v531 = vpop.permute.xlu0 %530
        %534 = vset.pattern.permute.xlu0 0
        %535 = vperm.xlu0 %534, %v201
        %v536 = vpop.permute.xlu0 %535
        %539 = vset.pattern.permute.xlu0 0
        %540 = vperm.xlu0 %539, %v202
        %v541 = vpop.permute.xlu0 %540
        %544 = vset.pattern.permute.xlu0 0
        %545 = vperm.xlu0 %544, %v203
        %v546 = vpop.permute.xlu0 %545
        %549 = vset.pattern.permute.xlu0 0
        %550 = vperm.xlu0 %549, %v204
        %v551 = vpop.permute.xlu0 %550
        %554 = vset.pattern.permute.xlu0 0
        %555 = vperm.xlu0 %554, %v205
        %v556 = vpop.permute.xlu0 %555
        %559 = vset.pattern.permute.xlu0 0
        %560 = vperm.xlu0 %559, %v206
        %v561 = vpop.permute.xlu0 %560
        %564 = vset.pattern.permute.xlu0 0
        %565 = vperm.xlu0 %564, %v207
        %v566 = vpop.permute.xlu0 %565
        %569 = vset.pattern.permute.xlu0 0
        %570 = vperm.xlu0 %569, %v208
        %v571 = vpop.permute.xlu0 %570
        %574 = vset.pattern.permute.xlu0 0
        %575 = vperm.xlu0 %574, %v209
        %v576 = vpop.permute.xlu0 %575
        %579 = vset.pattern.permute.xlu0 0
        %580 = vperm.xlu0 %579, %v210
        %v581 = vpop.permute.xlu0 %580
        %584 = vset.pattern.permute.xlu0 0
        %585 = vperm.xlu0 %584, %v211
        %v586 = vpop.permute.xlu0 %585
        %589 = vset.pattern.permute.xlu0 0
        %590 = vperm.xlu0 %589, %v212
        %v591 = vpop.permute.xlu0 %590
        %594 = vset.pattern.permute.xlu0 0
        %595 = vperm.xlu0 %594, %v213
        %v596 = vpop.permute.xlu0 %595
        %599 = vset.pattern.permute.xlu0 0
        %600 = vperm.xlu0 %599, %v214
        %v601 = vpop.permute.xlu0 %600
        %604 = vset.pattern.permute.xlu0 0
        %605 = vperm.xlu0 %604, %v215
        %v606 = vpop.permute.xlu0 %605
        %609 = vset.pattern.permute.xlu0 0
        %610 = vperm.xlu0 %609, %v216
        %v611 = vpop.permute.xlu0 %610
        %614 = vset.pattern.permute.xlu0 0
        %615 = vperm.xlu0 %614, %v217
        %v616 = vpop.permute.xlu0 %615
        %619 = vset.pattern.permute.xlu0 0
        %620 = vperm.xlu0 %619, %v218
        %v621 = vpop.permute.xlu0 %620
        %624 = vset.pattern.permute.xlu0 0
        %625 = vperm.xlu0 %624, %v219
        %v626 = vpop.permute.xlu0 %625
        %629 = vset.pattern.permute.xlu0 0
        %630 = vperm.xlu0 %629, %v220
        %v631 = vpop.permute.xlu0 %630
        %634 = vset.pattern.permute.xlu0 0
        %635 = vperm.xlu0 %634, %v221
        %v636 = vpop.permute.xlu0 %635
        %639 = vset.pattern.permute.xlu0 0
        %640 = vperm.xlu0 %639, %v222
        %v641 = vpop.permute.xlu0 %640
        %644 = vset.pattern.permute.xlu0 0
        %645 = vperm.xlu0 %644, %v223
        %v646 = vpop.permute.xlu0 %645
        %649 = vset.pattern.permute.xlu0 0
        %650 = vperm.xlu0 %649, %v224
        %v651 = vpop.permute.xlu0 %650
        %654 = vset.pattern.permute.xlu0 0
        %655 = vperm.xlu0 %654, %v225
        %v656 = vpop.permute.xlu0 %655
        %659 = vset.pattern.permute.xlu0 0
        %660 = vperm.xlu0 %659, %v226
        %v661 = vpop.permute.xlu0 %660
        %664 = vset.pattern.permute.xlu0 0
        %665 = vperm.xlu0 %664, %v227
        %v666 = vpop.permute.xlu0 %665
        %669 = vset.pattern.permute.xlu0 0
        %670 = vperm.xlu0 %669, %v228
        %v671 = vpop.permute.xlu0 %670
        %674 = vset.pattern.permute.xlu0 0
        %675 = vperm.xlu0 %674, %v229
        %v676 = vpop.permute.xlu0 %675
        %679 = vset.pattern.permute.xlu0 0
        %680 = vperm.xlu0 %679, %v230
        %v681 = vpop.permute.xlu0 %680
        %684 = vset.pattern.permute.xlu0 0
        %685 = vperm.xlu0 %684, %v231
        %v686 = vpop.permute.xlu0 %685
        %689 = vset.pattern.permute.xlu0 0
        %690 = vperm.xlu0 %689, %v232
        %v691 = vpop.permute.xlu0 %690
        %694 = vset.pattern.permute.xlu0 0
        %695 = vperm.xlu0 %694, %v233
        %v696 = vpop.permute.xlu0 %695
        %699 = vset.pattern.permute.xlu0 0
        %700 = vperm.xlu0 %699, %v234
        %v701 = vpop.permute.xlu0 %700
        %704 = vset.pattern.permute.xlu0 0
        %705 = vperm.xlu0 %704, %v235
        %v706 = vpop.permute.xlu0 %705
        %709 = vset.pattern.permute.xlu0 0
        %710 = vperm.xlu0 %709, %v236
        %v711 = vpop.permute.xlu0 %710
        %714 = vset.pattern.permute.xlu0 0
        %715 = vperm.xlu0 %714, %v237
        %v716 = vpop.permute.xlu0 %715
        %719 = vset.pattern.permute.xlu0 0
        %720 = vperm.xlu0 %719, %v238
        %v721 = vpop.permute.xlu0 %720
        %724 = vset.pattern.permute.xlu0 0
        %725 = vperm.xlu0 %724, %v239
        %v726 = vpop.permute.xlu0 %725
        %729 = vset.pattern.permute.xlu0 0
        %730 = vperm.xlu0 %729, %v240
        %v731 = vpop.permute.xlu0 %730
        %734 = vset.pattern.permute.xlu0 0
        %735 = vperm.xlu0 %734, %v241
        %v736 = vpop.permute.xlu0 %735
        %739 = vset.pattern.permute.xlu0 0
        %740 = vperm.xlu0 %739, %v242
        %v741 = vpop.permute.xlu0 %740
        %744 = vset.pattern.permute.xlu0 0
        %745 = vperm.xlu0 %744, %v243
        %v746 = vpop.permute.xlu0 %745
        %749 = vset.pattern.permute.xlu0 0
        %750 = vperm.xlu0 %749, %v244
        %v751 = vpop.permute.xlu0 %750
        %754 = vset.pattern.permute.xlu0 0
        %755 = vperm.xlu0 %754, %v245
        %v756 = vpop.permute.xlu0 %755
        %759 = vset.pattern.permute.xlu0 0
        %760 = vperm.xlu0 %759, %v246
        %v761 = vpop.permute.xlu0 %760
        %764 = vset.pattern.permute.xlu0 0
        %765 = vperm.xlu0 %764, %v247
        %v766 = vpop.permute.xlu0 %765
        %769 = vset.pattern.permute.xlu0 0
        %770 = vperm.xlu0 %769, %v248
        %v771 = vpop.permute.xlu0 %770
        %774 = vset.pattern.permute.xlu0 0
        %775 = vperm.xlu0 %774, %v249
        %v776 = vpop.permute.xlu0 %775
        %779 = vset.pattern.permute.xlu0 0
        %780 = vperm.xlu0 %779, %v250
        %v781 = vpop.permute.xlu0 %780
        %784 = vset.pattern.permute.xlu0 0
        %785 = vperm.xlu0 %784, %v251
        %v786 = vpop.permute.xlu0 %785
        %789 = vset.pattern.permute.xlu0 0
        %790 = vperm.xlu0 %789, %v252
        %v791 = vpop.permute.xlu0 %790
        %794 = vset.pattern.permute.xlu0 0
        %795 = vperm.xlu0 %794, %v253
        %v796 = vpop.permute.xlu0 %795
        %799 = vset.pattern.permute.xlu0 0
        %800 = vperm.xlu0 %799, %v254
        %v801 = vpop.permute.xlu0 %800
        %804 = vset.pattern.permute.xlu0 0
        %805 = vperm.xlu0 %804, %v255
        %v806 = vpop.permute.xlu0 %805
        %809 = vset.pattern.permute.xlu0 0
        %810 = vperm.xlu0 %809, %v256
        %v811 = vpop.permute.xlu0 %810
        %814 = vset.pattern.permute.xlu0 0
        %815 = vperm.xlu0 %814, %v257
        %v816 = vpop.permute.xlu0 %815
        %819 = vset.pattern.permute.xlu0 0
        %820 = vperm.xlu0 %819, %v258
        %v821 = vpop.permute.xlu0 %820
        %824 = vset.pattern.permute.xlu0 0
        %825 = vperm.xlu0 %824, %v259
        %v826 = vpop.permute.xlu0 %825
        %829 = vset.pattern.permute.xlu0 0
        %830 = vperm.xlu0 %829, %v260
        %v831 = vpop.permute.xlu0 %830
        %834 = vset.pattern.permute.xlu0 0
        %835 = vperm.xlu0 %834, %v261
        %v836 = vpop.permute.xlu0 %835
        %839 = vset.pattern.permute.xlu0 0
        %840 = vperm.xlu0 %839, %v262
        %v841 = vpop.permute.xlu0 %840
        %844 = vset.pattern.permute.xlu0 0
        %845 = vperm.xlu0 %844, %v263
        %v846 = vpop.permute.xlu0 %845
        %849 = vset.pattern.permute.xlu0 0
        %850 = vperm.xlu0 %849, %v264
        %v851 = vpop.permute.xlu0 %850
        %854 = vset.pattern.permute.xlu0 0
        %855 = vperm.xlu0 %854, %v265
        %v856 = vpop.permute.xlu0 %855
        %859 = vset.pattern.permute.xlu0 0
        %860 = vperm.xlu0 %859, %v266
        %v861 = vpop.permute.xlu0 %860
        %864 = vset.pattern.permute.xlu0 0
        %865 = vperm.xlu0 %864, %v267
        %v866 = vpop.permute.xlu0 %865
        %869 = vset.pattern.permute.xlu0 0
        %870 = vperm.xlu0 %869, %v268
        %v871 = vpop.permute.xlu0 %870
        %874 = vset.pattern.permute.xlu0 0
        %875 = vperm.xlu0 %874, %v269
        %v876 = vpop.permute.xlu0 %875
        %879 = vset.pattern.permute.xlu0 0
        %880 = vperm.xlu0 %879, %v270
        %v881 = vpop.permute.xlu0 %880
        %884 = vset.pattern.permute.xlu0 0
        %885 = vperm.xlu0 %884, %v271
        %v886 = vpop.permute.xlu0 %885
        %889 = vset.pattern.permute.xlu0 0
        %890 = vperm.xlu0 %889, %v272
        %v891 = vpop.permute.xlu0 %890
        %894 = vset.pattern.permute.xlu0 0
        %895 = vperm.xlu0 %894, %v273
        %v896 = vpop.permute.xlu0 %895
        %899 = vset.pattern.permute.xlu0 0
        %900 = vperm.xlu0 %899, %v274
        %v901 = vpop.permute.xlu0 %900
        %904 = vset.pattern.permute.xlu0 0
        %905 = vperm.xlu0 %904, %v275
        %v906 = vpop.permute.xlu0 %905
        %909 = vset.pattern.permute.xlu0 0
        %910 = vperm.xlu0 %909, %v276
        %v911 = vpop.permute.xlu0 %910
        %914 = vset.pattern.permute.xlu0 0
        %915 = vperm.xlu0 %914, %v277
        %v916 = vpop.permute.xlu0 %915
        %919 = vset.pattern.permute.xlu0 0
        %920 = vperm.xlu0 %919, %v278
        %v921 = vpop.permute.xlu0 %920
        %924 = vset.pattern.permute.xlu0 0
        %925 = vperm.xlu0 %924, %v279
        %v926 = vpop.permute.xlu0 %925
        %929 = vset.pattern.permute.xlu0 0
        %930 = vperm.xlu0 %929, %v280
        %v931 = vpop.permute.xlu0 %930
        %934 = vset.pattern.permute.xlu0 0
        %935 = vperm.xlu0 %934, %v281
        %v936 = vpop.permute.xlu0 %935
        %939 = vset.pattern.permute.xlu0 0
        %940 = vperm.xlu0 %939, %v282
        %v941 = vpop.permute.xlu0 %940
        %944 = vset.pattern.permute.xlu0 0
        %945 = vperm.xlu0 %944, %v283
        %v946 = vpop.permute.xlu0 %945
        %949 = vset.pattern.permute.xlu0 0
        %950 = vperm.xlu0 %949, %v284
        %v951 = vpop.permute.xlu0 %950
        %954 = vset.pattern.permute.xlu0 0
        %955 = vperm.xlu0 %954, %v285
        %v956 = vpop.permute.xlu0 %955
        %959 = vset.pattern.permute.xlu0 0
        %960 = vperm.xlu0 %959, %v286
        %v961 = vpop.permute.xlu0 %960
        %964 = vset.pattern.permute.xlu0 0
        %965 = vperm.xlu0 %964, %v287
        %v966 = vpop.permute.xlu0 %965
        %969 = vset.pattern.permute.xlu0 0
        %970 = vperm.xlu0 %969, %v288
        %v971 = vpop.permute.xlu0 %970
        %974 = vset.pattern.permute.xlu0 0
        %975 = vperm.xlu0 %974, %v289
        %v976 = vpop.permute.xlu0 %975
        %979 = vset.pattern.permute.xlu0 0
        %980 = vperm.xlu0 %979, %v290
        %v981 = vpop.permute.xlu0 %980
        %984 = vset.pattern.permute.xlu0 0
        %985 = vperm.xlu0 %984, %v291
        %v986 = vpop.permute.xlu0 %985
        %989 = vset.pattern.permute.xlu0 0
        %990 = vperm.xlu0 %989, %v292
        %v991 = vpop.permute.xlu0 %990
        %994 = vset.pattern.permute.xlu0 0
        %995 = vperm.xlu0 %994, %v293
        %v996 = vpop.permute.xlu0 %995
        %999 = vset.pattern.permute.xlu0 0
        %1000 = vperm.xlu0 %999, %v294
        %v1001 = vpop.permute.xlu0 %1000
        %1004 = vset.pattern.permute.xlu0 0
        %1005 = vperm.xlu0 %1004, %v295
        %v1006 = vpop.permute.xlu0 %1005
        %1009 = vset.pattern.permute.xlu0 0
        %1010 = vperm.xlu0 %1009, %v296
        %v1011 = vpop.permute.xlu0 %1010
        %1014 = vset.pattern.permute.xlu0 0
        %1015 = vperm.xlu0 %1014, %v297
        %v1016 = vpop.permute.xlu0 %1015
        %1019 = vset.pattern.permute.xlu0 0
        %1020 = vperm.xlu0 %1019, %v298
        %v1021 = vpop.permute.xlu0 %1020
        %1024 = vset.pattern.permute.xlu0 0
        %1025 = vperm.xlu0 %1024, %v299
        %v1026 = vpop.permute.xlu0 %1025
        %1029 = vset.pattern.permute.xlu0 0
        %1030 = vperm.xlu0 %1029, %v300
        %v1031 = vpop.permute.xlu0 %1030
        %1034 = vset.pattern.permute.xlu0 0
        %1035 = vperm.xlu0 %1034, %v301
        %v1036 = vpop.permute.xlu0 %1035
        %1039 = vset.pattern.permute.xlu0 0
        %1040 = vperm.xlu0 %1039, %v302
        %v1041 = vpop.permute.xlu0 %1040
        %1044 = vset.pattern.permute.xlu0 0
        %1045 = vperm.xlu0 %1044, %v303
        %v1046 = vpop.permute.xlu0 %1045
        %1049 = vset.pattern.permute.xlu0 0
        %1050 = vperm.xlu0 %1049, %v304
        %v1051 = vpop.permute.xlu0 %1050
        %1054 = vset.pattern.permute.xlu0 0
        %1055 = vperm.xlu0 %1054, %v305
        %v1056 = vpop.permute.xlu0 %1055
        %1059 = vset.pattern.permute.xlu0 0
        %1060 = vperm.xlu0 %1059, %v306
        %v1061 = vpop.permute.xlu0 %1060
        %1064 = vset.pattern.permute.xlu0 0
        %1065 = vperm.xlu0 %1064, %v307
        %v1066 = vpop.permute.xlu0 %1065
        %1069 = vset.pattern.permute.xlu0 0
        %1070 = vperm.xlu0 %1069, %v308
        %v1071 = vpop.permute.xlu0 %1070
        %1074 = vset.pattern.permute.xlu0 0
        %1075 = vperm.xlu0 %1074, %v309
        %v1076 = vpop.permute.xlu0 %1075
        %1079 = vset.pattern.permute.xlu0 0
        %1080 = vperm.xlu0 %1079, %v310
        %v1081 = vpop.permute.xlu0 %1080
        %1084 = vset.pattern.permute.xlu0 0
        %1085 = vperm.xlu0 %1084, %v311
        %v1086 = vpop.permute.xlu0 %1085
        %1089 = vset.pattern.permute.xlu0 0
        %1090 = vperm.xlu0 %1089, %v312
        %v1091 = vpop.permute.xlu0 %1090
        %1094 = vset.pattern.permute.xlu0 0
        %1095 = vperm.xlu0 %1094, %v313
        %v1096 = vpop.permute.xlu0 %1095
        %1099 = vset.pattern.permute.xlu0 0
        %1100 = vperm.xlu0 %1099, %v314
        %v1101 = vpop.permute.xlu0 %1100
        %1104 = vset.pattern.permute.xlu0 0
        %1105 = vperm.xlu0 %1104, %v315
        %v1106 = vpop.permute.xlu0 %1105
        %1109 = vset.pattern.permute.xlu0 0
        %1110 = vperm.xlu0 %1109, %v316
        %v1111 = vpop.permute.xlu0 %1110
        %1114 = vset.pattern.permute.xlu0 0
        %1115 = vperm.xlu0 %1114, %v317
        %v1116 = vpop.permute.xlu0 %1115
        %1119 = vset.pattern.permute.xlu0 0
        %1120 = vperm.xlu0 %1119, %v318
        %v1121 = vpop.permute.xlu0 %1120
        %1124 = vset.pattern.permute.xlu0 0
        %1125 = vperm.xlu0 %1124, %v319
        %v1126 = vpop.permute.xlu0 %1125
        %1129 = vset.pattern.permute.xlu0 0
        %1130 = vperm.xlu0 %1129, %v320
        %v1131 = vpop.permute.xlu0 %1130
        %1134 = vset.pattern.permute.xlu0 0
        %1135 = vperm.xlu0 %1134, %v321
        %v1136 = vpop.permute.xlu0 %1135
        %1139 = vset.pattern.permute.xlu0 0
        %1140 = vperm.xlu0 %1139, %v322
        %v1141 = vpop.permute.xlu0 %1140
        %1144 = vset.pattern.permute.xlu0 0
        %1145 = vperm.xlu0 %1144, %v323
        %v1146 = vpop.permute.xlu0 %1145
        %1149 = vset.pattern.permute.xlu0 0
        %1150 = vperm.xlu0 %1149, %v324
        %v1151 = vpop.permute.xlu0 %1150
        %1154 = vset.pattern.permute.xlu0 0
        %1155 = vperm.xlu0 %1154, %v325
        %v1156 = vpop.permute.xlu0 %1155
        %1159 = vset.pattern.permute.xlu0 0
        %1160 = vperm.xlu0 %1159, %v326
        %v1161 = vpop.permute.xlu0 %1160
        %1164 = vset.pattern.permute.xlu0 0
        %1165 = vperm.xlu0 %1164, %v327
        %v1166 = vpop.permute.xlu0 %1165
        %1169 = vset.pattern.permute.xlu0 0
        %1170 = vperm.xlu0 %1169, %v328
        %v1171 = vpop.permute.xlu0 %1170
        %1174 = vset.pattern.permute.xlu0 0
        %1175 = vperm.xlu0 %1174, %v329
        %v1176 = vpop.permute.xlu0 %1175
        %1179 = vset.pattern.permute.xlu0 0
        %1180 = vperm.xlu0 %1179, %v330
        %v1181 = vpop.permute.xlu0 %1180
        %1184 = vset.pattern.permute.xlu0 0
        %1185 = vperm.xlu0 %1184, %v331
        %v1186 = vpop.permute.xlu0 %1185
        %1189 = vset.pattern.permute.xlu0 0
        %1190 = vperm.xlu0 %1189, %v332
        %v1191 = vpop.permute.xlu0 %1190
        %1194 = vset.pattern.permute.xlu0 0
        %1195 = vperm.xlu0 %1194, %v333
        %v1196 = vpop.permute.xlu0 %1195
        %1199 = vset.pattern.permute.xlu0 0
        %1200 = vperm.xlu0 %1199, %v334
        %v1201 = vpop.permute.xlu0 %1200
        %1204 = vset.pattern.permute.xlu0 0
        %1205 = vperm.xlu0 %1204, %v335
        %v1206 = vpop.permute.xlu0 %1205
        %1209 = vset.pattern.permute.xlu0 0
        %1210 = vperm.xlu0 %1209, %v336
        %v1211 = vpop.permute.xlu0 %1210
        %1214 = vset.pattern.permute.xlu0 0
        %1215 = vperm.xlu0 %1214, %v337
        %v1216 = vpop.permute.xlu0 %1215
        %1219 = vset.pattern.permute.xlu0 0
        %1220 = vperm.xlu0 %1219, %v338
        %v1221 = vpop.permute.xlu0 %1220
        %1224 = vset.pattern.permute.xlu0 0
        %1225 = vperm.xlu0 %1224, %v339
        %v1226 = vpop.permute.xlu0 %1225
        %1229 = vset.pattern.permute.xlu0 0
        %1230 = vperm.xlu0 %1229, %v340
        %v1231 = vpop.permute.xlu0 %1230
        %1234 = vset.pattern.permute.xlu0 0
        %1235 = vperm.xlu0 %1234, %v341
        %v1236 = vpop.permute.xlu0 %1235
        %1239 = vset.pattern.permute.xlu0 0
        %1240 = vperm.xlu0 %1239, %v342
        %v1241 = vpop.permute.xlu0 %1240
        %1244 = vset.pattern.permute.xlu0 0
        %1245 = vperm.xlu0 %1244, %v343
        %v1246 = vpop.permute.xlu0 %1245
        %1249 = vset.pattern.permute.xlu0 0
        %1250 = vperm.xlu0 %1249, %v344
        %v1251 = vpop.permute.xlu0 %1250
        %1254 = vset.pattern.permute.xlu0 0
        %1255 = vperm.xlu0 %1254, %v345
        %v1256 = vpop.permute.xlu0 %1255
        %1259 = vset.pattern.permute.xlu0 0
        %1260 = vperm.xlu0 %1259, %v346
        %v1261 = vpop.permute.xlu0 %1260
        %1264 = vset.pattern.permute.xlu0 0
        %1265 = vperm.xlu0 %1264, %v347
        %v1266 = vpop.permute.xlu0 %1265
        %1269 = vset.pattern.permute.xlu0 0
        %1270 = vperm.xlu0 %1269, %v348
        %v1271 = vpop.permute.xlu0 %1270
        %1274 = vset.pattern.permute.xlu0 0
        %1275 = vperm.xlu0 %1274, %v349
        %v1276 = vpop.permute.xlu0 %1275
        %1279 = vset.pattern.permute.xlu0 0
        %1280 = vperm.xlu0 %1279, %v350
        %v1281 = vpop.permute.xlu0 %1280
        %1284 = vset.pattern.permute.xlu0 0
        %1285 = vperm.xlu0 %1284, %v351
        %v1286 = vpop.permute.xlu0 %1285
        %1289 = vset.pattern.permute.xlu0 0
        %1290 = vperm.xlu0 %1289, %v352
        %v1291 = vpop.permute.xlu0 %1290
        %1294 = vset.pattern.permute.xlu0 0
        %1295 = vperm.xlu0 %1294, %v353
        %v1296 = vpop.permute.xlu0 %1295
        %1299 = vset.pattern.permute.xlu0 0
        %1300 = vperm.xlu0 %1299, %v354
        %v1301 = vpop.permute.xlu0 %1300
        %1304 = vset.pattern.permute.xlu0 0
        %1305 = vperm.xlu0 %1304, %v355
        %v1306 = vpop.permute.xlu0 %1305
        %1309 = vset.pattern.permute.xlu0 0
        %1310 = vperm.xlu0 %1309, %v356
        %v1311 = vpop.permute.xlu0 %1310
        %1314 = vset.pattern.permute.xlu0 0
        %1315 = vperm.xlu0 %1314, %v357
        %v1316 = vpop.permute.xlu0 %1315
        %1319 = vset.pattern.permute.xlu0 0
        %1320 = vperm.xlu0 %1319, %v358
        %v1321 = vpop.permute.xlu0 %1320
        %1324 = vset.pattern.permute.xlu0 0
        %1325 = vperm.xlu0 %1324, %v359
        %v1326 = vpop.permute.xlu0 %1325
        %1329 = vset.pattern.permute.xlu0 0
        %1330 = vperm.xlu0 %1329, %v360
        %v1331 = vpop.permute.xlu0 %1330
        %1334 = vset.pattern.permute.xlu0 0
        %1335 = vperm.xlu0 %1334, %v361
        %v1336 = vpop.permute.xlu0 %1335
        %1339 = vset.pattern.permute.xlu0 0
        %1340 = vperm.xlu0 %1339, %v362
        %v1341 = vpop.permute.xlu0 %1340
        %1344 = vset.pattern.permute.xlu0 0
        %1345 = vperm.xlu0 %1344, %v363
        %v1346 = vpop.permute.xlu0 %1345
        %1349 = vset.pattern.permute.xlu0 0
        %1350 = vperm.xlu0 %1349, %v364
        %v1351 = vpop.permute.xlu0 %1350
        %1354 = vset.pattern.permute.xlu0 0
        %1355 = vperm.xlu0 %1354, %v365
        %v1356 = vpop.permute.xlu0 %1355
        %1359 = vset.pattern.permute.xlu0 0
        %1360 = vperm.xlu0 %1359, %v366
        %v1361 = vpop.permute.xlu0 %1360
        %1364 = vset.pattern.permute.xlu0 0
        %1365 = vperm.xlu0 %1364, %v367
        %v1366 = vpop.permute.xlu0 %1365
        %1369 = vset.pattern.permute.xlu0 0
        %1370 = vperm.xlu0 %1369, %v368
        %v1371 = vpop.permute.xlu0 %1370
        %1374 = vset.pattern.permute.xlu0 0
        %1375 = vperm.xlu0 %1374, %v369
        %v1376 = vpop.permute.xlu0 %1375
        %1379 = vset.pattern.permute.xlu0 0
        %1380 = vperm.xlu0 %1379, %v370
        %v1381 = vpop.permute.xlu0 %1380
        %1384 = vset.pattern.permute.xlu0 0
        %1385 = vperm.xlu0 %1384, %v371
        %v1386 = vpop.permute.xlu0 %1385
        %1389 = vset.pattern.permute.xlu0 0
        %1390 = vperm.xlu0 %1389, %v372
        %v1391 = vpop.permute.xlu0 %1390
        %1394 = vset.pattern.permute.xlu0 0
        %1395 = vperm.xlu0 %1394, %v373
        %v1396 = vpop.permute.xlu0 %1395
        %1399 = vset.pattern.permute.xlu0 0
        %1400 = vperm.xlu0 %1399, %v374
        %v1401 = vpop.permute.xlu0 %1400
        %1404 = vset.pattern.permute.xlu0 0
        %1405 = vperm.xlu0 %1404, %v375
        %v1406 = vpop.permute.xlu0 %1405
        %1409 = vset.pattern.permute.xlu0 0
        %1410 = vperm.xlu0 %1409, %v376
        %v1411 = vpop.permute.xlu0 %1410
        %1414 = vset.pattern.permute.xlu0 0
        %1415 = vperm.xlu0 %1414, %v377
        %v1416 = vpop.permute.xlu0 %1415
        %1419 = vset.pattern.permute.xlu0 0
        %1420 = vperm.xlu0 %1419, %v378
        %v1421 = vpop.permute.xlu0 %1420
        %1424 = vset.pattern.permute.xlu0 0
        %1425 = vperm.xlu0 %1424, %v379
        %v1426 = vpop.permute.xlu0 %1425
        %1429 = vset.pattern.permute.xlu0 0
        %1430 = vperm.xlu0 %1429, %v380
        %v1431 = vpop.permute.xlu0 %1430
        %1434 = vset.pattern.permute.xlu0 0
        %1435 = vperm.xlu0 %1434, %v381
        %v1436 = vpop.permute.xlu0 %1435
        %1439 = vset.pattern.permute.xlu0 0
        %1440 = vperm.xlu0 %1439, %v382
        %v1441 = vpop.permute.xlu0 %1440
        %1444 = vset.pattern.permute.xlu0 0
        %1445 = vperm.xlu0 %1444, %v383
        %v1446 = vpop.permute.xlu0 %1445
        %1449 = vset.pattern.permute.xlu0 0
        %1450 = vperm.xlu0 %1449, %v384
        %v1451 = vpop.permute.xlu0 %1450
        %1454 = vset.pattern.permute.xlu0 0
        %1455 = vperm.xlu0 %1454, %v385
        %v1456 = vpop.permute.xlu0 %1455
        %1459 = vset.pattern.permute.xlu0 0
        %1460 = vperm.xlu0 %1459, %v386
        %v1461 = vpop.permute.xlu0 %1460
        %1464 = vset.pattern.permute.xlu0 0
        %1465 = vperm.xlu0 %1464, %v387
        %v1466 = vpop.permute.xlu0 %1465
        %1469 = vset.pattern.permute.xlu0 0
        %1470 = vperm.xlu0 %1469, %v388
        %v1471 = vpop.permute.xlu0 %1470
        %1474 = vset.pattern.permute.xlu0 0
        %1475 = vperm.xlu0 %1474, %v389
        %v1476 = vpop.permute.xlu0 %1475
        %1479 = vset.pattern.permute.xlu0 0
        %1480 = vperm.xlu0 %1479, %v390
        %v1481 = vpop.permute.xlu0 %1480
        %1484 = vset.pattern.permute.xlu0 0
        %1485 = vperm.xlu0 %1484, %v391
        %v1486 = vpop.permute.xlu0 %1485
        %1489 = vset.pattern.permute.xlu0 0
        %1490 = vperm.xlu0 %1489, %v392
        %v1491 = vpop.permute.xlu0 %1490
        %1494 = vset.pattern.permute.xlu0 0
        %1495 = vperm.xlu0 %1494, %v393
        %v1496 = vpop.permute.xlu0 %1495
        %1499 = vset.pattern.permute.xlu0 0
        %1500 = vperm.xlu0 %1499, %v394
        %v1501 = vpop.permute.xlu0 %1500
        %1504 = vset.pattern.permute.xlu0 0
        %1505 = vperm.xlu0 %1504, %v395
        %v1506 = vpop.permute.xlu0 %1505
        %1509 = vset.pattern.permute.xlu0 0
        %1510 = vperm.xlu0 %1509, %v396
        %v1511 = vpop.permute.xlu0 %1510
        %1514 = vset.pattern.permute.xlu0 0
        %1515 = vperm.xlu0 %1514, %v397
        %v1516 = vpop.permute.xlu0 %1515
        %1519 = vset.pattern.permute.xlu0 0
        %1520 = vperm.xlu0 %1519, %v398
        %v1521 = vpop.permute.xlu0 %1520
        %1524 = vset.pattern.permute.xlu0 0
        %1525 = vperm.xlu0 %1524, %v399
        %v1526 = vpop.permute.xlu0 %1525
        %1529 = vset.pattern.permute.xlu0 0
        %1530 = vperm.xlu0 %1529, %v400
        %v1531 = vpop.permute.xlu0 %1530
        %1534 = vset.pattern.permute.xlu0 0
        %1535 = vperm.xlu0 %1534, %v401
        %v1536 = vpop.permute.xlu0 %1535
        %1539 = vset.pattern.permute.xlu0 0
        %1540 = vperm.xlu0 %1539, %v402
        %v1541 = vpop.permute.xlu0 %1540
        %1544 = vset.pattern.permute.xlu0 0
        %1545 = vperm.xlu0 %1544, %v403
        %v1546 = vpop.permute.xlu0 %1545
        %1549 = vset.pattern.permute.xlu0 0
        %1550 = vperm.xlu0 %1549, %v404
        %v1551 = vpop.permute.xlu0 %1550
        %1554 = vset.pattern.permute.xlu0 0
        %1555 = vperm.xlu0 %1554, %v405
        %v1556 = vpop.permute.xlu0 %1555
        %1559 = vset.pattern.permute.xlu0 0
        %1560 = vperm.xlu0 %1559, %v406
        %v1561 = vpop.permute.xlu0 %1560
        %1564 = vset.pattern.permute.xlu0 0
        %1565 = vperm.xlu0 %1564, %v407
        %v1566 = vpop.permute.xlu0 %1565
        %1569 = vset.pattern.permute.xlu0 0
        %1570 = vperm.xlu0 %1569, %v408
        %v1571 = vpop.permute.xlu0 %1570
        %1574 = vset.pattern.permute.xlu0 0
        %1575 = vperm.xlu0 %1574, %v409
        %v1576 = vpop.permute.xlu0 %1575
        %1579 = vset.pattern.permute.xlu0 0
        %1580 = vperm.xlu0 %1579, %v410
        %v1581 = vpop.permute.xlu0 %1580
        %1584 = vset.pattern.permute.xlu0 0
        %1585 = vperm.xlu0 %1584, %v411
        %v1586 = vpop.permute.xlu0 %1585
        %1589 = vset.pattern.permute.xlu0 0
        %1590 = vperm.xlu0 %1589, %v412
        %v1591 = vpop.permute.xlu0 %1590
        %1594 = vset.pattern.permute.xlu0 0
        %1595 = vperm.xlu0 %1594, %v413
        %v1596 = vpop.permute.xlu0 %1595
        %1599 = vset.pattern.permute.xlu0 0
        %1600 = vperm.xlu0 %1599, %v414
        %v1601 = vpop.permute.xlu0 %1600
        %1604 = vset.pattern.permute.xlu0 0
        %1605 = vperm.xlu0 %1604, %v415
        %v1606 = vpop.permute.xlu0 %1605
        %1609 = vset.pattern.permute.xlu0 0
        %1610 = vperm.xlu0 %1609, %v416
        %v1611 = vpop.permute.xlu0 %1610
        %1614 = vset.pattern.permute.xlu0 0
        %1615 = vperm.xlu0 %1614, %v417
        %v1616 = vpop.permute.xlu0 %1615
        %1619 = vset.pattern.permute.xlu0 0
        %1620 = vperm.xlu0 %1619, %v418
        %v1621 = vpop.permute.xlu0 %1620
        %1624 = vset.pattern.permute.xlu0 0
        %1625 = vperm.xlu0 %1624, %v419
        %v1626 = vpop.permute.xlu0 %1625
        %1629 = vset.pattern.permute.xlu0 0
        %1630 = vperm.xlu0 %1629, %v420
        %v1631 = vpop.permute.xlu0 %1630
        %1634 = vset.pattern.permute.xlu0 0
        %1635 = vperm.xlu0 %1634, %v421
        %v1636 = vpop.permute.xlu0 %1635
        %1639 = vset.pattern.permute.xlu0 0
        %1640 = vperm.xlu0 %1639, %v422
        %v1641 = vpop.permute.xlu0 %1640
        %1644 = vset.pattern.permute.xlu0 0
        %1645 = vperm.xlu0 %1644, %v423
        %v1646 = vpop.permute.xlu0 %1645
        %1649 = vset.pattern.permute.xlu0 0
        %1650 = vperm.xlu0 %1649, %v424
        %v1651 = vpop.permute.xlu0 %1650
        %1654 = vset.pattern.permute.xlu0 0
        %1655 = vperm.xlu0 %1654, %v425
        %v1656 = vpop.permute.xlu0 %1655
        %1659 = vset.pattern.permute.xlu0 0
        %1660 = vperm.xlu0 %1659, %v426
        %v1661 = vpop.permute.xlu0 %1660
        %1664 = vset.pattern.permute.xlu0 0
        %1665 = vperm.xlu0 %1664, %v427
        %v1666 = vpop.permute.xlu0 %1665
        %1669 = vset.pattern.permute.xlu0 0
        %1670 = vperm.xlu0 %1669, %v428
        %v1671 = vpop.permute.xlu0 %1670
        %1674 = vset.pattern.permute.xlu0 0
        %1675 = vperm.xlu0 %1674, %v429
        %v1676 = vpop.permute.xlu0 %1675
        %1679 = vset.pattern.permute.xlu0 0
        %1680 = vperm.xlu0 %1679, %v430
        %v1681 = vpop.permute.xlu0 %1680
        %1684 = vset.pattern.permute.xlu0 0
        %1685 = vperm.xlu0 %1684, %v431
        %v1686 = vpop.permute.xlu0 %1685
        %1689 = vset.pattern.permute.xlu0 0
        %1690 = vperm.xlu0 %1689, %v432
        %v1691 = vpop.permute.xlu0 %1690
        %1694 = vset.pattern.permute.xlu0 0
        %1695 = vperm.xlu0 %1694, %v433
        %v1696 = vpop.permute.xlu0 %1695
        %1699 = vset.pattern.permute.xlu0 0
        %1700 = vperm.xlu0 %1699, %v434
        %v1701 = vpop.permute.xlu0 %1700
        %1704 = vset.pattern.permute.xlu0 0
        %1705 = vperm.xlu0 %1704, %v435
        %v1706 = vpop.permute.xlu0 %1705
        %1709 = vset.pattern.permute.xlu0 0
        %1710 = vperm.xlu0 %1709, %v436
        %v1711 = vpop.permute.xlu0 %1710
        %1714 = vset.pattern.permute.xlu0 0
        %1715 = vperm.xlu0 %1714, %v437
        %v1716 = vpop.permute.xlu0 %1715
        %v1719 = vlaneseq
        %v1720 = vshrl.u32 %v1719, 7
        %v1721 = vsub.s32 0, %v1720
        %v1722 = vrot.slane %v181, %v1721
        %v1723 = vlaneseq
        %v1724 = vshrl.u32 %v1723, 7
        %v1725 = vsub.s32 1, %v1724
        %v1726 = vrot.slane %v181, %v1725
        %v1727 = vlaneseq
        %v1728 = vshrl.u32 %v1727, 7
        %v1729 = vsub.s32 2, %v1728
        %v1730 = vrot.slane %v181, %v1729
        %v1731 = vlaneseq
        %v1732 = vshrl.u32 %v1731, 7
        %v1733 = vsub.s32 3, %v1732
        %v1734 = vrot.slane %v181, %v1733
        %v1735 = vlaneseq
        %v1736 = vshrl.u32 %v1735, 7
        %v1737 = vsub.s32 4, %v1736
        %v1738 = vrot.slane %v181, %v1737
        %v1739 = vlaneseq
        %v1740 = vshrl.u32 %v1739, 7
        %v1741 = vsub.s32 5, %v1740
        %v1742 = vrot.slane %v181, %v1741
        %v1743 = vlaneseq
        %v1744 = vshrl.u32 %v1743, 7
        %v1745 = vsub.s32 6, %v1744
        %v1746 = vrot.slane %v181, %v1745
        %v1747 = vlaneseq
        %v1748 = vshrl.u32 %v1747, 7
        %v1749 = vsub.s32 7, %v1748
        %v1750 = vrot.slane %v181, %v1749
        %vm1759 = vcmp.lt.f32.partialorder %v441, %v1722
        %vm1760 = vcmp.lt.f32.partialorder %v441, %v1726
        %vm1761 = vcmp.lt.f32.partialorder %v441, %v1730
        %vm1762 = vcmp.lt.f32.partialorder %v441, %v1734
        %vm1763 = vcmp.lt.f32.partialorder %v441, %v1738
        %vm1764 = vcmp.lt.f32.partialorder %v441, %v1742
        %vm1765 = vcmp.lt.f32.partialorder %v441, %v1746
        %vm1766 = vcmp.lt.f32.partialorder %v441, %v1750
        %vm1767 = vcmp.lt.f32.partialorder %v446, %v1722
        %vm1768 = vcmp.lt.f32.partialorder %v446, %v1726
        %vm1769 = vcmp.lt.f32.partialorder %v446, %v1730
        %vm1770 = vcmp.lt.f32.partialorder %v446, %v1734
        %vm1771 = vcmp.lt.f32.partialorder %v446, %v1738
        %vm1772 = vcmp.lt.f32.partialorder %v446, %v1742
        %vm1773 = vcmp.lt.f32.partialorder %v446, %v1746
        %vm1774 = vcmp.lt.f32.partialorder %v446, %v1750
        %vm1775 = vcmp.lt.f32.partialorder %v451, %v1722
        %vm1776 = vcmp.lt.f32.partialorder %v451, %v1726
        %vm1777 = vcmp.lt.f32.partialorder %v451, %v1730
        %vm1778 = vcmp.lt.f32.partialorder %v451, %v1734
        %vm1779 = vcmp.lt.f32.partialorder %v451, %v1738
        %vm1780 = vcmp.lt.f32.partialorder %v451, %v1742
        %vm1781 = vcmp.lt.f32.partialorder %v451, %v1746
        %vm1782 = vcmp.lt.f32.partialorder %v451, %v1750
        %vm1783 = vcmp.lt.f32.partialorder %v456, %v1722
        %vm1784 = vcmp.lt.f32.partialorder %v456, %v1726
        %vm1785 = vcmp.lt.f32.partialorder %v456, %v1730
        %vm1786 = vcmp.lt.f32.partialorder %v456, %v1734
        %vm1787 = vcmp.lt.f32.partialorder %v456, %v1738
        %vm1788 = vcmp.lt.f32.partialorder %v456, %v1742
        %vm1789 = vcmp.lt.f32.partialorder %v456, %v1746
        %vm1790 = vcmp.lt.f32.partialorder %v456, %v1750
        %vm1791 = vcmp.lt.f32.partialorder %v461, %v1722
        %vm1792 = vcmp.lt.f32.partialorder %v461, %v1726
        %vm1793 = vcmp.lt.f32.partialorder %v461, %v1730
        %vm1794 = vcmp.lt.f32.partialorder %v461, %v1734
        %vm1795 = vcmp.lt.f32.partialorder %v461, %v1738
        %vm1796 = vcmp.lt.f32.partialorder %v461, %v1742
        %vm1797 = vcmp.lt.f32.partialorder %v461, %v1746
        %vm1798 = vcmp.lt.f32.partialorder %v461, %v1750
        %vm1799 = vcmp.lt.f32.partialorder %v466, %v1722
        %vm1800 = vcmp.lt.f32.partialorder %v466, %v1726
        %vm1801 = vcmp.lt.f32.partialorder %v466, %v1730
        %vm1802 = vcmp.lt.f32.partialorder %v466, %v1734
        %vm1803 = vcmp.lt.f32.partialorder %v466, %v1738
        %vm1804 = vcmp.lt.f32.partialorder %v466, %v1742
        %vm1805 = vcmp.lt.f32.partialorder %v466, %v1746
        %vm1806 = vcmp.lt.f32.partialorder %v466, %v1750
        %vm1807 = vcmp.lt.f32.partialorder %v471, %v1722
        %vm1808 = vcmp.lt.f32.partialorder %v471, %v1726
        %vm1809 = vcmp.lt.f32.partialorder %v471, %v1730
        %vm1810 = vcmp.lt.f32.partialorder %v471, %v1734
        %vm1811 = vcmp.lt.f32.partialorder %v471, %v1738
        %vm1812 = vcmp.lt.f32.partialorder %v471, %v1742
        %vm1813 = vcmp.lt.f32.partialorder %v471, %v1746
        %vm1814 = vcmp.lt.f32.partialorder %v471, %v1750
        %vm1815 = vcmp.lt.f32.partialorder %v476, %v1722
        %vm1816 = vcmp.lt.f32.partialorder %v476, %v1726
        %vm1817 = vcmp.lt.f32.partialorder %v476, %v1730
        %vm1818 = vcmp.lt.f32.partialorder %v476, %v1734
        %vm1819 = vcmp.lt.f32.partialorder %v476, %v1738
        %vm1820 = vcmp.lt.f32.partialorder %v476, %v1742
        %vm1821 = vcmp.lt.f32.partialorder %v476, %v1746
        %vm1822 = vcmp.lt.f32.partialorder %v476, %v1750
        %vm1823 = vcmp.lt.f32.partialorder %v481, %v1722
        %vm1824 = vcmp.lt.f32.partialorder %v481, %v1726
        %vm1825 = vcmp.lt.f32.partialorder %v481, %v1730
        %vm1826 = vcmp.lt.f32.partialorder %v481, %v1734
        %vm1827 = vcmp.lt.f32.partialorder %v481, %v1738
        %vm1828 = vcmp.lt.f32.partialorder %v481, %v1742
        %vm1829 = vcmp.lt.f32.partialorder %v481, %v1746
        %vm1830 = vcmp.lt.f32.partialorder %v481, %v1750
        %vm1831 = vcmp.lt.f32.partialorder %v486, %v1722
        %vm1832 = vcmp.lt.f32.partialorder %v486, %v1726
        %vm1833 = vcmp.lt.f32.partialorder %v486, %v1730
        %vm1834 = vcmp.lt.f32.partialorder %v486, %v1734
        %vm1835 = vcmp.lt.f32.partialorder %v486, %v1738
        %vm1836 = vcmp.lt.f32.partialorder %v486, %v1742
        %vm1837 = vcmp.lt.f32.partialorder %v486, %v1746
        %vm1838 = vcmp.lt.f32.partialorder %v486, %v1750
        %vm1839 = vcmp.lt.f32.partialorder %v491, %v1722
        %vm1840 = vcmp.lt.f32.partialorder %v491, %v1726
        %vm1841 = vcmp.lt.f32.partialorder %v491, %v1730
        %vm1842 = vcmp.lt.f32.partialorder %v491, %v1734
        %vm1843 = vcmp.lt.f32.partialorder %v491, %v1738
        %vm1844 = vcmp.lt.f32.partialorder %v491, %v1742
        %vm1845 = vcmp.lt.f32.partialorder %v491, %v1746
        %vm1846 = vcmp.lt.f32.partialorder %v491, %v1750
        %vm1847 = vcmp.lt.f32.partialorder %v496, %v1722
        %vm1848 = vcmp.lt.f32.partialorder %v496, %v1726
        %vm1849 = vcmp.lt.f32.partialorder %v496, %v1730
        %vm1850 = vcmp.lt.f32.partialorder %v496, %v1734
        %vm1851 = vcmp.lt.f32.partialorder %v496, %v1738
        %vm1852 = vcmp.lt.f32.partialorder %v496, %v1742
        %vm1853 = vcmp.lt.f32.partialorder %v496, %v1746
        %vm1854 = vcmp.lt.f32.partialorder %v496, %v1750
        %vm1855 = vcmp.lt.f32.partialorder %v501, %v1722
        %vm1856 = vcmp.lt.f32.partialorder %v501, %v1726
        %vm1857 = vcmp.lt.f32.partialorder %v501, %v1730
        %vm1858 = vcmp.lt.f32.partialorder %v501, %v1734
        %vm1859 = vcmp.lt.f32.partialorder %v501, %v1738
        %vm1860 = vcmp.lt.f32.partialorder %v501, %v1742
        %vm1861 = vcmp.lt.f32.partialorder %v501, %v1746
        %vm1862 = vcmp.lt.f32.partialorder %v501, %v1750
        %vm1863 = vcmp.lt.f32.partialorder %v506, %v1722
        %vm1864 = vcmp.lt.f32.partialorder %v506, %v1726
        %vm1865 = vcmp.lt.f32.partialorder %v506, %v1730
        %vm1866 = vcmp.lt.f32.partialorder %v506, %v1734
        %vm1867 = vcmp.lt.f32.partialorder %v506, %v1738
        %vm1868 = vcmp.lt.f32.partialorder %v506, %v1742
        %vm1869 = vcmp.lt.f32.partialorder %v506, %v1746
        %vm1870 = vcmp.lt.f32.partialorder %v506, %v1750
        %vm1871 = vcmp.lt.f32.partialorder %v511, %v1722
        %vm1872 = vcmp.lt.f32.partialorder %v511, %v1726
        %vm1873 = vcmp.lt.f32.partialorder %v511, %v1730
        %vm1874 = vcmp.lt.f32.partialorder %v511, %v1734
        %vm1875 = vcmp.lt.f32.partialorder %v511, %v1738
        %vm1876 = vcmp.lt.f32.partialorder %v511, %v1742
        %vm1877 = vcmp.lt.f32.partialorder %v511, %v1746
        %vm1878 = vcmp.lt.f32.partialorder %v511, %v1750
        %vm1879 = vcmp.lt.f32.partialorder %v516, %v1722
        %vm1880 = vcmp.lt.f32.partialorder %v516, %v1726
        %vm1881 = vcmp.lt.f32.partialorder %v516, %v1730
        %vm1882 = vcmp.lt.f32.partialorder %v516, %v1734
        %vm1883 = vcmp.lt.f32.partialorder %v516, %v1738
        %vm1884 = vcmp.lt.f32.partialorder %v516, %v1742
        %vm1885 = vcmp.lt.f32.partialorder %v516, %v1746
        %vm1886 = vcmp.lt.f32.partialorder %v516, %v1750
        %vm1887 = vcmp.lt.f32.partialorder %v521, %v1722
        %vm1888 = vcmp.lt.f32.partialorder %v521, %v1726
        %vm1889 = vcmp.lt.f32.partialorder %v521, %v1730
        %vm1890 = vcmp.lt.f32.partialorder %v521, %v1734
        %vm1891 = vcmp.lt.f32.partialorder %v521, %v1738
        %vm1892 = vcmp.lt.f32.partialorder %v521, %v1742
        %vm1893 = vcmp.lt.f32.partialorder %v521, %v1746
        %vm1894 = vcmp.lt.f32.partialorder %v521, %v1750
        %vm1895 = vcmp.lt.f32.partialorder %v526, %v1722
        %vm1896 = vcmp.lt.f32.partialorder %v526, %v1726
        %vm1897 = vcmp.lt.f32.partialorder %v526, %v1730
        %vm1898 = vcmp.lt.f32.partialorder %v526, %v1734
        %vm1899 = vcmp.lt.f32.partialorder %v526, %v1738
        %vm1900 = vcmp.lt.f32.partialorder %v526, %v1742
        %vm1901 = vcmp.lt.f32.partialorder %v526, %v1746
        %vm1902 = vcmp.lt.f32.partialorder %v526, %v1750
        %vm1903 = vcmp.lt.f32.partialorder %v531, %v1722
        %vm1904 = vcmp.lt.f32.partialorder %v531, %v1726
        %vm1905 = vcmp.lt.f32.partialorder %v531, %v1730
        %vm1906 = vcmp.lt.f32.partialorder %v531, %v1734
        %vm1907 = vcmp.lt.f32.partialorder %v531, %v1738
        %vm1908 = vcmp.lt.f32.partialorder %v531, %v1742
        %vm1909 = vcmp.lt.f32.partialorder %v531, %v1746
        %vm1910 = vcmp.lt.f32.partialorder %v531, %v1750
        %vm1911 = vcmp.lt.f32.partialorder %v536, %v1722
        %vm1912 = vcmp.lt.f32.partialorder %v536, %v1726
        %vm1913 = vcmp.lt.f32.partialorder %v536, %v1730
        %vm1914 = vcmp.lt.f32.partialorder %v536, %v1734
        %vm1915 = vcmp.lt.f32.partialorder %v536, %v1738
        %vm1916 = vcmp.lt.f32.partialorder %v536, %v1742
        %vm1917 = vcmp.lt.f32.partialorder %v536, %v1746
        %vm1918 = vcmp.lt.f32.partialorder %v536, %v1750
        %vm1919 = vcmp.lt.f32.partialorder %v541, %v1722
        %vm1920 = vcmp.lt.f32.partialorder %v541, %v1726
        %vm1921 = vcmp.lt.f32.partialorder %v541, %v1730
        %vm1922 = vcmp.lt.f32.partialorder %v541, %v1734
        %vm1923 = vcmp.lt.f32.partialorder %v541, %v1738
        %vm1924 = vcmp.lt.f32.partialorder %v541, %v1742
        %vm1925 = vcmp.lt.f32.partialorder %v541, %v1746
        %vm1926 = vcmp.lt.f32.partialorder %v541, %v1750
        %vm1927 = vcmp.lt.f32.partialorder %v546, %v1722
        %vm1928 = vcmp.lt.f32.partialorder %v546, %v1726
        %vm1929 = vcmp.lt.f32.partialorder %v546, %v1730
        %vm1930 = vcmp.lt.f32.partialorder %v546, %v1734
        %vm1931 = vcmp.lt.f32.partialorder %v546, %v1738
        %vm1932 = vcmp.lt.f32.partialorder %v546, %v1742
        %vm1933 = vcmp.lt.f32.partialorder %v546, %v1746
        %vm1934 = vcmp.lt.f32.partialorder %v546, %v1750
        %vm1935 = vcmp.lt.f32.partialorder %v551, %v1722
        %vm1936 = vcmp.lt.f32.partialorder %v551, %v1726
        %vm1937 = vcmp.lt.f32.partialorder %v551, %v1730
        %vm1938 = vcmp.lt.f32.partialorder %v551, %v1734
        %vm1939 = vcmp.lt.f32.partialorder %v551, %v1738
        %vm1940 = vcmp.lt.f32.partialorder %v551, %v1742
        %vm1941 = vcmp.lt.f32.partialorder %v551, %v1746
        %vm1942 = vcmp.lt.f32.partialorder %v551, %v1750
        %vm1943 = vcmp.lt.f32.partialorder %v556, %v1722
        %vm1944 = vcmp.lt.f32.partialorder %v556, %v1726
        %vm1945 = vcmp.lt.f32.partialorder %v556, %v1730
        %vm1946 = vcmp.lt.f32.partialorder %v556, %v1734
        %vm1947 = vcmp.lt.f32.partialorder %v556, %v1738
        %vm1948 = vcmp.lt.f32.partialorder %v556, %v1742
        %vm1949 = vcmp.lt.f32.partialorder %v556, %v1746
        %vm1950 = vcmp.lt.f32.partialorder %v556, %v1750
        %vm1951 = vcmp.lt.f32.partialorder %v561, %v1722
        %vm1952 = vcmp.lt.f32.partialorder %v561, %v1726
        %vm1953 = vcmp.lt.f32.partialorder %v561, %v1730
        %vm1954 = vcmp.lt.f32.partialorder %v561, %v1734
        %vm1955 = vcmp.lt.f32.partialorder %v561, %v1738
        %vm1956 = vcmp.lt.f32.partialorder %v561, %v1742
        %vm1957 = vcmp.lt.f32.partialorder %v561, %v1746
        %vm1958 = vcmp.lt.f32.partialorder %v561, %v1750
        %vm1959 = vcmp.lt.f32.partialorder %v566, %v1722
        %vm1960 = vcmp.lt.f32.partialorder %v566, %v1726
        %vm1961 = vcmp.lt.f32.partialorder %v566, %v1730
        %vm1962 = vcmp.lt.f32.partialorder %v566, %v1734
        %vm1963 = vcmp.lt.f32.partialorder %v566, %v1738
        %vm1964 = vcmp.lt.f32.partialorder %v566, %v1742
        %vm1965 = vcmp.lt.f32.partialorder %v566, %v1746
        %vm1966 = vcmp.lt.f32.partialorder %v566, %v1750
        %vm1967 = vcmp.lt.f32.partialorder %v571, %v1722
        %vm1968 = vcmp.lt.f32.partialorder %v571, %v1726
        %vm1969 = vcmp.lt.f32.partialorder %v571, %v1730
        %vm1970 = vcmp.lt.f32.partialorder %v571, %v1734
        %vm1971 = vcmp.lt.f32.partialorder %v571, %v1738
        %vm1972 = vcmp.lt.f32.partialorder %v571, %v1742
        %vm1973 = vcmp.lt.f32.partialorder %v571, %v1746
        %vm1974 = vcmp.lt.f32.partialorder %v571, %v1750
        %vm1975 = vcmp.lt.f32.partialorder %v576, %v1722
        %vm1976 = vcmp.lt.f32.partialorder %v576, %v1726
        %vm1977 = vcmp.lt.f32.partialorder %v576, %v1730
        %vm1978 = vcmp.lt.f32.partialorder %v576, %v1734
        %vm1979 = vcmp.lt.f32.partialorder %v576, %v1738
        %vm1980 = vcmp.lt.f32.partialorder %v576, %v1742
        %vm1981 = vcmp.lt.f32.partialorder %v576, %v1746
        %vm1982 = vcmp.lt.f32.partialorder %v576, %v1750
        %vm1983 = vcmp.lt.f32.partialorder %v581, %v1722
        %vm1984 = vcmp.lt.f32.partialorder %v581, %v1726
        %vm1985 = vcmp.lt.f32.partialorder %v581, %v1730
        %vm1986 = vcmp.lt.f32.partialorder %v581, %v1734
        %vm1987 = vcmp.lt.f32.partialorder %v581, %v1738
        %vm1988 = vcmp.lt.f32.partialorder %v581, %v1742
        %vm1989 = vcmp.lt.f32.partialorder %v581, %v1746
        %vm1990 = vcmp.lt.f32.partialorder %v581, %v1750
        %vm1991 = vcmp.lt.f32.partialorder %v586, %v1722
        %vm1992 = vcmp.lt.f32.partialorder %v586, %v1726
        %vm1993 = vcmp.lt.f32.partialorder %v586, %v1730
        %vm1994 = vcmp.lt.f32.partialorder %v586, %v1734
        %vm1995 = vcmp.lt.f32.partialorder %v586, %v1738
        %vm1996 = vcmp.lt.f32.partialorder %v586, %v1742
        %vm1997 = vcmp.lt.f32.partialorder %v586, %v1746
        %vm1998 = vcmp.lt.f32.partialorder %v586, %v1750
        %vm1999 = vcmp.lt.f32.partialorder %v591, %v1722
        %vm2000 = vcmp.lt.f32.partialorder %v591, %v1726
        %vm2001 = vcmp.lt.f32.partialorder %v591, %v1730
        %vm2002 = vcmp.lt.f32.partialorder %v591, %v1734
        %vm2003 = vcmp.lt.f32.partialorder %v591, %v1738
        %vm2004 = vcmp.lt.f32.partialorder %v591, %v1742
        %vm2005 = vcmp.lt.f32.partialorder %v591, %v1746
        %vm2006 = vcmp.lt.f32.partialorder %v591, %v1750
        %vm2007 = vcmp.lt.f32.partialorder %v596, %v1722
        %vm2008 = vcmp.lt.f32.partialorder %v596, %v1726
        %vm2009 = vcmp.lt.f32.partialorder %v596, %v1730
        %vm2010 = vcmp.lt.f32.partialorder %v596, %v1734
        %vm2011 = vcmp.lt.f32.partialorder %v596, %v1738
        %vm2012 = vcmp.lt.f32.partialorder %v596, %v1742
        %vm2013 = vcmp.lt.f32.partialorder %v596, %v1746
        %vm2014 = vcmp.lt.f32.partialorder %v596, %v1750
        %vm2015 = vcmp.lt.f32.partialorder %v601, %v1722
        %vm2016 = vcmp.lt.f32.partialorder %v601, %v1726
        %vm2017 = vcmp.lt.f32.partialorder %v601, %v1730
        %vm2018 = vcmp.lt.f32.partialorder %v601, %v1734
        %vm2019 = vcmp.lt.f32.partialorder %v601, %v1738
        %vm2020 = vcmp.lt.f32.partialorder %v601, %v1742
        %vm2021 = vcmp.lt.f32.partialorder %v601, %v1746
        %vm2022 = vcmp.lt.f32.partialorder %v601, %v1750
        %vm2023 = vcmp.lt.f32.partialorder %v606, %v1722
        %vm2024 = vcmp.lt.f32.partialorder %v606, %v1726
        %vm2025 = vcmp.lt.f32.partialorder %v606, %v1730
        %vm2026 = vcmp.lt.f32.partialorder %v606, %v1734
        %vm2027 = vcmp.lt.f32.partialorder %v606, %v1738
        %vm2028 = vcmp.lt.f32.partialorder %v606, %v1742
        %vm2029 = vcmp.lt.f32.partialorder %v606, %v1746
        %vm2030 = vcmp.lt.f32.partialorder %v606, %v1750
        %vm2031 = vcmp.lt.f32.partialorder %v611, %v1722
        %vm2032 = vcmp.lt.f32.partialorder %v611, %v1726
        %vm2033 = vcmp.lt.f32.partialorder %v611, %v1730
        %vm2034 = vcmp.lt.f32.partialorder %v611, %v1734
        %vm2035 = vcmp.lt.f32.partialorder %v611, %v1738
        %vm2036 = vcmp.lt.f32.partialorder %v611, %v1742
        %vm2037 = vcmp.lt.f32.partialorder %v611, %v1746
        %vm2038 = vcmp.lt.f32.partialorder %v611, %v1750
        %vm2039 = vcmp.lt.f32.partialorder %v616, %v1722
        %vm2040 = vcmp.lt.f32.partialorder %v616, %v1726
        %vm2041 = vcmp.lt.f32.partialorder %v616, %v1730
        %vm2042 = vcmp.lt.f32.partialorder %v616, %v1734
        %vm2043 = vcmp.lt.f32.partialorder %v616, %v1738
        %vm2044 = vcmp.lt.f32.partialorder %v616, %v1742
        %vm2045 = vcmp.lt.f32.partialorder %v616, %v1746
        %vm2046 = vcmp.lt.f32.partialorder %v616, %v1750
        %vm2047 = vcmp.lt.f32.partialorder %v621, %v1722
        %vm2048 = vcmp.lt.f32.partialorder %v621, %v1726
        %vm2049 = vcmp.lt.f32.partialorder %v621, %v1730
        %vm2050 = vcmp.lt.f32.partialorder %v621, %v1734
        %vm2051 = vcmp.lt.f32.partialorder %v621, %v1738
        %vm2052 = vcmp.lt.f32.partialorder %v621, %v1742
        %vm2053 = vcmp.lt.f32.partialorder %v621, %v1746
        %vm2054 = vcmp.lt.f32.partialorder %v621, %v1750
        %vm2055 = vcmp.lt.f32.partialorder %v626, %v1722
        %vm2056 = vcmp.lt.f32.partialorder %v626, %v1726
        %vm2057 = vcmp.lt.f32.partialorder %v626, %v1730
        %vm2058 = vcmp.lt.f32.partialorder %v626, %v1734
        %vm2059 = vcmp.lt.f32.partialorder %v626, %v1738
        %vm2060 = vcmp.lt.f32.partialorder %v626, %v1742
        %vm2061 = vcmp.lt.f32.partialorder %v626, %v1746
        %vm2062 = vcmp.lt.f32.partialorder %v626, %v1750
        %vm2063 = vcmp.lt.f32.partialorder %v631, %v1722
        %vm2064 = vcmp.lt.f32.partialorder %v631, %v1726
        %vm2065 = vcmp.lt.f32.partialorder %v631, %v1730
        %vm2066 = vcmp.lt.f32.partialorder %v631, %v1734
        %vm2067 = vcmp.lt.f32.partialorder %v631, %v1738
        %vm2068 = vcmp.lt.f32.partialorder %v631, %v1742
        %vm2069 = vcmp.lt.f32.partialorder %v631, %v1746
        %vm2070 = vcmp.lt.f32.partialorder %v631, %v1750
        %vm2071 = vcmp.lt.f32.partialorder %v636, %v1722
        %vm2072 = vcmp.lt.f32.partialorder %v636, %v1726
        %vm2073 = vcmp.lt.f32.partialorder %v636, %v1730
        %vm2074 = vcmp.lt.f32.partialorder %v636, %v1734
        %vm2075 = vcmp.lt.f32.partialorder %v636, %v1738
        %vm2076 = vcmp.lt.f32.partialorder %v636, %v1742
        %vm2077 = vcmp.lt.f32.partialorder %v636, %v1746
        %vm2078 = vcmp.lt.f32.partialorder %v636, %v1750
        %vm2079 = vcmp.lt.f32.partialorder %v641, %v1722
        %vm2080 = vcmp.lt.f32.partialorder %v641, %v1726
        %vm2081 = vcmp.lt.f32.partialorder %v641, %v1730
        %vm2082 = vcmp.lt.f32.partialorder %v641, %v1734
        %vm2083 = vcmp.lt.f32.partialorder %v641, %v1738
        %vm2084 = vcmp.lt.f32.partialorder %v641, %v1742
        %vm2085 = vcmp.lt.f32.partialorder %v641, %v1746
        %vm2086 = vcmp.lt.f32.partialorder %v641, %v1750
        %vm2087 = vcmp.lt.f32.partialorder %v646, %v1722
        %vm2088 = vcmp.lt.f32.partialorder %v646, %v1726
        %vm2089 = vcmp.lt.f32.partialorder %v646, %v1730
        %vm2090 = vcmp.lt.f32.partialorder %v646, %v1734
        %vm2091 = vcmp.lt.f32.partialorder %v646, %v1738
        %vm2092 = vcmp.lt.f32.partialorder %v646, %v1742
        %vm2093 = vcmp.lt.f32.partialorder %v646, %v1746
        %vm2094 = vcmp.lt.f32.partialorder %v646, %v1750
        %vm2095 = vcmp.lt.f32.partialorder %v651, %v1722
        %vm2096 = vcmp.lt.f32.partialorder %v651, %v1726
        %vm2097 = vcmp.lt.f32.partialorder %v651, %v1730
        %vm2098 = vcmp.lt.f32.partialorder %v651, %v1734
        %vm2099 = vcmp.lt.f32.partialorder %v651, %v1738
        %vm2100 = vcmp.lt.f32.partialorder %v651, %v1742
        %vm2101 = vcmp.lt.f32.partialorder %v651, %v1746
        %vm2102 = vcmp.lt.f32.partialorder %v651, %v1750
        %vm2103 = vcmp.lt.f32.partialorder %v656, %v1722
        %vm2104 = vcmp.lt.f32.partialorder %v656, %v1726
        %vm2105 = vcmp.lt.f32.partialorder %v656, %v1730
        %vm2106 = vcmp.lt.f32.partialorder %v656, %v1734
        %vm2107 = vcmp.lt.f32.partialorder %v656, %v1738
        %vm2108 = vcmp.lt.f32.partialorder %v656, %v1742
        %vm2109 = vcmp.lt.f32.partialorder %v656, %v1746
        %vm2110 = vcmp.lt.f32.partialorder %v656, %v1750
        %vm2111 = vcmp.lt.f32.partialorder %v661, %v1722
        %vm2112 = vcmp.lt.f32.partialorder %v661, %v1726
        %vm2113 = vcmp.lt.f32.partialorder %v661, %v1730
        %vm2114 = vcmp.lt.f32.partialorder %v661, %v1734
        %vm2115 = vcmp.lt.f32.partialorder %v661, %v1738
        %vm2116 = vcmp.lt.f32.partialorder %v661, %v1742
        %vm2117 = vcmp.lt.f32.partialorder %v661, %v1746
        %vm2118 = vcmp.lt.f32.partialorder %v661, %v1750
        %vm2119 = vcmp.lt.f32.partialorder %v666, %v1722
        %vm2120 = vcmp.lt.f32.partialorder %v666, %v1726
        %vm2121 = vcmp.lt.f32.partialorder %v666, %v1730
        %vm2122 = vcmp.lt.f32.partialorder %v666, %v1734
        %vm2123 = vcmp.lt.f32.partialorder %v666, %v1738
        %vm2124 = vcmp.lt.f32.partialorder %v666, %v1742
        %vm2125 = vcmp.lt.f32.partialorder %v666, %v1746
        %vm2126 = vcmp.lt.f32.partialorder %v666, %v1750
        %vm2127 = vcmp.lt.f32.partialorder %v671, %v1722
        %vm2128 = vcmp.lt.f32.partialorder %v671, %v1726
        %vm2129 = vcmp.lt.f32.partialorder %v671, %v1730
        %vm2130 = vcmp.lt.f32.partialorder %v671, %v1734
        %vm2131 = vcmp.lt.f32.partialorder %v671, %v1738
        %vm2132 = vcmp.lt.f32.partialorder %v671, %v1742
        %vm2133 = vcmp.lt.f32.partialorder %v671, %v1746
        %vm2134 = vcmp.lt.f32.partialorder %v671, %v1750
        %vm2135 = vcmp.lt.f32.partialorder %v676, %v1722
        %vm2136 = vcmp.lt.f32.partialorder %v676, %v1726
        %vm2137 = vcmp.lt.f32.partialorder %v676, %v1730
        %vm2138 = vcmp.lt.f32.partialorder %v676, %v1734
        %vm2139 = vcmp.lt.f32.partialorder %v676, %v1738
        %vm2140 = vcmp.lt.f32.partialorder %v676, %v1742
        %vm2141 = vcmp.lt.f32.partialorder %v676, %v1746
        %vm2142 = vcmp.lt.f32.partialorder %v676, %v1750
        %vm2143 = vcmp.lt.f32.partialorder %v681, %v1722
        %vm2144 = vcmp.lt.f32.partialorder %v681, %v1726
        %vm2145 = vcmp.lt.f32.partialorder %v681, %v1730
        %vm2146 = vcmp.lt.f32.partialorder %v681, %v1734
        %vm2147 = vcmp.lt.f32.partialorder %v681, %v1738
        %vm2148 = vcmp.lt.f32.partialorder %v681, %v1742
        %vm2149 = vcmp.lt.f32.partialorder %v681, %v1746
        %vm2150 = vcmp.lt.f32.partialorder %v681, %v1750
        %vm2151 = vcmp.lt.f32.partialorder %v686, %v1722
        %vm2152 = vcmp.lt.f32.partialorder %v686, %v1726
        %vm2153 = vcmp.lt.f32.partialorder %v686, %v1730
        %vm2154 = vcmp.lt.f32.partialorder %v686, %v1734
        %vm2155 = vcmp.lt.f32.partialorder %v686, %v1738
        %vm2156 = vcmp.lt.f32.partialorder %v686, %v1742
        %vm2157 = vcmp.lt.f32.partialorder %v686, %v1746
        %vm2158 = vcmp.lt.f32.partialorder %v686, %v1750
        %vm2159 = vcmp.lt.f32.partialorder %v691, %v1722
        %vm2160 = vcmp.lt.f32.partialorder %v691, %v1726
        %vm2161 = vcmp.lt.f32.partialorder %v691, %v1730
        %vm2162 = vcmp.lt.f32.partialorder %v691, %v1734
        %vm2163 = vcmp.lt.f32.partialorder %v691, %v1738
        %vm2164 = vcmp.lt.f32.partialorder %v691, %v1742
        %vm2165 = vcmp.lt.f32.partialorder %v691, %v1746
        %vm2166 = vcmp.lt.f32.partialorder %v691, %v1750
        %vm2167 = vcmp.lt.f32.partialorder %v696, %v1722
        %vm2168 = vcmp.lt.f32.partialorder %v696, %v1726
        %vm2169 = vcmp.lt.f32.partialorder %v696, %v1730
        %vm2170 = vcmp.lt.f32.partialorder %v696, %v1734
        %vm2171 = vcmp.lt.f32.partialorder %v696, %v1738
        %vm2172 = vcmp.lt.f32.partialorder %v696, %v1742
        %vm2173 = vcmp.lt.f32.partialorder %v696, %v1746
        %vm2174 = vcmp.lt.f32.partialorder %v696, %v1750
        %vm2175 = vcmp.lt.f32.partialorder %v701, %v1722
        %vm2176 = vcmp.lt.f32.partialorder %v701, %v1726
        %vm2177 = vcmp.lt.f32.partialorder %v701, %v1730
        %vm2178 = vcmp.lt.f32.partialorder %v701, %v1734
        %vm2179 = vcmp.lt.f32.partialorder %v701, %v1738
        %vm2180 = vcmp.lt.f32.partialorder %v701, %v1742
        %vm2181 = vcmp.lt.f32.partialorder %v701, %v1746
        %vm2182 = vcmp.lt.f32.partialorder %v701, %v1750
        %vm2183 = vcmp.lt.f32.partialorder %v706, %v1722
        %vm2184 = vcmp.lt.f32.partialorder %v706, %v1726
        %vm2185 = vcmp.lt.f32.partialorder %v706, %v1730
        %vm2186 = vcmp.lt.f32.partialorder %v706, %v1734
        %vm2187 = vcmp.lt.f32.partialorder %v706, %v1738
        %vm2188 = vcmp.lt.f32.partialorder %v706, %v1742
        %vm2189 = vcmp.lt.f32.partialorder %v706, %v1746
        %vm2190 = vcmp.lt.f32.partialorder %v706, %v1750
        %vm2191 = vcmp.lt.f32.partialorder %v711, %v1722
        %vm2192 = vcmp.lt.f32.partialorder %v711, %v1726
        %vm2193 = vcmp.lt.f32.partialorder %v711, %v1730
        %vm2194 = vcmp.lt.f32.partialorder %v711, %v1734
        %vm2195 = vcmp.lt.f32.partialorder %v711, %v1738
        %vm2196 = vcmp.lt.f32.partialorder %v711, %v1742
        %vm2197 = vcmp.lt.f32.partialorder %v711, %v1746
        %vm2198 = vcmp.lt.f32.partialorder %v711, %v1750
        %vm2199 = vcmp.lt.f32.partialorder %v716, %v1722
        %vm2200 = vcmp.lt.f32.partialorder %v716, %v1726
        %vm2201 = vcmp.lt.f32.partialorder %v716, %v1730
        %vm2202 = vcmp.lt.f32.partialorder %v716, %v1734
        %vm2203 = vcmp.lt.f32.partialorder %v716, %v1738
        %vm2204 = vcmp.lt.f32.partialorder %v716, %v1742
        %vm2205 = vcmp.lt.f32.partialorder %v716, %v1746
        %vm2206 = vcmp.lt.f32.partialorder %v716, %v1750
        %vm2207 = vcmp.lt.f32.partialorder %v721, %v1722
        %vm2208 = vcmp.lt.f32.partialorder %v721, %v1726
        %vm2209 = vcmp.lt.f32.partialorder %v721, %v1730
        %vm2210 = vcmp.lt.f32.partialorder %v721, %v1734
        %vm2211 = vcmp.lt.f32.partialorder %v721, %v1738
        %vm2212 = vcmp.lt.f32.partialorder %v721, %v1742
        %vm2213 = vcmp.lt.f32.partialorder %v721, %v1746
        %vm2214 = vcmp.lt.f32.partialorder %v721, %v1750
        %vm2215 = vcmp.lt.f32.partialorder %v726, %v1722
        %vm2216 = vcmp.lt.f32.partialorder %v726, %v1726
        %vm2217 = vcmp.lt.f32.partialorder %v726, %v1730
        %vm2218 = vcmp.lt.f32.partialorder %v726, %v1734
        %vm2219 = vcmp.lt.f32.partialorder %v726, %v1738
        %vm2220 = vcmp.lt.f32.partialorder %v726, %v1742
        %vm2221 = vcmp.lt.f32.partialorder %v726, %v1746
        %vm2222 = vcmp.lt.f32.partialorder %v726, %v1750
        %vm2223 = vcmp.lt.f32.partialorder %v731, %v1722
        %vm2224 = vcmp.lt.f32.partialorder %v731, %v1726
        %vm2225 = vcmp.lt.f32.partialorder %v731, %v1730
        %vm2226 = vcmp.lt.f32.partialorder %v731, %v1734
        %vm2227 = vcmp.lt.f32.partialorder %v731, %v1738
        %vm2228 = vcmp.lt.f32.partialorder %v731, %v1742
        %vm2229 = vcmp.lt.f32.partialorder %v731, %v1746
        %vm2230 = vcmp.lt.f32.partialorder %v731, %v1750
        %vm2231 = vcmp.lt.f32.partialorder %v736, %v1722
        %vm2232 = vcmp.lt.f32.partialorder %v736, %v1726
        %vm2233 = vcmp.lt.f32.partialorder %v736, %v1730
        %vm2234 = vcmp.lt.f32.partialorder %v736, %v1734
        %vm2235 = vcmp.lt.f32.partialorder %v736, %v1738
        %vm2236 = vcmp.lt.f32.partialorder %v736, %v1742
        %vm2237 = vcmp.lt.f32.partialorder %v736, %v1746
        %vm2238 = vcmp.lt.f32.partialorder %v736, %v1750
        %vm2239 = vcmp.lt.f32.partialorder %v741, %v1722
        %vm2240 = vcmp.lt.f32.partialorder %v741, %v1726
        %vm2241 = vcmp.lt.f32.partialorder %v741, %v1730
        %vm2242 = vcmp.lt.f32.partialorder %v741, %v1734
        %vm2243 = vcmp.lt.f32.partialorder %v741, %v1738
        %vm2244 = vcmp.lt.f32.partialorder %v741, %v1742
        %vm2245 = vcmp.lt.f32.partialorder %v741, %v1746
        %vm2246 = vcmp.lt.f32.partialorder %v741, %v1750
        %vm2247 = vcmp.lt.f32.partialorder %v746, %v1722
        %vm2248 = vcmp.lt.f32.partialorder %v746, %v1726
        %vm2249 = vcmp.lt.f32.partialorder %v746, %v1730
        %vm2250 = vcmp.lt.f32.partialorder %v746, %v1734
        %vm2251 = vcmp.lt.f32.partialorder %v746, %v1738
        %vm2252 = vcmp.lt.f32.partialorder %v746, %v1742
        %vm2253 = vcmp.lt.f32.partialorder %v746, %v1746
        %vm2254 = vcmp.lt.f32.partialorder %v746, %v1750
        %vm2255 = vcmp.lt.f32.partialorder %v751, %v1722
        %vm2256 = vcmp.lt.f32.partialorder %v751, %v1726
        %vm2257 = vcmp.lt.f32.partialorder %v751, %v1730
        %vm2258 = vcmp.lt.f32.partialorder %v751, %v1734
        %vm2259 = vcmp.lt.f32.partialorder %v751, %v1738
        %vm2260 = vcmp.lt.f32.partialorder %v751, %v1742
        %vm2261 = vcmp.lt.f32.partialorder %v751, %v1746
        %vm2262 = vcmp.lt.f32.partialorder %v751, %v1750
        %vm2263 = vcmp.lt.f32.partialorder %v756, %v1722
        %vm2264 = vcmp.lt.f32.partialorder %v756, %v1726
        %vm2265 = vcmp.lt.f32.partialorder %v756, %v1730
        %vm2266 = vcmp.lt.f32.partialorder %v756, %v1734
        %vm2267 = vcmp.lt.f32.partialorder %v756, %v1738
        %vm2268 = vcmp.lt.f32.partialorder %v756, %v1742
        %vm2269 = vcmp.lt.f32.partialorder %v756, %v1746
        %vm2270 = vcmp.lt.f32.partialorder %v756, %v1750
        %vm2271 = vcmp.lt.f32.partialorder %v761, %v1722
        %vm2272 = vcmp.lt.f32.partialorder %v761, %v1726
        %vm2273 = vcmp.lt.f32.partialorder %v761, %v1730
        %vm2274 = vcmp.lt.f32.partialorder %v761, %v1734
        %vm2275 = vcmp.lt.f32.partialorder %v761, %v1738
        %vm2276 = vcmp.lt.f32.partialorder %v761, %v1742
        %vm2277 = vcmp.lt.f32.partialorder %v761, %v1746
        %vm2278 = vcmp.lt.f32.partialorder %v761, %v1750
        %vm2279 = vcmp.lt.f32.partialorder %v766, %v1722
        %vm2280 = vcmp.lt.f32.partialorder %v766, %v1726
        %vm2281 = vcmp.lt.f32.partialorder %v766, %v1730
        %vm2282 = vcmp.lt.f32.partialorder %v766, %v1734
        %vm2283 = vcmp.lt.f32.partialorder %v766, %v1738
        %vm2284 = vcmp.lt.f32.partialorder %v766, %v1742
        %vm2285 = vcmp.lt.f32.partialorder %v766, %v1746
        %vm2286 = vcmp.lt.f32.partialorder %v766, %v1750
        %vm2287 = vcmp.lt.f32.partialorder %v771, %v1722
        %vm2288 = vcmp.lt.f32.partialorder %v771, %v1726
        %vm2289 = vcmp.lt.f32.partialorder %v771, %v1730
        %vm2290 = vcmp.lt.f32.partialorder %v771, %v1734
        %vm2291 = vcmp.lt.f32.partialorder %v771, %v1738
        %vm2292 = vcmp.lt.f32.partialorder %v771, %v1742
        %vm2293 = vcmp.lt.f32.partialorder %v771, %v1746
        %vm2294 = vcmp.lt.f32.partialorder %v771, %v1750
        %vm2295 = vcmp.lt.f32.partialorder %v776, %v1722
        %vm2296 = vcmp.lt.f32.partialorder %v776, %v1726
        %vm2297 = vcmp.lt.f32.partialorder %v776, %v1730
        %vm2298 = vcmp.lt.f32.partialorder %v776, %v1734
        %vm2299 = vcmp.lt.f32.partialorder %v776, %v1738
        %vm2300 = vcmp.lt.f32.partialorder %v776, %v1742
        %vm2301 = vcmp.lt.f32.partialorder %v776, %v1746
        %vm2302 = vcmp.lt.f32.partialorder %v776, %v1750
        %vm2303 = vcmp.lt.f32.partialorder %v781, %v1722
        %vm2304 = vcmp.lt.f32.partialorder %v781, %v1726
        %vm2305 = vcmp.lt.f32.partialorder %v781, %v1730
        %vm2306 = vcmp.lt.f32.partialorder %v781, %v1734
        %vm2307 = vcmp.lt.f32.partialorder %v781, %v1738
        %vm2308 = vcmp.lt.f32.partialorder %v781, %v1742
        %vm2309 = vcmp.lt.f32.partialorder %v781, %v1746
        %vm2310 = vcmp.lt.f32.partialorder %v781, %v1750
        %vm2311 = vcmp.lt.f32.partialorder %v786, %v1722
        %vm2312 = vcmp.lt.f32.partialorder %v786, %v1726
        %vm2313 = vcmp.lt.f32.partialorder %v786, %v1730
        %vm2314 = vcmp.lt.f32.partialorder %v786, %v1734
        %vm2315 = vcmp.lt.f32.partialorder %v786, %v1738
        %vm2316 = vcmp.lt.f32.partialorder %v786, %v1742
        %vm2317 = vcmp.lt.f32.partialorder %v786, %v1746
        %vm2318 = vcmp.lt.f32.partialorder %v786, %v1750
        %vm2319 = vcmp.lt.f32.partialorder %v791, %v1722
        %vm2320 = vcmp.lt.f32.partialorder %v791, %v1726
        %vm2321 = vcmp.lt.f32.partialorder %v791, %v1730
        %vm2322 = vcmp.lt.f32.partialorder %v791, %v1734
        %vm2323 = vcmp.lt.f32.partialorder %v791, %v1738
        %vm2324 = vcmp.lt.f32.partialorder %v791, %v1742
        %vm2325 = vcmp.lt.f32.partialorder %v791, %v1746
        %vm2326 = vcmp.lt.f32.partialorder %v791, %v1750
        %vm2327 = vcmp.lt.f32.partialorder %v796, %v1722
        %vm2328 = vcmp.lt.f32.partialorder %v796, %v1726
        %vm2329 = vcmp.lt.f32.partialorder %v796, %v1730
        %vm2330 = vcmp.lt.f32.partialorder %v796, %v1734
        %vm2331 = vcmp.lt.f32.partialorder %v796, %v1738
        %vm2332 = vcmp.lt.f32.partialorder %v796, %v1742
        %vm2333 = vcmp.lt.f32.partialorder %v796, %v1746
        %vm2334 = vcmp.lt.f32.partialorder %v796, %v1750
        %vm2335 = vcmp.lt.f32.partialorder %v801, %v1722
        %vm2336 = vcmp.lt.f32.partialorder %v801, %v1726
        %vm2337 = vcmp.lt.f32.partialorder %v801, %v1730
        %vm2338 = vcmp.lt.f32.partialorder %v801, %v1734
        %vm2339 = vcmp.lt.f32.partialorder %v801, %v1738
        %vm2340 = vcmp.lt.f32.partialorder %v801, %v1742
        %vm2341 = vcmp.lt.f32.partialorder %v801, %v1746
        %vm2342 = vcmp.lt.f32.partialorder %v801, %v1750
        %vm2343 = vcmp.lt.f32.partialorder %v806, %v1722
        %vm2344 = vcmp.lt.f32.partialorder %v806, %v1726
        %vm2345 = vcmp.lt.f32.partialorder %v806, %v1730
        %vm2346 = vcmp.lt.f32.partialorder %v806, %v1734
        %vm2347 = vcmp.lt.f32.partialorder %v806, %v1738
        %vm2348 = vcmp.lt.f32.partialorder %v806, %v1742
        %vm2349 = vcmp.lt.f32.partialorder %v806, %v1746
        %vm2350 = vcmp.lt.f32.partialorder %v806, %v1750
        %vm2351 = vcmp.lt.f32.partialorder %v811, %v1722
        %vm2352 = vcmp.lt.f32.partialorder %v811, %v1726
        %vm2353 = vcmp.lt.f32.partialorder %v811, %v1730
        %vm2354 = vcmp.lt.f32.partialorder %v811, %v1734
        %vm2355 = vcmp.lt.f32.partialorder %v811, %v1738
        %vm2356 = vcmp.lt.f32.partialorder %v811, %v1742
        %vm2357 = vcmp.lt.f32.partialorder %v811, %v1746
        %vm2358 = vcmp.lt.f32.partialorder %v811, %v1750
        %vm2359 = vcmp.lt.f32.partialorder %v816, %v1722
        %vm2360 = vcmp.lt.f32.partialorder %v816, %v1726
        %vm2361 = vcmp.lt.f32.partialorder %v816, %v1730
        %vm2362 = vcmp.lt.f32.partialorder %v816, %v1734
        %vm2363 = vcmp.lt.f32.partialorder %v816, %v1738
        %vm2364 = vcmp.lt.f32.partialorder %v816, %v1742
        %vm2365 = vcmp.lt.f32.partialorder %v816, %v1746
        %vm2366 = vcmp.lt.f32.partialorder %v816, %v1750
        %vm2367 = vcmp.lt.f32.partialorder %v821, %v1722
        %vm2368 = vcmp.lt.f32.partialorder %v821, %v1726
        %vm2369 = vcmp.lt.f32.partialorder %v821, %v1730
        %vm2370 = vcmp.lt.f32.partialorder %v821, %v1734
        %vm2371 = vcmp.lt.f32.partialorder %v821, %v1738
        %vm2372 = vcmp.lt.f32.partialorder %v821, %v1742
        %vm2373 = vcmp.lt.f32.partialorder %v821, %v1746
        %vm2374 = vcmp.lt.f32.partialorder %v821, %v1750
        %vm2375 = vcmp.lt.f32.partialorder %v826, %v1722
        %vm2376 = vcmp.lt.f32.partialorder %v826, %v1726
        %vm2377 = vcmp.lt.f32.partialorder %v826, %v1730
        %vm2378 = vcmp.lt.f32.partialorder %v826, %v1734
        %vm2379 = vcmp.lt.f32.partialorder %v826, %v1738
        %vm2380 = vcmp.lt.f32.partialorder %v826, %v1742
        %vm2381 = vcmp.lt.f32.partialorder %v826, %v1746
        %vm2382 = vcmp.lt.f32.partialorder %v826, %v1750
        %vm2383 = vcmp.lt.f32.partialorder %v831, %v1722
        %vm2384 = vcmp.lt.f32.partialorder %v831, %v1726
        %vm2385 = vcmp.lt.f32.partialorder %v831, %v1730
        %vm2386 = vcmp.lt.f32.partialorder %v831, %v1734
        %vm2387 = vcmp.lt.f32.partialorder %v831, %v1738
        %vm2388 = vcmp.lt.f32.partialorder %v831, %v1742
        %vm2389 = vcmp.lt.f32.partialorder %v831, %v1746
        %vm2390 = vcmp.lt.f32.partialorder %v831, %v1750
        %vm2391 = vcmp.lt.f32.partialorder %v836, %v1722
        %vm2392 = vcmp.lt.f32.partialorder %v836, %v1726
        %vm2393 = vcmp.lt.f32.partialorder %v836, %v1730
        %vm2394 = vcmp.lt.f32.partialorder %v836, %v1734
        %vm2395 = vcmp.lt.f32.partialorder %v836, %v1738
        %vm2396 = vcmp.lt.f32.partialorder %v836, %v1742
        %vm2397 = vcmp.lt.f32.partialorder %v836, %v1746
        %vm2398 = vcmp.lt.f32.partialorder %v836, %v1750
        %vm2399 = vcmp.lt.f32.partialorder %v841, %v1722
        %vm2400 = vcmp.lt.f32.partialorder %v841, %v1726
        %vm2401 = vcmp.lt.f32.partialorder %v841, %v1730
        %vm2402 = vcmp.lt.f32.partialorder %v841, %v1734
        %vm2403 = vcmp.lt.f32.partialorder %v841, %v1738
        %vm2404 = vcmp.lt.f32.partialorder %v841, %v1742
        %vm2405 = vcmp.lt.f32.partialorder %v841, %v1746
        %vm2406 = vcmp.lt.f32.partialorder %v841, %v1750
        %vm2407 = vcmp.lt.f32.partialorder %v846, %v1722
        %vm2408 = vcmp.lt.f32.partialorder %v846, %v1726
        %vm2409 = vcmp.lt.f32.partialorder %v846, %v1730
        %vm2410 = vcmp.lt.f32.partialorder %v846, %v1734
        %vm2411 = vcmp.lt.f32.partialorder %v846, %v1738
        %vm2412 = vcmp.lt.f32.partialorder %v846, %v1742
        %vm2413 = vcmp.lt.f32.partialorder %v846, %v1746
        %vm2414 = vcmp.lt.f32.partialorder %v846, %v1750
        %vm2415 = vcmp.lt.f32.partialorder %v851, %v1722
        %vm2416 = vcmp.lt.f32.partialorder %v851, %v1726
        %vm2417 = vcmp.lt.f32.partialorder %v851, %v1730
        %vm2418 = vcmp.lt.f32.partialorder %v851, %v1734
        %vm2419 = vcmp.lt.f32.partialorder %v851, %v1738
        %vm2420 = vcmp.lt.f32.partialorder %v851, %v1742
        %vm2421 = vcmp.lt.f32.partialorder %v851, %v1746
        %vm2422 = vcmp.lt.f32.partialorder %v851, %v1750
        %vm2423 = vcmp.lt.f32.partialorder %v856, %v1722
        %vm2424 = vcmp.lt.f32.partialorder %v856, %v1726
        %vm2425 = vcmp.lt.f32.partialorder %v856, %v1730
        %vm2426 = vcmp.lt.f32.partialorder %v856, %v1734
        %vm2427 = vcmp.lt.f32.partialorder %v856, %v1738
        %vm2428 = vcmp.lt.f32.partialorder %v856, %v1742
        %vm2429 = vcmp.lt.f32.partialorder %v856, %v1746
        %vm2430 = vcmp.lt.f32.partialorder %v856, %v1750
        %vm2431 = vcmp.lt.f32.partialorder %v861, %v1722
        %vm2432 = vcmp.lt.f32.partialorder %v861, %v1726
        %vm2433 = vcmp.lt.f32.partialorder %v861, %v1730
        %vm2434 = vcmp.lt.f32.partialorder %v861, %v1734
        %vm2435 = vcmp.lt.f32.partialorder %v861, %v1738
        %vm2436 = vcmp.lt.f32.partialorder %v861, %v1742
        %vm2437 = vcmp.lt.f32.partialorder %v861, %v1746
        %vm2438 = vcmp.lt.f32.partialorder %v861, %v1750
        %vm2439 = vcmp.lt.f32.partialorder %v866, %v1722
        %vm2440 = vcmp.lt.f32.partialorder %v866, %v1726
        %vm2441 = vcmp.lt.f32.partialorder %v866, %v1730
        %vm2442 = vcmp.lt.f32.partialorder %v866, %v1734
        %vm2443 = vcmp.lt.f32.partialorder %v866, %v1738
        %vm2444 = vcmp.lt.f32.partialorder %v866, %v1742
        %vm2445 = vcmp.lt.f32.partialorder %v866, %v1746
        %vm2446 = vcmp.lt.f32.partialorder %v866, %v1750
        %vm2447 = vcmp.lt.f32.partialorder %v871, %v1722
        %vm2448 = vcmp.lt.f32.partialorder %v871, %v1726
        %vm2449 = vcmp.lt.f32.partialorder %v871, %v1730
        %vm2450 = vcmp.lt.f32.partialorder %v871, %v1734
        %vm2451 = vcmp.lt.f32.partialorder %v871, %v1738
        %vm2452 = vcmp.lt.f32.partialorder %v871, %v1742
        %vm2453 = vcmp.lt.f32.partialorder %v871, %v1746
        %vm2454 = vcmp.lt.f32.partialorder %v871, %v1750
        %vm2455 = vcmp.lt.f32.partialorder %v876, %v1722
        %vm2456 = vcmp.lt.f32.partialorder %v876, %v1726
        %vm2457 = vcmp.lt.f32.partialorder %v876, %v1730
        %vm2458 = vcmp.lt.f32.partialorder %v876, %v1734
        %vm2459 = vcmp.lt.f32.partialorder %v876, %v1738
        %vm2460 = vcmp.lt.f32.partialorder %v876, %v1742
        %vm2461 = vcmp.lt.f32.partialorder %v876, %v1746
        %vm2462 = vcmp.lt.f32.partialorder %v876, %v1750
        %vm2463 = vcmp.lt.f32.partialorder %v881, %v1722
        %vm2464 = vcmp.lt.f32.partialorder %v881, %v1726
        %vm2465 = vcmp.lt.f32.partialorder %v881, %v1730
        %vm2466 = vcmp.lt.f32.partialorder %v881, %v1734
        %vm2467 = vcmp.lt.f32.partialorder %v881, %v1738
        %vm2468 = vcmp.lt.f32.partialorder %v881, %v1742
        %vm2469 = vcmp.lt.f32.partialorder %v881, %v1746
        %vm2470 = vcmp.lt.f32.partialorder %v881, %v1750
        %vm2471 = vcmp.lt.f32.partialorder %v886, %v1722
        %vm2472 = vcmp.lt.f32.partialorder %v886, %v1726
        %vm2473 = vcmp.lt.f32.partialorder %v886, %v1730
        %vm2474 = vcmp.lt.f32.partialorder %v886, %v1734
        %vm2475 = vcmp.lt.f32.partialorder %v886, %v1738
        %vm2476 = vcmp.lt.f32.partialorder %v886, %v1742
        %vm2477 = vcmp.lt.f32.partialorder %v886, %v1746
        %vm2478 = vcmp.lt.f32.partialorder %v886, %v1750
        %vm2479 = vcmp.lt.f32.partialorder %v891, %v1722
        %vm2480 = vcmp.lt.f32.partialorder %v891, %v1726
        %vm2481 = vcmp.lt.f32.partialorder %v891, %v1730
        %vm2482 = vcmp.lt.f32.partialorder %v891, %v1734
        %vm2483 = vcmp.lt.f32.partialorder %v891, %v1738
        %vm2484 = vcmp.lt.f32.partialorder %v891, %v1742
        %vm2485 = vcmp.lt.f32.partialorder %v891, %v1746
        %vm2486 = vcmp.lt.f32.partialorder %v891, %v1750
        %vm2487 = vcmp.lt.f32.partialorder %v896, %v1722
        %vm2488 = vcmp.lt.f32.partialorder %v896, %v1726
        %vm2489 = vcmp.lt.f32.partialorder %v896, %v1730
        %vm2490 = vcmp.lt.f32.partialorder %v896, %v1734
        %vm2491 = vcmp.lt.f32.partialorder %v896, %v1738
        %vm2492 = vcmp.lt.f32.partialorder %v896, %v1742
        %vm2493 = vcmp.lt.f32.partialorder %v896, %v1746
        %vm2494 = vcmp.lt.f32.partialorder %v896, %v1750
        %vm2495 = vcmp.lt.f32.partialorder %v901, %v1722
        %vm2496 = vcmp.lt.f32.partialorder %v901, %v1726
        %vm2497 = vcmp.lt.f32.partialorder %v901, %v1730
        %vm2498 = vcmp.lt.f32.partialorder %v901, %v1734
        %vm2499 = vcmp.lt.f32.partialorder %v901, %v1738
        %vm2500 = vcmp.lt.f32.partialorder %v901, %v1742
        %vm2501 = vcmp.lt.f32.partialorder %v901, %v1746
        %vm2502 = vcmp.lt.f32.partialorder %v901, %v1750
        %vm2503 = vcmp.lt.f32.partialorder %v906, %v1722
        %vm2504 = vcmp.lt.f32.partialorder %v906, %v1726
        %vm2505 = vcmp.lt.f32.partialorder %v906, %v1730
        %vm2506 = vcmp.lt.f32.partialorder %v906, %v1734
        %vm2507 = vcmp.lt.f32.partialorder %v906, %v1738
        %vm2508 = vcmp.lt.f32.partialorder %v906, %v1742
        %vm2509 = vcmp.lt.f32.partialorder %v906, %v1746
        %vm2510 = vcmp.lt.f32.partialorder %v906, %v1750
        %vm2511 = vcmp.lt.f32.partialorder %v911, %v1722
        %vm2512 = vcmp.lt.f32.partialorder %v911, %v1726
        %vm2513 = vcmp.lt.f32.partialorder %v911, %v1730
        %vm2514 = vcmp.lt.f32.partialorder %v911, %v1734
        %vm2515 = vcmp.lt.f32.partialorder %v911, %v1738
        %vm2516 = vcmp.lt.f32.partialorder %v911, %v1742
        %vm2517 = vcmp.lt.f32.partialorder %v911, %v1746
        %vm2518 = vcmp.lt.f32.partialorder %v911, %v1750
        %vm2519 = vcmp.lt.f32.partialorder %v916, %v1722
        %vm2520 = vcmp.lt.f32.partialorder %v916, %v1726
        %vm2521 = vcmp.lt.f32.partialorder %v916, %v1730
        %vm2522 = vcmp.lt.f32.partialorder %v916, %v1734
        %vm2523 = vcmp.lt.f32.partialorder %v916, %v1738
        %vm2524 = vcmp.lt.f32.partialorder %v916, %v1742
        %vm2525 = vcmp.lt.f32.partialorder %v916, %v1746
        %vm2526 = vcmp.lt.f32.partialorder %v916, %v1750
        %vm2527 = vcmp.lt.f32.partialorder %v921, %v1722
        %vm2528 = vcmp.lt.f32.partialorder %v921, %v1726
        %vm2529 = vcmp.lt.f32.partialorder %v921, %v1730
        %vm2530 = vcmp.lt.f32.partialorder %v921, %v1734
        %vm2531 = vcmp.lt.f32.partialorder %v921, %v1738
        %vm2532 = vcmp.lt.f32.partialorder %v921, %v1742
        %vm2533 = vcmp.lt.f32.partialorder %v921, %v1746
        %vm2534 = vcmp.lt.f32.partialorder %v921, %v1750
        %vm2535 = vcmp.lt.f32.partialorder %v926, %v1722
        %vm2536 = vcmp.lt.f32.partialorder %v926, %v1726
        %vm2537 = vcmp.lt.f32.partialorder %v926, %v1730
        %vm2538 = vcmp.lt.f32.partialorder %v926, %v1734
        %vm2539 = vcmp.lt.f32.partialorder %v926, %v1738
        %vm2540 = vcmp.lt.f32.partialorder %v926, %v1742
        %vm2541 = vcmp.lt.f32.partialorder %v926, %v1746
        %vm2542 = vcmp.lt.f32.partialorder %v926, %v1750
        %vm2543 = vcmp.lt.f32.partialorder %v931, %v1722
        %vm2544 = vcmp.lt.f32.partialorder %v931, %v1726
        %vm2545 = vcmp.lt.f32.partialorder %v931, %v1730
        %vm2546 = vcmp.lt.f32.partialorder %v931, %v1734
        %vm2547 = vcmp.lt.f32.partialorder %v931, %v1738
        %vm2548 = vcmp.lt.f32.partialorder %v931, %v1742
        %vm2549 = vcmp.lt.f32.partialorder %v931, %v1746
        %vm2550 = vcmp.lt.f32.partialorder %v931, %v1750
        %vm2551 = vcmp.lt.f32.partialorder %v936, %v1722
        %vm2552 = vcmp.lt.f32.partialorder %v936, %v1726
        %vm2553 = vcmp.lt.f32.partialorder %v936, %v1730
        %vm2554 = vcmp.lt.f32.partialorder %v936, %v1734
        %vm2555 = vcmp.lt.f32.partialorder %v936, %v1738
        %vm2556 = vcmp.lt.f32.partialorder %v936, %v1742
        %vm2557 = vcmp.lt.f32.partialorder %v936, %v1746
        %vm2558 = vcmp.lt.f32.partialorder %v936, %v1750
        %vm2559 = vcmp.lt.f32.partialorder %v941, %v1722
        %vm2560 = vcmp.lt.f32.partialorder %v941, %v1726
        %vm2561 = vcmp.lt.f32.partialorder %v941, %v1730
        %vm2562 = vcmp.lt.f32.partialorder %v941, %v1734
        %vm2563 = vcmp.lt.f32.partialorder %v941, %v1738
        %vm2564 = vcmp.lt.f32.partialorder %v941, %v1742
        %vm2565 = vcmp.lt.f32.partialorder %v941, %v1746
        %vm2566 = vcmp.lt.f32.partialorder %v941, %v1750
        %vm2567 = vcmp.lt.f32.partialorder %v946, %v1722
        %vm2568 = vcmp.lt.f32.partialorder %v946, %v1726
        %vm2569 = vcmp.lt.f32.partialorder %v946, %v1730
        %vm2570 = vcmp.lt.f32.partialorder %v946, %v1734
        %vm2571 = vcmp.lt.f32.partialorder %v946, %v1738
        %vm2572 = vcmp.lt.f32.partialorder %v946, %v1742
        %vm2573 = vcmp.lt.f32.partialorder %v946, %v1746
        %vm2574 = vcmp.lt.f32.partialorder %v946, %v1750
        %vm2575 = vcmp.lt.f32.partialorder %v951, %v1722
        %vm2576 = vcmp.lt.f32.partialorder %v951, %v1726
        %vm2577 = vcmp.lt.f32.partialorder %v951, %v1730
        %vm2578 = vcmp.lt.f32.partialorder %v951, %v1734
        %vm2579 = vcmp.lt.f32.partialorder %v951, %v1738
        %vm2580 = vcmp.lt.f32.partialorder %v951, %v1742
        %vm2581 = vcmp.lt.f32.partialorder %v951, %v1746
        %vm2582 = vcmp.lt.f32.partialorder %v951, %v1750
        %vm2583 = vcmp.lt.f32.partialorder %v956, %v1722
        %vm2584 = vcmp.lt.f32.partialorder %v956, %v1726
        %vm2585 = vcmp.lt.f32.partialorder %v956, %v1730
        %vm2586 = vcmp.lt.f32.partialorder %v956, %v1734
        %vm2587 = vcmp.lt.f32.partialorder %v956, %v1738
        %vm2588 = vcmp.lt.f32.partialorder %v956, %v1742
        %vm2589 = vcmp.lt.f32.partialorder %v956, %v1746
        %vm2590 = vcmp.lt.f32.partialorder %v956, %v1750
        %vm2591 = vcmp.lt.f32.partialorder %v961, %v1722
        %vm2592 = vcmp.lt.f32.partialorder %v961, %v1726
        %vm2593 = vcmp.lt.f32.partialorder %v961, %v1730
        %vm2594 = vcmp.lt.f32.partialorder %v961, %v1734
        %vm2595 = vcmp.lt.f32.partialorder %v961, %v1738
        %vm2596 = vcmp.lt.f32.partialorder %v961, %v1742
        %vm2597 = vcmp.lt.f32.partialorder %v961, %v1746
        %vm2598 = vcmp.lt.f32.partialorder %v961, %v1750
        %vm2599 = vcmp.lt.f32.partialorder %v966, %v1722
        %vm2600 = vcmp.lt.f32.partialorder %v966, %v1726
        %vm2601 = vcmp.lt.f32.partialorder %v966, %v1730
        %vm2602 = vcmp.lt.f32.partialorder %v966, %v1734
        %vm2603 = vcmp.lt.f32.partialorder %v966, %v1738
        %vm2604 = vcmp.lt.f32.partialorder %v966, %v1742
        %vm2605 = vcmp.lt.f32.partialorder %v966, %v1746
        %vm2606 = vcmp.lt.f32.partialorder %v966, %v1750
        %vm2607 = vcmp.lt.f32.partialorder %v971, %v1722
        %vm2608 = vcmp.lt.f32.partialorder %v971, %v1726
        %vm2609 = vcmp.lt.f32.partialorder %v971, %v1730
        %vm2610 = vcmp.lt.f32.partialorder %v971, %v1734
        %vm2611 = vcmp.lt.f32.partialorder %v971, %v1738
        %vm2612 = vcmp.lt.f32.partialorder %v971, %v1742
        %vm2613 = vcmp.lt.f32.partialorder %v971, %v1746
        %vm2614 = vcmp.lt.f32.partialorder %v971, %v1750
        %vm2615 = vcmp.lt.f32.partialorder %v976, %v1722
        %vm2616 = vcmp.lt.f32.partialorder %v976, %v1726
        %vm2617 = vcmp.lt.f32.partialorder %v976, %v1730
        %vm2618 = vcmp.lt.f32.partialorder %v976, %v1734
        %vm2619 = vcmp.lt.f32.partialorder %v976, %v1738
        %vm2620 = vcmp.lt.f32.partialorder %v976, %v1742
        %vm2621 = vcmp.lt.f32.partialorder %v976, %v1746
        %vm2622 = vcmp.lt.f32.partialorder %v976, %v1750
        %vm2623 = vcmp.lt.f32.partialorder %v981, %v1722
        %vm2624 = vcmp.lt.f32.partialorder %v981, %v1726
        %vm2625 = vcmp.lt.f32.partialorder %v981, %v1730
        %vm2626 = vcmp.lt.f32.partialorder %v981, %v1734
        %vm2627 = vcmp.lt.f32.partialorder %v981, %v1738
        %vm2628 = vcmp.lt.f32.partialorder %v981, %v1742
        %vm2629 = vcmp.lt.f32.partialorder %v981, %v1746
        %vm2630 = vcmp.lt.f32.partialorder %v981, %v1750
        %vm2631 = vcmp.lt.f32.partialorder %v986, %v1722
        %vm2632 = vcmp.lt.f32.partialorder %v986, %v1726
        %vm2633 = vcmp.lt.f32.partialorder %v986, %v1730
        %vm2634 = vcmp.lt.f32.partialorder %v986, %v1734
        %vm2635 = vcmp.lt.f32.partialorder %v986, %v1738
        %vm2636 = vcmp.lt.f32.partialorder %v986, %v1742
        %vm2637 = vcmp.lt.f32.partialorder %v986, %v1746
        %vm2638 = vcmp.lt.f32.partialorder %v986, %v1750
        %vm2639 = vcmp.lt.f32.partialorder %v991, %v1722
        %vm2640 = vcmp.lt.f32.partialorder %v991, %v1726
        %vm2641 = vcmp.lt.f32.partialorder %v991, %v1730
        %vm2642 = vcmp.lt.f32.partialorder %v991, %v1734
        %vm2643 = vcmp.lt.f32.partialorder %v991, %v1738
        %vm2644 = vcmp.lt.f32.partialorder %v991, %v1742
        %vm2645 = vcmp.lt.f32.partialorder %v991, %v1746
        %vm2646 = vcmp.lt.f32.partialorder %v991, %v1750
        %vm2647 = vcmp.lt.f32.partialorder %v996, %v1722
        %vm2648 = vcmp.lt.f32.partialorder %v996, %v1726
        %vm2649 = vcmp.lt.f32.partialorder %v996, %v1730
        %vm2650 = vcmp.lt.f32.partialorder %v996, %v1734
        %vm2651 = vcmp.lt.f32.partialorder %v996, %v1738
        %vm2652 = vcmp.lt.f32.partialorder %v996, %v1742
        %vm2653 = vcmp.lt.f32.partialorder %v996, %v1746
        %vm2654 = vcmp.lt.f32.partialorder %v996, %v1750
        %vm2655 = vcmp.lt.f32.partialorder %v1001, %v1722
        %vm2656 = vcmp.lt.f32.partialorder %v1001, %v1726
        %vm2657 = vcmp.lt.f32.partialorder %v1001, %v1730
        %vm2658 = vcmp.lt.f32.partialorder %v1001, %v1734
        %vm2659 = vcmp.lt.f32.partialorder %v1001, %v1738
        %vm2660 = vcmp.lt.f32.partialorder %v1001, %v1742
        %vm2661 = vcmp.lt.f32.partialorder %v1001, %v1746
        %vm2662 = vcmp.lt.f32.partialorder %v1001, %v1750
        %vm2663 = vcmp.lt.f32.partialorder %v1006, %v1722
        %vm2664 = vcmp.lt.f32.partialorder %v1006, %v1726
        %vm2665 = vcmp.lt.f32.partialorder %v1006, %v1730
        %vm2666 = vcmp.lt.f32.partialorder %v1006, %v1734
        %vm2667 = vcmp.lt.f32.partialorder %v1006, %v1738
        %vm2668 = vcmp.lt.f32.partialorder %v1006, %v1742
        %vm2669 = vcmp.lt.f32.partialorder %v1006, %v1746
        %vm2670 = vcmp.lt.f32.partialorder %v1006, %v1750
        %vm2671 = vcmp.lt.f32.partialorder %v1011, %v1722
        %vm2672 = vcmp.lt.f32.partialorder %v1011, %v1726
        %vm2673 = vcmp.lt.f32.partialorder %v1011, %v1730
        %vm2674 = vcmp.lt.f32.partialorder %v1011, %v1734
        %vm2675 = vcmp.lt.f32.partialorder %v1011, %v1738
        %vm2676 = vcmp.lt.f32.partialorder %v1011, %v1742
        %vm2677 = vcmp.lt.f32.partialorder %v1011, %v1746
        %vm2678 = vcmp.lt.f32.partialorder %v1011, %v1750
        %vm2679 = vcmp.lt.f32.partialorder %v1016, %v1722
        %vm2680 = vcmp.lt.f32.partialorder %v1016, %v1726
        %vm2681 = vcmp.lt.f32.partialorder %v1016, %v1730
        %vm2682 = vcmp.lt.f32.partialorder %v1016, %v1734
        %vm2683 = vcmp.lt.f32.partialorder %v1016, %v1738
        %vm2684 = vcmp.lt.f32.partialorder %v1016, %v1742
        %vm2685 = vcmp.lt.f32.partialorder %v1016, %v1746
        %vm2686 = vcmp.lt.f32.partialorder %v1016, %v1750
        %vm2687 = vcmp.lt.f32.partialorder %v1021, %v1722
        %vm2688 = vcmp.lt.f32.partialorder %v1021, %v1726
        %vm2689 = vcmp.lt.f32.partialorder %v1021, %v1730
        %vm2690 = vcmp.lt.f32.partialorder %v1021, %v1734
        %vm2691 = vcmp.lt.f32.partialorder %v1021, %v1738
        %vm2692 = vcmp.lt.f32.partialorder %v1021, %v1742
        %vm2693 = vcmp.lt.f32.partialorder %v1021, %v1746
        %vm2694 = vcmp.lt.f32.partialorder %v1021, %v1750
        %vm2695 = vcmp.lt.f32.partialorder %v1026, %v1722
        %vm2696 = vcmp.lt.f32.partialorder %v1026, %v1726
        %vm2697 = vcmp.lt.f32.partialorder %v1026, %v1730
        %vm2698 = vcmp.lt.f32.partialorder %v1026, %v1734
        %vm2699 = vcmp.lt.f32.partialorder %v1026, %v1738
        %vm2700 = vcmp.lt.f32.partialorder %v1026, %v1742
        %vm2701 = vcmp.lt.f32.partialorder %v1026, %v1746
        %vm2702 = vcmp.lt.f32.partialorder %v1026, %v1750
        %vm2703 = vcmp.lt.f32.partialorder %v1031, %v1722
        %vm2704 = vcmp.lt.f32.partialorder %v1031, %v1726
        %vm2705 = vcmp.lt.f32.partialorder %v1031, %v1730
        %vm2706 = vcmp.lt.f32.partialorder %v1031, %v1734
        %vm2707 = vcmp.lt.f32.partialorder %v1031, %v1738
        %vm2708 = vcmp.lt.f32.partialorder %v1031, %v1742
        %vm2709 = vcmp.lt.f32.partialorder %v1031, %v1746
        %vm2710 = vcmp.lt.f32.partialorder %v1031, %v1750
        %vm2711 = vcmp.lt.f32.partialorder %v1036, %v1722
        %vm2712 = vcmp.lt.f32.partialorder %v1036, %v1726
        %vm2713 = vcmp.lt.f32.partialorder %v1036, %v1730
        %vm2714 = vcmp.lt.f32.partialorder %v1036, %v1734
        %vm2715 = vcmp.lt.f32.partialorder %v1036, %v1738
        %vm2716 = vcmp.lt.f32.partialorder %v1036, %v1742
        %vm2717 = vcmp.lt.f32.partialorder %v1036, %v1746
        %vm2718 = vcmp.lt.f32.partialorder %v1036, %v1750
        %vm2719 = vcmp.lt.f32.partialorder %v1041, %v1722
        %vm2720 = vcmp.lt.f32.partialorder %v1041, %v1726
        %vm2721 = vcmp.lt.f32.partialorder %v1041, %v1730
        %vm2722 = vcmp.lt.f32.partialorder %v1041, %v1734
        %vm2723 = vcmp.lt.f32.partialorder %v1041, %v1738
        %vm2724 = vcmp.lt.f32.partialorder %v1041, %v1742
        %vm2725 = vcmp.lt.f32.partialorder %v1041, %v1746
        %vm2726 = vcmp.lt.f32.partialorder %v1041, %v1750
        %vm2727 = vcmp.lt.f32.partialorder %v1046, %v1722
        %vm2728 = vcmp.lt.f32.partialorder %v1046, %v1726
        %vm2729 = vcmp.lt.f32.partialorder %v1046, %v1730
        %vm2730 = vcmp.lt.f32.partialorder %v1046, %v1734
        %vm2731 = vcmp.lt.f32.partialorder %v1046, %v1738
        %vm2732 = vcmp.lt.f32.partialorder %v1046, %v1742
        %vm2733 = vcmp.lt.f32.partialorder %v1046, %v1746
        %vm2734 = vcmp.lt.f32.partialorder %v1046, %v1750
        %vm2735 = vcmp.lt.f32.partialorder %v1051, %v1722
        %vm2736 = vcmp.lt.f32.partialorder %v1051, %v1726
        %vm2737 = vcmp.lt.f32.partialorder %v1051, %v1730
        %vm2738 = vcmp.lt.f32.partialorder %v1051, %v1734
        %vm2739 = vcmp.lt.f32.partialorder %v1051, %v1738
        %vm2740 = vcmp.lt.f32.partialorder %v1051, %v1742
        %vm2741 = vcmp.lt.f32.partialorder %v1051, %v1746
        %vm2742 = vcmp.lt.f32.partialorder %v1051, %v1750
        %vm2743 = vcmp.lt.f32.partialorder %v1056, %v1722
        %vm2744 = vcmp.lt.f32.partialorder %v1056, %v1726
        %vm2745 = vcmp.lt.f32.partialorder %v1056, %v1730
        %vm2746 = vcmp.lt.f32.partialorder %v1056, %v1734
        %vm2747 = vcmp.lt.f32.partialorder %v1056, %v1738
        %vm2748 = vcmp.lt.f32.partialorder %v1056, %v1742
        %vm2749 = vcmp.lt.f32.partialorder %v1056, %v1746
        %vm2750 = vcmp.lt.f32.partialorder %v1056, %v1750
        %vm2751 = vcmp.lt.f32.partialorder %v1061, %v1722
        %vm2752 = vcmp.lt.f32.partialorder %v1061, %v1726
        %vm2753 = vcmp.lt.f32.partialorder %v1061, %v1730
        %vm2754 = vcmp.lt.f32.partialorder %v1061, %v1734
        %vm2755 = vcmp.lt.f32.partialorder %v1061, %v1738
        %vm2756 = vcmp.lt.f32.partialorder %v1061, %v1742
        %vm2757 = vcmp.lt.f32.partialorder %v1061, %v1746
        %vm2758 = vcmp.lt.f32.partialorder %v1061, %v1750
        %vm2759 = vcmp.lt.f32.partialorder %v1066, %v1722
        %vm2760 = vcmp.lt.f32.partialorder %v1066, %v1726
        %vm2761 = vcmp.lt.f32.partialorder %v1066, %v1730
        %vm2762 = vcmp.lt.f32.partialorder %v1066, %v1734
        %vm2763 = vcmp.lt.f32.partialorder %v1066, %v1738
        %vm2764 = vcmp.lt.f32.partialorder %v1066, %v1742
        %vm2765 = vcmp.lt.f32.partialorder %v1066, %v1746
        %vm2766 = vcmp.lt.f32.partialorder %v1066, %v1750
        %vm2767 = vcmp.lt.f32.partialorder %v1071, %v1722
        %vm2768 = vcmp.lt.f32.partialorder %v1071, %v1726
        %vm2769 = vcmp.lt.f32.partialorder %v1071, %v1730
        %vm2770 = vcmp.lt.f32.partialorder %v1071, %v1734
        %vm2771 = vcmp.lt.f32.partialorder %v1071, %v1738
        %vm2772 = vcmp.lt.f32.partialorder %v1071, %v1742
        %vm2773 = vcmp.lt.f32.partialorder %v1071, %v1746
        %vm2774 = vcmp.lt.f32.partialorder %v1071, %v1750
        %vm2775 = vcmp.lt.f32.partialorder %v1076, %v1722
        %vm2776 = vcmp.lt.f32.partialorder %v1076, %v1726
        %vm2777 = vcmp.lt.f32.partialorder %v1076, %v1730
        %vm2778 = vcmp.lt.f32.partialorder %v1076, %v1734
        %vm2779 = vcmp.lt.f32.partialorder %v1076, %v1738
        %vm2780 = vcmp.lt.f32.partialorder %v1076, %v1742
        %vm2781 = vcmp.lt.f32.partialorder %v1076, %v1746
        %vm2782 = vcmp.lt.f32.partialorder %v1076, %v1750
        %vm2783 = vcmp.lt.f32.partialorder %v1081, %v1722
        %vm2784 = vcmp.lt.f32.partialorder %v1081, %v1726
        %vm2785 = vcmp.lt.f32.partialorder %v1081, %v1730
        %vm2786 = vcmp.lt.f32.partialorder %v1081, %v1734
        %vm2787 = vcmp.lt.f32.partialorder %v1081, %v1738
        %vm2788 = vcmp.lt.f32.partialorder %v1081, %v1742
        %vm2789 = vcmp.lt.f32.partialorder %v1081, %v1746
        %vm2790 = vcmp.lt.f32.partialorder %v1081, %v1750
        %vm2791 = vcmp.lt.f32.partialorder %v1086, %v1722
        %vm2792 = vcmp.lt.f32.partialorder %v1086, %v1726
        %vm2793 = vcmp.lt.f32.partialorder %v1086, %v1730
        %vm2794 = vcmp.lt.f32.partialorder %v1086, %v1734
        %vm2795 = vcmp.lt.f32.partialorder %v1086, %v1738
        %vm2796 = vcmp.lt.f32.partialorder %v1086, %v1742
        %vm2797 = vcmp.lt.f32.partialorder %v1086, %v1746
        %vm2798 = vcmp.lt.f32.partialorder %v1086, %v1750
        %vm2799 = vcmp.lt.f32.partialorder %v1091, %v1722
        %vm2800 = vcmp.lt.f32.partialorder %v1091, %v1726
        %vm2801 = vcmp.lt.f32.partialorder %v1091, %v1730
        %vm2802 = vcmp.lt.f32.partialorder %v1091, %v1734
        %vm2803 = vcmp.lt.f32.partialorder %v1091, %v1738
        %vm2804 = vcmp.lt.f32.partialorder %v1091, %v1742
        %vm2805 = vcmp.lt.f32.partialorder %v1091, %v1746
        %vm2806 = vcmp.lt.f32.partialorder %v1091, %v1750
        %vm2807 = vcmp.lt.f32.partialorder %v1096, %v1722
        %vm2808 = vcmp.lt.f32.partialorder %v1096, %v1726
        %vm2809 = vcmp.lt.f32.partialorder %v1096, %v1730
        %vm2810 = vcmp.lt.f32.partialorder %v1096, %v1734
        %vm2811 = vcmp.lt.f32.partialorder %v1096, %v1738
        %vm2812 = vcmp.lt.f32.partialorder %v1096, %v1742
        %vm2813 = vcmp.lt.f32.partialorder %v1096, %v1746
        %vm2814 = vcmp.lt.f32.partialorder %v1096, %v1750
        %vm2815 = vcmp.lt.f32.partialorder %v1101, %v1722
        %vm2816 = vcmp.lt.f32.partialorder %v1101, %v1726
        %vm2817 = vcmp.lt.f32.partialorder %v1101, %v1730
        %vm2818 = vcmp.lt.f32.partialorder %v1101, %v1734
        %vm2819 = vcmp.lt.f32.partialorder %v1101, %v1738
        %vm2820 = vcmp.lt.f32.partialorder %v1101, %v1742
        %vm2821 = vcmp.lt.f32.partialorder %v1101, %v1746
        %vm2822 = vcmp.lt.f32.partialorder %v1101, %v1750
        %vm2823 = vcmp.lt.f32.partialorder %v1106, %v1722
        %vm2824 = vcmp.lt.f32.partialorder %v1106, %v1726
        %vm2825 = vcmp.lt.f32.partialorder %v1106, %v1730
        %vm2826 = vcmp.lt.f32.partialorder %v1106, %v1734
        %vm2827 = vcmp.lt.f32.partialorder %v1106, %v1738
        %vm2828 = vcmp.lt.f32.partialorder %v1106, %v1742
        %vm2829 = vcmp.lt.f32.partialorder %v1106, %v1746
        %vm2830 = vcmp.lt.f32.partialorder %v1106, %v1750
        %vm2831 = vcmp.lt.f32.partialorder %v1111, %v1722
        %vm2832 = vcmp.lt.f32.partialorder %v1111, %v1726
        %vm2833 = vcmp.lt.f32.partialorder %v1111, %v1730
        %vm2834 = vcmp.lt.f32.partialorder %v1111, %v1734
        %vm2835 = vcmp.lt.f32.partialorder %v1111, %v1738
        %vm2836 = vcmp.lt.f32.partialorder %v1111, %v1742
        %vm2837 = vcmp.lt.f32.partialorder %v1111, %v1746
        %vm2838 = vcmp.lt.f32.partialorder %v1111, %v1750
        %vm2839 = vcmp.lt.f32.partialorder %v1116, %v1722
        %vm2840 = vcmp.lt.f32.partialorder %v1116, %v1726
        %vm2841 = vcmp.lt.f32.partialorder %v1116, %v1730
        %vm2842 = vcmp.lt.f32.partialorder %v1116, %v1734
        %vm2843 = vcmp.lt.f32.partialorder %v1116, %v1738
        %vm2844 = vcmp.lt.f32.partialorder %v1116, %v1742
        %vm2845 = vcmp.lt.f32.partialorder %v1116, %v1746
        %vm2846 = vcmp.lt.f32.partialorder %v1116, %v1750
        %vm2847 = vcmp.lt.f32.partialorder %v1121, %v1722
        %vm2848 = vcmp.lt.f32.partialorder %v1121, %v1726
        %vm2849 = vcmp.lt.f32.partialorder %v1121, %v1730
        %vm2850 = vcmp.lt.f32.partialorder %v1121, %v1734
        %vm2851 = vcmp.lt.f32.partialorder %v1121, %v1738
        %vm2852 = vcmp.lt.f32.partialorder %v1121, %v1742
        %vm2853 = vcmp.lt.f32.partialorder %v1121, %v1746
        %vm2854 = vcmp.lt.f32.partialorder %v1121, %v1750
        %vm2855 = vcmp.lt.f32.partialorder %v1126, %v1722
        %vm2856 = vcmp.lt.f32.partialorder %v1126, %v1726
        %vm2857 = vcmp.lt.f32.partialorder %v1126, %v1730
        %vm2858 = vcmp.lt.f32.partialorder %v1126, %v1734
        %vm2859 = vcmp.lt.f32.partialorder %v1126, %v1738
        %vm2860 = vcmp.lt.f32.partialorder %v1126, %v1742
        %vm2861 = vcmp.lt.f32.partialorder %v1126, %v1746
        %vm2862 = vcmp.lt.f32.partialorder %v1126, %v1750
        %vm2863 = vcmp.lt.f32.partialorder %v1131, %v1722
        %vm2864 = vcmp.lt.f32.partialorder %v1131, %v1726
        %vm2865 = vcmp.lt.f32.partialorder %v1131, %v1730
        %vm2866 = vcmp.lt.f32.partialorder %v1131, %v1734
        %vm2867 = vcmp.lt.f32.partialorder %v1131, %v1738
        %vm2868 = vcmp.lt.f32.partialorder %v1131, %v1742
        %vm2869 = vcmp.lt.f32.partialorder %v1131, %v1746
        %vm2870 = vcmp.lt.f32.partialorder %v1131, %v1750
        %vm2871 = vcmp.lt.f32.partialorder %v1136, %v1722
        %vm2872 = vcmp.lt.f32.partialorder %v1136, %v1726
        %vm2873 = vcmp.lt.f32.partialorder %v1136, %v1730
        %vm2874 = vcmp.lt.f32.partialorder %v1136, %v1734
        %vm2875 = vcmp.lt.f32.partialorder %v1136, %v1738
        %vm2876 = vcmp.lt.f32.partialorder %v1136, %v1742
        %vm2877 = vcmp.lt.f32.partialorder %v1136, %v1746
        %vm2878 = vcmp.lt.f32.partialorder %v1136, %v1750
        %vm2879 = vcmp.lt.f32.partialorder %v1141, %v1722
        %vm2880 = vcmp.lt.f32.partialorder %v1141, %v1726
        %vm2881 = vcmp.lt.f32.partialorder %v1141, %v1730
        %vm2882 = vcmp.lt.f32.partialorder %v1141, %v1734
        %vm2883 = vcmp.lt.f32.partialorder %v1141, %v1738
        %vm2884 = vcmp.lt.f32.partialorder %v1141, %v1742
        %vm2885 = vcmp.lt.f32.partialorder %v1141, %v1746
        %vm2886 = vcmp.lt.f32.partialorder %v1141, %v1750
        %vm2887 = vcmp.lt.f32.partialorder %v1146, %v1722
        %vm2888 = vcmp.lt.f32.partialorder %v1146, %v1726
        %vm2889 = vcmp.lt.f32.partialorder %v1146, %v1730
        %vm2890 = vcmp.lt.f32.partialorder %v1146, %v1734
        %vm2891 = vcmp.lt.f32.partialorder %v1146, %v1738
        %vm2892 = vcmp.lt.f32.partialorder %v1146, %v1742
        %vm2893 = vcmp.lt.f32.partialorder %v1146, %v1746
        %vm2894 = vcmp.lt.f32.partialorder %v1146, %v1750
        %vm2895 = vcmp.lt.f32.partialorder %v1151, %v1722
        %vm2896 = vcmp.lt.f32.partialorder %v1151, %v1726
        %vm2897 = vcmp.lt.f32.partialorder %v1151, %v1730
        %vm2898 = vcmp.lt.f32.partialorder %v1151, %v1734
        %vm2899 = vcmp.lt.f32.partialorder %v1151, %v1738
        %vm2900 = vcmp.lt.f32.partialorder %v1151, %v1742
        %vm2901 = vcmp.lt.f32.partialorder %v1151, %v1746
        %vm2902 = vcmp.lt.f32.partialorder %v1151, %v1750
        %vm2903 = vcmp.lt.f32.partialorder %v1156, %v1722
        %vm2904 = vcmp.lt.f32.partialorder %v1156, %v1726
        %vm2905 = vcmp.lt.f32.partialorder %v1156, %v1730
        %vm2906 = vcmp.lt.f32.partialorder %v1156, %v1734
        %vm2907 = vcmp.lt.f32.partialorder %v1156, %v1738
        %vm2908 = vcmp.lt.f32.partialorder %v1156, %v1742
        %vm2909 = vcmp.lt.f32.partialorder %v1156, %v1746
        %vm2910 = vcmp.lt.f32.partialorder %v1156, %v1750
        %vm2911 = vcmp.lt.f32.partialorder %v1161, %v1722
        %vm2912 = vcmp.lt.f32.partialorder %v1161, %v1726
        %vm2913 = vcmp.lt.f32.partialorder %v1161, %v1730
        %vm2914 = vcmp.lt.f32.partialorder %v1161, %v1734
        %vm2915 = vcmp.lt.f32.partialorder %v1161, %v1738
        %vm2916 = vcmp.lt.f32.partialorder %v1161, %v1742
        %vm2917 = vcmp.lt.f32.partialorder %v1161, %v1746
        %vm2918 = vcmp.lt.f32.partialorder %v1161, %v1750
        %vm2919 = vcmp.lt.f32.partialorder %v1166, %v1722
        %vm2920 = vcmp.lt.f32.partialorder %v1166, %v1726
        %vm2921 = vcmp.lt.f32.partialorder %v1166, %v1730
        %vm2922 = vcmp.lt.f32.partialorder %v1166, %v1734
        %vm2923 = vcmp.lt.f32.partialorder %v1166, %v1738
        %vm2924 = vcmp.lt.f32.partialorder %v1166, %v1742
        %vm2925 = vcmp.lt.f32.partialorder %v1166, %v1746
        %vm2926 = vcmp.lt.f32.partialorder %v1166, %v1750
        %vm2927 = vcmp.lt.f32.partialorder %v1171, %v1722
        %vm2928 = vcmp.lt.f32.partialorder %v1171, %v1726
        %vm2929 = vcmp.lt.f32.partialorder %v1171, %v1730
        %vm2930 = vcmp.lt.f32.partialorder %v1171, %v1734
        %vm2931 = vcmp.lt.f32.partialorder %v1171, %v1738
        %vm2932 = vcmp.lt.f32.partialorder %v1171, %v1742
        %vm2933 = vcmp.lt.f32.partialorder %v1171, %v1746
        %vm2934 = vcmp.lt.f32.partialorder %v1171, %v1750
        %vm2935 = vcmp.lt.f32.partialorder %v1176, %v1722
        %vm2936 = vcmp.lt.f32.partialorder %v1176, %v1726
        %vm2937 = vcmp.lt.f32.partialorder %v1176, %v1730
        %vm2938 = vcmp.lt.f32.partialorder %v1176, %v1734
        %vm2939 = vcmp.lt.f32.partialorder %v1176, %v1738
        %vm2940 = vcmp.lt.f32.partialorder %v1176, %v1742
        %vm2941 = vcmp.lt.f32.partialorder %v1176, %v1746
        %vm2942 = vcmp.lt.f32.partialorder %v1176, %v1750
        %vm2943 = vcmp.lt.f32.partialorder %v1181, %v1722
        %vm2944 = vcmp.lt.f32.partialorder %v1181, %v1726
        %vm2945 = vcmp.lt.f32.partialorder %v1181, %v1730
        %vm2946 = vcmp.lt.f32.partialorder %v1181, %v1734
        %vm2947 = vcmp.lt.f32.partialorder %v1181, %v1738
        %vm2948 = vcmp.lt.f32.partialorder %v1181, %v1742
        %vm2949 = vcmp.lt.f32.partialorder %v1181, %v1746
        %vm2950 = vcmp.lt.f32.partialorder %v1181, %v1750
        %vm2951 = vcmp.lt.f32.partialorder %v1186, %v1722
        %vm2952 = vcmp.lt.f32.partialorder %v1186, %v1726
        %vm2953 = vcmp.lt.f32.partialorder %v1186, %v1730
        %vm2954 = vcmp.lt.f32.partialorder %v1186, %v1734
        %vm2955 = vcmp.lt.f32.partialorder %v1186, %v1738
        %vm2956 = vcmp.lt.f32.partialorder %v1186, %v1742
        %vm2957 = vcmp.lt.f32.partialorder %v1186, %v1746
        %vm2958 = vcmp.lt.f32.partialorder %v1186, %v1750
        %vm2959 = vcmp.lt.f32.partialorder %v1191, %v1722
        %vm2960 = vcmp.lt.f32.partialorder %v1191, %v1726
        %vm2961 = vcmp.lt.f32.partialorder %v1191, %v1730
        %vm2962 = vcmp.lt.f32.partialorder %v1191, %v1734
        %vm2963 = vcmp.lt.f32.partialorder %v1191, %v1738
        %vm2964 = vcmp.lt.f32.partialorder %v1191, %v1742
        %vm2965 = vcmp.lt.f32.partialorder %v1191, %v1746
        %vm2966 = vcmp.lt.f32.partialorder %v1191, %v1750
        %vm2967 = vcmp.lt.f32.partialorder %v1196, %v1722
        %vm2968 = vcmp.lt.f32.partialorder %v1196, %v1726
        %vm2969 = vcmp.lt.f32.partialorder %v1196, %v1730
        %vm2970 = vcmp.lt.f32.partialorder %v1196, %v1734
        %vm2971 = vcmp.lt.f32.partialorder %v1196, %v1738
        %vm2972 = vcmp.lt.f32.partialorder %v1196, %v1742
        %vm2973 = vcmp.lt.f32.partialorder %v1196, %v1746
        %vm2974 = vcmp.lt.f32.partialorder %v1196, %v1750
        %vm2975 = vcmp.lt.f32.partialorder %v1201, %v1722
        %vm2976 = vcmp.lt.f32.partialorder %v1201, %v1726
        %vm2977 = vcmp.lt.f32.partialorder %v1201, %v1730
        %vm2978 = vcmp.lt.f32.partialorder %v1201, %v1734
        %vm2979 = vcmp.lt.f32.partialorder %v1201, %v1738
        %vm2980 = vcmp.lt.f32.partialorder %v1201, %v1742
        %vm2981 = vcmp.lt.f32.partialorder %v1201, %v1746
        %vm2982 = vcmp.lt.f32.partialorder %v1201, %v1750
        %vm2983 = vcmp.lt.f32.partialorder %v1206, %v1722
        %vm2984 = vcmp.lt.f32.partialorder %v1206, %v1726
        %vm2985 = vcmp.lt.f32.partialorder %v1206, %v1730
        %vm2986 = vcmp.lt.f32.partialorder %v1206, %v1734
        %vm2987 = vcmp.lt.f32.partialorder %v1206, %v1738
        %vm2988 = vcmp.lt.f32.partialorder %v1206, %v1742
        %vm2989 = vcmp.lt.f32.partialorder %v1206, %v1746
        %vm2990 = vcmp.lt.f32.partialorder %v1206, %v1750
        %vm2991 = vcmp.lt.f32.partialorder %v1211, %v1722
        %vm2992 = vcmp.lt.f32.partialorder %v1211, %v1726
        %vm2993 = vcmp.lt.f32.partialorder %v1211, %v1730
        %vm2994 = vcmp.lt.f32.partialorder %v1211, %v1734
        %vm2995 = vcmp.lt.f32.partialorder %v1211, %v1738
        %vm2996 = vcmp.lt.f32.partialorder %v1211, %v1742
        %vm2997 = vcmp.lt.f32.partialorder %v1211, %v1746
        %vm2998 = vcmp.lt.f32.partialorder %v1211, %v1750
        %vm2999 = vcmp.lt.f32.partialorder %v1216, %v1722
        %vm3000 = vcmp.lt.f32.partialorder %v1216, %v1726
        %vm3001 = vcmp.lt.f32.partialorder %v1216, %v1730
        %vm3002 = vcmp.lt.f32.partialorder %v1216, %v1734
        %vm3003 = vcmp.lt.f32.partialorder %v1216, %v1738
        %vm3004 = vcmp.lt.f32.partialorder %v1216, %v1742
        %vm3005 = vcmp.lt.f32.partialorder %v1216, %v1746
        %vm3006 = vcmp.lt.f32.partialorder %v1216, %v1750
        %vm3007 = vcmp.lt.f32.partialorder %v1221, %v1722
        %vm3008 = vcmp.lt.f32.partialorder %v1221, %v1726
        %vm3009 = vcmp.lt.f32.partialorder %v1221, %v1730
        %vm3010 = vcmp.lt.f32.partialorder %v1221, %v1734
        %vm3011 = vcmp.lt.f32.partialorder %v1221, %v1738
        %vm3012 = vcmp.lt.f32.partialorder %v1221, %v1742
        %vm3013 = vcmp.lt.f32.partialorder %v1221, %v1746
        %vm3014 = vcmp.lt.f32.partialorder %v1221, %v1750
        %vm3015 = vcmp.lt.f32.partialorder %v1226, %v1722
        %vm3016 = vcmp.lt.f32.partialorder %v1226, %v1726
        %vm3017 = vcmp.lt.f32.partialorder %v1226, %v1730
        %vm3018 = vcmp.lt.f32.partialorder %v1226, %v1734
        %vm3019 = vcmp.lt.f32.partialorder %v1226, %v1738
        %vm3020 = vcmp.lt.f32.partialorder %v1226, %v1742
        %vm3021 = vcmp.lt.f32.partialorder %v1226, %v1746
        %vm3022 = vcmp.lt.f32.partialorder %v1226, %v1750
        %vm3023 = vcmp.lt.f32.partialorder %v1231, %v1722
        %vm3024 = vcmp.lt.f32.partialorder %v1231, %v1726
        %vm3025 = vcmp.lt.f32.partialorder %v1231, %v1730
        %vm3026 = vcmp.lt.f32.partialorder %v1231, %v1734
        %vm3027 = vcmp.lt.f32.partialorder %v1231, %v1738
        %vm3028 = vcmp.lt.f32.partialorder %v1231, %v1742
        %vm3029 = vcmp.lt.f32.partialorder %v1231, %v1746
        %vm3030 = vcmp.lt.f32.partialorder %v1231, %v1750
        %vm3031 = vcmp.lt.f32.partialorder %v1236, %v1722
        %vm3032 = vcmp.lt.f32.partialorder %v1236, %v1726
        %vm3033 = vcmp.lt.f32.partialorder %v1236, %v1730
        %vm3034 = vcmp.lt.f32.partialorder %v1236, %v1734
        %vm3035 = vcmp.lt.f32.partialorder %v1236, %v1738
        %vm3036 = vcmp.lt.f32.partialorder %v1236, %v1742
        %vm3037 = vcmp.lt.f32.partialorder %v1236, %v1746
        %vm3038 = vcmp.lt.f32.partialorder %v1236, %v1750
        %vm3039 = vcmp.lt.f32.partialorder %v1241, %v1722
        %vm3040 = vcmp.lt.f32.partialorder %v1241, %v1726
        %vm3041 = vcmp.lt.f32.partialorder %v1241, %v1730
        %vm3042 = vcmp.lt.f32.partialorder %v1241, %v1734
        %vm3043 = vcmp.lt.f32.partialorder %v1241, %v1738
        %vm3044 = vcmp.lt.f32.partialorder %v1241, %v1742
        %vm3045 = vcmp.lt.f32.partialorder %v1241, %v1746
        %vm3046 = vcmp.lt.f32.partialorder %v1241, %v1750
        %vm3047 = vcmp.lt.f32.partialorder %v1246, %v1722
        %vm3048 = vcmp.lt.f32.partialorder %v1246, %v1726
        %vm3049 = vcmp.lt.f32.partialorder %v1246, %v1730
        %vm3050 = vcmp.lt.f32.partialorder %v1246, %v1734
        %vm3051 = vcmp.lt.f32.partialorder %v1246, %v1738
        %vm3052 = vcmp.lt.f32.partialorder %v1246, %v1742
        %vm3053 = vcmp.lt.f32.partialorder %v1246, %v1746
        %vm3054 = vcmp.lt.f32.partialorder %v1246, %v1750
        %vm3055 = vcmp.lt.f32.partialorder %v1251, %v1722
        %vm3056 = vcmp.lt.f32.partialorder %v1251, %v1726
        %vm3057 = vcmp.lt.f32.partialorder %v1251, %v1730
        %vm3058 = vcmp.lt.f32.partialorder %v1251, %v1734
        %vm3059 = vcmp.lt.f32.partialorder %v1251, %v1738
        %vm3060 = vcmp.lt.f32.partialorder %v1251, %v1742
        %vm3061 = vcmp.lt.f32.partialorder %v1251, %v1746
        %vm3062 = vcmp.lt.f32.partialorder %v1251, %v1750
        %vm3063 = vcmp.lt.f32.partialorder %v1256, %v1722
        %vm3064 = vcmp.lt.f32.partialorder %v1256, %v1726
        %vm3065 = vcmp.lt.f32.partialorder %v1256, %v1730
        %vm3066 = vcmp.lt.f32.partialorder %v1256, %v1734
        %vm3067 = vcmp.lt.f32.partialorder %v1256, %v1738
        %vm3068 = vcmp.lt.f32.partialorder %v1256, %v1742
        %vm3069 = vcmp.lt.f32.partialorder %v1256, %v1746
        %vm3070 = vcmp.lt.f32.partialorder %v1256, %v1750
        %vm3071 = vcmp.lt.f32.partialorder %v1261, %v1722
        %vm3072 = vcmp.lt.f32.partialorder %v1261, %v1726
        %vm3073 = vcmp.lt.f32.partialorder %v1261, %v1730
        %vm3074 = vcmp.lt.f32.partialorder %v1261, %v1734
        %vm3075 = vcmp.lt.f32.partialorder %v1261, %v1738
        %vm3076 = vcmp.lt.f32.partialorder %v1261, %v1742
        %vm3077 = vcmp.lt.f32.partialorder %v1261, %v1746
        %vm3078 = vcmp.lt.f32.partialorder %v1261, %v1750
        %vm3079 = vcmp.lt.f32.partialorder %v1266, %v1722
        %vm3080 = vcmp.lt.f32.partialorder %v1266, %v1726
        %vm3081 = vcmp.lt.f32.partialorder %v1266, %v1730
        %vm3082 = vcmp.lt.f32.partialorder %v1266, %v1734
        %vm3083 = vcmp.lt.f32.partialorder %v1266, %v1738
        %vm3084 = vcmp.lt.f32.partialorder %v1266, %v1742
        %vm3085 = vcmp.lt.f32.partialorder %v1266, %v1746
        %vm3086 = vcmp.lt.f32.partialorder %v1266, %v1750
        %vm3087 = vcmp.lt.f32.partialorder %v1271, %v1722
        %vm3088 = vcmp.lt.f32.partialorder %v1271, %v1726
        %vm3089 = vcmp.lt.f32.partialorder %v1271, %v1730
        %vm3090 = vcmp.lt.f32.partialorder %v1271, %v1734
        %vm3091 = vcmp.lt.f32.partialorder %v1271, %v1738
        %vm3092 = vcmp.lt.f32.partialorder %v1271, %v1742
        %vm3093 = vcmp.lt.f32.partialorder %v1271, %v1746
        %vm3094 = vcmp.lt.f32.partialorder %v1271, %v1750
        %vm3095 = vcmp.lt.f32.partialorder %v1276, %v1722
        %vm3096 = vcmp.lt.f32.partialorder %v1276, %v1726
        %vm3097 = vcmp.lt.f32.partialorder %v1276, %v1730
        %vm3098 = vcmp.lt.f32.partialorder %v1276, %v1734
        %vm3099 = vcmp.lt.f32.partialorder %v1276, %v1738
        %vm3100 = vcmp.lt.f32.partialorder %v1276, %v1742
        %vm3101 = vcmp.lt.f32.partialorder %v1276, %v1746
        %vm3102 = vcmp.lt.f32.partialorder %v1276, %v1750
        %vm3103 = vcmp.lt.f32.partialorder %v1281, %v1722
        %vm3104 = vcmp.lt.f32.partialorder %v1281, %v1726
        %vm3105 = vcmp.lt.f32.partialorder %v1281, %v1730
        %vm3106 = vcmp.lt.f32.partialorder %v1281, %v1734
        %vm3107 = vcmp.lt.f32.partialorder %v1281, %v1738
        %vm3108 = vcmp.lt.f32.partialorder %v1281, %v1742
        %vm3109 = vcmp.lt.f32.partialorder %v1281, %v1746
        %vm3110 = vcmp.lt.f32.partialorder %v1281, %v1750
        %vm3111 = vcmp.lt.f32.partialorder %v1286, %v1722
        %vm3112 = vcmp.lt.f32.partialorder %v1286, %v1726
        %vm3113 = vcmp.lt.f32.partialorder %v1286, %v1730
        %vm3114 = vcmp.lt.f32.partialorder %v1286, %v1734
        %vm3115 = vcmp.lt.f32.partialorder %v1286, %v1738
        %vm3116 = vcmp.lt.f32.partialorder %v1286, %v1742
        %vm3117 = vcmp.lt.f32.partialorder %v1286, %v1746
        %vm3118 = vcmp.lt.f32.partialorder %v1286, %v1750
        %vm3119 = vcmp.lt.f32.partialorder %v1291, %v1722
        %vm3120 = vcmp.lt.f32.partialorder %v1291, %v1726
        %vm3121 = vcmp.lt.f32.partialorder %v1291, %v1730
        %vm3122 = vcmp.lt.f32.partialorder %v1291, %v1734
        %vm3123 = vcmp.lt.f32.partialorder %v1291, %v1738
        %vm3124 = vcmp.lt.f32.partialorder %v1291, %v1742
        %vm3125 = vcmp.lt.f32.partialorder %v1291, %v1746
        %vm3126 = vcmp.lt.f32.partialorder %v1291, %v1750
        %vm3127 = vcmp.lt.f32.partialorder %v1296, %v1722
        %vm3128 = vcmp.lt.f32.partialorder %v1296, %v1726
        %vm3129 = vcmp.lt.f32.partialorder %v1296, %v1730
        %vm3130 = vcmp.lt.f32.partialorder %v1296, %v1734
        %vm3131 = vcmp.lt.f32.partialorder %v1296, %v1738
        %vm3132 = vcmp.lt.f32.partialorder %v1296, %v1742
        %vm3133 = vcmp.lt.f32.partialorder %v1296, %v1746
        %vm3134 = vcmp.lt.f32.partialorder %v1296, %v1750
        %vm3135 = vcmp.lt.f32.partialorder %v1301, %v1722
        %vm3136 = vcmp.lt.f32.partialorder %v1301, %v1726
        %vm3137 = vcmp.lt.f32.partialorder %v1301, %v1730
        %vm3138 = vcmp.lt.f32.partialorder %v1301, %v1734
        %vm3139 = vcmp.lt.f32.partialorder %v1301, %v1738
        %vm3140 = vcmp.lt.f32.partialorder %v1301, %v1742
        %vm3141 = vcmp.lt.f32.partialorder %v1301, %v1746
        %vm3142 = vcmp.lt.f32.partialorder %v1301, %v1750
        %vm3143 = vcmp.lt.f32.partialorder %v1306, %v1722
        %vm3144 = vcmp.lt.f32.partialorder %v1306, %v1726
        %vm3145 = vcmp.lt.f32.partialorder %v1306, %v1730
        %vm3146 = vcmp.lt.f32.partialorder %v1306, %v1734
        %vm3147 = vcmp.lt.f32.partialorder %v1306, %v1738
        %vm3148 = vcmp.lt.f32.partialorder %v1306, %v1742
        %vm3149 = vcmp.lt.f32.partialorder %v1306, %v1746
        %vm3150 = vcmp.lt.f32.partialorder %v1306, %v1750
        %vm3151 = vcmp.lt.f32.partialorder %v1311, %v1722
        %vm3152 = vcmp.lt.f32.partialorder %v1311, %v1726
        %vm3153 = vcmp.lt.f32.partialorder %v1311, %v1730
        %vm3154 = vcmp.lt.f32.partialorder %v1311, %v1734
        %vm3155 = vcmp.lt.f32.partialorder %v1311, %v1738
        %vm3156 = vcmp.lt.f32.partialorder %v1311, %v1742
        %vm3157 = vcmp.lt.f32.partialorder %v1311, %v1746
        %vm3158 = vcmp.lt.f32.partialorder %v1311, %v1750
        %vm3159 = vcmp.lt.f32.partialorder %v1316, %v1722
        %vm3160 = vcmp.lt.f32.partialorder %v1316, %v1726
        %vm3161 = vcmp.lt.f32.partialorder %v1316, %v1730
        %vm3162 = vcmp.lt.f32.partialorder %v1316, %v1734
        %vm3163 = vcmp.lt.f32.partialorder %v1316, %v1738
        %vm3164 = vcmp.lt.f32.partialorder %v1316, %v1742
        %vm3165 = vcmp.lt.f32.partialorder %v1316, %v1746
        %vm3166 = vcmp.lt.f32.partialorder %v1316, %v1750
        %vm3167 = vcmp.lt.f32.partialorder %v1321, %v1722
        %vm3168 = vcmp.lt.f32.partialorder %v1321, %v1726
        %vm3169 = vcmp.lt.f32.partialorder %v1321, %v1730
        %vm3170 = vcmp.lt.f32.partialorder %v1321, %v1734
        %vm3171 = vcmp.lt.f32.partialorder %v1321, %v1738
        %vm3172 = vcmp.lt.f32.partialorder %v1321, %v1742
        %vm3173 = vcmp.lt.f32.partialorder %v1321, %v1746
        %vm3174 = vcmp.lt.f32.partialorder %v1321, %v1750
        %vm3175 = vcmp.lt.f32.partialorder %v1326, %v1722
        %vm3176 = vcmp.lt.f32.partialorder %v1326, %v1726
        %vm3177 = vcmp.lt.f32.partialorder %v1326, %v1730
        %vm3178 = vcmp.lt.f32.partialorder %v1326, %v1734
        %vm3179 = vcmp.lt.f32.partialorder %v1326, %v1738
        %vm3180 = vcmp.lt.f32.partialorder %v1326, %v1742
        %vm3181 = vcmp.lt.f32.partialorder %v1326, %v1746
        %vm3182 = vcmp.lt.f32.partialorder %v1326, %v1750
        %vm3183 = vcmp.lt.f32.partialorder %v1331, %v1722
        %vm3184 = vcmp.lt.f32.partialorder %v1331, %v1726
        %vm3185 = vcmp.lt.f32.partialorder %v1331, %v1730
        %vm3186 = vcmp.lt.f32.partialorder %v1331, %v1734
        %vm3187 = vcmp.lt.f32.partialorder %v1331, %v1738
        %vm3188 = vcmp.lt.f32.partialorder %v1331, %v1742
        %vm3189 = vcmp.lt.f32.partialorder %v1331, %v1746
        %vm3190 = vcmp.lt.f32.partialorder %v1331, %v1750
        %vm3191 = vcmp.lt.f32.partialorder %v1336, %v1722
        %vm3192 = vcmp.lt.f32.partialorder %v1336, %v1726
        %vm3193 = vcmp.lt.f32.partialorder %v1336, %v1730
        %vm3194 = vcmp.lt.f32.partialorder %v1336, %v1734
        %vm3195 = vcmp.lt.f32.partialorder %v1336, %v1738
        %vm3196 = vcmp.lt.f32.partialorder %v1336, %v1742
        %vm3197 = vcmp.lt.f32.partialorder %v1336, %v1746
        %vm3198 = vcmp.lt.f32.partialorder %v1336, %v1750
        %vm3199 = vcmp.lt.f32.partialorder %v1341, %v1722
        %vm3200 = vcmp.lt.f32.partialorder %v1341, %v1726
        %vm3201 = vcmp.lt.f32.partialorder %v1341, %v1730
        %vm3202 = vcmp.lt.f32.partialorder %v1341, %v1734
        %vm3203 = vcmp.lt.f32.partialorder %v1341, %v1738
        %vm3204 = vcmp.lt.f32.partialorder %v1341, %v1742
        %vm3205 = vcmp.lt.f32.partialorder %v1341, %v1746
        %vm3206 = vcmp.lt.f32.partialorder %v1341, %v1750
        %vm3207 = vcmp.lt.f32.partialorder %v1346, %v1722
        %vm3208 = vcmp.lt.f32.partialorder %v1346, %v1726
        %vm3209 = vcmp.lt.f32.partialorder %v1346, %v1730
        %vm3210 = vcmp.lt.f32.partialorder %v1346, %v1734
        %vm3211 = vcmp.lt.f32.partialorder %v1346, %v1738
        %vm3212 = vcmp.lt.f32.partialorder %v1346, %v1742
        %vm3213 = vcmp.lt.f32.partialorder %v1346, %v1746
        %vm3214 = vcmp.lt.f32.partialorder %v1346, %v1750
        %vm3215 = vcmp.lt.f32.partialorder %v1351, %v1722
        %vm3216 = vcmp.lt.f32.partialorder %v1351, %v1726
        %vm3217 = vcmp.lt.f32.partialorder %v1351, %v1730
        %vm3218 = vcmp.lt.f32.partialorder %v1351, %v1734
        %vm3219 = vcmp.lt.f32.partialorder %v1351, %v1738
        %vm3220 = vcmp.lt.f32.partialorder %v1351, %v1742
        %vm3221 = vcmp.lt.f32.partialorder %v1351, %v1746
        %vm3222 = vcmp.lt.f32.partialorder %v1351, %v1750
        %vm3223 = vcmp.lt.f32.partialorder %v1356, %v1722
        %vm3224 = vcmp.lt.f32.partialorder %v1356, %v1726
        %vm3225 = vcmp.lt.f32.partialorder %v1356, %v1730
        %vm3226 = vcmp.lt.f32.partialorder %v1356, %v1734
        %vm3227 = vcmp.lt.f32.partialorder %v1356, %v1738
        %vm3228 = vcmp.lt.f32.partialorder %v1356, %v1742
        %vm3229 = vcmp.lt.f32.partialorder %v1356, %v1746
        %vm3230 = vcmp.lt.f32.partialorder %v1356, %v1750
        %vm3231 = vcmp.lt.f32.partialorder %v1361, %v1722
        %vm3232 = vcmp.lt.f32.partialorder %v1361, %v1726
        %vm3233 = vcmp.lt.f32.partialorder %v1361, %v1730
        %vm3234 = vcmp.lt.f32.partialorder %v1361, %v1734
        %vm3235 = vcmp.lt.f32.partialorder %v1361, %v1738
        %vm3236 = vcmp.lt.f32.partialorder %v1361, %v1742
        %vm3237 = vcmp.lt.f32.partialorder %v1361, %v1746
        %vm3238 = vcmp.lt.f32.partialorder %v1361, %v1750
        %vm3239 = vcmp.lt.f32.partialorder %v1366, %v1722
        %vm3240 = vcmp.lt.f32.partialorder %v1366, %v1726
        %vm3241 = vcmp.lt.f32.partialorder %v1366, %v1730
        %vm3242 = vcmp.lt.f32.partialorder %v1366, %v1734
        %vm3243 = vcmp.lt.f32.partialorder %v1366, %v1738
        %vm3244 = vcmp.lt.f32.partialorder %v1366, %v1742
        %vm3245 = vcmp.lt.f32.partialorder %v1366, %v1746
        %vm3246 = vcmp.lt.f32.partialorder %v1366, %v1750
        %vm3247 = vcmp.lt.f32.partialorder %v1371, %v1722
        %vm3248 = vcmp.lt.f32.partialorder %v1371, %v1726
        %vm3249 = vcmp.lt.f32.partialorder %v1371, %v1730
        %vm3250 = vcmp.lt.f32.partialorder %v1371, %v1734
        %vm3251 = vcmp.lt.f32.partialorder %v1371, %v1738
        %vm3252 = vcmp.lt.f32.partialorder %v1371, %v1742
        %vm3253 = vcmp.lt.f32.partialorder %v1371, %v1746
        %vm3254 = vcmp.lt.f32.partialorder %v1371, %v1750
        %vm3255 = vcmp.lt.f32.partialorder %v1376, %v1722
        %vm3256 = vcmp.lt.f32.partialorder %v1376, %v1726
        %vm3257 = vcmp.lt.f32.partialorder %v1376, %v1730
        %vm3258 = vcmp.lt.f32.partialorder %v1376, %v1734
        %vm3259 = vcmp.lt.f32.partialorder %v1376, %v1738
        %vm3260 = vcmp.lt.f32.partialorder %v1376, %v1742
        %vm3261 = vcmp.lt.f32.partialorder %v1376, %v1746
        %vm3262 = vcmp.lt.f32.partialorder %v1376, %v1750
        %vm3263 = vcmp.lt.f32.partialorder %v1381, %v1722
        %vm3264 = vcmp.lt.f32.partialorder %v1381, %v1726
        %vm3265 = vcmp.lt.f32.partialorder %v1381, %v1730
        %vm3266 = vcmp.lt.f32.partialorder %v1381, %v1734
        %vm3267 = vcmp.lt.f32.partialorder %v1381, %v1738
        %vm3268 = vcmp.lt.f32.partialorder %v1381, %v1742
        %vm3269 = vcmp.lt.f32.partialorder %v1381, %v1746
        %vm3270 = vcmp.lt.f32.partialorder %v1381, %v1750
        %vm3271 = vcmp.lt.f32.partialorder %v1386, %v1722
        %vm3272 = vcmp.lt.f32.partialorder %v1386, %v1726
        %vm3273 = vcmp.lt.f32.partialorder %v1386, %v1730
        %vm3274 = vcmp.lt.f32.partialorder %v1386, %v1734
        %vm3275 = vcmp.lt.f32.partialorder %v1386, %v1738
        %vm3276 = vcmp.lt.f32.partialorder %v1386, %v1742
        %vm3277 = vcmp.lt.f32.partialorder %v1386, %v1746
        %vm3278 = vcmp.lt.f32.partialorder %v1386, %v1750
        %vm3279 = vcmp.lt.f32.partialorder %v1391, %v1722
        %vm3280 = vcmp.lt.f32.partialorder %v1391, %v1726
        %vm3281 = vcmp.lt.f32.partialorder %v1391, %v1730
        %vm3282 = vcmp.lt.f32.partialorder %v1391, %v1734
        %vm3283 = vcmp.lt.f32.partialorder %v1391, %v1738
        %vm3284 = vcmp.lt.f32.partialorder %v1391, %v1742
        %vm3285 = vcmp.lt.f32.partialorder %v1391, %v1746
        %vm3286 = vcmp.lt.f32.partialorder %v1391, %v1750
        %vm3287 = vcmp.lt.f32.partialorder %v1396, %v1722
        %vm3288 = vcmp.lt.f32.partialorder %v1396, %v1726
        %vm3289 = vcmp.lt.f32.partialorder %v1396, %v1730
        %vm3290 = vcmp.lt.f32.partialorder %v1396, %v1734
        %vm3291 = vcmp.lt.f32.partialorder %v1396, %v1738
        %vm3292 = vcmp.lt.f32.partialorder %v1396, %v1742
        %vm3293 = vcmp.lt.f32.partialorder %v1396, %v1746
        %vm3294 = vcmp.lt.f32.partialorder %v1396, %v1750
        %vm3295 = vcmp.lt.f32.partialorder %v1401, %v1722
        %vm3296 = vcmp.lt.f32.partialorder %v1401, %v1726
        %vm3297 = vcmp.lt.f32.partialorder %v1401, %v1730
        %vm3298 = vcmp.lt.f32.partialorder %v1401, %v1734
        %vm3299 = vcmp.lt.f32.partialorder %v1401, %v1738
        %vm3300 = vcmp.lt.f32.partialorder %v1401, %v1742
        %vm3301 = vcmp.lt.f32.partialorder %v1401, %v1746
        %vm3302 = vcmp.lt.f32.partialorder %v1401, %v1750
        %vm3303 = vcmp.lt.f32.partialorder %v1406, %v1722
        %vm3304 = vcmp.lt.f32.partialorder %v1406, %v1726
        %vm3305 = vcmp.lt.f32.partialorder %v1406, %v1730
        %vm3306 = vcmp.lt.f32.partialorder %v1406, %v1734
        %vm3307 = vcmp.lt.f32.partialorder %v1406, %v1738
        %vm3308 = vcmp.lt.f32.partialorder %v1406, %v1742
        %vm3309 = vcmp.lt.f32.partialorder %v1406, %v1746
        %vm3310 = vcmp.lt.f32.partialorder %v1406, %v1750
        %vm3311 = vcmp.lt.f32.partialorder %v1411, %v1722
        %vm3312 = vcmp.lt.f32.partialorder %v1411, %v1726
        %vm3313 = vcmp.lt.f32.partialorder %v1411, %v1730
        %vm3314 = vcmp.lt.f32.partialorder %v1411, %v1734
        %vm3315 = vcmp.lt.f32.partialorder %v1411, %v1738
        %vm3316 = vcmp.lt.f32.partialorder %v1411, %v1742
        %vm3317 = vcmp.lt.f32.partialorder %v1411, %v1746
        %vm3318 = vcmp.lt.f32.partialorder %v1411, %v1750
        %vm3319 = vcmp.lt.f32.partialorder %v1416, %v1722
        %vm3320 = vcmp.lt.f32.partialorder %v1416, %v1726
        %vm3321 = vcmp.lt.f32.partialorder %v1416, %v1730
        %vm3322 = vcmp.lt.f32.partialorder %v1416, %v1734
        %vm3323 = vcmp.lt.f32.partialorder %v1416, %v1738
        %vm3324 = vcmp.lt.f32.partialorder %v1416, %v1742
        %vm3325 = vcmp.lt.f32.partialorder %v1416, %v1746
        %vm3326 = vcmp.lt.f32.partialorder %v1416, %v1750
        %vm3327 = vcmp.lt.f32.partialorder %v1421, %v1722
        %vm3328 = vcmp.lt.f32.partialorder %v1421, %v1726
        %vm3329 = vcmp.lt.f32.partialorder %v1421, %v1730
        %vm3330 = vcmp.lt.f32.partialorder %v1421, %v1734
        %vm3331 = vcmp.lt.f32.partialorder %v1421, %v1738
        %vm3332 = vcmp.lt.f32.partialorder %v1421, %v1742
        %vm3333 = vcmp.lt.f32.partialorder %v1421, %v1746
        %vm3334 = vcmp.lt.f32.partialorder %v1421, %v1750
        %vm3335 = vcmp.lt.f32.partialorder %v1426, %v1722
        %vm3336 = vcmp.lt.f32.partialorder %v1426, %v1726
        %vm3337 = vcmp.lt.f32.partialorder %v1426, %v1730
        %vm3338 = vcmp.lt.f32.partialorder %v1426, %v1734
        %vm3339 = vcmp.lt.f32.partialorder %v1426, %v1738
        %vm3340 = vcmp.lt.f32.partialorder %v1426, %v1742
        %vm3341 = vcmp.lt.f32.partialorder %v1426, %v1746
        %vm3342 = vcmp.lt.f32.partialorder %v1426, %v1750
        %vm3343 = vcmp.lt.f32.partialorder %v1431, %v1722
        %vm3344 = vcmp.lt.f32.partialorder %v1431, %v1726
        %vm3345 = vcmp.lt.f32.partialorder %v1431, %v1730
        %vm3346 = vcmp.lt.f32.partialorder %v1431, %v1734
        %vm3347 = vcmp.lt.f32.partialorder %v1431, %v1738
        %vm3348 = vcmp.lt.f32.partialorder %v1431, %v1742
        %vm3349 = vcmp.lt.f32.partialorder %v1431, %v1746
        %vm3350 = vcmp.lt.f32.partialorder %v1431, %v1750
        %vm3351 = vcmp.lt.f32.partialorder %v1436, %v1722
        %vm3352 = vcmp.lt.f32.partialorder %v1436, %v1726
        %vm3353 = vcmp.lt.f32.partialorder %v1436, %v1730
        %vm3354 = vcmp.lt.f32.partialorder %v1436, %v1734
        %vm3355 = vcmp.lt.f32.partialorder %v1436, %v1738
        %vm3356 = vcmp.lt.f32.partialorder %v1436, %v1742
        %vm3357 = vcmp.lt.f32.partialorder %v1436, %v1746
        %vm3358 = vcmp.lt.f32.partialorder %v1436, %v1750
        %vm3359 = vcmp.lt.f32.partialorder %v1441, %v1722
        %vm3360 = vcmp.lt.f32.partialorder %v1441, %v1726
        %vm3361 = vcmp.lt.f32.partialorder %v1441, %v1730
        %vm3362 = vcmp.lt.f32.partialorder %v1441, %v1734
        %vm3363 = vcmp.lt.f32.partialorder %v1441, %v1738
        %vm3364 = vcmp.lt.f32.partialorder %v1441, %v1742
        %vm3365 = vcmp.lt.f32.partialorder %v1441, %v1746
        %vm3366 = vcmp.lt.f32.partialorder %v1441, %v1750
        %vm3367 = vcmp.lt.f32.partialorder %v1446, %v1722
        %vm3368 = vcmp.lt.f32.partialorder %v1446, %v1726
        %vm3369 = vcmp.lt.f32.partialorder %v1446, %v1730
        %vm3370 = vcmp.lt.f32.partialorder %v1446, %v1734
        %vm3371 = vcmp.lt.f32.partialorder %v1446, %v1738
        %vm3372 = vcmp.lt.f32.partialorder %v1446, %v1742
        %vm3373 = vcmp.lt.f32.partialorder %v1446, %v1746
        %vm3374 = vcmp.lt.f32.partialorder %v1446, %v1750
        %vm3375 = vcmp.lt.f32.partialorder %v1451, %v1722
        %vm3376 = vcmp.lt.f32.partialorder %v1451, %v1726
        %vm3377 = vcmp.lt.f32.partialorder %v1451, %v1730
        %vm3378 = vcmp.lt.f32.partialorder %v1451, %v1734
        %vm3379 = vcmp.lt.f32.partialorder %v1451, %v1738
        %vm3380 = vcmp.lt.f32.partialorder %v1451, %v1742
        %vm3381 = vcmp.lt.f32.partialorder %v1451, %v1746
        %vm3382 = vcmp.lt.f32.partialorder %v1451, %v1750
        %vm3383 = vcmp.lt.f32.partialorder %v1456, %v1722
        %vm3384 = vcmp.lt.f32.partialorder %v1456, %v1726
        %vm3385 = vcmp.lt.f32.partialorder %v1456, %v1730
        %vm3386 = vcmp.lt.f32.partialorder %v1456, %v1734
        %vm3387 = vcmp.lt.f32.partialorder %v1456, %v1738
        %vm3388 = vcmp.lt.f32.partialorder %v1456, %v1742
        %vm3389 = vcmp.lt.f32.partialorder %v1456, %v1746
        %vm3390 = vcmp.lt.f32.partialorder %v1456, %v1750
        %vm3391 = vcmp.lt.f32.partialorder %v1461, %v1722
        %vm3392 = vcmp.lt.f32.partialorder %v1461, %v1726
        %vm3393 = vcmp.lt.f32.partialorder %v1461, %v1730
        %vm3394 = vcmp.lt.f32.partialorder %v1461, %v1734
        %vm3395 = vcmp.lt.f32.partialorder %v1461, %v1738
        %vm3396 = vcmp.lt.f32.partialorder %v1461, %v1742
        %vm3397 = vcmp.lt.f32.partialorder %v1461, %v1746
        %vm3398 = vcmp.lt.f32.partialorder %v1461, %v1750
        %vm3399 = vcmp.lt.f32.partialorder %v1466, %v1722
        %vm3400 = vcmp.lt.f32.partialorder %v1466, %v1726
        %vm3401 = vcmp.lt.f32.partialorder %v1466, %v1730
        %vm3402 = vcmp.lt.f32.partialorder %v1466, %v1734
        %vm3403 = vcmp.lt.f32.partialorder %v1466, %v1738
        %vm3404 = vcmp.lt.f32.partialorder %v1466, %v1742
        %vm3405 = vcmp.lt.f32.partialorder %v1466, %v1746
        %vm3406 = vcmp.lt.f32.partialorder %v1466, %v1750
        %vm3407 = vcmp.lt.f32.partialorder %v1471, %v1722
        %vm3408 = vcmp.lt.f32.partialorder %v1471, %v1726
        %vm3409 = vcmp.lt.f32.partialorder %v1471, %v1730
        %vm3410 = vcmp.lt.f32.partialorder %v1471, %v1734
        %vm3411 = vcmp.lt.f32.partialorder %v1471, %v1738
        %vm3412 = vcmp.lt.f32.partialorder %v1471, %v1742
        %vm3413 = vcmp.lt.f32.partialorder %v1471, %v1746
        %vm3414 = vcmp.lt.f32.partialorder %v1471, %v1750
        %vm3415 = vcmp.lt.f32.partialorder %v1476, %v1722
        %vm3416 = vcmp.lt.f32.partialorder %v1476, %v1726
        %vm3417 = vcmp.lt.f32.partialorder %v1476, %v1730
        %vm3418 = vcmp.lt.f32.partialorder %v1476, %v1734
        %vm3419 = vcmp.lt.f32.partialorder %v1476, %v1738
        %vm3420 = vcmp.lt.f32.partialorder %v1476, %v1742
        %vm3421 = vcmp.lt.f32.partialorder %v1476, %v1746
        %vm3422 = vcmp.lt.f32.partialorder %v1476, %v1750
        %vm3423 = vcmp.lt.f32.partialorder %v1481, %v1722
        %vm3424 = vcmp.lt.f32.partialorder %v1481, %v1726
        %vm3425 = vcmp.lt.f32.partialorder %v1481, %v1730
        %vm3426 = vcmp.lt.f32.partialorder %v1481, %v1734
        %vm3427 = vcmp.lt.f32.partialorder %v1481, %v1738
        %vm3428 = vcmp.lt.f32.partialorder %v1481, %v1742
        %vm3429 = vcmp.lt.f32.partialorder %v1481, %v1746
        %vm3430 = vcmp.lt.f32.partialorder %v1481, %v1750
        %vm3431 = vcmp.lt.f32.partialorder %v1486, %v1722
        %vm3432 = vcmp.lt.f32.partialorder %v1486, %v1726
        %vm3433 = vcmp.lt.f32.partialorder %v1486, %v1730
        %vm3434 = vcmp.lt.f32.partialorder %v1486, %v1734
        %vm3435 = vcmp.lt.f32.partialorder %v1486, %v1738
        %vm3436 = vcmp.lt.f32.partialorder %v1486, %v1742
        %vm3437 = vcmp.lt.f32.partialorder %v1486, %v1746
        %vm3438 = vcmp.lt.f32.partialorder %v1486, %v1750
        %vm3439 = vcmp.lt.f32.partialorder %v1491, %v1722
        %vm3440 = vcmp.lt.f32.partialorder %v1491, %v1726
        %vm3441 = vcmp.lt.f32.partialorder %v1491, %v1730
        %vm3442 = vcmp.lt.f32.partialorder %v1491, %v1734
        %vm3443 = vcmp.lt.f32.partialorder %v1491, %v1738
        %vm3444 = vcmp.lt.f32.partialorder %v1491, %v1742
        %vm3445 = vcmp.lt.f32.partialorder %v1491, %v1746
        %vm3446 = vcmp.lt.f32.partialorder %v1491, %v1750
        %vm3447 = vcmp.lt.f32.partialorder %v1496, %v1722
        %vm3448 = vcmp.lt.f32.partialorder %v1496, %v1726
        %vm3449 = vcmp.lt.f32.partialorder %v1496, %v1730
        %vm3450 = vcmp.lt.f32.partialorder %v1496, %v1734
        %vm3451 = vcmp.lt.f32.partialorder %v1496, %v1738
        %vm3452 = vcmp.lt.f32.partialorder %v1496, %v1742
        %vm3453 = vcmp.lt.f32.partialorder %v1496, %v1746
        %vm3454 = vcmp.lt.f32.partialorder %v1496, %v1750
        %vm3455 = vcmp.lt.f32.partialorder %v1501, %v1722
        %vm3456 = vcmp.lt.f32.partialorder %v1501, %v1726
        %vm3457 = vcmp.lt.f32.partialorder %v1501, %v1730
        %vm3458 = vcmp.lt.f32.partialorder %v1501, %v1734
        %vm3459 = vcmp.lt.f32.partialorder %v1501, %v1738
        %vm3460 = vcmp.lt.f32.partialorder %v1501, %v1742
        %vm3461 = vcmp.lt.f32.partialorder %v1501, %v1746
        %vm3462 = vcmp.lt.f32.partialorder %v1501, %v1750
        %vm3463 = vcmp.lt.f32.partialorder %v1506, %v1722
        %vm3464 = vcmp.lt.f32.partialorder %v1506, %v1726
        %vm3465 = vcmp.lt.f32.partialorder %v1506, %v1730
        %vm3466 = vcmp.lt.f32.partialorder %v1506, %v1734
        %vm3467 = vcmp.lt.f32.partialorder %v1506, %v1738
        %vm3468 = vcmp.lt.f32.partialorder %v1506, %v1742
        %vm3469 = vcmp.lt.f32.partialorder %v1506, %v1746
        %vm3470 = vcmp.lt.f32.partialorder %v1506, %v1750
        %vm3471 = vcmp.lt.f32.partialorder %v1511, %v1722
        %vm3472 = vcmp.lt.f32.partialorder %v1511, %v1726
        %vm3473 = vcmp.lt.f32.partialorder %v1511, %v1730
        %vm3474 = vcmp.lt.f32.partialorder %v1511, %v1734
        %vm3475 = vcmp.lt.f32.partialorder %v1511, %v1738
        %vm3476 = vcmp.lt.f32.partialorder %v1511, %v1742
        %vm3477 = vcmp.lt.f32.partialorder %v1511, %v1746
        %vm3478 = vcmp.lt.f32.partialorder %v1511, %v1750
        %vm3479 = vcmp.lt.f32.partialorder %v1516, %v1722
        %vm3480 = vcmp.lt.f32.partialorder %v1516, %v1726
        %vm3481 = vcmp.lt.f32.partialorder %v1516, %v1730
        %vm3482 = vcmp.lt.f32.partialorder %v1516, %v1734
        %vm3483 = vcmp.lt.f32.partialorder %v1516, %v1738
        %vm3484 = vcmp.lt.f32.partialorder %v1516, %v1742
        %vm3485 = vcmp.lt.f32.partialorder %v1516, %v1746
        %vm3486 = vcmp.lt.f32.partialorder %v1516, %v1750
        %vm3487 = vcmp.lt.f32.partialorder %v1521, %v1722
        %vm3488 = vcmp.lt.f32.partialorder %v1521, %v1726
        %vm3489 = vcmp.lt.f32.partialorder %v1521, %v1730
        %vm3490 = vcmp.lt.f32.partialorder %v1521, %v1734
        %vm3491 = vcmp.lt.f32.partialorder %v1521, %v1738
        %vm3492 = vcmp.lt.f32.partialorder %v1521, %v1742
        %vm3493 = vcmp.lt.f32.partialorder %v1521, %v1746
        %vm3494 = vcmp.lt.f32.partialorder %v1521, %v1750
        %vm3495 = vcmp.lt.f32.partialorder %v1526, %v1722
        %vm3496 = vcmp.lt.f32.partialorder %v1526, %v1726
        %vm3497 = vcmp.lt.f32.partialorder %v1526, %v1730
        %vm3498 = vcmp.lt.f32.partialorder %v1526, %v1734
        %vm3499 = vcmp.lt.f32.partialorder %v1526, %v1738
        %vm3500 = vcmp.lt.f32.partialorder %v1526, %v1742
        %vm3501 = vcmp.lt.f32.partialorder %v1526, %v1746
        %vm3502 = vcmp.lt.f32.partialorder %v1526, %v1750
        %vm3503 = vcmp.lt.f32.partialorder %v1531, %v1722
        %vm3504 = vcmp.lt.f32.partialorder %v1531, %v1726
        %vm3505 = vcmp.lt.f32.partialorder %v1531, %v1730
        %vm3506 = vcmp.lt.f32.partialorder %v1531, %v1734
        %vm3507 = vcmp.lt.f32.partialorder %v1531, %v1738
        %vm3508 = vcmp.lt.f32.partialorder %v1531, %v1742
        %vm3509 = vcmp.lt.f32.partialorder %v1531, %v1746
        %vm3510 = vcmp.lt.f32.partialorder %v1531, %v1750
        %vm3511 = vcmp.lt.f32.partialorder %v1536, %v1722
        %vm3512 = vcmp.lt.f32.partialorder %v1536, %v1726
        %vm3513 = vcmp.lt.f32.partialorder %v1536, %v1730
        %vm3514 = vcmp.lt.f32.partialorder %v1536, %v1734
        %vm3515 = vcmp.lt.f32.partialorder %v1536, %v1738
        %vm3516 = vcmp.lt.f32.partialorder %v1536, %v1742
        %vm3517 = vcmp.lt.f32.partialorder %v1536, %v1746
        %vm3518 = vcmp.lt.f32.partialorder %v1536, %v1750
        %vm3519 = vcmp.lt.f32.partialorder %v1541, %v1722
        %vm3520 = vcmp.lt.f32.partialorder %v1541, %v1726
        %vm3521 = vcmp.lt.f32.partialorder %v1541, %v1730
        %vm3522 = vcmp.lt.f32.partialorder %v1541, %v1734
        %vm3523 = vcmp.lt.f32.partialorder %v1541, %v1738
        %vm3524 = vcmp.lt.f32.partialorder %v1541, %v1742
        %vm3525 = vcmp.lt.f32.partialorder %v1541, %v1746
        %vm3526 = vcmp.lt.f32.partialorder %v1541, %v1750
        %vm3527 = vcmp.lt.f32.partialorder %v1546, %v1722
        %vm3528 = vcmp.lt.f32.partialorder %v1546, %v1726
        %vm3529 = vcmp.lt.f32.partialorder %v1546, %v1730
        %vm3530 = vcmp.lt.f32.partialorder %v1546, %v1734
        %vm3531 = vcmp.lt.f32.partialorder %v1546, %v1738
        %vm3532 = vcmp.lt.f32.partialorder %v1546, %v1742
        %vm3533 = vcmp.lt.f32.partialorder %v1546, %v1746
        %vm3534 = vcmp.lt.f32.partialorder %v1546, %v1750
        %vm3535 = vcmp.lt.f32.partialorder %v1551, %v1722
        %vm3536 = vcmp.lt.f32.partialorder %v1551, %v1726
        %vm3537 = vcmp.lt.f32.partialorder %v1551, %v1730
        %vm3538 = vcmp.lt.f32.partialorder %v1551, %v1734
        %vm3539 = vcmp.lt.f32.partialorder %v1551, %v1738
        %vm3540 = vcmp.lt.f32.partialorder %v1551, %v1742
        %vm3541 = vcmp.lt.f32.partialorder %v1551, %v1746
        %vm3542 = vcmp.lt.f32.partialorder %v1551, %v1750
        %vm3543 = vcmp.lt.f32.partialorder %v1556, %v1722
        %vm3544 = vcmp.lt.f32.partialorder %v1556, %v1726
        %vm3545 = vcmp.lt.f32.partialorder %v1556, %v1730
        %vm3546 = vcmp.lt.f32.partialorder %v1556, %v1734
        %vm3547 = vcmp.lt.f32.partialorder %v1556, %v1738
        %vm3548 = vcmp.lt.f32.partialorder %v1556, %v1742
        %vm3549 = vcmp.lt.f32.partialorder %v1556, %v1746
        %vm3550 = vcmp.lt.f32.partialorder %v1556, %v1750
        %vm3551 = vcmp.lt.f32.partialorder %v1561, %v1722
        %vm3552 = vcmp.lt.f32.partialorder %v1561, %v1726
        %vm3553 = vcmp.lt.f32.partialorder %v1561, %v1730
        %vm3554 = vcmp.lt.f32.partialorder %v1561, %v1734
        %vm3555 = vcmp.lt.f32.partialorder %v1561, %v1738
        %vm3556 = vcmp.lt.f32.partialorder %v1561, %v1742
        %vm3557 = vcmp.lt.f32.partialorder %v1561, %v1746
        %vm3558 = vcmp.lt.f32.partialorder %v1561, %v1750
        %vm3559 = vcmp.lt.f32.partialorder %v1566, %v1722
        %vm3560 = vcmp.lt.f32.partialorder %v1566, %v1726
        %vm3561 = vcmp.lt.f32.partialorder %v1566, %v1730
        %vm3562 = vcmp.lt.f32.partialorder %v1566, %v1734
        %vm3563 = vcmp.lt.f32.partialorder %v1566, %v1738
        %vm3564 = vcmp.lt.f32.partialorder %v1566, %v1742
        %vm3565 = vcmp.lt.f32.partialorder %v1566, %v1746
        %vm3566 = vcmp.lt.f32.partialorder %v1566, %v1750
        %vm3567 = vcmp.lt.f32.partialorder %v1571, %v1722
        %vm3568 = vcmp.lt.f32.partialorder %v1571, %v1726
        %vm3569 = vcmp.lt.f32.partialorder %v1571, %v1730
        %vm3570 = vcmp.lt.f32.partialorder %v1571, %v1734
        %vm3571 = vcmp.lt.f32.partialorder %v1571, %v1738
        %vm3572 = vcmp.lt.f32.partialorder %v1571, %v1742
        %vm3573 = vcmp.lt.f32.partialorder %v1571, %v1746
        %vm3574 = vcmp.lt.f32.partialorder %v1571, %v1750
        %vm3575 = vcmp.lt.f32.partialorder %v1576, %v1722
        %vm3576 = vcmp.lt.f32.partialorder %v1576, %v1726
        %vm3577 = vcmp.lt.f32.partialorder %v1576, %v1730
        %vm3578 = vcmp.lt.f32.partialorder %v1576, %v1734
        %vm3579 = vcmp.lt.f32.partialorder %v1576, %v1738
        %vm3580 = vcmp.lt.f32.partialorder %v1576, %v1742
        %vm3581 = vcmp.lt.f32.partialorder %v1576, %v1746
        %vm3582 = vcmp.lt.f32.partialorder %v1576, %v1750
        %vm3583 = vcmp.lt.f32.partialorder %v1581, %v1722
        %vm3584 = vcmp.lt.f32.partialorder %v1581, %v1726
        %vm3585 = vcmp.lt.f32.partialorder %v1581, %v1730
        %vm3586 = vcmp.lt.f32.partialorder %v1581, %v1734
        %vm3587 = vcmp.lt.f32.partialorder %v1581, %v1738
        %vm3588 = vcmp.lt.f32.partialorder %v1581, %v1742
        %vm3589 = vcmp.lt.f32.partialorder %v1581, %v1746
        %vm3590 = vcmp.lt.f32.partialorder %v1581, %v1750
        %vm3591 = vcmp.lt.f32.partialorder %v1586, %v1722
        %vm3592 = vcmp.lt.f32.partialorder %v1586, %v1726
        %vm3593 = vcmp.lt.f32.partialorder %v1586, %v1730
        %vm3594 = vcmp.lt.f32.partialorder %v1586, %v1734
        %vm3595 = vcmp.lt.f32.partialorder %v1586, %v1738
        %vm3596 = vcmp.lt.f32.partialorder %v1586, %v1742
        %vm3597 = vcmp.lt.f32.partialorder %v1586, %v1746
        %vm3598 = vcmp.lt.f32.partialorder %v1586, %v1750
        %vm3599 = vcmp.lt.f32.partialorder %v1591, %v1722
        %vm3600 = vcmp.lt.f32.partialorder %v1591, %v1726
        %vm3601 = vcmp.lt.f32.partialorder %v1591, %v1730
        %vm3602 = vcmp.lt.f32.partialorder %v1591, %v1734
        %vm3603 = vcmp.lt.f32.partialorder %v1591, %v1738
        %vm3604 = vcmp.lt.f32.partialorder %v1591, %v1742
        %vm3605 = vcmp.lt.f32.partialorder %v1591, %v1746
        %vm3606 = vcmp.lt.f32.partialorder %v1591, %v1750
        %vm3607 = vcmp.lt.f32.partialorder %v1596, %v1722
        %vm3608 = vcmp.lt.f32.partialorder %v1596, %v1726
        %vm3609 = vcmp.lt.f32.partialorder %v1596, %v1730
        %vm3610 = vcmp.lt.f32.partialorder %v1596, %v1734
        %vm3611 = vcmp.lt.f32.partialorder %v1596, %v1738
        %vm3612 = vcmp.lt.f32.partialorder %v1596, %v1742
        %vm3613 = vcmp.lt.f32.partialorder %v1596, %v1746
        %vm3614 = vcmp.lt.f32.partialorder %v1596, %v1750
        %vm3615 = vcmp.lt.f32.partialorder %v1601, %v1722
        %vm3616 = vcmp.lt.f32.partialorder %v1601, %v1726
        %vm3617 = vcmp.lt.f32.partialorder %v1601, %v1730
        %vm3618 = vcmp.lt.f32.partialorder %v1601, %v1734
        %vm3619 = vcmp.lt.f32.partialorder %v1601, %v1738
        %vm3620 = vcmp.lt.f32.partialorder %v1601, %v1742
        %vm3621 = vcmp.lt.f32.partialorder %v1601, %v1746
        %vm3622 = vcmp.lt.f32.partialorder %v1601, %v1750
        %vm3623 = vcmp.lt.f32.partialorder %v1606, %v1722
        %vm3624 = vcmp.lt.f32.partialorder %v1606, %v1726
        %vm3625 = vcmp.lt.f32.partialorder %v1606, %v1730
        %vm3626 = vcmp.lt.f32.partialorder %v1606, %v1734
        %vm3627 = vcmp.lt.f32.partialorder %v1606, %v1738
        %vm3628 = vcmp.lt.f32.partialorder %v1606, %v1742
        %vm3629 = vcmp.lt.f32.partialorder %v1606, %v1746
        %vm3630 = vcmp.lt.f32.partialorder %v1606, %v1750
        %vm3631 = vcmp.lt.f32.partialorder %v1611, %v1722
        %vm3632 = vcmp.lt.f32.partialorder %v1611, %v1726
        %vm3633 = vcmp.lt.f32.partialorder %v1611, %v1730
        %vm3634 = vcmp.lt.f32.partialorder %v1611, %v1734
        %vm3635 = vcmp.lt.f32.partialorder %v1611, %v1738
        %vm3636 = vcmp.lt.f32.partialorder %v1611, %v1742
        %vm3637 = vcmp.lt.f32.partialorder %v1611, %v1746
        %vm3638 = vcmp.lt.f32.partialorder %v1611, %v1750
        %vm3639 = vcmp.lt.f32.partialorder %v1616, %v1722
        %vm3640 = vcmp.lt.f32.partialorder %v1616, %v1726
        %vm3641 = vcmp.lt.f32.partialorder %v1616, %v1730
        %vm3642 = vcmp.lt.f32.partialorder %v1616, %v1734
        %vm3643 = vcmp.lt.f32.partialorder %v1616, %v1738
        %vm3644 = vcmp.lt.f32.partialorder %v1616, %v1742
        %vm3645 = vcmp.lt.f32.partialorder %v1616, %v1746
        %vm3646 = vcmp.lt.f32.partialorder %v1616, %v1750
        %vm3647 = vcmp.lt.f32.partialorder %v1621, %v1722
        %vm3648 = vcmp.lt.f32.partialorder %v1621, %v1726
        %vm3649 = vcmp.lt.f32.partialorder %v1621, %v1730
        %vm3650 = vcmp.lt.f32.partialorder %v1621, %v1734
        %vm3651 = vcmp.lt.f32.partialorder %v1621, %v1738
        %vm3652 = vcmp.lt.f32.partialorder %v1621, %v1742
        %vm3653 = vcmp.lt.f32.partialorder %v1621, %v1746
        %vm3654 = vcmp.lt.f32.partialorder %v1621, %v1750
        %vm3655 = vcmp.lt.f32.partialorder %v1626, %v1722
        %vm3656 = vcmp.lt.f32.partialorder %v1626, %v1726
        %vm3657 = vcmp.lt.f32.partialorder %v1626, %v1730
        %vm3658 = vcmp.lt.f32.partialorder %v1626, %v1734
        %vm3659 = vcmp.lt.f32.partialorder %v1626, %v1738
        %vm3660 = vcmp.lt.f32.partialorder %v1626, %v1742
        %vm3661 = vcmp.lt.f32.partialorder %v1626, %v1746
        %vm3662 = vcmp.lt.f32.partialorder %v1626, %v1750
        %vm3663 = vcmp.lt.f32.partialorder %v1631, %v1722
        %vm3664 = vcmp.lt.f32.partialorder %v1631, %v1726
        %vm3665 = vcmp.lt.f32.partialorder %v1631, %v1730
        %vm3666 = vcmp.lt.f32.partialorder %v1631, %v1734
        %vm3667 = vcmp.lt.f32.partialorder %v1631, %v1738
        %vm3668 = vcmp.lt.f32.partialorder %v1631, %v1742
        %vm3669 = vcmp.lt.f32.partialorder %v1631, %v1746
        %vm3670 = vcmp.lt.f32.partialorder %v1631, %v1750
        %vm3671 = vcmp.lt.f32.partialorder %v1636, %v1722
        %vm3672 = vcmp.lt.f32.partialorder %v1636, %v1726
        %vm3673 = vcmp.lt.f32.partialorder %v1636, %v1730
        %vm3674 = vcmp.lt.f32.partialorder %v1636, %v1734
        %vm3675 = vcmp.lt.f32.partialorder %v1636, %v1738
        %vm3676 = vcmp.lt.f32.partialorder %v1636, %v1742
        %vm3677 = vcmp.lt.f32.partialorder %v1636, %v1746
        %vm3678 = vcmp.lt.f32.partialorder %v1636, %v1750
        %vm3679 = vcmp.lt.f32.partialorder %v1641, %v1722
        %vm3680 = vcmp.lt.f32.partialorder %v1641, %v1726
        %vm3681 = vcmp.lt.f32.partialorder %v1641, %v1730
        %vm3682 = vcmp.lt.f32.partialorder %v1641, %v1734
        %vm3683 = vcmp.lt.f32.partialorder %v1641, %v1738
        %vm3684 = vcmp.lt.f32.partialorder %v1641, %v1742
        %vm3685 = vcmp.lt.f32.partialorder %v1641, %v1746
        %vm3686 = vcmp.lt.f32.partialorder %v1641, %v1750
        %vm3687 = vcmp.lt.f32.partialorder %v1646, %v1722
        %vm3688 = vcmp.lt.f32.partialorder %v1646, %v1726
        %vm3689 = vcmp.lt.f32.partialorder %v1646, %v1730
        %vm3690 = vcmp.lt.f32.partialorder %v1646, %v1734
        %vm3691 = vcmp.lt.f32.partialorder %v1646, %v1738
        %vm3692 = vcmp.lt.f32.partialorder %v1646, %v1742
        %vm3693 = vcmp.lt.f32.partialorder %v1646, %v1746
        %vm3694 = vcmp.lt.f32.partialorder %v1646, %v1750
        %vm3695 = vcmp.lt.f32.partialorder %v1651, %v1722
        %vm3696 = vcmp.lt.f32.partialorder %v1651, %v1726
        %vm3697 = vcmp.lt.f32.partialorder %v1651, %v1730
        %vm3698 = vcmp.lt.f32.partialorder %v1651, %v1734
        %vm3699 = vcmp.lt.f32.partialorder %v1651, %v1738
        %vm3700 = vcmp.lt.f32.partialorder %v1651, %v1742
        %vm3701 = vcmp.lt.f32.partialorder %v1651, %v1746
        %vm3702 = vcmp.lt.f32.partialorder %v1651, %v1750
        %vm3703 = vcmp.lt.f32.partialorder %v1656, %v1722
        %vm3704 = vcmp.lt.f32.partialorder %v1656, %v1726
        %vm3705 = vcmp.lt.f32.partialorder %v1656, %v1730
        %vm3706 = vcmp.lt.f32.partialorder %v1656, %v1734
        %vm3707 = vcmp.lt.f32.partialorder %v1656, %v1738
        %vm3708 = vcmp.lt.f32.partialorder %v1656, %v1742
        %vm3709 = vcmp.lt.f32.partialorder %v1656, %v1746
        %vm3710 = vcmp.lt.f32.partialorder %v1656, %v1750
        %vm3711 = vcmp.lt.f32.partialorder %v1661, %v1722
        %vm3712 = vcmp.lt.f32.partialorder %v1661, %v1726
        %vm3713 = vcmp.lt.f32.partialorder %v1661, %v1730
        %vm3714 = vcmp.lt.f32.partialorder %v1661, %v1734
        %vm3715 = vcmp.lt.f32.partialorder %v1661, %v1738
        %vm3716 = vcmp.lt.f32.partialorder %v1661, %v1742
        %vm3717 = vcmp.lt.f32.partialorder %v1661, %v1746
        %vm3718 = vcmp.lt.f32.partialorder %v1661, %v1750
        %vm3719 = vcmp.lt.f32.partialorder %v1666, %v1722
        %vm3720 = vcmp.lt.f32.partialorder %v1666, %v1726
        %vm3721 = vcmp.lt.f32.partialorder %v1666, %v1730
        %vm3722 = vcmp.lt.f32.partialorder %v1666, %v1734
        %vm3723 = vcmp.lt.f32.partialorder %v1666, %v1738
        %vm3724 = vcmp.lt.f32.partialorder %v1666, %v1742
        %vm3725 = vcmp.lt.f32.partialorder %v1666, %v1746
        %vm3726 = vcmp.lt.f32.partialorder %v1666, %v1750
        %vm3727 = vcmp.lt.f32.partialorder %v1671, %v1722
        %vm3728 = vcmp.lt.f32.partialorder %v1671, %v1726
        %vm3729 = vcmp.lt.f32.partialorder %v1671, %v1730
        %vm3730 = vcmp.lt.f32.partialorder %v1671, %v1734
        %vm3731 = vcmp.lt.f32.partialorder %v1671, %v1738
        %vm3732 = vcmp.lt.f32.partialorder %v1671, %v1742
        %vm3733 = vcmp.lt.f32.partialorder %v1671, %v1746
        %vm3734 = vcmp.lt.f32.partialorder %v1671, %v1750
        %vm3735 = vcmp.lt.f32.partialorder %v1676, %v1722
        %vm3736 = vcmp.lt.f32.partialorder %v1676, %v1726
        %vm3737 = vcmp.lt.f32.partialorder %v1676, %v1730
        %vm3738 = vcmp.lt.f32.partialorder %v1676, %v1734
        %vm3739 = vcmp.lt.f32.partialorder %v1676, %v1738
        %vm3740 = vcmp.lt.f32.partialorder %v1676, %v1742
        %vm3741 = vcmp.lt.f32.partialorder %v1676, %v1746
        %vm3742 = vcmp.lt.f32.partialorder %v1676, %v1750
        %vm3743 = vcmp.lt.f32.partialorder %v1681, %v1722
        %vm3744 = vcmp.lt.f32.partialorder %v1681, %v1726
        %vm3745 = vcmp.lt.f32.partialorder %v1681, %v1730
        %vm3746 = vcmp.lt.f32.partialorder %v1681, %v1734
        %vm3747 = vcmp.lt.f32.partialorder %v1681, %v1738
        %vm3748 = vcmp.lt.f32.partialorder %v1681, %v1742
        %vm3749 = vcmp.lt.f32.partialorder %v1681, %v1746
        %vm3750 = vcmp.lt.f32.partialorder %v1681, %v1750
        %vm3751 = vcmp.lt.f32.partialorder %v1686, %v1722
        %vm3752 = vcmp.lt.f32.partialorder %v1686, %v1726
        %vm3753 = vcmp.lt.f32.partialorder %v1686, %v1730
        %vm3754 = vcmp.lt.f32.partialorder %v1686, %v1734
        %vm3755 = vcmp.lt.f32.partialorder %v1686, %v1738
        %vm3756 = vcmp.lt.f32.partialorder %v1686, %v1742
        %vm3757 = vcmp.lt.f32.partialorder %v1686, %v1746
        %vm3758 = vcmp.lt.f32.partialorder %v1686, %v1750
        %vm3759 = vcmp.lt.f32.partialorder %v1691, %v1722
        %vm3760 = vcmp.lt.f32.partialorder %v1691, %v1726
        %vm3761 = vcmp.lt.f32.partialorder %v1691, %v1730
        %vm3762 = vcmp.lt.f32.partialorder %v1691, %v1734
        %vm3763 = vcmp.lt.f32.partialorder %v1691, %v1738
        %vm3764 = vcmp.lt.f32.partialorder %v1691, %v1742
        %vm3765 = vcmp.lt.f32.partialorder %v1691, %v1746
        %vm3766 = vcmp.lt.f32.partialorder %v1691, %v1750
        %vm3767 = vcmp.lt.f32.partialorder %v1696, %v1722
        %vm3768 = vcmp.lt.f32.partialorder %v1696, %v1726
        %vm3769 = vcmp.lt.f32.partialorder %v1696, %v1730
        %vm3770 = vcmp.lt.f32.partialorder %v1696, %v1734
        %vm3771 = vcmp.lt.f32.partialorder %v1696, %v1738
        %vm3772 = vcmp.lt.f32.partialorder %v1696, %v1742
        %vm3773 = vcmp.lt.f32.partialorder %v1696, %v1746
        %vm3774 = vcmp.lt.f32.partialorder %v1696, %v1750
        %vm3775 = vcmp.lt.f32.partialorder %v1701, %v1722
        %vm3776 = vcmp.lt.f32.partialorder %v1701, %v1726
        %vm3777 = vcmp.lt.f32.partialorder %v1701, %v1730
        %vm3778 = vcmp.lt.f32.partialorder %v1701, %v1734
        %vm3779 = vcmp.lt.f32.partialorder %v1701, %v1738
        %vm3780 = vcmp.lt.f32.partialorder %v1701, %v1742
        %vm3781 = vcmp.lt.f32.partialorder %v1701, %v1746
        %vm3782 = vcmp.lt.f32.partialorder %v1701, %v1750
        %vm3783 = vcmp.lt.f32.partialorder %v1706, %v1722
        %vm3784 = vcmp.lt.f32.partialorder %v1706, %v1726
        %vm3785 = vcmp.lt.f32.partialorder %v1706, %v1730
        %vm3786 = vcmp.lt.f32.partialorder %v1706, %v1734
        %vm3787 = vcmp.lt.f32.partialorder %v1706, %v1738
        %vm3788 = vcmp.lt.f32.partialorder %v1706, %v1742
        %vm3789 = vcmp.lt.f32.partialorder %v1706, %v1746
        %vm3790 = vcmp.lt.f32.partialorder %v1706, %v1750
        %vm3791 = vcmp.lt.f32.partialorder %v1711, %v1722
        %vm3792 = vcmp.lt.f32.partialorder %v1711, %v1726
        %vm3793 = vcmp.lt.f32.partialorder %v1711, %v1730
        %vm3794 = vcmp.lt.f32.partialorder %v1711, %v1734
        %vm3795 = vcmp.lt.f32.partialorder %v1711, %v1738
        %vm3796 = vcmp.lt.f32.partialorder %v1711, %v1742
        %vm3797 = vcmp.lt.f32.partialorder %v1711, %v1746
        %vm3798 = vcmp.lt.f32.partialorder %v1711, %v1750
        %vm3799 = vcmp.lt.f32.partialorder %v1716, %v1722
        %vm3800 = vcmp.lt.f32.partialorder %v1716, %v1726
        %vm3801 = vcmp.lt.f32.partialorder %v1716, %v1730
        %vm3802 = vcmp.lt.f32.partialorder %v1716, %v1734
        %vm3803 = vcmp.lt.f32.partialorder %v1716, %v1738
        %vm3804 = vcmp.lt.f32.partialorder %v1716, %v1742
        %vm3805 = vcmp.lt.f32.partialorder %v1716, %v1746
        %vm3806 = vcmp.lt.f32.partialorder %v1716, %v1750
        %v3807 = vsel %vm1759, 1, 0
        %v3808 = vsel %vm1760, 1, 0
        %v3809 = vsel %vm1761, 1, 0
        %v3810 = vsel %vm1762, 1, 0
        %v3811 = vsel %vm1763, 1, 0
        %v3812 = vsel %vm1764, 1, 0
        %v3813 = vsel %vm1765, 1, 0
        %v3814 = vsel %vm1766, 1, 0
        %v3815 = vsel %vm1767, 1, 0
        %v3816 = vsel %vm1768, 1, 0
        %v3817 = vsel %vm1769, 1, 0
        %v3818 = vsel %vm1770, 1, 0
        %v3819 = vsel %vm1771, 1, 0
        %v3820 = vsel %vm1772, 1, 0
        %v3821 = vsel %vm1773, 1, 0
        %v3822 = vsel %vm1774, 1, 0
        %v3823 = vsel %vm1775, 1, 0
        %v3824 = vsel %vm1776, 1, 0
        %v3825 = vsel %vm1777, 1, 0
        %v3826 = vsel %vm1778, 1, 0
        %v3827 = vsel %vm1779, 1, 0
        %v3828 = vsel %vm1780, 1, 0
        %v3829 = vsel %vm1781, 1, 0
        %v3830 = vsel %vm1782, 1, 0
        %v3831 = vsel %vm1783, 1, 0
        %v3832 = vsel %vm1784, 1, 0
        %v3833 = vsel %vm1785, 1, 0
        %v3834 = vsel %vm1786, 1, 0
        %v3835 = vsel %vm1787, 1, 0
        %v3836 = vsel %vm1788, 1, 0
        %v3837 = vsel %vm1789, 1, 0
        %v3838 = vsel %vm1790, 1, 0
        %v3839 = vsel %vm1791, 1, 0
        %v3840 = vsel %vm1792, 1, 0
        %v3841 = vsel %vm1793, 1, 0
        %v3842 = vsel %vm1794, 1, 0
        %v3843 = vsel %vm1795, 1, 0
        %v3844 = vsel %vm1796, 1, 0
        %v3845 = vsel %vm1797, 1, 0
        %v3846 = vsel %vm1798, 1, 0
        %v3847 = vsel %vm1799, 1, 0
        %v3848 = vsel %vm1800, 1, 0
        %v3849 = vsel %vm1801, 1, 0
        %v3850 = vsel %vm1802, 1, 0
        %v3851 = vsel %vm1803, 1, 0
        %v3852 = vsel %vm1804, 1, 0
        %v3853 = vsel %vm1805, 1, 0
        %v3854 = vsel %vm1806, 1, 0
        %v3855 = vsel %vm1807, 1, 0
        %v3856 = vsel %vm1808, 1, 0
        %v3857 = vsel %vm1809, 1, 0
        %v3858 = vsel %vm1810, 1, 0
        %v3859 = vsel %vm1811, 1, 0
        %v3860 = vsel %vm1812, 1, 0
        %v3861 = vsel %vm1813, 1, 0
        %v3862 = vsel %vm1814, 1, 0
        %v3863 = vsel %vm1815, 1, 0
        %v3864 = vsel %vm1816, 1, 0
        %v3865 = vsel %vm1817, 1, 0
        %v3866 = vsel %vm1818, 1, 0
        %v3867 = vsel %vm1819, 1, 0
        %v3868 = vsel %vm1820, 1, 0
        %v3869 = vsel %vm1821, 1, 0
        %v3870 = vsel %vm1822, 1, 0
        %v3871 = vsel %vm1823, 1, 0
        %v3872 = vsel %vm1824, 1, 0
        %v3873 = vsel %vm1825, 1, 0
        %v3874 = vsel %vm1826, 1, 0
        %v3875 = vsel %vm1827, 1, 0
        %v3876 = vsel %vm1828, 1, 0
        %v3877 = vsel %vm1829, 1, 0
        %v3878 = vsel %vm1830, 1, 0
        %v3879 = vsel %vm1831, 1, 0
        %v3880 = vsel %vm1832, 1, 0
        %v3881 = vsel %vm1833, 1, 0
        %v3882 = vsel %vm1834, 1, 0
        %v3883 = vsel %vm1835, 1, 0
        %v3884 = vsel %vm1836, 1, 0
        %v3885 = vsel %vm1837, 1, 0
        %v3886 = vsel %vm1838, 1, 0
        %v3887 = vsel %vm1839, 1, 0
        %v3888 = vsel %vm1840, 1, 0
        %v3889 = vsel %vm1841, 1, 0
        %v3890 = vsel %vm1842, 1, 0
        %v3891 = vsel %vm1843, 1, 0
        %v3892 = vsel %vm1844, 1, 0
        %v3893 = vsel %vm1845, 1, 0
        %v3894 = vsel %vm1846, 1, 0
        %v3895 = vsel %vm1847, 1, 0
        %v3896 = vsel %vm1848, 1, 0
        %v3897 = vsel %vm1849, 1, 0
        %v3898 = vsel %vm1850, 1, 0
        %v3899 = vsel %vm1851, 1, 0
        %v3900 = vsel %vm1852, 1, 0
        %v3901 = vsel %vm1853, 1, 0
        %v3902 = vsel %vm1854, 1, 0
        %v3903 = vsel %vm1855, 1, 0
        %v3904 = vsel %vm1856, 1, 0
        %v3905 = vsel %vm1857, 1, 0
        %v3906 = vsel %vm1858, 1, 0
        %v3907 = vsel %vm1859, 1, 0
        %v3908 = vsel %vm1860, 1, 0
        %v3909 = vsel %vm1861, 1, 0
        %v3910 = vsel %vm1862, 1, 0
        %v3911 = vsel %vm1863, 1, 0
        %v3912 = vsel %vm1864, 1, 0
        %v3913 = vsel %vm1865, 1, 0
        %v3914 = vsel %vm1866, 1, 0
        %v3915 = vsel %vm1867, 1, 0
        %v3916 = vsel %vm1868, 1, 0
        %v3917 = vsel %vm1869, 1, 0
        %v3918 = vsel %vm1870, 1, 0
        %v3919 = vsel %vm1871, 1, 0
        %v3920 = vsel %vm1872, 1, 0
        %v3921 = vsel %vm1873, 1, 0
        %v3922 = vsel %vm1874, 1, 0
        %v3923 = vsel %vm1875, 1, 0
        %v3924 = vsel %vm1876, 1, 0
        %v3925 = vsel %vm1877, 1, 0
        %v3926 = vsel %vm1878, 1, 0
        %v3927 = vsel %vm1879, 1, 0
        %v3928 = vsel %vm1880, 1, 0
        %v3929 = vsel %vm1881, 1, 0
        %v3930 = vsel %vm1882, 1, 0
        %v3931 = vsel %vm1883, 1, 0
        %v3932 = vsel %vm1884, 1, 0
        %v3933 = vsel %vm1885, 1, 0
        %v3934 = vsel %vm1886, 1, 0
        %v3935 = vsel %vm1887, 1, 0
        %v3936 = vsel %vm1888, 1, 0
        %v3937 = vsel %vm1889, 1, 0
        %v3938 = vsel %vm1890, 1, 0
        %v3939 = vsel %vm1891, 1, 0
        %v3940 = vsel %vm1892, 1, 0
        %v3941 = vsel %vm1893, 1, 0
        %v3942 = vsel %vm1894, 1, 0
        %v3943 = vsel %vm1895, 1, 0
        %v3944 = vsel %vm1896, 1, 0
        %v3945 = vsel %vm1897, 1, 0
        %v3946 = vsel %vm1898, 1, 0
        %v3947 = vsel %vm1899, 1, 0
        %v3948 = vsel %vm1900, 1, 0
        %v3949 = vsel %vm1901, 1, 0
        %v3950 = vsel %vm1902, 1, 0
        %v3951 = vsel %vm1903, 1, 0
        %v3952 = vsel %vm1904, 1, 0
        %v3953 = vsel %vm1905, 1, 0
        %v3954 = vsel %vm1906, 1, 0
        %v3955 = vsel %vm1907, 1, 0
        %v3956 = vsel %vm1908, 1, 0
        %v3957 = vsel %vm1909, 1, 0
        %v3958 = vsel %vm1910, 1, 0
        %v3959 = vsel %vm1911, 1, 0
        %v3960 = vsel %vm1912, 1, 0
        %v3961 = vsel %vm1913, 1, 0
        %v3962 = vsel %vm1914, 1, 0
        %v3963 = vsel %vm1915, 1, 0
        %v3964 = vsel %vm1916, 1, 0
        %v3965 = vsel %vm1917, 1, 0
        %v3966 = vsel %vm1918, 1, 0
        %v3967 = vsel %vm1919, 1, 0
        %v3968 = vsel %vm1920, 1, 0
        %v3969 = vsel %vm1921, 1, 0
        %v3970 = vsel %vm1922, 1, 0
        %v3971 = vsel %vm1923, 1, 0
        %v3972 = vsel %vm1924, 1, 0
        %v3973 = vsel %vm1925, 1, 0
        %v3974 = vsel %vm1926, 1, 0
        %v3975 = vsel %vm1927, 1, 0
        %v3976 = vsel %vm1928, 1, 0
        %v3977 = vsel %vm1929, 1, 0
        %v3978 = vsel %vm1930, 1, 0
        %v3979 = vsel %vm1931, 1, 0
        %v3980 = vsel %vm1932, 1, 0
        %v3981 = vsel %vm1933, 1, 0
        %v3982 = vsel %vm1934, 1, 0
        %v3983 = vsel %vm1935, 1, 0
        %v3984 = vsel %vm1936, 1, 0
        %v3985 = vsel %vm1937, 1, 0
        %v3986 = vsel %vm1938, 1, 0
        %v3987 = vsel %vm1939, 1, 0
        %v3988 = vsel %vm1940, 1, 0
        %v3989 = vsel %vm1941, 1, 0
        %v3990 = vsel %vm1942, 1, 0
        %v3991 = vsel %vm1943, 1, 0
        %v3992 = vsel %vm1944, 1, 0
        %v3993 = vsel %vm1945, 1, 0
        %v3994 = vsel %vm1946, 1, 0
        %v3995 = vsel %vm1947, 1, 0
        %v3996 = vsel %vm1948, 1, 0
        %v3997 = vsel %vm1949, 1, 0
        %v3998 = vsel %vm1950, 1, 0
        %v3999 = vsel %vm1951, 1, 0
        %v4000 = vsel %vm1952, 1, 0
        %v4001 = vsel %vm1953, 1, 0
        %v4002 = vsel %vm1954, 1, 0
        %v4003 = vsel %vm1955, 1, 0
        %v4004 = vsel %vm1956, 1, 0
        %v4005 = vsel %vm1957, 1, 0
        %v4006 = vsel %vm1958, 1, 0
        %v4007 = vsel %vm1959, 1, 0
        %v4008 = vsel %vm1960, 1, 0
        %v4009 = vsel %vm1961, 1, 0
        %v4010 = vsel %vm1962, 1, 0
        %v4011 = vsel %vm1963, 1, 0
        %v4012 = vsel %vm1964, 1, 0
        %v4013 = vsel %vm1965, 1, 0
        %v4014 = vsel %vm1966, 1, 0
        %v4015 = vsel %vm1967, 1, 0
        %v4016 = vsel %vm1968, 1, 0
        %v4017 = vsel %vm1969, 1, 0
        %v4018 = vsel %vm1970, 1, 0
        %v4019 = vsel %vm1971, 1, 0
        %v4020 = vsel %vm1972, 1, 0
        %v4021 = vsel %vm1973, 1, 0
        %v4022 = vsel %vm1974, 1, 0
        %v4023 = vsel %vm1975, 1, 0
        %v4024 = vsel %vm1976, 1, 0
        %v4025 = vsel %vm1977, 1, 0
        %v4026 = vsel %vm1978, 1, 0
        %v4027 = vsel %vm1979, 1, 0
        %v4028 = vsel %vm1980, 1, 0
        %v4029 = vsel %vm1981, 1, 0
        %v4030 = vsel %vm1982, 1, 0
        %v4031 = vsel %vm1983, 1, 0
        %v4032 = vsel %vm1984, 1, 0
        %v4033 = vsel %vm1985, 1, 0
        %v4034 = vsel %vm1986, 1, 0
        %v4035 = vsel %vm1987, 1, 0
        %v4036 = vsel %vm1988, 1, 0
        %v4037 = vsel %vm1989, 1, 0
        %v4038 = vsel %vm1990, 1, 0
        %v4039 = vsel %vm1991, 1, 0
        %v4040 = vsel %vm1992, 1, 0
        %v4041 = vsel %vm1993, 1, 0
        %v4042 = vsel %vm1994, 1, 0
        %v4043 = vsel %vm1995, 1, 0
        %v4044 = vsel %vm1996, 1, 0
        %v4045 = vsel %vm1997, 1, 0
        %v4046 = vsel %vm1998, 1, 0
        %v4047 = vsel %vm1999, 1, 0
        %v4048 = vsel %vm2000, 1, 0
        %v4049 = vsel %vm2001, 1, 0
        %v4050 = vsel %vm2002, 1, 0
        %v4051 = vsel %vm2003, 1, 0
        %v4052 = vsel %vm2004, 1, 0
        %v4053 = vsel %vm2005, 1, 0
        %v4054 = vsel %vm2006, 1, 0
        %v4055 = vsel %vm2007, 1, 0
        %v4056 = vsel %vm2008, 1, 0
        %v4057 = vsel %vm2009, 1, 0
        %v4058 = vsel %vm2010, 1, 0
        %v4059 = vsel %vm2011, 1, 0
        %v4060 = vsel %vm2012, 1, 0
        %v4061 = vsel %vm2013, 1, 0
        %v4062 = vsel %vm2014, 1, 0
        %v4063 = vsel %vm2015, 1, 0
        %v4064 = vsel %vm2016, 1, 0
        %v4065 = vsel %vm2017, 1, 0
        %v4066 = vsel %vm2018, 1, 0
        %v4067 = vsel %vm2019, 1, 0
        %v4068 = vsel %vm2020, 1, 0
        %v4069 = vsel %vm2021, 1, 0
        %v4070 = vsel %vm2022, 1, 0
        %v4071 = vsel %vm2023, 1, 0
        %v4072 = vsel %vm2024, 1, 0
        %v4073 = vsel %vm2025, 1, 0
        %v4074 = vsel %vm2026, 1, 0
        %v4075 = vsel %vm2027, 1, 0
        %v4076 = vsel %vm2028, 1, 0
        %v4077 = vsel %vm2029, 1, 0
        %v4078 = vsel %vm2030, 1, 0
        %v4079 = vsel %vm2031, 1, 0
        %v4080 = vsel %vm2032, 1, 0
        %v4081 = vsel %vm2033, 1, 0
        %v4082 = vsel %vm2034, 1, 0
        %v4083 = vsel %vm2035, 1, 0
        %v4084 = vsel %vm2036, 1, 0
        %v4085 = vsel %vm2037, 1, 0
        %v4086 = vsel %vm2038, 1, 0
        %v4087 = vsel %vm2039, 1, 0
        %v4088 = vsel %vm2040, 1, 0
        %v4089 = vsel %vm2041, 1, 0
        %v4090 = vsel %vm2042, 1, 0
        %v4091 = vsel %vm2043, 1, 0
        %v4092 = vsel %vm2044, 1, 0
        %v4093 = vsel %vm2045, 1, 0
        %v4094 = vsel %vm2046, 1, 0
        %v4095 = vsel %vm2047, 1, 0
        %v4096 = vsel %vm2048, 1, 0
        %v4097 = vsel %vm2049, 1, 0
        %v4098 = vsel %vm2050, 1, 0
        %v4099 = vsel %vm2051, 1, 0
        %v4100 = vsel %vm2052, 1, 0
        %v4101 = vsel %vm2053, 1, 0
        %v4102 = vsel %vm2054, 1, 0
        %v4103 = vsel %vm2055, 1, 0
        %v4104 = vsel %vm2056, 1, 0
        %v4105 = vsel %vm2057, 1, 0
        %v4106 = vsel %vm2058, 1, 0
        %v4107 = vsel %vm2059, 1, 0
        %v4108 = vsel %vm2060, 1, 0
        %v4109 = vsel %vm2061, 1, 0
        %v4110 = vsel %vm2062, 1, 0
        %v4111 = vsel %vm2063, 1, 0
        %v4112 = vsel %vm2064, 1, 0
        %v4113 = vsel %vm2065, 1, 0
        %v4114 = vsel %vm2066, 1, 0
        %v4115 = vsel %vm2067, 1, 0
        %v4116 = vsel %vm2068, 1, 0
        %v4117 = vsel %vm2069, 1, 0
        %v4118 = vsel %vm2070, 1, 0
        %v4119 = vsel %vm2071, 1, 0
        %v4120 = vsel %vm2072, 1, 0
        %v4121 = vsel %vm2073, 1, 0
        %v4122 = vsel %vm2074, 1, 0
        %v4123 = vsel %vm2075, 1, 0
        %v4124 = vsel %vm2076, 1, 0
        %v4125 = vsel %vm2077, 1, 0
        %v4126 = vsel %vm2078, 1, 0
        %v4127 = vsel %vm2079, 1, 0
        %v4128 = vsel %vm2080, 1, 0
        %v4129 = vsel %vm2081, 1, 0
        %v4130 = vsel %vm2082, 1, 0
        %v4131 = vsel %vm2083, 1, 0
        %v4132 = vsel %vm2084, 1, 0
        %v4133 = vsel %vm2085, 1, 0
        %v4134 = vsel %vm2086, 1, 0
        %v4135 = vsel %vm2087, 1, 0
        %v4136 = vsel %vm2088, 1, 0
        %v4137 = vsel %vm2089, 1, 0
        %v4138 = vsel %vm2090, 1, 0
        %v4139 = vsel %vm2091, 1, 0
        %v4140 = vsel %vm2092, 1, 0
        %v4141 = vsel %vm2093, 1, 0
        %v4142 = vsel %vm2094, 1, 0
        %v4143 = vsel %vm2095, 1, 0
        %v4144 = vsel %vm2096, 1, 0
        %v4145 = vsel %vm2097, 1, 0
        %v4146 = vsel %vm2098, 1, 0
        %v4147 = vsel %vm2099, 1, 0
        %v4148 = vsel %vm2100, 1, 0
        %v4149 = vsel %vm2101, 1, 0
        %v4150 = vsel %vm2102, 1, 0
        %v4151 = vsel %vm2103, 1, 0
        %v4152 = vsel %vm2104, 1, 0
        %v4153 = vsel %vm2105, 1, 0
        %v4154 = vsel %vm2106, 1, 0
        %v4155 = vsel %vm2107, 1, 0
        %v4156 = vsel %vm2108, 1, 0
        %v4157 = vsel %vm2109, 1, 0
        %v4158 = vsel %vm2110, 1, 0
        %v4159 = vsel %vm2111, 1, 0
        %v4160 = vsel %vm2112, 1, 0
        %v4161 = vsel %vm2113, 1, 0
        %v4162 = vsel %vm2114, 1, 0
        %v4163 = vsel %vm2115, 1, 0
        %v4164 = vsel %vm2116, 1, 0
        %v4165 = vsel %vm2117, 1, 0
        %v4166 = vsel %vm2118, 1, 0
        %v4167 = vsel %vm2119, 1, 0
        %v4168 = vsel %vm2120, 1, 0
        %v4169 = vsel %vm2121, 1, 0
        %v4170 = vsel %vm2122, 1, 0
        %v4171 = vsel %vm2123, 1, 0
        %v4172 = vsel %vm2124, 1, 0
        %v4173 = vsel %vm2125, 1, 0
        %v4174 = vsel %vm2126, 1, 0
        %v4175 = vsel %vm2127, 1, 0
        %v4176 = vsel %vm2128, 1, 0
        %v4177 = vsel %vm2129, 1, 0
        %v4178 = vsel %vm2130, 1, 0
        %v4179 = vsel %vm2131, 1, 0
        %v4180 = vsel %vm2132, 1, 0
        %v4181 = vsel %vm2133, 1, 0
        %v4182 = vsel %vm2134, 1, 0
        %v4183 = vsel %vm2135, 1, 0
        %v4184 = vsel %vm2136, 1, 0
        %v4185 = vsel %vm2137, 1, 0
        %v4186 = vsel %vm2138, 1, 0
        %v4187 = vsel %vm2139, 1, 0
        %v4188 = vsel %vm2140, 1, 0
        %v4189 = vsel %vm2141, 1, 0
        %v4190 = vsel %vm2142, 1, 0
        %v4191 = vsel %vm2143, 1, 0
        %v4192 = vsel %vm2144, 1, 0
        %v4193 = vsel %vm2145, 1, 0
        %v4194 = vsel %vm2146, 1, 0
        %v4195 = vsel %vm2147, 1, 0
        %v4196 = vsel %vm2148, 1, 0
        %v4197 = vsel %vm2149, 1, 0
        %v4198 = vsel %vm2150, 1, 0
        %v4199 = vsel %vm2151, 1, 0
        %v4200 = vsel %vm2152, 1, 0
        %v4201 = vsel %vm2153, 1, 0
        %v4202 = vsel %vm2154, 1, 0
        %v4203 = vsel %vm2155, 1, 0
        %v4204 = vsel %vm2156, 1, 0
        %v4205 = vsel %vm2157, 1, 0
        %v4206 = vsel %vm2158, 1, 0
        %v4207 = vsel %vm2159, 1, 0
        %v4208 = vsel %vm2160, 1, 0
        %v4209 = vsel %vm2161, 1, 0
        %v4210 = vsel %vm2162, 1, 0
        %v4211 = vsel %vm2163, 1, 0
        %v4212 = vsel %vm2164, 1, 0
        %v4213 = vsel %vm2165, 1, 0
        %v4214 = vsel %vm2166, 1, 0
        %v4215 = vsel %vm2167, 1, 0
        %v4216 = vsel %vm2168, 1, 0
        %v4217 = vsel %vm2169, 1, 0
        %v4218 = vsel %vm2170, 1, 0
        %v4219 = vsel %vm2171, 1, 0
        %v4220 = vsel %vm2172, 1, 0
        %v4221 = vsel %vm2173, 1, 0
        %v4222 = vsel %vm2174, 1, 0
        %v4223 = vsel %vm2175, 1, 0
        %v4224 = vsel %vm2176, 1, 0
        %v4225 = vsel %vm2177, 1, 0
        %v4226 = vsel %vm2178, 1, 0
        %v4227 = vsel %vm2179, 1, 0
        %v4228 = vsel %vm2180, 1, 0
        %v4229 = vsel %vm2181, 1, 0
        %v4230 = vsel %vm2182, 1, 0
        %v4231 = vsel %vm2183, 1, 0
        %v4232 = vsel %vm2184, 1, 0
        %v4233 = vsel %vm2185, 1, 0
        %v4234 = vsel %vm2186, 1, 0
        %v4235 = vsel %vm2187, 1, 0
        %v4236 = vsel %vm2188, 1, 0
        %v4237 = vsel %vm2189, 1, 0
        %v4238 = vsel %vm2190, 1, 0
        %v4239 = vsel %vm2191, 1, 0
        %v4240 = vsel %vm2192, 1, 0
        %v4241 = vsel %vm2193, 1, 0
        %v4242 = vsel %vm2194, 1, 0
        %v4243 = vsel %vm2195, 1, 0
        %v4244 = vsel %vm2196, 1, 0
        %v4245 = vsel %vm2197, 1, 0
        %v4246 = vsel %vm2198, 1, 0
        %v4247 = vsel %vm2199, 1, 0
        %v4248 = vsel %vm2200, 1, 0
        %v4249 = vsel %vm2201, 1, 0
        %v4250 = vsel %vm2202, 1, 0
        %v4251 = vsel %vm2203, 1, 0
        %v4252 = vsel %vm2204, 1, 0
        %v4253 = vsel %vm2205, 1, 0
        %v4254 = vsel %vm2206, 1, 0
        %v4255 = vsel %vm2207, 1, 0
        %v4256 = vsel %vm2208, 1, 0
        %v4257 = vsel %vm2209, 1, 0
        %v4258 = vsel %vm2210, 1, 0
        %v4259 = vsel %vm2211, 1, 0
        %v4260 = vsel %vm2212, 1, 0
        %v4261 = vsel %vm2213, 1, 0
        %v4262 = vsel %vm2214, 1, 0
        %v4263 = vsel %vm2215, 1, 0
        %v4264 = vsel %vm2216, 1, 0
        %v4265 = vsel %vm2217, 1, 0
        %v4266 = vsel %vm2218, 1, 0
        %v4267 = vsel %vm2219, 1, 0
        %v4268 = vsel %vm2220, 1, 0
        %v4269 = vsel %vm2221, 1, 0
        %v4270 = vsel %vm2222, 1, 0
        %v4271 = vsel %vm2223, 1, 0
        %v4272 = vsel %vm2224, 1, 0
        %v4273 = vsel %vm2225, 1, 0
        %v4274 = vsel %vm2226, 1, 0
        %v4275 = vsel %vm2227, 1, 0
        %v4276 = vsel %vm2228, 1, 0
        %v4277 = vsel %vm2229, 1, 0
        %v4278 = vsel %vm2230, 1, 0
        %v4279 = vsel %vm2231, 1, 0
        %v4280 = vsel %vm2232, 1, 0
        %v4281 = vsel %vm2233, 1, 0
        %v4282 = vsel %vm2234, 1, 0
        %v4283 = vsel %vm2235, 1, 0
        %v4284 = vsel %vm2236, 1, 0
        %v4285 = vsel %vm2237, 1, 0
        %v4286 = vsel %vm2238, 1, 0
        %v4287 = vsel %vm2239, 1, 0
        %v4288 = vsel %vm2240, 1, 0
        %v4289 = vsel %vm2241, 1, 0
        %v4290 = vsel %vm2242, 1, 0
        %v4291 = vsel %vm2243, 1, 0
        %v4292 = vsel %vm2244, 1, 0
        %v4293 = vsel %vm2245, 1, 0
        %v4294 = vsel %vm2246, 1, 0
        %v4295 = vsel %vm2247, 1, 0
        %v4296 = vsel %vm2248, 1, 0
        %v4297 = vsel %vm2249, 1, 0
        %v4298 = vsel %vm2250, 1, 0
        %v4299 = vsel %vm2251, 1, 0
        %v4300 = vsel %vm2252, 1, 0
        %v4301 = vsel %vm2253, 1, 0
        %v4302 = vsel %vm2254, 1, 0
        %v4303 = vsel %vm2255, 1, 0
        %v4304 = vsel %vm2256, 1, 0
        %v4305 = vsel %vm2257, 1, 0
        %v4306 = vsel %vm2258, 1, 0
        %v4307 = vsel %vm2259, 1, 0
        %v4308 = vsel %vm2260, 1, 0
        %v4309 = vsel %vm2261, 1, 0
        %v4310 = vsel %vm2262, 1, 0
        %v4311 = vsel %vm2263, 1, 0
        %v4312 = vsel %vm2264, 1, 0
        %v4313 = vsel %vm2265, 1, 0
        %v4314 = vsel %vm2266, 1, 0
        %v4315 = vsel %vm2267, 1, 0
        %v4316 = vsel %vm2268, 1, 0
        %v4317 = vsel %vm2269, 1, 0
        %v4318 = vsel %vm2270, 1, 0
        %v4319 = vsel %vm2271, 1, 0
        %v4320 = vsel %vm2272, 1, 0
        %v4321 = vsel %vm2273, 1, 0
        %v4322 = vsel %vm2274, 1, 0
        %v4323 = vsel %vm2275, 1, 0
        %v4324 = vsel %vm2276, 1, 0
        %v4325 = vsel %vm2277, 1, 0
        %v4326 = vsel %vm2278, 1, 0
        %v4327 = vsel %vm2279, 1, 0
        %v4328 = vsel %vm2280, 1, 0
        %v4329 = vsel %vm2281, 1, 0
        %v4330 = vsel %vm2282, 1, 0
        %v4331 = vsel %vm2283, 1, 0
        %v4332 = vsel %vm2284, 1, 0
        %v4333 = vsel %vm2285, 1, 0
        %v4334 = vsel %vm2286, 1, 0
        %v4335 = vsel %vm2287, 1, 0
        %v4336 = vsel %vm2288, 1, 0
        %v4337 = vsel %vm2289, 1, 0
        %v4338 = vsel %vm2290, 1, 0
        %v4339 = vsel %vm2291, 1, 0
        %v4340 = vsel %vm2292, 1, 0
        %v4341 = vsel %vm2293, 1, 0
        %v4342 = vsel %vm2294, 1, 0
        %v4343 = vsel %vm2295, 1, 0
        %v4344 = vsel %vm2296, 1, 0
        %v4345 = vsel %vm2297, 1, 0
        %v4346 = vsel %vm2298, 1, 0
        %v4347 = vsel %vm2299, 1, 0
        %v4348 = vsel %vm2300, 1, 0
        %v4349 = vsel %vm2301, 1, 0
        %v4350 = vsel %vm2302, 1, 0
        %v4351 = vsel %vm2303, 1, 0
        %v4352 = vsel %vm2304, 1, 0
        %v4353 = vsel %vm2305, 1, 0
        %v4354 = vsel %vm2306, 1, 0
        %v4355 = vsel %vm2307, 1, 0
        %v4356 = vsel %vm2308, 1, 0
        %v4357 = vsel %vm2309, 1, 0
        %v4358 = vsel %vm2310, 1, 0
        %v4359 = vsel %vm2311, 1, 0
        %v4360 = vsel %vm2312, 1, 0
        %v4361 = vsel %vm2313, 1, 0
        %v4362 = vsel %vm2314, 1, 0
        %v4363 = vsel %vm2315, 1, 0
        %v4364 = vsel %vm2316, 1, 0
        %v4365 = vsel %vm2317, 1, 0
        %v4366 = vsel %vm2318, 1, 0
        %v4367 = vsel %vm2319, 1, 0
        %v4368 = vsel %vm2320, 1, 0
        %v4369 = vsel %vm2321, 1, 0
        %v4370 = vsel %vm2322, 1, 0
        %v4371 = vsel %vm2323, 1, 0
        %v4372 = vsel %vm2324, 1, 0
        %v4373 = vsel %vm2325, 1, 0
        %v4374 = vsel %vm2326, 1, 0
        %v4375 = vsel %vm2327, 1, 0
        %v4376 = vsel %vm2328, 1, 0
        %v4377 = vsel %vm2329, 1, 0
        %v4378 = vsel %vm2330, 1, 0
        %v4379 = vsel %vm2331, 1, 0
        %v4380 = vsel %vm2332, 1, 0
        %v4381 = vsel %vm2333, 1, 0
        %v4382 = vsel %vm2334, 1, 0
        %v4383 = vsel %vm2335, 1, 0
        %v4384 = vsel %vm2336, 1, 0
        %v4385 = vsel %vm2337, 1, 0
        %v4386 = vsel %vm2338, 1, 0
        %v4387 = vsel %vm2339, 1, 0
        %v4388 = vsel %vm2340, 1, 0
        %v4389 = vsel %vm2341, 1, 0
        %v4390 = vsel %vm2342, 1, 0
        %v4391 = vsel %vm2343, 1, 0
        %v4392 = vsel %vm2344, 1, 0
        %v4393 = vsel %vm2345, 1, 0
        %v4394 = vsel %vm2346, 1, 0
        %v4395 = vsel %vm2347, 1, 0
        %v4396 = vsel %vm2348, 1, 0
        %v4397 = vsel %vm2349, 1, 0
        %v4398 = vsel %vm2350, 1, 0
        %v4399 = vsel %vm2351, 1, 0
        %v4400 = vsel %vm2352, 1, 0
        %v4401 = vsel %vm2353, 1, 0
        %v4402 = vsel %vm2354, 1, 0
        %v4403 = vsel %vm2355, 1, 0
        %v4404 = vsel %vm2356, 1, 0
        %v4405 = vsel %vm2357, 1, 0
        %v4406 = vsel %vm2358, 1, 0
        %v4407 = vsel %vm2359, 1, 0
        %v4408 = vsel %vm2360, 1, 0
        %v4409 = vsel %vm2361, 1, 0
        %v4410 = vsel %vm2362, 1, 0
        %v4411 = vsel %vm2363, 1, 0
        %v4412 = vsel %vm2364, 1, 0
        %v4413 = vsel %vm2365, 1, 0
        %v4414 = vsel %vm2366, 1, 0
        %v4415 = vsel %vm2367, 1, 0
        %v4416 = vsel %vm2368, 1, 0
        %v4417 = vsel %vm2369, 1, 0
        %v4418 = vsel %vm2370, 1, 0
        %v4419 = vsel %vm2371, 1, 0
        %v4420 = vsel %vm2372, 1, 0
        %v4421 = vsel %vm2373, 1, 0
        %v4422 = vsel %vm2374, 1, 0
        %v4423 = vsel %vm2375, 1, 0
        %v4424 = vsel %vm2376, 1, 0
        %v4425 = vsel %vm2377, 1, 0
        %v4426 = vsel %vm2378, 1, 0
        %v4427 = vsel %vm2379, 1, 0
        %v4428 = vsel %vm2380, 1, 0
        %v4429 = vsel %vm2381, 1, 0
        %v4430 = vsel %vm2382, 1, 0
        %v4431 = vsel %vm2383, 1, 0
        %v4432 = vsel %vm2384, 1, 0
        %v4433 = vsel %vm2385, 1, 0
        %v4434 = vsel %vm2386, 1, 0
        %v4435 = vsel %vm2387, 1, 0
        %v4436 = vsel %vm2388, 1, 0
        %v4437 = vsel %vm2389, 1, 0
        %v4438 = vsel %vm2390, 1, 0
        %v4439 = vsel %vm2391, 1, 0
        %v4440 = vsel %vm2392, 1, 0
        %v4441 = vsel %vm2393, 1, 0
        %v4442 = vsel %vm2394, 1, 0
        %v4443 = vsel %vm2395, 1, 0
        %v4444 = vsel %vm2396, 1, 0
        %v4445 = vsel %vm2397, 1, 0
        %v4446 = vsel %vm2398, 1, 0
        %v4447 = vsel %vm2399, 1, 0
        %v4448 = vsel %vm2400, 1, 0
        %v4449 = vsel %vm2401, 1, 0
        %v4450 = vsel %vm2402, 1, 0
        %v4451 = vsel %vm2403, 1, 0
        %v4452 = vsel %vm2404, 1, 0
        %v4453 = vsel %vm2405, 1, 0
        %v4454 = vsel %vm2406, 1, 0
        %v4455 = vsel %vm2407, 1, 0
        %v4456 = vsel %vm2408, 1, 0
        %v4457 = vsel %vm2409, 1, 0
        %v4458 = vsel %vm2410, 1, 0
        %v4459 = vsel %vm2411, 1, 0
        %v4460 = vsel %vm2412, 1, 0
        %v4461 = vsel %vm2413, 1, 0
        %v4462 = vsel %vm2414, 1, 0
        %v4463 = vsel %vm2415, 1, 0
        %v4464 = vsel %vm2416, 1, 0
        %v4465 = vsel %vm2417, 1, 0
        %v4466 = vsel %vm2418, 1, 0
        %v4467 = vsel %vm2419, 1, 0
        %v4468 = vsel %vm2420, 1, 0
        %v4469 = vsel %vm2421, 1, 0
        %v4470 = vsel %vm2422, 1, 0
        %v4471 = vsel %vm2423, 1, 0
        %v4472 = vsel %vm2424, 1, 0
        %v4473 = vsel %vm2425, 1, 0
        %v4474 = vsel %vm2426, 1, 0
        %v4475 = vsel %vm2427, 1, 0
        %v4476 = vsel %vm2428, 1, 0
        %v4477 = vsel %vm2429, 1, 0
        %v4478 = vsel %vm2430, 1, 0
        %v4479 = vsel %vm2431, 1, 0
        %v4480 = vsel %vm2432, 1, 0
        %v4481 = vsel %vm2433, 1, 0
        %v4482 = vsel %vm2434, 1, 0
        %v4483 = vsel %vm2435, 1, 0
        %v4484 = vsel %vm2436, 1, 0
        %v4485 = vsel %vm2437, 1, 0
        %v4486 = vsel %vm2438, 1, 0
        %v4487 = vsel %vm2439, 1, 0
        %v4488 = vsel %vm2440, 1, 0
        %v4489 = vsel %vm2441, 1, 0
        %v4490 = vsel %vm2442, 1, 0
        %v4491 = vsel %vm2443, 1, 0
        %v4492 = vsel %vm2444, 1, 0
        %v4493 = vsel %vm2445, 1, 0
        %v4494 = vsel %vm2446, 1, 0
        %v4495 = vsel %vm2447, 1, 0
        %v4496 = vsel %vm2448, 1, 0
        %v4497 = vsel %vm2449, 1, 0
        %v4498 = vsel %vm2450, 1, 0
        %v4499 = vsel %vm2451, 1, 0
        %v4500 = vsel %vm2452, 1, 0
        %v4501 = vsel %vm2453, 1, 0
        %v4502 = vsel %vm2454, 1, 0
        %v4503 = vsel %vm2455, 1, 0
        %v4504 = vsel %vm2456, 1, 0
        %v4505 = vsel %vm2457, 1, 0
        %v4506 = vsel %vm2458, 1, 0
        %v4507 = vsel %vm2459, 1, 0
        %v4508 = vsel %vm2460, 1, 0
        %v4509 = vsel %vm2461, 1, 0
        %v4510 = vsel %vm2462, 1, 0
        %v4511 = vsel %vm2463, 1, 0
        %v4512 = vsel %vm2464, 1, 0
        %v4513 = vsel %vm2465, 1, 0
        %v4514 = vsel %vm2466, 1, 0
        %v4515 = vsel %vm2467, 1, 0
        %v4516 = vsel %vm2468, 1, 0
        %v4517 = vsel %vm2469, 1, 0
        %v4518 = vsel %vm2470, 1, 0
        %v4519 = vsel %vm2471, 1, 0
        %v4520 = vsel %vm2472, 1, 0
        %v4521 = vsel %vm2473, 1, 0
        %v4522 = vsel %vm2474, 1, 0
        %v4523 = vsel %vm2475, 1, 0
        %v4524 = vsel %vm2476, 1, 0
        %v4525 = vsel %vm2477, 1, 0
        %v4526 = vsel %vm2478, 1, 0
        %v4527 = vsel %vm2479, 1, 0
        %v4528 = vsel %vm2480, 1, 0
        %v4529 = vsel %vm2481, 1, 0
        %v4530 = vsel %vm2482, 1, 0
        %v4531 = vsel %vm2483, 1, 0
        %v4532 = vsel %vm2484, 1, 0
        %v4533 = vsel %vm2485, 1, 0
        %v4534 = vsel %vm2486, 1, 0
        %v4535 = vsel %vm2487, 1, 0
        %v4536 = vsel %vm2488, 1, 0
        %v4537 = vsel %vm2489, 1, 0
        %v4538 = vsel %vm2490, 1, 0
        %v4539 = vsel %vm2491, 1, 0
        %v4540 = vsel %vm2492, 1, 0
        %v4541 = vsel %vm2493, 1, 0
        %v4542 = vsel %vm2494, 1, 0
        %v4543 = vsel %vm2495, 1, 0
        %v4544 = vsel %vm2496, 1, 0
        %v4545 = vsel %vm2497, 1, 0
        %v4546 = vsel %vm2498, 1, 0
        %v4547 = vsel %vm2499, 1, 0
        %v4548 = vsel %vm2500, 1, 0
        %v4549 = vsel %vm2501, 1, 0
        %v4550 = vsel %vm2502, 1, 0
        %v4551 = vsel %vm2503, 1, 0
        %v4552 = vsel %vm2504, 1, 0
        %v4553 = vsel %vm2505, 1, 0
        %v4554 = vsel %vm2506, 1, 0
        %v4555 = vsel %vm2507, 1, 0
        %v4556 = vsel %vm2508, 1, 0
        %v4557 = vsel %vm2509, 1, 0
        %v4558 = vsel %vm2510, 1, 0
        %v4559 = vsel %vm2511, 1, 0
        %v4560 = vsel %vm2512, 1, 0
        %v4561 = vsel %vm2513, 1, 0
        %v4562 = vsel %vm2514, 1, 0
        %v4563 = vsel %vm2515, 1, 0
        %v4564 = vsel %vm2516, 1, 0
        %v4565 = vsel %vm2517, 1, 0
        %v4566 = vsel %vm2518, 1, 0
        %v4567 = vsel %vm2519, 1, 0
        %v4568 = vsel %vm2520, 1, 0
        %v4569 = vsel %vm2521, 1, 0
        %v4570 = vsel %vm2522, 1, 0
        %v4571 = vsel %vm2523, 1, 0
        %v4572 = vsel %vm2524, 1, 0
        %v4573 = vsel %vm2525, 1, 0
        %v4574 = vsel %vm2526, 1, 0
        %v4575 = vsel %vm2527, 1, 0
        %v4576 = vsel %vm2528, 1, 0
        %v4577 = vsel %vm2529, 1, 0
        %v4578 = vsel %vm2530, 1, 0
        %v4579 = vsel %vm2531, 1, 0
        %v4580 = vsel %vm2532, 1, 0
        %v4581 = vsel %vm2533, 1, 0
        %v4582 = vsel %vm2534, 1, 0
        %v4583 = vsel %vm2535, 1, 0
        %v4584 = vsel %vm2536, 1, 0
        %v4585 = vsel %vm2537, 1, 0
        %v4586 = vsel %vm2538, 1, 0
        %v4587 = vsel %vm2539, 1, 0
        %v4588 = vsel %vm2540, 1, 0
        %v4589 = vsel %vm2541, 1, 0
        %v4590 = vsel %vm2542, 1, 0
        %v4591 = vsel %vm2543, 1, 0
        %v4592 = vsel %vm2544, 1, 0
        %v4593 = vsel %vm2545, 1, 0
        %v4594 = vsel %vm2546, 1, 0
        %v4595 = vsel %vm2547, 1, 0
        %v4596 = vsel %vm2548, 1, 0
        %v4597 = vsel %vm2549, 1, 0
        %v4598 = vsel %vm2550, 1, 0
        %v4599 = vsel %vm2551, 1, 0
        %v4600 = vsel %vm2552, 1, 0
        %v4601 = vsel %vm2553, 1, 0
        %v4602 = vsel %vm2554, 1, 0
        %v4603 = vsel %vm2555, 1, 0
        %v4604 = vsel %vm2556, 1, 0
        %v4605 = vsel %vm2557, 1, 0
        %v4606 = vsel %vm2558, 1, 0
        %v4607 = vsel %vm2559, 1, 0
        %v4608 = vsel %vm2560, 1, 0
        %v4609 = vsel %vm2561, 1, 0
        %v4610 = vsel %vm2562, 1, 0
        %v4611 = vsel %vm2563, 1, 0
        %v4612 = vsel %vm2564, 1, 0
        %v4613 = vsel %vm2565, 1, 0
        %v4614 = vsel %vm2566, 1, 0
        %v4615 = vsel %vm2567, 1, 0
        %v4616 = vsel %vm2568, 1, 0
        %v4617 = vsel %vm2569, 1, 0
        %v4618 = vsel %vm2570, 1, 0
        %v4619 = vsel %vm2571, 1, 0
        %v4620 = vsel %vm2572, 1, 0
        %v4621 = vsel %vm2573, 1, 0
        %v4622 = vsel %vm2574, 1, 0
        %v4623 = vsel %vm2575, 1, 0
        %v4624 = vsel %vm2576, 1, 0
        %v4625 = vsel %vm2577, 1, 0
        %v4626 = vsel %vm2578, 1, 0
        %v4627 = vsel %vm2579, 1, 0
        %v4628 = vsel %vm2580, 1, 0
        %v4629 = vsel %vm2581, 1, 0
        %v4630 = vsel %vm2582, 1, 0
        %v4631 = vsel %vm2583, 1, 0
        %v4632 = vsel %vm2584, 1, 0
        %v4633 = vsel %vm2585, 1, 0
        %v4634 = vsel %vm2586, 1, 0
        %v4635 = vsel %vm2587, 1, 0
        %v4636 = vsel %vm2588, 1, 0
        %v4637 = vsel %vm2589, 1, 0
        %v4638 = vsel %vm2590, 1, 0
        %v4639 = vsel %vm2591, 1, 0
        %v4640 = vsel %vm2592, 1, 0
        %v4641 = vsel %vm2593, 1, 0
        %v4642 = vsel %vm2594, 1, 0
        %v4643 = vsel %vm2595, 1, 0
        %v4644 = vsel %vm2596, 1, 0
        %v4645 = vsel %vm2597, 1, 0
        %v4646 = vsel %vm2598, 1, 0
        %v4647 = vsel %vm2599, 1, 0
        %v4648 = vsel %vm2600, 1, 0
        %v4649 = vsel %vm2601, 1, 0
        %v4650 = vsel %vm2602, 1, 0
        %v4651 = vsel %vm2603, 1, 0
        %v4652 = vsel %vm2604, 1, 0
        %v4653 = vsel %vm2605, 1, 0
        %v4654 = vsel %vm2606, 1, 0
        %v4655 = vsel %vm2607, 1, 0
        %v4656 = vsel %vm2608, 1, 0
        %v4657 = vsel %vm2609, 1, 0
        %v4658 = vsel %vm2610, 1, 0
        %v4659 = vsel %vm2611, 1, 0
        %v4660 = vsel %vm2612, 1, 0
        %v4661 = vsel %vm2613, 1, 0
        %v4662 = vsel %vm2614, 1, 0
        %v4663 = vsel %vm2615, 1, 0
        %v4664 = vsel %vm2616, 1, 0
        %v4665 = vsel %vm2617, 1, 0
        %v4666 = vsel %vm2618, 1, 0
        %v4667 = vsel %vm2619, 1, 0
        %v4668 = vsel %vm2620, 1, 0
        %v4669 = vsel %vm2621, 1, 0
        %v4670 = vsel %vm2622, 1, 0
        %v4671 = vsel %vm2623, 1, 0
        %v4672 = vsel %vm2624, 1, 0
        %v4673 = vsel %vm2625, 1, 0
        %v4674 = vsel %vm2626, 1, 0
        %v4675 = vsel %vm2627, 1, 0
        %v4676 = vsel %vm2628, 1, 0
        %v4677 = vsel %vm2629, 1, 0
        %v4678 = vsel %vm2630, 1, 0
        %v4679 = vsel %vm2631, 1, 0
        %v4680 = vsel %vm2632, 1, 0
        %v4681 = vsel %vm2633, 1, 0
        %v4682 = vsel %vm2634, 1, 0
        %v4683 = vsel %vm2635, 1, 0
        %v4684 = vsel %vm2636, 1, 0
        %v4685 = vsel %vm2637, 1, 0
        %v4686 = vsel %vm2638, 1, 0
        %v4687 = vsel %vm2639, 1, 0
        %v4688 = vsel %vm2640, 1, 0
        %v4689 = vsel %vm2641, 1, 0
        %v4690 = vsel %vm2642, 1, 0
        %v4691 = vsel %vm2643, 1, 0
        %v4692 = vsel %vm2644, 1, 0
        %v4693 = vsel %vm2645, 1, 0
        %v4694 = vsel %vm2646, 1, 0
        %v4695 = vsel %vm2647, 1, 0
        %v4696 = vsel %vm2648, 1, 0
        %v4697 = vsel %vm2649, 1, 0
        %v4698 = vsel %vm2650, 1, 0
        %v4699 = vsel %vm2651, 1, 0
        %v4700 = vsel %vm2652, 1, 0
        %v4701 = vsel %vm2653, 1, 0
        %v4702 = vsel %vm2654, 1, 0
        %v4703 = vsel %vm2655, 1, 0
        %v4704 = vsel %vm2656, 1, 0
        %v4705 = vsel %vm2657, 1, 0
        %v4706 = vsel %vm2658, 1, 0
        %v4707 = vsel %vm2659, 1, 0
        %v4708 = vsel %vm2660, 1, 0
        %v4709 = vsel %vm2661, 1, 0
        %v4710 = vsel %vm2662, 1, 0
        %v4711 = vsel %vm2663, 1, 0
        %v4712 = vsel %vm2664, 1, 0
        %v4713 = vsel %vm2665, 1, 0
        %v4714 = vsel %vm2666, 1, 0
        %v4715 = vsel %vm2667, 1, 0
        %v4716 = vsel %vm2668, 1, 0
        %v4717 = vsel %vm2669, 1, 0
        %v4718 = vsel %vm2670, 1, 0
        %v4719 = vsel %vm2671, 1, 0
        %v4720 = vsel %vm2672, 1, 0
        %v4721 = vsel %vm2673, 1, 0
        %v4722 = vsel %vm2674, 1, 0
        %v4723 = vsel %vm2675, 1, 0
        %v4724 = vsel %vm2676, 1, 0
        %v4725 = vsel %vm2677, 1, 0
        %v4726 = vsel %vm2678, 1, 0
        %v4727 = vsel %vm2679, 1, 0
        %v4728 = vsel %vm2680, 1, 0
        %v4729 = vsel %vm2681, 1, 0
        %v4730 = vsel %vm2682, 1, 0
        %v4731 = vsel %vm2683, 1, 0
        %v4732 = vsel %vm2684, 1, 0
        %v4733 = vsel %vm2685, 1, 0
        %v4734 = vsel %vm2686, 1, 0
        %v4735 = vsel %vm2687, 1, 0
        %v4736 = vsel %vm2688, 1, 0
        %v4737 = vsel %vm2689, 1, 0
        %v4738 = vsel %vm2690, 1, 0
        %v4739 = vsel %vm2691, 1, 0
        %v4740 = vsel %vm2692, 1, 0
        %v4741 = vsel %vm2693, 1, 0
        %v4742 = vsel %vm2694, 1, 0
        %v4743 = vsel %vm2695, 1, 0
        %v4744 = vsel %vm2696, 1, 0
        %v4745 = vsel %vm2697, 1, 0
        %v4746 = vsel %vm2698, 1, 0
        %v4747 = vsel %vm2699, 1, 0
        %v4748 = vsel %vm2700, 1, 0
        %v4749 = vsel %vm2701, 1, 0
        %v4750 = vsel %vm2702, 1, 0
        %v4751 = vsel %vm2703, 1, 0
        %v4752 = vsel %vm2704, 1, 0
        %v4753 = vsel %vm2705, 1, 0
        %v4754 = vsel %vm2706, 1, 0
        %v4755 = vsel %vm2707, 1, 0
        %v4756 = vsel %vm2708, 1, 0
        %v4757 = vsel %vm2709, 1, 0
        %v4758 = vsel %vm2710, 1, 0
        %v4759 = vsel %vm2711, 1, 0
        %v4760 = vsel %vm2712, 1, 0
        %v4761 = vsel %vm2713, 1, 0
        %v4762 = vsel %vm2714, 1, 0
        %v4763 = vsel %vm2715, 1, 0
        %v4764 = vsel %vm2716, 1, 0
        %v4765 = vsel %vm2717, 1, 0
        %v4766 = vsel %vm2718, 1, 0
        %v4767 = vsel %vm2719, 1, 0
        %v4768 = vsel %vm2720, 1, 0
        %v4769 = vsel %vm2721, 1, 0
        %v4770 = vsel %vm2722, 1, 0
        %v4771 = vsel %vm2723, 1, 0
        %v4772 = vsel %vm2724, 1, 0
        %v4773 = vsel %vm2725, 1, 0
        %v4774 = vsel %vm2726, 1, 0
        %v4775 = vsel %vm2727, 1, 0
        %v4776 = vsel %vm2728, 1, 0
        %v4777 = vsel %vm2729, 1, 0
        %v4778 = vsel %vm2730, 1, 0
        %v4779 = vsel %vm2731, 1, 0
        %v4780 = vsel %vm2732, 1, 0
        %v4781 = vsel %vm2733, 1, 0
        %v4782 = vsel %vm2734, 1, 0
        %v4783 = vsel %vm2735, 1, 0
        %v4784 = vsel %vm2736, 1, 0
        %v4785 = vsel %vm2737, 1, 0
        %v4786 = vsel %vm2738, 1, 0
        %v4787 = vsel %vm2739, 1, 0
        %v4788 = vsel %vm2740, 1, 0
        %v4789 = vsel %vm2741, 1, 0
        %v4790 = vsel %vm2742, 1, 0
        %v4791 = vsel %vm2743, 1, 0
        %v4792 = vsel %vm2744, 1, 0
        %v4793 = vsel %vm2745, 1, 0
        %v4794 = vsel %vm2746, 1, 0
        %v4795 = vsel %vm2747, 1, 0
        %v4796 = vsel %vm2748, 1, 0
        %v4797 = vsel %vm2749, 1, 0
        %v4798 = vsel %vm2750, 1, 0
        %v4799 = vsel %vm2751, 1, 0
        %v4800 = vsel %vm2752, 1, 0
        %v4801 = vsel %vm2753, 1, 0
        %v4802 = vsel %vm2754, 1, 0
        %v4803 = vsel %vm2755, 1, 0
        %v4804 = vsel %vm2756, 1, 0
        %v4805 = vsel %vm2757, 1, 0
        %v4806 = vsel %vm2758, 1, 0
        %v4807 = vsel %vm2759, 1, 0
        %v4808 = vsel %vm2760, 1, 0
        %v4809 = vsel %vm2761, 1, 0
        %v4810 = vsel %vm2762, 1, 0
        %v4811 = vsel %vm2763, 1, 0
        %v4812 = vsel %vm2764, 1, 0
        %v4813 = vsel %vm2765, 1, 0
        %v4814 = vsel %vm2766, 1, 0
        %v4815 = vsel %vm2767, 1, 0
        %v4816 = vsel %vm2768, 1, 0
        %v4817 = vsel %vm2769, 1, 0
        %v4818 = vsel %vm2770, 1, 0
        %v4819 = vsel %vm2771, 1, 0
        %v4820 = vsel %vm2772, 1, 0
        %v4821 = vsel %vm2773, 1, 0
        %v4822 = vsel %vm2774, 1, 0
        %v4823 = vsel %vm2775, 1, 0
        %v4824 = vsel %vm2776, 1, 0
        %v4825 = vsel %vm2777, 1, 0
        %v4826 = vsel %vm2778, 1, 0
        %v4827 = vsel %vm2779, 1, 0
        %v4828 = vsel %vm2780, 1, 0
        %v4829 = vsel %vm2781, 1, 0
        %v4830 = vsel %vm2782, 1, 0
        %v4831 = vsel %vm2783, 1, 0
        %v4832 = vsel %vm2784, 1, 0
        %v4833 = vsel %vm2785, 1, 0
        %v4834 = vsel %vm2786, 1, 0
        %v4835 = vsel %vm2787, 1, 0
        %v4836 = vsel %vm2788, 1, 0
        %v4837 = vsel %vm2789, 1, 0
        %v4838 = vsel %vm2790, 1, 0
        %v4839 = vsel %vm2791, 1, 0
        %v4840 = vsel %vm2792, 1, 0
        %v4841 = vsel %vm2793, 1, 0
        %v4842 = vsel %vm2794, 1, 0
        %v4843 = vsel %vm2795, 1, 0
        %v4844 = vsel %vm2796, 1, 0
        %v4845 = vsel %vm2797, 1, 0
        %v4846 = vsel %vm2798, 1, 0
        %v4847 = vsel %vm2799, 1, 0
        %v4848 = vsel %vm2800, 1, 0
        %v4849 = vsel %vm2801, 1, 0
        %v4850 = vsel %vm2802, 1, 0
        %v4851 = vsel %vm2803, 1, 0
        %v4852 = vsel %vm2804, 1, 0
        %v4853 = vsel %vm2805, 1, 0
        %v4854 = vsel %vm2806, 1, 0
        %v4855 = vsel %vm2807, 1, 0
        %v4856 = vsel %vm2808, 1, 0
        %v4857 = vsel %vm2809, 1, 0
        %v4858 = vsel %vm2810, 1, 0
        %v4859 = vsel %vm2811, 1, 0
        %v4860 = vsel %vm2812, 1, 0
        %v4861 = vsel %vm2813, 1, 0
        %v4862 = vsel %vm2814, 1, 0
        %v4863 = vsel %vm2815, 1, 0
        %v4864 = vsel %vm2816, 1, 0
        %v4865 = vsel %vm2817, 1, 0
        %v4866 = vsel %vm2818, 1, 0
        %v4867 = vsel %vm2819, 1, 0
        %v4868 = vsel %vm2820, 1, 0
        %v4869 = vsel %vm2821, 1, 0
        %v4870 = vsel %vm2822, 1, 0
        %v4871 = vsel %vm2823, 1, 0
        %v4872 = vsel %vm2824, 1, 0
        %v4873 = vsel %vm2825, 1, 0
        %v4874 = vsel %vm2826, 1, 0
        %v4875 = vsel %vm2827, 1, 0
        %v4876 = vsel %vm2828, 1, 0
        %v4877 = vsel %vm2829, 1, 0
        %v4878 = vsel %vm2830, 1, 0
        %v4879 = vsel %vm2831, 1, 0
        %v4880 = vsel %vm2832, 1, 0
        %v4881 = vsel %vm2833, 1, 0
        %v4882 = vsel %vm2834, 1, 0
        %v4883 = vsel %vm2835, 1, 0
        %v4884 = vsel %vm2836, 1, 0
        %v4885 = vsel %vm2837, 1, 0
        %v4886 = vsel %vm2838, 1, 0
        %v4887 = vsel %vm2839, 1, 0
        %v4888 = vsel %vm2840, 1, 0
        %v4889 = vsel %vm2841, 1, 0
        %v4890 = vsel %vm2842, 1, 0
        %v4891 = vsel %vm2843, 1, 0
        %v4892 = vsel %vm2844, 1, 0
        %v4893 = vsel %vm2845, 1, 0
        %v4894 = vsel %vm2846, 1, 0
        %v4895 = vsel %vm2847, 1, 0
        %v4896 = vsel %vm2848, 1, 0
        %v4897 = vsel %vm2849, 1, 0
        %v4898 = vsel %vm2850, 1, 0
        %v4899 = vsel %vm2851, 1, 0
        %v4900 = vsel %vm2852, 1, 0
        %v4901 = vsel %vm2853, 1, 0
        %v4902 = vsel %vm2854, 1, 0
        %v4903 = vsel %vm2855, 1, 0
        %v4904 = vsel %vm2856, 1, 0
        %v4905 = vsel %vm2857, 1, 0
        %v4906 = vsel %vm2858, 1, 0
        %v4907 = vsel %vm2859, 1, 0
        %v4908 = vsel %vm2860, 1, 0
        %v4909 = vsel %vm2861, 1, 0
        %v4910 = vsel %vm2862, 1, 0
        %v4911 = vsel %vm2863, 1, 0
        %v4912 = vsel %vm2864, 1, 0
        %v4913 = vsel %vm2865, 1, 0
        %v4914 = vsel %vm2866, 1, 0
        %v4915 = vsel %vm2867, 1, 0
        %v4916 = vsel %vm2868, 1, 0
        %v4917 = vsel %vm2869, 1, 0
        %v4918 = vsel %vm2870, 1, 0
        %v4919 = vsel %vm2871, 1, 0
        %v4920 = vsel %vm2872, 1, 0
        %v4921 = vsel %vm2873, 1, 0
        %v4922 = vsel %vm2874, 1, 0
        %v4923 = vsel %vm2875, 1, 0
        %v4924 = vsel %vm2876, 1, 0
        %v4925 = vsel %vm2877, 1, 0
        %v4926 = vsel %vm2878, 1, 0
        %v4927 = vsel %vm2879, 1, 0
        %v4928 = vsel %vm2880, 1, 0
        %v4929 = vsel %vm2881, 1, 0
        %v4930 = vsel %vm2882, 1, 0
        %v4931 = vsel %vm2883, 1, 0
        %v4932 = vsel %vm2884, 1, 0
        %v4933 = vsel %vm2885, 1, 0
        %v4934 = vsel %vm2886, 1, 0
        %v4935 = vsel %vm2887, 1, 0
        %v4936 = vsel %vm2888, 1, 0
        %v4937 = vsel %vm2889, 1, 0
        %v4938 = vsel %vm2890, 1, 0
        %v4939 = vsel %vm2891, 1, 0
        %v4940 = vsel %vm2892, 1, 0
        %v4941 = vsel %vm2893, 1, 0
        %v4942 = vsel %vm2894, 1, 0
        %v4943 = vsel %vm2895, 1, 0
        %v4944 = vsel %vm2896, 1, 0
        %v4945 = vsel %vm2897, 1, 0
        %v4946 = vsel %vm2898, 1, 0
        %v4947 = vsel %vm2899, 1, 0
        %v4948 = vsel %vm2900, 1, 0
        %v4949 = vsel %vm2901, 1, 0
        %v4950 = vsel %vm2902, 1, 0
        %v4951 = vsel %vm2903, 1, 0
        %v4952 = vsel %vm2904, 1, 0
        %v4953 = vsel %vm2905, 1, 0
        %v4954 = vsel %vm2906, 1, 0
        %v4955 = vsel %vm2907, 1, 0
        %v4956 = vsel %vm2908, 1, 0
        %v4957 = vsel %vm2909, 1, 0
        %v4958 = vsel %vm2910, 1, 0
        %v4959 = vsel %vm2911, 1, 0
        %v4960 = vsel %vm2912, 1, 0
        %v4961 = vsel %vm2913, 1, 0
        %v4962 = vsel %vm2914, 1, 0
        %v4963 = vsel %vm2915, 1, 0
        %v4964 = vsel %vm2916, 1, 0
        %v4965 = vsel %vm2917, 1, 0
        %v4966 = vsel %vm2918, 1, 0
        %v4967 = vsel %vm2919, 1, 0
        %v4968 = vsel %vm2920, 1, 0
        %v4969 = vsel %vm2921, 1, 0
        %v4970 = vsel %vm2922, 1, 0
        %v4971 = vsel %vm2923, 1, 0
        %v4972 = vsel %vm2924, 1, 0
        %v4973 = vsel %vm2925, 1, 0
        %v4974 = vsel %vm2926, 1, 0
        %v4975 = vsel %vm2927, 1, 0
        %v4976 = vsel %vm2928, 1, 0
        %v4977 = vsel %vm2929, 1, 0
        %v4978 = vsel %vm2930, 1, 0
        %v4979 = vsel %vm2931, 1, 0
        %v4980 = vsel %vm2932, 1, 0
        %v4981 = vsel %vm2933, 1, 0
        %v4982 = vsel %vm2934, 1, 0
        %v4983 = vsel %vm2935, 1, 0
        %v4984 = vsel %vm2936, 1, 0
        %v4985 = vsel %vm2937, 1, 0
        %v4986 = vsel %vm2938, 1, 0
        %v4987 = vsel %vm2939, 1, 0
        %v4988 = vsel %vm2940, 1, 0
        %v4989 = vsel %vm2941, 1, 0
        %v4990 = vsel %vm2942, 1, 0
        %v4991 = vsel %vm2943, 1, 0
        %v4992 = vsel %vm2944, 1, 0
        %v4993 = vsel %vm2945, 1, 0
        %v4994 = vsel %vm2946, 1, 0
        %v4995 = vsel %vm2947, 1, 0
        %v4996 = vsel %vm2948, 1, 0
        %v4997 = vsel %vm2949, 1, 0
        %v4998 = vsel %vm2950, 1, 0
        %v4999 = vsel %vm2951, 1, 0
        %v5000 = vsel %vm2952, 1, 0
        %v5001 = vsel %vm2953, 1, 0
        %v5002 = vsel %vm2954, 1, 0
        %v5003 = vsel %vm2955, 1, 0
        %v5004 = vsel %vm2956, 1, 0
        %v5005 = vsel %vm2957, 1, 0
        %v5006 = vsel %vm2958, 1, 0
        %v5007 = vsel %vm2959, 1, 0
        %v5008 = vsel %vm2960, 1, 0
        %v5009 = vsel %vm2961, 1, 0
        %v5010 = vsel %vm2962, 1, 0
        %v5011 = vsel %vm2963, 1, 0
        %v5012 = vsel %vm2964, 1, 0
        %v5013 = vsel %vm2965, 1, 0
        %v5014 = vsel %vm2966, 1, 0
        %v5015 = vsel %vm2967, 1, 0
        %v5016 = vsel %vm2968, 1, 0
        %v5017 = vsel %vm2969, 1, 0
        %v5018 = vsel %vm2970, 1, 0
        %v5019 = vsel %vm2971, 1, 0
        %v5020 = vsel %vm2972, 1, 0
        %v5021 = vsel %vm2973, 1, 0
        %v5022 = vsel %vm2974, 1, 0
        %v5023 = vsel %vm2975, 1, 0
        %v5024 = vsel %vm2976, 1, 0
        %v5025 = vsel %vm2977, 1, 0
        %v5026 = vsel %vm2978, 1, 0
        %v5027 = vsel %vm2979, 1, 0
        %v5028 = vsel %vm2980, 1, 0
        %v5029 = vsel %vm2981, 1, 0
        %v5030 = vsel %vm2982, 1, 0
        %v5031 = vsel %vm2983, 1, 0
        %v5032 = vsel %vm2984, 1, 0
        %v5033 = vsel %vm2985, 1, 0
        %v5034 = vsel %vm2986, 1, 0
        %v5035 = vsel %vm2987, 1, 0
        %v5036 = vsel %vm2988, 1, 0
        %v5037 = vsel %vm2989, 1, 0
        %v5038 = vsel %vm2990, 1, 0
        %v5039 = vsel %vm2991, 1, 0
        %v5040 = vsel %vm2992, 1, 0
        %v5041 = vsel %vm2993, 1, 0
        %v5042 = vsel %vm2994, 1, 0
        %v5043 = vsel %vm2995, 1, 0
        %v5044 = vsel %vm2996, 1, 0
        %v5045 = vsel %vm2997, 1, 0
        %v5046 = vsel %vm2998, 1, 0
        %v5047 = vsel %vm2999, 1, 0
        %v5048 = vsel %vm3000, 1, 0
        %v5049 = vsel %vm3001, 1, 0
        %v5050 = vsel %vm3002, 1, 0
        %v5051 = vsel %vm3003, 1, 0
        %v5052 = vsel %vm3004, 1, 0
        %v5053 = vsel %vm3005, 1, 0
        %v5054 = vsel %vm3006, 1, 0
        %v5055 = vsel %vm3007, 1, 0
        %v5056 = vsel %vm3008, 1, 0
        %v5057 = vsel %vm3009, 1, 0
        %v5058 = vsel %vm3010, 1, 0
        %v5059 = vsel %vm3011, 1, 0
        %v5060 = vsel %vm3012, 1, 0
        %v5061 = vsel %vm3013, 1, 0
        %v5062 = vsel %vm3014, 1, 0
        %v5063 = vsel %vm3015, 1, 0
        %v5064 = vsel %vm3016, 1, 0
        %v5065 = vsel %vm3017, 1, 0
        %v5066 = vsel %vm3018, 1, 0
        %v5067 = vsel %vm3019, 1, 0
        %v5068 = vsel %vm3020, 1, 0
        %v5069 = vsel %vm3021, 1, 0
        %v5070 = vsel %vm3022, 1, 0
        %v5071 = vsel %vm3023, 1, 0
        %v5072 = vsel %vm3024, 1, 0
        %v5073 = vsel %vm3025, 1, 0
        %v5074 = vsel %vm3026, 1, 0
        %v5075 = vsel %vm3027, 1, 0
        %v5076 = vsel %vm3028, 1, 0
        %v5077 = vsel %vm3029, 1, 0
        %v5078 = vsel %vm3030, 1, 0
        %v5079 = vsel %vm3031, 1, 0
        %v5080 = vsel %vm3032, 1, 0
        %v5081 = vsel %vm3033, 1, 0
        %v5082 = vsel %vm3034, 1, 0
        %v5083 = vsel %vm3035, 1, 0
        %v5084 = vsel %vm3036, 1, 0
        %v5085 = vsel %vm3037, 1, 0
        %v5086 = vsel %vm3038, 1, 0
        %v5087 = vsel %vm3039, 1, 0
        %v5088 = vsel %vm3040, 1, 0
        %v5089 = vsel %vm3041, 1, 0
        %v5090 = vsel %vm3042, 1, 0
        %v5091 = vsel %vm3043, 1, 0
        %v5092 = vsel %vm3044, 1, 0
        %v5093 = vsel %vm3045, 1, 0
        %v5094 = vsel %vm3046, 1, 0
        %v5095 = vsel %vm3047, 1, 0
        %v5096 = vsel %vm3048, 1, 0
        %v5097 = vsel %vm3049, 1, 0
        %v5098 = vsel %vm3050, 1, 0
        %v5099 = vsel %vm3051, 1, 0
        %v5100 = vsel %vm3052, 1, 0
        %v5101 = vsel %vm3053, 1, 0
        %v5102 = vsel %vm3054, 1, 0
        %v5103 = vsel %vm3055, 1, 0
        %v5104 = vsel %vm3056, 1, 0
        %v5105 = vsel %vm3057, 1, 0
        %v5106 = vsel %vm3058, 1, 0
        %v5107 = vsel %vm3059, 1, 0
        %v5108 = vsel %vm3060, 1, 0
        %v5109 = vsel %vm3061, 1, 0
        %v5110 = vsel %vm3062, 1, 0
        %v5111 = vsel %vm3063, 1, 0
        %v5112 = vsel %vm3064, 1, 0
        %v5113 = vsel %vm3065, 1, 0
        %v5114 = vsel %vm3066, 1, 0
        %v5115 = vsel %vm3067, 1, 0
        %v5116 = vsel %vm3068, 1, 0
        %v5117 = vsel %vm3069, 1, 0
        %v5118 = vsel %vm3070, 1, 0
        %v5119 = vsel %vm3071, 1, 0
        %v5120 = vsel %vm3072, 1, 0
        %v5121 = vsel %vm3073, 1, 0
        %v5122 = vsel %vm3074, 1, 0
        %v5123 = vsel %vm3075, 1, 0
        %v5124 = vsel %vm3076, 1, 0
        %v5125 = vsel %vm3077, 1, 0
        %v5126 = vsel %vm3078, 1, 0
        %v5127 = vsel %vm3079, 1, 0
        %v5128 = vsel %vm3080, 1, 0
        %v5129 = vsel %vm3081, 1, 0
        %v5130 = vsel %vm3082, 1, 0
        %v5131 = vsel %vm3083, 1, 0
        %v5132 = vsel %vm3084, 1, 0
        %v5133 = vsel %vm3085, 1, 0
        %v5134 = vsel %vm3086, 1, 0
        %v5135 = vsel %vm3087, 1, 0
        %v5136 = vsel %vm3088, 1, 0
        %v5137 = vsel %vm3089, 1, 0
        %v5138 = vsel %vm3090, 1, 0
        %v5139 = vsel %vm3091, 1, 0
        %v5140 = vsel %vm3092, 1, 0
        %v5141 = vsel %vm3093, 1, 0
        %v5142 = vsel %vm3094, 1, 0
        %v5143 = vsel %vm3095, 1, 0
        %v5144 = vsel %vm3096, 1, 0
        %v5145 = vsel %vm3097, 1, 0
        %v5146 = vsel %vm3098, 1, 0
        %v5147 = vsel %vm3099, 1, 0
        %v5148 = vsel %vm3100, 1, 0
        %v5149 = vsel %vm3101, 1, 0
        %v5150 = vsel %vm3102, 1, 0
        %v5151 = vsel %vm3103, 1, 0
        %v5152 = vsel %vm3104, 1, 0
        %v5153 = vsel %vm3105, 1, 0
        %v5154 = vsel %vm3106, 1, 0
        %v5155 = vsel %vm3107, 1, 0
        %v5156 = vsel %vm3108, 1, 0
        %v5157 = vsel %vm3109, 1, 0
        %v5158 = vsel %vm3110, 1, 0
        %v5159 = vsel %vm3111, 1, 0
        %v5160 = vsel %vm3112, 1, 0
        %v5161 = vsel %vm3113, 1, 0
        %v5162 = vsel %vm3114, 1, 0
        %v5163 = vsel %vm3115, 1, 0
        %v5164 = vsel %vm3116, 1, 0
        %v5165 = vsel %vm3117, 1, 0
        %v5166 = vsel %vm3118, 1, 0
        %v5167 = vsel %vm3119, 1, 0
        %v5168 = vsel %vm3120, 1, 0
        %v5169 = vsel %vm3121, 1, 0
        %v5170 = vsel %vm3122, 1, 0
        %v5171 = vsel %vm3123, 1, 0
        %v5172 = vsel %vm3124, 1, 0
        %v5173 = vsel %vm3125, 1, 0
        %v5174 = vsel %vm3126, 1, 0
        %v5175 = vsel %vm3127, 1, 0
        %v5176 = vsel %vm3128, 1, 0
        %v5177 = vsel %vm3129, 1, 0
        %v5178 = vsel %vm3130, 1, 0
        %v5179 = vsel %vm3131, 1, 0
        %v5180 = vsel %vm3132, 1, 0
        %v5181 = vsel %vm3133, 1, 0
        %v5182 = vsel %vm3134, 1, 0
        %v5183 = vsel %vm3135, 1, 0
        %v5184 = vsel %vm3136, 1, 0
        %v5185 = vsel %vm3137, 1, 0
        %v5186 = vsel %vm3138, 1, 0
        %v5187 = vsel %vm3139, 1, 0
        %v5188 = vsel %vm3140, 1, 0
        %v5189 = vsel %vm3141, 1, 0
        %v5190 = vsel %vm3142, 1, 0
        %v5191 = vsel %vm3143, 1, 0
        %v5192 = vsel %vm3144, 1, 0
        %v5193 = vsel %vm3145, 1, 0
        %v5194 = vsel %vm3146, 1, 0
        %v5195 = vsel %vm3147, 1, 0
        %v5196 = vsel %vm3148, 1, 0
        %v5197 = vsel %vm3149, 1, 0
        %v5198 = vsel %vm3150, 1, 0
        %v5199 = vsel %vm3151, 1, 0
        %v5200 = vsel %vm3152, 1, 0
        %v5201 = vsel %vm3153, 1, 0
        %v5202 = vsel %vm3154, 1, 0
        %v5203 = vsel %vm3155, 1, 0
        %v5204 = vsel %vm3156, 1, 0
        %v5205 = vsel %vm3157, 1, 0
        %v5206 = vsel %vm3158, 1, 0
        %v5207 = vsel %vm3159, 1, 0
        %v5208 = vsel %vm3160, 1, 0
        %v5209 = vsel %vm3161, 1, 0
        %v5210 = vsel %vm3162, 1, 0
        %v5211 = vsel %vm3163, 1, 0
        %v5212 = vsel %vm3164, 1, 0
        %v5213 = vsel %vm3165, 1, 0
        %v5214 = vsel %vm3166, 1, 0
        %v5215 = vsel %vm3167, 1, 0
        %v5216 = vsel %vm3168, 1, 0
        %v5217 = vsel %vm3169, 1, 0
        %v5218 = vsel %vm3170, 1, 0
        %v5219 = vsel %vm3171, 1, 0
        %v5220 = vsel %vm3172, 1, 0
        %v5221 = vsel %vm3173, 1, 0
        %v5222 = vsel %vm3174, 1, 0
        %v5223 = vsel %vm3175, 1, 0
        %v5224 = vsel %vm3176, 1, 0
        %v5225 = vsel %vm3177, 1, 0
        %v5226 = vsel %vm3178, 1, 0
        %v5227 = vsel %vm3179, 1, 0
        %v5228 = vsel %vm3180, 1, 0
        %v5229 = vsel %vm3181, 1, 0
        %v5230 = vsel %vm3182, 1, 0
        %v5231 = vsel %vm3183, 1, 0
        %v5232 = vsel %vm3184, 1, 0
        %v5233 = vsel %vm3185, 1, 0
        %v5234 = vsel %vm3186, 1, 0
        %v5235 = vsel %vm3187, 1, 0
        %v5236 = vsel %vm3188, 1, 0
        %v5237 = vsel %vm3189, 1, 0
        %v5238 = vsel %vm3190, 1, 0
        %v5239 = vsel %vm3191, 1, 0
        %v5240 = vsel %vm3192, 1, 0
        %v5241 = vsel %vm3193, 1, 0
        %v5242 = vsel %vm3194, 1, 0
        %v5243 = vsel %vm3195, 1, 0
        %v5244 = vsel %vm3196, 1, 0
        %v5245 = vsel %vm3197, 1, 0
        %v5246 = vsel %vm3198, 1, 0
        %v5247 = vsel %vm3199, 1, 0
        %v5248 = vsel %vm3200, 1, 0
        %v5249 = vsel %vm3201, 1, 0
        %v5250 = vsel %vm3202, 1, 0
        %v5251 = vsel %vm3203, 1, 0
        %v5252 = vsel %vm3204, 1, 0
        %v5253 = vsel %vm3205, 1, 0
        %v5254 = vsel %vm3206, 1, 0
        %v5255 = vsel %vm3207, 1, 0
        %v5256 = vsel %vm3208, 1, 0
        %v5257 = vsel %vm3209, 1, 0
        %v5258 = vsel %vm3210, 1, 0
        %v5259 = vsel %vm3211, 1, 0
        %v5260 = vsel %vm3212, 1, 0
        %v5261 = vsel %vm3213, 1, 0
        %v5262 = vsel %vm3214, 1, 0
        %v5263 = vsel %vm3215, 1, 0
        %v5264 = vsel %vm3216, 1, 0
        %v5265 = vsel %vm3217, 1, 0
        %v5266 = vsel %vm3218, 1, 0
        %v5267 = vsel %vm3219, 1, 0
        %v5268 = vsel %vm3220, 1, 0
        %v5269 = vsel %vm3221, 1, 0
        %v5270 = vsel %vm3222, 1, 0
        %v5271 = vsel %vm3223, 1, 0
        %v5272 = vsel %vm3224, 1, 0
        %v5273 = vsel %vm3225, 1, 0
        %v5274 = vsel %vm3226, 1, 0
        %v5275 = vsel %vm3227, 1, 0
        %v5276 = vsel %vm3228, 1, 0
        %v5277 = vsel %vm3229, 1, 0
        %v5278 = vsel %vm3230, 1, 0
        %v5279 = vsel %vm3231, 1, 0
        %v5280 = vsel %vm3232, 1, 0
        %v5281 = vsel %vm3233, 1, 0
        %v5282 = vsel %vm3234, 1, 0
        %v5283 = vsel %vm3235, 1, 0
        %v5284 = vsel %vm3236, 1, 0
        %v5285 = vsel %vm3237, 1, 0
        %v5286 = vsel %vm3238, 1, 0
        %v5287 = vsel %vm3239, 1, 0
        %v5288 = vsel %vm3240, 1, 0
        %v5289 = vsel %vm3241, 1, 0
        %v5290 = vsel %vm3242, 1, 0
        %v5291 = vsel %vm3243, 1, 0
        %v5292 = vsel %vm3244, 1, 0
        %v5293 = vsel %vm3245, 1, 0
        %v5294 = vsel %vm3246, 1, 0
        %v5295 = vsel %vm3247, 1, 0
        %v5296 = vsel %vm3248, 1, 0
        %v5297 = vsel %vm3249, 1, 0
        %v5298 = vsel %vm3250, 1, 0
        %v5299 = vsel %vm3251, 1, 0
        %v5300 = vsel %vm3252, 1, 0
        %v5301 = vsel %vm3253, 1, 0
        %v5302 = vsel %vm3254, 1, 0
        %v5303 = vsel %vm3255, 1, 0
        %v5304 = vsel %vm3256, 1, 0
        %v5305 = vsel %vm3257, 1, 0
        %v5306 = vsel %vm3258, 1, 0
        %v5307 = vsel %vm3259, 1, 0
        %v5308 = vsel %vm3260, 1, 0
        %v5309 = vsel %vm3261, 1, 0
        %v5310 = vsel %vm3262, 1, 0
        %v5311 = vsel %vm3263, 1, 0
        %v5312 = vsel %vm3264, 1, 0
        %v5313 = vsel %vm3265, 1, 0
        %v5314 = vsel %vm3266, 1, 0
        %v5315 = vsel %vm3267, 1, 0
        %v5316 = vsel %vm3268, 1, 0
        %v5317 = vsel %vm3269, 1, 0
        %v5318 = vsel %vm3270, 1, 0
        %v5319 = vsel %vm3271, 1, 0
        %v5320 = vsel %vm3272, 1, 0
        %v5321 = vsel %vm3273, 1, 0
        %v5322 = vsel %vm3274, 1, 0
        %v5323 = vsel %vm3275, 1, 0
        %v5324 = vsel %vm3276, 1, 0
        %v5325 = vsel %vm3277, 1, 0
        %v5326 = vsel %vm3278, 1, 0
        %v5327 = vsel %vm3279, 1, 0
        %v5328 = vsel %vm3280, 1, 0
        %v5329 = vsel %vm3281, 1, 0
        %v5330 = vsel %vm3282, 1, 0
        %v5331 = vsel %vm3283, 1, 0
        %v5332 = vsel %vm3284, 1, 0
        %v5333 = vsel %vm3285, 1, 0
        %v5334 = vsel %vm3286, 1, 0
        %v5335 = vsel %vm3287, 1, 0
        %v5336 = vsel %vm3288, 1, 0
        %v5337 = vsel %vm3289, 1, 0
        %v5338 = vsel %vm3290, 1, 0
        %v5339 = vsel %vm3291, 1, 0
        %v5340 = vsel %vm3292, 1, 0
        %v5341 = vsel %vm3293, 1, 0
        %v5342 = vsel %vm3294, 1, 0
        %v5343 = vsel %vm3295, 1, 0
        %v5344 = vsel %vm3296, 1, 0
        %v5345 = vsel %vm3297, 1, 0
        %v5346 = vsel %vm3298, 1, 0
        %v5347 = vsel %vm3299, 1, 0
        %v5348 = vsel %vm3300, 1, 0
        %v5349 = vsel %vm3301, 1, 0
        %v5350 = vsel %vm3302, 1, 0
        %v5351 = vsel %vm3303, 1, 0
        %v5352 = vsel %vm3304, 1, 0
        %v5353 = vsel %vm3305, 1, 0
        %v5354 = vsel %vm3306, 1, 0
        %v5355 = vsel %vm3307, 1, 0
        %v5356 = vsel %vm3308, 1, 0
        %v5357 = vsel %vm3309, 1, 0
        %v5358 = vsel %vm3310, 1, 0
        %v5359 = vsel %vm3311, 1, 0
        %v5360 = vsel %vm3312, 1, 0
        %v5361 = vsel %vm3313, 1, 0
        %v5362 = vsel %vm3314, 1, 0
        %v5363 = vsel %vm3315, 1, 0
        %v5364 = vsel %vm3316, 1, 0
        %v5365 = vsel %vm3317, 1, 0
        %v5366 = vsel %vm3318, 1, 0
        %v5367 = vsel %vm3319, 1, 0
        %v5368 = vsel %vm3320, 1, 0
        %v5369 = vsel %vm3321, 1, 0
        %v5370 = vsel %vm3322, 1, 0
        %v5371 = vsel %vm3323, 1, 0
        %v5372 = vsel %vm3324, 1, 0
        %v5373 = vsel %vm3325, 1, 0
        %v5374 = vsel %vm3326, 1, 0
        %v5375 = vsel %vm3327, 1, 0
        %v5376 = vsel %vm3328, 1, 0
        %v5377 = vsel %vm3329, 1, 0
        %v5378 = vsel %vm3330, 1, 0
        %v5379 = vsel %vm3331, 1, 0
        %v5380 = vsel %vm3332, 1, 0
        %v5381 = vsel %vm3333, 1, 0
        %v5382 = vsel %vm3334, 1, 0
        %v5383 = vsel %vm3335, 1, 0
        %v5384 = vsel %vm3336, 1, 0
        %v5385 = vsel %vm3337, 1, 0
        %v5386 = vsel %vm3338, 1, 0
        %v5387 = vsel %vm3339, 1, 0
        %v5388 = vsel %vm3340, 1, 0
        %v5389 = vsel %vm3341, 1, 0
        %v5390 = vsel %vm3342, 1, 0
        %v5391 = vsel %vm3343, 1, 0
        %v5392 = vsel %vm3344, 1, 0
        %v5393 = vsel %vm3345, 1, 0
        %v5394 = vsel %vm3346, 1, 0
        %v5395 = vsel %vm3347, 1, 0
        %v5396 = vsel %vm3348, 1, 0
        %v5397 = vsel %vm3349, 1, 0
        %v5398 = vsel %vm3350, 1, 0
        %v5399 = vsel %vm3351, 1, 0
        %v5400 = vsel %vm3352, 1, 0
        %v5401 = vsel %vm3353, 1, 0
        %v5402 = vsel %vm3354, 1, 0
        %v5403 = vsel %vm3355, 1, 0
        %v5404 = vsel %vm3356, 1, 0
        %v5405 = vsel %vm3357, 1, 0
        %v5406 = vsel %vm3358, 1, 0
        %v5407 = vsel %vm3359, 1, 0
        %v5408 = vsel %vm3360, 1, 0
        %v5409 = vsel %vm3361, 1, 0
        %v5410 = vsel %vm3362, 1, 0
        %v5411 = vsel %vm3363, 1, 0
        %v5412 = vsel %vm3364, 1, 0
        %v5413 = vsel %vm3365, 1, 0
        %v5414 = vsel %vm3366, 1, 0
        %v5415 = vsel %vm3367, 1, 0
        %v5416 = vsel %vm3368, 1, 0
        %v5417 = vsel %vm3369, 1, 0
        %v5418 = vsel %vm3370, 1, 0
        %v5419 = vsel %vm3371, 1, 0
        %v5420 = vsel %vm3372, 1, 0
        %v5421 = vsel %vm3373, 1, 0
        %v5422 = vsel %vm3374, 1, 0
        %v5423 = vsel %vm3375, 1, 0
        %v5424 = vsel %vm3376, 1, 0
        %v5425 = vsel %vm3377, 1, 0
        %v5426 = vsel %vm3378, 1, 0
        %v5427 = vsel %vm3379, 1, 0
        %v5428 = vsel %vm3380, 1, 0
        %v5429 = vsel %vm3381, 1, 0
        %v5430 = vsel %vm3382, 1, 0
        %v5431 = vsel %vm3383, 1, 0
        %v5432 = vsel %vm3384, 1, 0
        %v5433 = vsel %vm3385, 1, 0
        %v5434 = vsel %vm3386, 1, 0
        %v5435 = vsel %vm3387, 1, 0
        %v5436 = vsel %vm3388, 1, 0
        %v5437 = vsel %vm3389, 1, 0
        %v5438 = vsel %vm3390, 1, 0
        %v5439 = vsel %vm3391, 1, 0
        %v5440 = vsel %vm3392, 1, 0
        %v5441 = vsel %vm3393, 1, 0
        %v5442 = vsel %vm3394, 1, 0
        %v5443 = vsel %vm3395, 1, 0
        %v5444 = vsel %vm3396, 1, 0
        %v5445 = vsel %vm3397, 1, 0
        %v5446 = vsel %vm3398, 1, 0
        %v5447 = vsel %vm3399, 1, 0
        %v5448 = vsel %vm3400, 1, 0
        %v5449 = vsel %vm3401, 1, 0
        %v5450 = vsel %vm3402, 1, 0
        %v5451 = vsel %vm3403, 1, 0
        %v5452 = vsel %vm3404, 1, 0
        %v5453 = vsel %vm3405, 1, 0
        %v5454 = vsel %vm3406, 1, 0
        %v5455 = vsel %vm3407, 1, 0
        %v5456 = vsel %vm3408, 1, 0
        %v5457 = vsel %vm3409, 1, 0
        %v5458 = vsel %vm3410, 1, 0
        %v5459 = vsel %vm3411, 1, 0
        %v5460 = vsel %vm3412, 1, 0
        %v5461 = vsel %vm3413, 1, 0
        %v5462 = vsel %vm3414, 1, 0
        %v5463 = vsel %vm3415, 1, 0
        %v5464 = vsel %vm3416, 1, 0
        %v5465 = vsel %vm3417, 1, 0
        %v5466 = vsel %vm3418, 1, 0
        %v5467 = vsel %vm3419, 1, 0
        %v5468 = vsel %vm3420, 1, 0
        %v5469 = vsel %vm3421, 1, 0
        %v5470 = vsel %vm3422, 1, 0
        %v5471 = vsel %vm3423, 1, 0
        %v5472 = vsel %vm3424, 1, 0
        %v5473 = vsel %vm3425, 1, 0
        %v5474 = vsel %vm3426, 1, 0
        %v5475 = vsel %vm3427, 1, 0
        %v5476 = vsel %vm3428, 1, 0
        %v5477 = vsel %vm3429, 1, 0
        %v5478 = vsel %vm3430, 1, 0
        %v5479 = vsel %vm3431, 1, 0
        %v5480 = vsel %vm3432, 1, 0
        %v5481 = vsel %vm3433, 1, 0
        %v5482 = vsel %vm3434, 1, 0
        %v5483 = vsel %vm3435, 1, 0
        %v5484 = vsel %vm3436, 1, 0
        %v5485 = vsel %vm3437, 1, 0
        %v5486 = vsel %vm3438, 1, 0
        %v5487 = vsel %vm3439, 1, 0
        %v5488 = vsel %vm3440, 1, 0
        %v5489 = vsel %vm3441, 1, 0
        %v5490 = vsel %vm3442, 1, 0
        %v5491 = vsel %vm3443, 1, 0
        %v5492 = vsel %vm3444, 1, 0
        %v5493 = vsel %vm3445, 1, 0
        %v5494 = vsel %vm3446, 1, 0
        %v5495 = vsel %vm3447, 1, 0
        %v5496 = vsel %vm3448, 1, 0
        %v5497 = vsel %vm3449, 1, 0
        %v5498 = vsel %vm3450, 1, 0
        %v5499 = vsel %vm3451, 1, 0
        %v5500 = vsel %vm3452, 1, 0
        %v5501 = vsel %vm3453, 1, 0
        %v5502 = vsel %vm3454, 1, 0
        %v5503 = vsel %vm3455, 1, 0
        %v5504 = vsel %vm3456, 1, 0
        %v5505 = vsel %vm3457, 1, 0
        %v5506 = vsel %vm3458, 1, 0
        %v5507 = vsel %vm3459, 1, 0
        %v5508 = vsel %vm3460, 1, 0
        %v5509 = vsel %vm3461, 1, 0
        %v5510 = vsel %vm3462, 1, 0
        %v5511 = vsel %vm3463, 1, 0
        %v5512 = vsel %vm3464, 1, 0
        %v5513 = vsel %vm3465, 1, 0
        %v5514 = vsel %vm3466, 1, 0
        %v5515 = vsel %vm3467, 1, 0
        %v5516 = vsel %vm3468, 1, 0
        %v5517 = vsel %vm3469, 1, 0
        %v5518 = vsel %vm3470, 1, 0
        %v5519 = vsel %vm3471, 1, 0
        %v5520 = vsel %vm3472, 1, 0
        %v5521 = vsel %vm3473, 1, 0
        %v5522 = vsel %vm3474, 1, 0
        %v5523 = vsel %vm3475, 1, 0
        %v5524 = vsel %vm3476, 1, 0
        %v5525 = vsel %vm3477, 1, 0
        %v5526 = vsel %vm3478, 1, 0
        %v5527 = vsel %vm3479, 1, 0
        %v5528 = vsel %vm3480, 1, 0
        %v5529 = vsel %vm3481, 1, 0
        %v5530 = vsel %vm3482, 1, 0
        %v5531 = vsel %vm3483, 1, 0
        %v5532 = vsel %vm3484, 1, 0
        %v5533 = vsel %vm3485, 1, 0
        %v5534 = vsel %vm3486, 1, 0
        %v5535 = vsel %vm3487, 1, 0
        %v5536 = vsel %vm3488, 1, 0
        %v5537 = vsel %vm3489, 1, 0
        %v5538 = vsel %vm3490, 1, 0
        %v5539 = vsel %vm3491, 1, 0
        %v5540 = vsel %vm3492, 1, 0
        %v5541 = vsel %vm3493, 1, 0
        %v5542 = vsel %vm3494, 1, 0
        %v5543 = vsel %vm3495, 1, 0
        %v5544 = vsel %vm3496, 1, 0
        %v5545 = vsel %vm3497, 1, 0
        %v5546 = vsel %vm3498, 1, 0
        %v5547 = vsel %vm3499, 1, 0
        %v5548 = vsel %vm3500, 1, 0
        %v5549 = vsel %vm3501, 1, 0
        %v5550 = vsel %vm3502, 1, 0
        %v5551 = vsel %vm3503, 1, 0
        %v5552 = vsel %vm3504, 1, 0
        %v5553 = vsel %vm3505, 1, 0
        %v5554 = vsel %vm3506, 1, 0
        %v5555 = vsel %vm3507, 1, 0
        %v5556 = vsel %vm3508, 1, 0
        %v5557 = vsel %vm3509, 1, 0
        %v5558 = vsel %vm3510, 1, 0
        %v5559 = vsel %vm3511, 1, 0
        %v5560 = vsel %vm3512, 1, 0
        %v5561 = vsel %vm3513, 1, 0
        %v5562 = vsel %vm3514, 1, 0
        %v5563 = vsel %vm3515, 1, 0
        %v5564 = vsel %vm3516, 1, 0
        %v5565 = vsel %vm3517, 1, 0
        %v5566 = vsel %vm3518, 1, 0
        %v5567 = vsel %vm3519, 1, 0
        %v5568 = vsel %vm3520, 1, 0
        %v5569 = vsel %vm3521, 1, 0
        %v5570 = vsel %vm3522, 1, 0
        %v5571 = vsel %vm3523, 1, 0
        %v5572 = vsel %vm3524, 1, 0
        %v5573 = vsel %vm3525, 1, 0
        %v5574 = vsel %vm3526, 1, 0
        %v5575 = vsel %vm3527, 1, 0
        %v5576 = vsel %vm3528, 1, 0
        %v5577 = vsel %vm3529, 1, 0
        %v5578 = vsel %vm3530, 1, 0
        %v5579 = vsel %vm3531, 1, 0
        %v5580 = vsel %vm3532, 1, 0
        %v5581 = vsel %vm3533, 1, 0
        %v5582 = vsel %vm3534, 1, 0
        %v5583 = vsel %vm3535, 1, 0
        %v5584 = vsel %vm3536, 1, 0
        %v5585 = vsel %vm3537, 1, 0
        %v5586 = vsel %vm3538, 1, 0
        %v5587 = vsel %vm3539, 1, 0
        %v5588 = vsel %vm3540, 1, 0
        %v5589 = vsel %vm3541, 1, 0
        %v5590 = vsel %vm3542, 1, 0
        %v5591 = vsel %vm3543, 1, 0
        %v5592 = vsel %vm3544, 1, 0
        %v5593 = vsel %vm3545, 1, 0
        %v5594 = vsel %vm3546, 1, 0
        %v5595 = vsel %vm3547, 1, 0
        %v5596 = vsel %vm3548, 1, 0
        %v5597 = vsel %vm3549, 1, 0
        %v5598 = vsel %vm3550, 1, 0
        %v5599 = vsel %vm3551, 1, 0
        %v5600 = vsel %vm3552, 1, 0
        %v5601 = vsel %vm3553, 1, 0
        %v5602 = vsel %vm3554, 1, 0
        %v5603 = vsel %vm3555, 1, 0
        %v5604 = vsel %vm3556, 1, 0
        %v5605 = vsel %vm3557, 1, 0
        %v5606 = vsel %vm3558, 1, 0
        %v5607 = vsel %vm3559, 1, 0
        %v5608 = vsel %vm3560, 1, 0
        %v5609 = vsel %vm3561, 1, 0
        %v5610 = vsel %vm3562, 1, 0
        %v5611 = vsel %vm3563, 1, 0
        %v5612 = vsel %vm3564, 1, 0
        %v5613 = vsel %vm3565, 1, 0
        %v5614 = vsel %vm3566, 1, 0
        %v5615 = vsel %vm3567, 1, 0
        %v5616 = vsel %vm3568, 1, 0
        %v5617 = vsel %vm3569, 1, 0
        %v5618 = vsel %vm3570, 1, 0
        %v5619 = vsel %vm3571, 1, 0
        %v5620 = vsel %vm3572, 1, 0
        %v5621 = vsel %vm3573, 1, 0
        %v5622 = vsel %vm3574, 1, 0
        %v5623 = vsel %vm3575, 1, 0
        %v5624 = vsel %vm3576, 1, 0
        %v5625 = vsel %vm3577, 1, 0
        %v5626 = vsel %vm3578, 1, 0
        %v5627 = vsel %vm3579, 1, 0
        %v5628 = vsel %vm3580, 1, 0
        %v5629 = vsel %vm3581, 1, 0
        %v5630 = vsel %vm3582, 1, 0
        %v5631 = vsel %vm3583, 1, 0
        %v5632 = vsel %vm3584, 1, 0
        %v5633 = vsel %vm3585, 1, 0
        %v5634 = vsel %vm3586, 1, 0
        %v5635 = vsel %vm3587, 1, 0
        %v5636 = vsel %vm3588, 1, 0
        %v5637 = vsel %vm3589, 1, 0
        %v5638 = vsel %vm3590, 1, 0
        %v5639 = vsel %vm3591, 1, 0
        %v5640 = vsel %vm3592, 1, 0
        %v5641 = vsel %vm3593, 1, 0
        %v5642 = vsel %vm3594, 1, 0
        %v5643 = vsel %vm3595, 1, 0
        %v5644 = vsel %vm3596, 1, 0
        %v5645 = vsel %vm3597, 1, 0
        %v5646 = vsel %vm3598, 1, 0
        %v5647 = vsel %vm3599, 1, 0
        %v5648 = vsel %vm3600, 1, 0
        %v5649 = vsel %vm3601, 1, 0
        %v5650 = vsel %vm3602, 1, 0
        %v5651 = vsel %vm3603, 1, 0
        %v5652 = vsel %vm3604, 1, 0
        %v5653 = vsel %vm3605, 1, 0
        %v5654 = vsel %vm3606, 1, 0
        %v5655 = vsel %vm3607, 1, 0
        %v5656 = vsel %vm3608, 1, 0
        %v5657 = vsel %vm3609, 1, 0
        %v5658 = vsel %vm3610, 1, 0
        %v5659 = vsel %vm3611, 1, 0
        %v5660 = vsel %vm3612, 1, 0
        %v5661 = vsel %vm3613, 1, 0
        %v5662 = vsel %vm3614, 1, 0
        %v5663 = vsel %vm3615, 1, 0
        %v5664 = vsel %vm3616, 1, 0
        %v5665 = vsel %vm3617, 1, 0
        %v5666 = vsel %vm3618, 1, 0
        %v5667 = vsel %vm3619, 1, 0
        %v5668 = vsel %vm3620, 1, 0
        %v5669 = vsel %vm3621, 1, 0
        %v5670 = vsel %vm3622, 1, 0
        %v5671 = vsel %vm3623, 1, 0
        %v5672 = vsel %vm3624, 1, 0
        %v5673 = vsel %vm3625, 1, 0
        %v5674 = vsel %vm3626, 1, 0
        %v5675 = vsel %vm3627, 1, 0
        %v5676 = vsel %vm3628, 1, 0
        %v5677 = vsel %vm3629, 1, 0
        %v5678 = vsel %vm3630, 1, 0
        %v5679 = vsel %vm3631, 1, 0
        %v5680 = vsel %vm3632, 1, 0
        %v5681 = vsel %vm3633, 1, 0
        %v5682 = vsel %vm3634, 1, 0
        %v5683 = vsel %vm3635, 1, 0
        %v5684 = vsel %vm3636, 1, 0
        %v5685 = vsel %vm3637, 1, 0
        %v5686 = vsel %vm3638, 1, 0
        %v5687 = vsel %vm3639, 1, 0
        %v5688 = vsel %vm3640, 1, 0
        %v5689 = vsel %vm3641, 1, 0
        %v5690 = vsel %vm3642, 1, 0
        %v5691 = vsel %vm3643, 1, 0
        %v5692 = vsel %vm3644, 1, 0
        %v5693 = vsel %vm3645, 1, 0
        %v5694 = vsel %vm3646, 1, 0
        %v5695 = vsel %vm3647, 1, 0
        %v5696 = vsel %vm3648, 1, 0
        %v5697 = vsel %vm3649, 1, 0
        %v5698 = vsel %vm3650, 1, 0
        %v5699 = vsel %vm3651, 1, 0
        %v5700 = vsel %vm3652, 1, 0
        %v5701 = vsel %vm3653, 1, 0
        %v5702 = vsel %vm3654, 1, 0
        %v5703 = vsel %vm3655, 1, 0
        %v5704 = vsel %vm3656, 1, 0
        %v5705 = vsel %vm3657, 1, 0
        %v5706 = vsel %vm3658, 1, 0
        %v5707 = vsel %vm3659, 1, 0
        %v5708 = vsel %vm3660, 1, 0
        %v5709 = vsel %vm3661, 1, 0
        %v5710 = vsel %vm3662, 1, 0
        %v5711 = vsel %vm3663, 1, 0
        %v5712 = vsel %vm3664, 1, 0
        %v5713 = vsel %vm3665, 1, 0
        %v5714 = vsel %vm3666, 1, 0
        %v5715 = vsel %vm3667, 1, 0
        %v5716 = vsel %vm3668, 1, 0
        %v5717 = vsel %vm3669, 1, 0
        %v5718 = vsel %vm3670, 1, 0
        %v5719 = vsel %vm3671, 1, 0
        %v5720 = vsel %vm3672, 1, 0
        %v5721 = vsel %vm3673, 1, 0
        %v5722 = vsel %vm3674, 1, 0
        %v5723 = vsel %vm3675, 1, 0
        %v5724 = vsel %vm3676, 1, 0
        %v5725 = vsel %vm3677, 1, 0
        %v5726 = vsel %vm3678, 1, 0
        %v5727 = vsel %vm3679, 1, 0
        %v5728 = vsel %vm3680, 1, 0
        %v5729 = vsel %vm3681, 1, 0
        %v5730 = vsel %vm3682, 1, 0
        %v5731 = vsel %vm3683, 1, 0
        %v5732 = vsel %vm3684, 1, 0
        %v5733 = vsel %vm3685, 1, 0
        %v5734 = vsel %vm3686, 1, 0
        %v5735 = vsel %vm3687, 1, 0
        %v5736 = vsel %vm3688, 1, 0
        %v5737 = vsel %vm3689, 1, 0
        %v5738 = vsel %vm3690, 1, 0
        %v5739 = vsel %vm3691, 1, 0
        %v5740 = vsel %vm3692, 1, 0
        %v5741 = vsel %vm3693, 1, 0
        %v5742 = vsel %vm3694, 1, 0
        %v5743 = vsel %vm3695, 1, 0
        %v5744 = vsel %vm3696, 1, 0
        %v5745 = vsel %vm3697, 1, 0
        %v5746 = vsel %vm3698, 1, 0
        %v5747 = vsel %vm3699, 1, 0
        %v5748 = vsel %vm3700, 1, 0
        %v5749 = vsel %vm3701, 1, 0
        %v5750 = vsel %vm3702, 1, 0
        %v5751 = vsel %vm3703, 1, 0
        %v5752 = vsel %vm3704, 1, 0
        %v5753 = vsel %vm3705, 1, 0
        %v5754 = vsel %vm3706, 1, 0
        %v5755 = vsel %vm3707, 1, 0
        %v5756 = vsel %vm3708, 1, 0
        %v5757 = vsel %vm3709, 1, 0
        %v5758 = vsel %vm3710, 1, 0
        %v5759 = vsel %vm3711, 1, 0
        %v5760 = vsel %vm3712, 1, 0
        %v5761 = vsel %vm3713, 1, 0
        %v5762 = vsel %vm3714, 1, 0
        %v5763 = vsel %vm3715, 1, 0
        %v5764 = vsel %vm3716, 1, 0
        %v5765 = vsel %vm3717, 1, 0
        %v5766 = vsel %vm3718, 1, 0
        %v5767 = vsel %vm3719, 1, 0
        %v5768 = vsel %vm3720, 1, 0
        %v5769 = vsel %vm3721, 1, 0
        %v5770 = vsel %vm3722, 1, 0
        %v5771 = vsel %vm3723, 1, 0
        %v5772 = vsel %vm3724, 1, 0
        %v5773 = vsel %vm3725, 1, 0
        %v5774 = vsel %vm3726, 1, 0
        %v5775 = vsel %vm3727, 1, 0
        %v5776 = vsel %vm3728, 1, 0
        %v5777 = vsel %vm3729, 1, 0
        %v5778 = vsel %vm3730, 1, 0
        %v5779 = vsel %vm3731, 1, 0
        %v5780 = vsel %vm3732, 1, 0
        %v5781 = vsel %vm3733, 1, 0
        %v5782 = vsel %vm3734, 1, 0
        %v5783 = vsel %vm3735, 1, 0
        %v5784 = vsel %vm3736, 1, 0
        %v5785 = vsel %vm3737, 1, 0
        %v5786 = vsel %vm3738, 1, 0
        %v5787 = vsel %vm3739, 1, 0
        %v5788 = vsel %vm3740, 1, 0
        %v5789 = vsel %vm3741, 1, 0
        %v5790 = vsel %vm3742, 1, 0
        %v5791 = vsel %vm3743, 1, 0
        %v5792 = vsel %vm3744, 1, 0
        %v5793 = vsel %vm3745, 1, 0
        %v5794 = vsel %vm3746, 1, 0
        %v5795 = vsel %vm3747, 1, 0
        %v5796 = vsel %vm3748, 1, 0
        %v5797 = vsel %vm3749, 1, 0
        %v5798 = vsel %vm3750, 1, 0
        %v5799 = vsel %vm3751, 1, 0
        %v5800 = vsel %vm3752, 1, 0
        %v5801 = vsel %vm3753, 1, 0
        %v5802 = vsel %vm3754, 1, 0
        %v5803 = vsel %vm3755, 1, 0
        %v5804 = vsel %vm3756, 1, 0
        %v5805 = vsel %vm3757, 1, 0
        %v5806 = vsel %vm3758, 1, 0
        %v5807 = vsel %vm3759, 1, 0
        %v5808 = vsel %vm3760, 1, 0
        %v5809 = vsel %vm3761, 1, 0
        %v5810 = vsel %vm3762, 1, 0
        %v5811 = vsel %vm3763, 1, 0
        %v5812 = vsel %vm3764, 1, 0
        %v5813 = vsel %vm3765, 1, 0
        %v5814 = vsel %vm3766, 1, 0
        %v5815 = vsel %vm3767, 1, 0
        %v5816 = vsel %vm3768, 1, 0
        %v5817 = vsel %vm3769, 1, 0
        %v5818 = vsel %vm3770, 1, 0
        %v5819 = vsel %vm3771, 1, 0
        %v5820 = vsel %vm3772, 1, 0
        %v5821 = vsel %vm3773, 1, 0
        %v5822 = vsel %vm3774, 1, 0
        %v5823 = vsel %vm3775, 1, 0
        %v5824 = vsel %vm3776, 1, 0
        %v5825 = vsel %vm3777, 1, 0
        %v5826 = vsel %vm3778, 1, 0
        %v5827 = vsel %vm3779, 1, 0
        %v5828 = vsel %vm3780, 1, 0
        %v5829 = vsel %vm3781, 1, 0
        %v5830 = vsel %vm3782, 1, 0
        %v5831 = vsel %vm3783, 1, 0
        %v5832 = vsel %vm3784, 1, 0
        %v5833 = vsel %vm3785, 1, 0
        %v5834 = vsel %vm3786, 1, 0
        %v5835 = vsel %vm3787, 1, 0
        %v5836 = vsel %vm3788, 1, 0
        %v5837 = vsel %vm3789, 1, 0
        %v5838 = vsel %vm3790, 1, 0
        %v5839 = vsel %vm3791, 1, 0
        %v5840 = vsel %vm3792, 1, 0
        %v5841 = vsel %vm3793, 1, 0
        %v5842 = vsel %vm3794, 1, 0
        %v5843 = vsel %vm3795, 1, 0
        %v5844 = vsel %vm3796, 1, 0
        %v5845 = vsel %vm3797, 1, 0
        %v5846 = vsel %vm3798, 1, 0
        %v5847 = vsel %vm3799, 1, 0
        %v5848 = vsel %vm3800, 1, 0
        %v5849 = vsel %vm3801, 1, 0
        %v5850 = vsel %vm3802, 1, 0
        %v5851 = vsel %vm3803, 1, 0
        %v5852 = vsel %vm3804, 1, 0
        %v5853 = vsel %vm3805, 1, 0
        %v5854 = vsel %vm3806, 1, 0
        %v5855 = vld [vmem:[%s163] sm:$0xff]
        %v5856 = vadd.s32 %v3807, %v3815
        %v5857 = vadd.s32 %v5856, %v3823
        %v5858 = vadd.s32 %v5857, %v3831
        %v5859 = vadd.s32 %v5858, %v3839
        %v5860 = vadd.s32 %v5859, %v3847
        %v5861 = vadd.s32 %v5860, %v3855
        %v5862 = vadd.s32 %v5861, %v3863
        %v5863 = vadd.s32 %v5862, %v3871
        %v5864 = vadd.s32 %v5863, %v3879
        %v5865 = vadd.s32 %v5864, %v3887
        %v5866 = vadd.s32 %v5865, %v3895
        %v5867 = vadd.s32 %v5866, %v3903
        %v5868 = vadd.s32 %v5867, %v3911
        %v5869 = vadd.s32 %v5868, %v3919
        %v5870 = vadd.s32 %v5869, %v3927
        %v5871 = vadd.s32 %v5870, %v3935
        %v5872 = vadd.s32 %v5871, %v3943
        %v5873 = vadd.s32 %v5872, %v3951
        %v5874 = vadd.s32 %v5873, %v3959
        %v5875 = vadd.s32 %v5874, %v3967
        %v5876 = vadd.s32 %v5875, %v3975
        %v5877 = vadd.s32 %v5876, %v3983
        %v5878 = vadd.s32 %v5877, %v3991
        %v5879 = vadd.s32 %v5878, %v3999
        %v5880 = vadd.s32 %v5879, %v4007
        %v5881 = vadd.s32 %v5880, %v4015
        %v5882 = vadd.s32 %v5881, %v4023
        %v5883 = vadd.s32 %v5882, %v4031
        %v5884 = vadd.s32 %v5883, %v4039
        %v5885 = vadd.s32 %v5884, %v4047
        %v5886 = vadd.s32 %v5885, %v4055
        %v5887 = vadd.s32 %v5886, %v4063
        %v5888 = vadd.s32 %v5887, %v4071
        %v5889 = vadd.s32 %v5888, %v4079
        %v5890 = vadd.s32 %v5889, %v4087
        %v5891 = vadd.s32 %v5890, %v4095
        %v5892 = vadd.s32 %v5891, %v4103
        %v5893 = vadd.s32 %v5892, %v4111
        %v5894 = vadd.s32 %v5893, %v4119
        %v5895 = vadd.s32 %v5894, %v4127
        %v5896 = vadd.s32 %v5895, %v4135
        %v5897 = vadd.s32 %v5896, %v4143
        %v5898 = vadd.s32 %v5897, %v4151
        %v5899 = vadd.s32 %v5898, %v4159
        %v5900 = vadd.s32 %v5899, %v4167
        %v5901 = vadd.s32 %v5900, %v4175
        %v5902 = vadd.s32 %v5901, %v4183
        %v5903 = vadd.s32 %v5902, %v4191
        %v5904 = vadd.s32 %v5903, %v4199
        %v5905 = vadd.s32 %v5904, %v4207
        %v5906 = vadd.s32 %v5905, %v4215
        %v5907 = vadd.s32 %v5906, %v4223
        %v5908 = vadd.s32 %v5907, %v4231
        %v5909 = vadd.s32 %v5908, %v4239
        %v5910 = vadd.s32 %v5909, %v4247
        %v5911 = vadd.s32 %v5910, %v4255
        %v5912 = vadd.s32 %v5911, %v4263
        %v5913 = vadd.s32 %v5912, %v4271
        %v5914 = vadd.s32 %v5913, %v4279
        %v5915 = vadd.s32 %v5914, %v4287
        %v5916 = vadd.s32 %v5915, %v4295
        %v5917 = vadd.s32 %v5916, %v4303
        %v5918 = vadd.s32 %v5917, %v4311
        %v5919 = vadd.s32 %v5918, %v4319
        %v5920 = vadd.s32 %v5919, %v4327
        %v5921 = vadd.s32 %v5920, %v4335
        %v5922 = vadd.s32 %v5921, %v4343
        %v5923 = vadd.s32 %v5922, %v4351
        %v5924 = vadd.s32 %v5923, %v4359
        %v5925 = vadd.s32 %v5924, %v4367
        %v5926 = vadd.s32 %v5925, %v4375
        %v5927 = vadd.s32 %v5926, %v4383
        %v5928 = vadd.s32 %v5927, %v4391
        %v5929 = vadd.s32 %v5928, %v4399
        %v5930 = vadd.s32 %v5929, %v4407
        %v5931 = vadd.s32 %v5930, %v4415
        %v5932 = vadd.s32 %v5931, %v4423
        %v5933 = vadd.s32 %v5932, %v4431
        %v5934 = vadd.s32 %v5933, %v4439
        %v5935 = vadd.s32 %v5934, %v4447
        %v5936 = vadd.s32 %v5935, %v4455
        %v5937 = vadd.s32 %v5936, %v4463
        %v5938 = vadd.s32 %v5937, %v4471
        %v5939 = vadd.s32 %v5938, %v4479
        %v5940 = vadd.s32 %v5939, %v4487
        %v5941 = vadd.s32 %v5940, %v4495
        %v5942 = vadd.s32 %v5941, %v4503
        %v5943 = vadd.s32 %v5942, %v4511
        %v5944 = vadd.s32 %v5943, %v4519
        %v5945 = vadd.s32 %v5944, %v4527
        %v5946 = vadd.s32 %v5945, %v4535
        %v5947 = vadd.s32 %v5946, %v4543
        %v5948 = vadd.s32 %v5947, %v4551
        %v5949 = vadd.s32 %v5948, %v4559
        %v5950 = vadd.s32 %v5949, %v4567
        %v5951 = vadd.s32 %v5950, %v4575
        %v5952 = vadd.s32 %v5951, %v4583
        %v5953 = vadd.s32 %v5952, %v4591
        %v5954 = vadd.s32 %v5953, %v4599
        %v5955 = vadd.s32 %v5954, %v4607
        %v5956 = vadd.s32 %v5955, %v4615
        %v5957 = vadd.s32 %v5956, %v4623
        %v5958 = vadd.s32 %v5957, %v4631
        %v5959 = vadd.s32 %v5958, %v4639
        %v5960 = vadd.s32 %v5959, %v4647
        %v5961 = vadd.s32 %v5960, %v4655
        %v5962 = vadd.s32 %v5961, %v4663
        %v5963 = vadd.s32 %v5962, %v4671
        %v5964 = vadd.s32 %v5963, %v4679
        %v5965 = vadd.s32 %v5964, %v4687
        %v5966 = vadd.s32 %v5965, %v4695
        %v5967 = vadd.s32 %v5966, %v4703
        %v5968 = vadd.s32 %v5967, %v4711
        %v5969 = vadd.s32 %v5968, %v4719
        %v5970 = vadd.s32 %v5969, %v4727
        %v5971 = vadd.s32 %v5970, %v4735
        %v5972 = vadd.s32 %v5971, %v4743
        %v5973 = vadd.s32 %v5972, %v4751
        %v5974 = vadd.s32 %v5973, %v4759
        %v5975 = vadd.s32 %v5974, %v4767
        %v5976 = vadd.s32 %v5975, %v4775
        %v5977 = vadd.s32 %v5976, %v4783
        %v5978 = vadd.s32 %v5977, %v4791
        %v5979 = vadd.s32 %v5978, %v4799
        %v5980 = vadd.s32 %v5979, %v4807
        %v5981 = vadd.s32 %v5980, %v4815
        %v5982 = vadd.s32 %v5981, %v4823
        %v5983 = vadd.s32 %v5982, %v4831
        %v5984 = vadd.s32 %v5983, %v4839
        %v5985 = vadd.s32 %v5984, %v4847
        %v5986 = vadd.s32 %v5985, %v4855
        %v5987 = vadd.s32 %v5986, %v4863
        %v5988 = vadd.s32 %v5987, %v4871
        %v5989 = vadd.s32 %v5988, %v4879
        %v5990 = vadd.s32 %v5989, %v4887
        %v5991 = vadd.s32 %v5990, %v4895
        %v5992 = vadd.s32 %v5991, %v4903
        %v5993 = vadd.s32 %v5992, %v4911
        %v5994 = vadd.s32 %v5993, %v4919
        %v5995 = vadd.s32 %v5994, %v4927
        %v5996 = vadd.s32 %v5995, %v4935
        %v5997 = vadd.s32 %v5996, %v4943
        %v5998 = vadd.s32 %v5997, %v4951
        %v5999 = vadd.s32 %v5998, %v4959
        %v6000 = vadd.s32 %v5999, %v4967
        %v6001 = vadd.s32 %v6000, %v4975
        %v6002 = vadd.s32 %v6001, %v4983
        %v6003 = vadd.s32 %v6002, %v4991
        %v6004 = vadd.s32 %v6003, %v4999
        %v6005 = vadd.s32 %v6004, %v5007
        %v6006 = vadd.s32 %v6005, %v5015
        %v6007 = vadd.s32 %v6006, %v5023
        %v6008 = vadd.s32 %v6007, %v5031
        %v6009 = vadd.s32 %v6008, %v5039
        %v6010 = vadd.s32 %v6009, %v5047
        %v6011 = vadd.s32 %v6010, %v5055
        %v6012 = vadd.s32 %v6011, %v5063
        %v6013 = vadd.s32 %v6012, %v5071
        %v6014 = vadd.s32 %v6013, %v5079
        %v6015 = vadd.s32 %v6014, %v5087
        %v6016 = vadd.s32 %v6015, %v5095
        %v6017 = vadd.s32 %v6016, %v5103
        %v6018 = vadd.s32 %v6017, %v5111
        %v6019 = vadd.s32 %v6018, %v5119
        %v6020 = vadd.s32 %v6019, %v5127
        %v6021 = vadd.s32 %v6020, %v5135
        %v6022 = vadd.s32 %v6021, %v5143
        %v6023 = vadd.s32 %v6022, %v5151
        %v6024 = vadd.s32 %v6023, %v5159
        %v6025 = vadd.s32 %v6024, %v5167
        %v6026 = vadd.s32 %v6025, %v5175
        %v6027 = vadd.s32 %v6026, %v5183
        %v6028 = vadd.s32 %v6027, %v5191
        %v6029 = vadd.s32 %v6028, %v5199
        %v6030 = vadd.s32 %v6029, %v5207
        %v6031 = vadd.s32 %v6030, %v5215
        %v6032 = vadd.s32 %v6031, %v5223
        %v6033 = vadd.s32 %v6032, %v5231
        %v6034 = vadd.s32 %v6033, %v5239
        %v6035 = vadd.s32 %v6034, %v5247
        %v6036 = vadd.s32 %v6035, %v5255
        %v6037 = vadd.s32 %v6036, %v5263
        %v6038 = vadd.s32 %v6037, %v5271
        %v6039 = vadd.s32 %v6038, %v5279
        %v6040 = vadd.s32 %v6039, %v5287
        %v6041 = vadd.s32 %v6040, %v5295
        %v6042 = vadd.s32 %v6041, %v5303
        %v6043 = vadd.s32 %v6042, %v5311
        %v6044 = vadd.s32 %v6043, %v5319
        %v6045 = vadd.s32 %v6044, %v5327
        %v6046 = vadd.s32 %v6045, %v5335
        %v6047 = vadd.s32 %v6046, %v5343
        %v6048 = vadd.s32 %v6047, %v5351
        %v6049 = vadd.s32 %v6048, %v5359
        %v6050 = vadd.s32 %v6049, %v5367
        %v6051 = vadd.s32 %v6050, %v5375
        %v6052 = vadd.s32 %v6051, %v5383
        %v6053 = vadd.s32 %v6052, %v5391
        %v6054 = vadd.s32 %v6053, %v5399
        %v6055 = vadd.s32 %v6054, %v5407
        %v6056 = vadd.s32 %v6055, %v5415
        %v6057 = vadd.s32 %v6056, %v5423
        %v6058 = vadd.s32 %v6057, %v5431
        %v6059 = vadd.s32 %v6058, %v5439
        %v6060 = vadd.s32 %v6059, %v5447
        %v6061 = vadd.s32 %v6060, %v5455
        %v6062 = vadd.s32 %v6061, %v5463
        %v6063 = vadd.s32 %v6062, %v5471
        %v6064 = vadd.s32 %v6063, %v5479
        %v6065 = vadd.s32 %v6064, %v5487
        %v6066 = vadd.s32 %v6065, %v5495
        %v6067 = vadd.s32 %v6066, %v5503
        %v6068 = vadd.s32 %v6067, %v5511
        %v6069 = vadd.s32 %v6068, %v5519
        %v6070 = vadd.s32 %v6069, %v5527
        %v6071 = vadd.s32 %v6070, %v5535
        %v6072 = vadd.s32 %v6071, %v5543
        %v6073 = vadd.s32 %v6072, %v5551
        %v6074 = vadd.s32 %v6073, %v5559
        %v6075 = vadd.s32 %v6074, %v5567
        %v6076 = vadd.s32 %v6075, %v5575
        %v6077 = vadd.s32 %v6076, %v5583
        %v6078 = vadd.s32 %v6077, %v5591
        %v6079 = vadd.s32 %v6078, %v5599
        %v6080 = vadd.s32 %v6079, %v5607
        %v6081 = vadd.s32 %v6080, %v5615
        %v6082 = vadd.s32 %v6081, %v5623
        %v6083 = vadd.s32 %v6082, %v5631
        %v6084 = vadd.s32 %v6083, %v5639
        %v6085 = vadd.s32 %v6084, %v5647
        %v6086 = vadd.s32 %v6085, %v5655
        %v6087 = vadd.s32 %v6086, %v5663
        %v6088 = vadd.s32 %v6087, %v5671
        %v6089 = vadd.s32 %v6088, %v5679
        %v6090 = vadd.s32 %v6089, %v5687
        %v6091 = vadd.s32 %v6090, %v5695
        %v6092 = vadd.s32 %v6091, %v5703
        %v6093 = vadd.s32 %v6092, %v5711
        %v6094 = vadd.s32 %v6093, %v5719
        %v6095 = vadd.s32 %v6094, %v5727
        %v6096 = vadd.s32 %v6095, %v5735
        %v6097 = vadd.s32 %v6096, %v5743
        %v6098 = vadd.s32 %v6097, %v5751
        %v6099 = vadd.s32 %v6098, %v5759
        %v6100 = vadd.s32 %v6099, %v5767
        %v6101 = vadd.s32 %v6100, %v5775
        %v6102 = vadd.s32 %v6101, %v5783
        %v6103 = vadd.s32 %v6102, %v5791
        %v6104 = vadd.s32 %v6103, %v5799
        %v6105 = vadd.s32 %v6104, %v5807
        %v6106 = vadd.s32 %v6105, %v5815
        %v6107 = vadd.s32 %v6106, %v5823
        %v6108 = vadd.s32 %v6107, %v5831
        %v6109 = vadd.s32 %v6108, %v5839
        %v6110 = vadd.s32 %v6109, %v5847
        %v6111 = vrot.slane %v6110, 4
        %v6112 = vadd.s32 %v6110, %v6111
        %v6113 = vrot.slane %v6112, 2
        %v6114 = vadd.s32 %v6112, %v6113
        %v6115 = vrot.slane %v6114, 1
        %v6116 = vadd.s32 %v6114, %v6115
        %v6117 = vadd.s32 %v3808, %v3816
        %v6118 = vadd.s32 %v6117, %v3824
        %v6119 = vadd.s32 %v6118, %v3832
        %v6120 = vadd.s32 %v6119, %v3840
        %v6121 = vadd.s32 %v6120, %v3848
        %v6122 = vadd.s32 %v6121, %v3856
        %v6123 = vadd.s32 %v6122, %v3864
        %v6124 = vadd.s32 %v6123, %v3872
        %v6125 = vadd.s32 %v6124, %v3880
        %v6126 = vadd.s32 %v6125, %v3888
        %v6127 = vadd.s32 %v6126, %v3896
        %v6128 = vadd.s32 %v6127, %v3904
        %v6129 = vadd.s32 %v6128, %v3912
        %v6130 = vadd.s32 %v6129, %v3920
        %v6131 = vadd.s32 %v6130, %v3928
        %v6132 = vadd.s32 %v6131, %v3936
        %v6133 = vadd.s32 %v6132, %v3944
        %v6134 = vadd.s32 %v6133, %v3952
        %v6135 = vadd.s32 %v6134, %v3960
        %v6136 = vadd.s32 %v6135, %v3968
        %v6137 = vadd.s32 %v6136, %v3976
        %v6138 = vadd.s32 %v6137, %v3984
        %v6139 = vadd.s32 %v6138, %v3992
        %v6140 = vadd.s32 %v6139, %v4000
        %v6141 = vadd.s32 %v6140, %v4008
        %v6142 = vadd.s32 %v6141, %v4016
        %v6143 = vadd.s32 %v6142, %v4024
        %v6144 = vadd.s32 %v6143, %v4032
        %v6145 = vadd.s32 %v6144, %v4040
        %v6146 = vadd.s32 %v6145, %v4048
        %v6147 = vadd.s32 %v6146, %v4056
        %v6148 = vadd.s32 %v6147, %v4064
        %v6149 = vadd.s32 %v6148, %v4072
        %v6150 = vadd.s32 %v6149, %v4080
        %v6151 = vadd.s32 %v6150, %v4088
        %v6152 = vadd.s32 %v6151, %v4096
        %v6153 = vadd.s32 %v6152, %v4104
        %v6154 = vadd.s32 %v6153, %v4112
        %v6155 = vadd.s32 %v6154, %v4120
        %v6156 = vadd.s32 %v6155, %v4128
        %v6157 = vadd.s32 %v6156, %v4136
        %v6158 = vadd.s32 %v6157, %v4144
        %v6159 = vadd.s32 %v6158, %v4152
        %v6160 = vadd.s32 %v6159, %v4160
        %v6161 = vadd.s32 %v6160, %v4168
        %v6162 = vadd.s32 %v6161, %v4176
        %v6163 = vadd.s32 %v6162, %v4184
        %v6164 = vadd.s32 %v6163, %v4192
        %v6165 = vadd.s32 %v6164, %v4200
        %v6166 = vadd.s32 %v6165, %v4208
        %v6167 = vadd.s32 %v6166, %v4216
        %v6168 = vadd.s32 %v6167, %v4224
        %v6169 = vadd.s32 %v6168, %v4232
        %v6170 = vadd.s32 %v6169, %v4240
        %v6171 = vadd.s32 %v6170, %v4248
        %v6172 = vadd.s32 %v6171, %v4256
        %v6173 = vadd.s32 %v6172, %v4264
        %v6174 = vadd.s32 %v6173, %v4272
        %v6175 = vadd.s32 %v6174, %v4280
        %v6176 = vadd.s32 %v6175, %v4288
        %v6177 = vadd.s32 %v6176, %v4296
        %v6178 = vadd.s32 %v6177, %v4304
        %v6179 = vadd.s32 %v6178, %v4312
        %v6180 = vadd.s32 %v6179, %v4320
        %v6181 = vadd.s32 %v6180, %v4328
        %v6182 = vadd.s32 %v6181, %v4336
        %v6183 = vadd.s32 %v6182, %v4344
        %v6184 = vadd.s32 %v6183, %v4352
        %v6185 = vadd.s32 %v6184, %v4360
        %v6186 = vadd.s32 %v6185, %v4368
        %v6187 = vadd.s32 %v6186, %v4376
        %v6188 = vadd.s32 %v6187, %v4384
        %v6189 = vadd.s32 %v6188, %v4392
        %v6190 = vadd.s32 %v6189, %v4400
        %v6191 = vadd.s32 %v6190, %v4408
        %v6192 = vadd.s32 %v6191, %v4416
        %v6193 = vadd.s32 %v6192, %v4424
        %v6194 = vadd.s32 %v6193, %v4432
        %v6195 = vadd.s32 %v6194, %v4440
        %v6196 = vadd.s32 %v6195, %v4448
        %v6197 = vadd.s32 %v6196, %v4456
        %v6198 = vadd.s32 %v6197, %v4464
        %v6199 = vadd.s32 %v6198, %v4472
        %v6200 = vadd.s32 %v6199, %v4480
        %v6201 = vadd.s32 %v6200, %v4488
        %v6202 = vadd.s32 %v6201, %v4496
        %v6203 = vadd.s32 %v6202, %v4504
        %v6204 = vadd.s32 %v6203, %v4512
        %v6205 = vadd.s32 %v6204, %v4520
        %v6206 = vadd.s32 %v6205, %v4528
        %v6207 = vadd.s32 %v6206, %v4536
        %v6208 = vadd.s32 %v6207, %v4544
        %v6209 = vadd.s32 %v6208, %v4552
        %v6210 = vadd.s32 %v6209, %v4560
        %v6211 = vadd.s32 %v6210, %v4568
        %v6212 = vadd.s32 %v6211, %v4576
        %v6213 = vadd.s32 %v6212, %v4584
        %v6214 = vadd.s32 %v6213, %v4592
        %v6215 = vadd.s32 %v6214, %v4600
        %v6216 = vadd.s32 %v6215, %v4608
        %v6217 = vadd.s32 %v6216, %v4616
        %v6218 = vadd.s32 %v6217, %v4624
        %v6219 = vadd.s32 %v6218, %v4632
        %v6220 = vadd.s32 %v6219, %v4640
        %v6221 = vadd.s32 %v6220, %v4648
        %v6222 = vadd.s32 %v6221, %v4656
        %v6223 = vadd.s32 %v6222, %v4664
        %v6224 = vadd.s32 %v6223, %v4672
        %v6225 = vadd.s32 %v6224, %v4680
        %v6226 = vadd.s32 %v6225, %v4688
        %v6227 = vadd.s32 %v6226, %v4696
        %v6228 = vadd.s32 %v6227, %v4704
        %v6229 = vadd.s32 %v6228, %v4712
        %v6230 = vadd.s32 %v6229, %v4720
        %v6231 = vadd.s32 %v6230, %v4728
        %v6232 = vadd.s32 %v6231, %v4736
        %v6233 = vadd.s32 %v6232, %v4744
        %v6234 = vadd.s32 %v6233, %v4752
        %v6235 = vadd.s32 %v6234, %v4760
        %v6236 = vadd.s32 %v6235, %v4768
        %v6237 = vadd.s32 %v6236, %v4776
        %v6238 = vadd.s32 %v6237, %v4784
        %v6239 = vadd.s32 %v6238, %v4792
        %v6240 = vadd.s32 %v6239, %v4800
        %v6241 = vadd.s32 %v6240, %v4808
        %v6242 = vadd.s32 %v6241, %v4816
        %v6243 = vadd.s32 %v6242, %v4824
        %v6244 = vadd.s32 %v6243, %v4832
        %v6245 = vadd.s32 %v6244, %v4840
        %v6246 = vadd.s32 %v6245, %v4848
        %v6247 = vadd.s32 %v6246, %v4856
        %v6248 = vadd.s32 %v6247, %v4864
        %v6249 = vadd.s32 %v6248, %v4872
        %v6250 = vadd.s32 %v6249, %v4880
        %v6251 = vadd.s32 %v6250, %v4888
        %v6252 = vadd.s32 %v6251, %v4896
        %v6253 = vadd.s32 %v6252, %v4904
        %v6254 = vadd.s32 %v6253, %v4912
        %v6255 = vadd.s32 %v6254, %v4920
        %v6256 = vadd.s32 %v6255, %v4928
        %v6257 = vadd.s32 %v6256, %v4936
        %v6258 = vadd.s32 %v6257, %v4944
        %v6259 = vadd.s32 %v6258, %v4952
        %v6260 = vadd.s32 %v6259, %v4960
        %v6261 = vadd.s32 %v6260, %v4968
        %v6262 = vadd.s32 %v6261, %v4976
        %v6263 = vadd.s32 %v6262, %v4984
        %v6264 = vadd.s32 %v6263, %v4992
        %v6265 = vadd.s32 %v6264, %v5000
        %v6266 = vadd.s32 %v6265, %v5008
        %v6267 = vadd.s32 %v6266, %v5016
        %v6268 = vadd.s32 %v6267, %v5024
        %v6269 = vadd.s32 %v6268, %v5032
        %v6270 = vadd.s32 %v6269, %v5040
        %v6271 = vadd.s32 %v6270, %v5048
        %v6272 = vadd.s32 %v6271, %v5056
        %v6273 = vadd.s32 %v6272, %v5064
        %v6274 = vadd.s32 %v6273, %v5072
        %v6275 = vadd.s32 %v6274, %v5080
        %v6276 = vadd.s32 %v6275, %v5088
        %v6277 = vadd.s32 %v6276, %v5096
        %v6278 = vadd.s32 %v6277, %v5104
        %v6279 = vadd.s32 %v6278, %v5112
        %v6280 = vadd.s32 %v6279, %v5120
        %v6281 = vadd.s32 %v6280, %v5128
        %v6282 = vadd.s32 %v6281, %v5136
        %v6283 = vadd.s32 %v6282, %v5144
        %v6284 = vadd.s32 %v6283, %v5152
        %v6285 = vadd.s32 %v6284, %v5160
        %v6286 = vadd.s32 %v6285, %v5168
        %v6287 = vadd.s32 %v6286, %v5176
        %v6288 = vadd.s32 %v6287, %v5184
        %v6289 = vadd.s32 %v6288, %v5192
        %v6290 = vadd.s32 %v6289, %v5200
        %v6291 = vadd.s32 %v6290, %v5208
        %v6292 = vadd.s32 %v6291, %v5216
        %v6293 = vadd.s32 %v6292, %v5224
        %v6294 = vadd.s32 %v6293, %v5232
        %v6295 = vadd.s32 %v6294, %v5240
        %v6296 = vadd.s32 %v6295, %v5248
        %v6297 = vadd.s32 %v6296, %v5256
        %v6298 = vadd.s32 %v6297, %v5264
        %v6299 = vadd.s32 %v6298, %v5272
        %v6300 = vadd.s32 %v6299, %v5280
        %v6301 = vadd.s32 %v6300, %v5288
        %v6302 = vadd.s32 %v6301, %v5296
        %v6303 = vadd.s32 %v6302, %v5304
        %v6304 = vadd.s32 %v6303, %v5312
        %v6305 = vadd.s32 %v6304, %v5320
        %v6306 = vadd.s32 %v6305, %v5328
        %v6307 = vadd.s32 %v6306, %v5336
        %v6308 = vadd.s32 %v6307, %v5344
        %v6309 = vadd.s32 %v6308, %v5352
        %v6310 = vadd.s32 %v6309, %v5360
        %v6311 = vadd.s32 %v6310, %v5368
        %v6312 = vadd.s32 %v6311, %v5376
        %v6313 = vadd.s32 %v6312, %v5384
        %v6314 = vadd.s32 %v6313, %v5392
        %v6315 = vadd.s32 %v6314, %v5400
        %v6316 = vadd.s32 %v6315, %v5408
        %v6317 = vadd.s32 %v6316, %v5416
        %v6318 = vadd.s32 %v6317, %v5424
        %v6319 = vadd.s32 %v6318, %v5432
        %v6320 = vadd.s32 %v6319, %v5440
        %v6321 = vadd.s32 %v6320, %v5448
        %v6322 = vadd.s32 %v6321, %v5456
        %v6323 = vadd.s32 %v6322, %v5464
        %v6324 = vadd.s32 %v6323, %v5472
        %v6325 = vadd.s32 %v6324, %v5480
        %v6326 = vadd.s32 %v6325, %v5488
        %v6327 = vadd.s32 %v6326, %v5496
        %v6328 = vadd.s32 %v6327, %v5504
        %v6329 = vadd.s32 %v6328, %v5512
        %v6330 = vadd.s32 %v6329, %v5520
        %v6331 = vadd.s32 %v6330, %v5528
        %v6332 = vadd.s32 %v6331, %v5536
        %v6333 = vadd.s32 %v6332, %v5544
        %v6334 = vadd.s32 %v6333, %v5552
        %v6335 = vadd.s32 %v6334, %v5560
        %v6336 = vadd.s32 %v6335, %v5568
        %v6337 = vadd.s32 %v6336, %v5576
        %v6338 = vadd.s32 %v6337, %v5584
        %v6339 = vadd.s32 %v6338, %v5592
        %v6340 = vadd.s32 %v6339, %v5600
        %v6341 = vadd.s32 %v6340, %v5608
        %v6342 = vadd.s32 %v6341, %v5616
        %v6343 = vadd.s32 %v6342, %v5624
        %v6344 = vadd.s32 %v6343, %v5632
        %v6345 = vadd.s32 %v6344, %v5640
        %v6346 = vadd.s32 %v6345, %v5648
        %v6347 = vadd.s32 %v6346, %v5656
        %v6348 = vadd.s32 %v6347, %v5664
        %v6349 = vadd.s32 %v6348, %v5672
        %v6350 = vadd.s32 %v6349, %v5680
        %v6351 = vadd.s32 %v6350, %v5688
        %v6352 = vadd.s32 %v6351, %v5696
        %v6353 = vadd.s32 %v6352, %v5704
        %v6354 = vadd.s32 %v6353, %v5712
        %v6355 = vadd.s32 %v6354, %v5720
        %v6356 = vadd.s32 %v6355, %v5728
        %v6357 = vadd.s32 %v6356, %v5736
        %v6358 = vadd.s32 %v6357, %v5744
        %v6359 = vadd.s32 %v6358, %v5752
        %v6360 = vadd.s32 %v6359, %v5760
        %v6361 = vadd.s32 %v6360, %v5768
        %v6362 = vadd.s32 %v6361, %v5776
        %v6363 = vadd.s32 %v6362, %v5784
        %v6364 = vadd.s32 %v6363, %v5792
        %v6365 = vadd.s32 %v6364, %v5800
        %v6366 = vadd.s32 %v6365, %v5808
        %v6367 = vadd.s32 %v6366, %v5816
        %v6368 = vadd.s32 %v6367, %v5824
        %v6369 = vadd.s32 %v6368, %v5832
        %v6370 = vadd.s32 %v6369, %v5840
        %v6371 = vadd.s32 %v6370, %v5848
        %v6372 = vrot.slane %v6371, 4
        %v6373 = vadd.s32 %v6371, %v6372
        %v6374 = vrot.slane %v6373, 2
        %v6375 = vadd.s32 %v6373, %v6374
        %v6376 = vrot.slane %v6375, 1
        %v6377 = vadd.s32 %v6375, %v6376
        %v6378 = vadd.s32 %v3809, %v3817
        %v6379 = vadd.s32 %v6378, %v3825
        %v6380 = vadd.s32 %v6379, %v3833
        %v6381 = vadd.s32 %v6380, %v3841
        %v6382 = vadd.s32 %v6381, %v3849
        %v6383 = vadd.s32 %v6382, %v3857
        %v6384 = vadd.s32 %v6383, %v3865
        %v6385 = vadd.s32 %v6384, %v3873
        %v6386 = vadd.s32 %v6385, %v3881
        %v6387 = vadd.s32 %v6386, %v3889
        %v6388 = vadd.s32 %v6387, %v3897
        %v6389 = vadd.s32 %v6388, %v3905
        %v6390 = vadd.s32 %v6389, %v3913
        %v6391 = vadd.s32 %v6390, %v3921
        %v6392 = vadd.s32 %v6391, %v3929
        %v6393 = vadd.s32 %v6392, %v3937
        %v6394 = vadd.s32 %v6393, %v3945
        %v6395 = vadd.s32 %v6394, %v3953
        %v6396 = vadd.s32 %v6395, %v3961
        %v6397 = vadd.s32 %v6396, %v3969
        %v6398 = vadd.s32 %v6397, %v3977
        %v6399 = vadd.s32 %v6398, %v3985
        %v6400 = vadd.s32 %v6399, %v3993
        %v6401 = vadd.s32 %v6400, %v4001
        %v6402 = vadd.s32 %v6401, %v4009
        %v6403 = vadd.s32 %v6402, %v4017
        %v6404 = vadd.s32 %v6403, %v4025
        %v6405 = vadd.s32 %v6404, %v4033
        %v6406 = vadd.s32 %v6405, %v4041
        %v6407 = vadd.s32 %v6406, %v4049
        %v6408 = vadd.s32 %v6407, %v4057
        %v6409 = vadd.s32 %v6408, %v4065
        %v6410 = vadd.s32 %v6409, %v4073
        %v6411 = vadd.s32 %v6410, %v4081
        %v6412 = vadd.s32 %v6411, %v4089
        %v6413 = vadd.s32 %v6412, %v4097
        %v6414 = vadd.s32 %v6413, %v4105
        %v6415 = vadd.s32 %v6414, %v4113
        %v6416 = vadd.s32 %v6415, %v4121
        %v6417 = vadd.s32 %v6416, %v4129
        %v6418 = vadd.s32 %v6417, %v4137
        %v6419 = vadd.s32 %v6418, %v4145
        %v6420 = vadd.s32 %v6419, %v4153
        %v6421 = vadd.s32 %v6420, %v4161
        %v6422 = vadd.s32 %v6421, %v4169
        %v6423 = vadd.s32 %v6422, %v4177
        %v6424 = vadd.s32 %v6423, %v4185
        %v6425 = vadd.s32 %v6424, %v4193
        %v6426 = vadd.s32 %v6425, %v4201
        %v6427 = vadd.s32 %v6426, %v4209
        %v6428 = vadd.s32 %v6427, %v4217
        %v6429 = vadd.s32 %v6428, %v4225
        %v6430 = vadd.s32 %v6429, %v4233
        %v6431 = vadd.s32 %v6430, %v4241
        %v6432 = vadd.s32 %v6431, %v4249
        %v6433 = vadd.s32 %v6432, %v4257
        %v6434 = vadd.s32 %v6433, %v4265
        %v6435 = vadd.s32 %v6434, %v4273
        %v6436 = vadd.s32 %v6435, %v4281
        %v6437 = vadd.s32 %v6436, %v4289
        %v6438 = vadd.s32 %v6437, %v4297
        %v6439 = vadd.s32 %v6438, %v4305
        %v6440 = vadd.s32 %v6439, %v4313
        %v6441 = vadd.s32 %v6440, %v4321
        %v6442 = vadd.s32 %v6441, %v4329
        %v6443 = vadd.s32 %v6442, %v4337
        %v6444 = vadd.s32 %v6443, %v4345
        %v6445 = vadd.s32 %v6444, %v4353
        %v6446 = vadd.s32 %v6445, %v4361
        %v6447 = vadd.s32 %v6446, %v4369
        %v6448 = vadd.s32 %v6447, %v4377
        %v6449 = vadd.s32 %v6448, %v4385
        %v6450 = vadd.s32 %v6449, %v4393
        %v6451 = vadd.s32 %v6450, %v4401
        %v6452 = vadd.s32 %v6451, %v4409
        %v6453 = vadd.s32 %v6452, %v4417
        %v6454 = vadd.s32 %v6453, %v4425
        %v6455 = vadd.s32 %v6454, %v4433
        %v6456 = vadd.s32 %v6455, %v4441
        %v6457 = vadd.s32 %v6456, %v4449
        %v6458 = vadd.s32 %v6457, %v4457
        %v6459 = vadd.s32 %v6458, %v4465
        %v6460 = vadd.s32 %v6459, %v4473
        %v6461 = vadd.s32 %v6460, %v4481
        %v6462 = vadd.s32 %v6461, %v4489
        %v6463 = vadd.s32 %v6462, %v4497
        %v6464 = vadd.s32 %v6463, %v4505
        %v6465 = vadd.s32 %v6464, %v4513
        %v6466 = vadd.s32 %v6465, %v4521
        %v6467 = vadd.s32 %v6466, %v4529
        %v6468 = vadd.s32 %v6467, %v4537
        %v6469 = vadd.s32 %v6468, %v4545
        %v6470 = vadd.s32 %v6469, %v4553
        %v6471 = vadd.s32 %v6470, %v4561
        %v6472 = vadd.s32 %v6471, %v4569
        %v6473 = vadd.s32 %v6472, %v4577
        %v6474 = vadd.s32 %v6473, %v4585
        %v6475 = vadd.s32 %v6474, %v4593
        %v6476 = vadd.s32 %v6475, %v4601
        %v6477 = vadd.s32 %v6476, %v4609
        %v6478 = vadd.s32 %v6477, %v4617
        %v6479 = vadd.s32 %v6478, %v4625
        %v6480 = vadd.s32 %v6479, %v4633
        %v6481 = vadd.s32 %v6480, %v4641
        %v6482 = vadd.s32 %v6481, %v4649
        %v6483 = vadd.s32 %v6482, %v4657
        %v6484 = vadd.s32 %v6483, %v4665
        %v6485 = vadd.s32 %v6484, %v4673
        %v6486 = vadd.s32 %v6485, %v4681
        %v6487 = vadd.s32 %v6486, %v4689
        %v6488 = vadd.s32 %v6487, %v4697
        %v6489 = vadd.s32 %v6488, %v4705
        %v6490 = vadd.s32 %v6489, %v4713
        %v6491 = vadd.s32 %v6490, %v4721
        %v6492 = vadd.s32 %v6491, %v4729
        %v6493 = vadd.s32 %v6492, %v4737
        %v6494 = vadd.s32 %v6493, %v4745
        %v6495 = vadd.s32 %v6494, %v4753
        %v6496 = vadd.s32 %v6495, %v4761
        %v6497 = vadd.s32 %v6496, %v4769
        %v6498 = vadd.s32 %v6497, %v4777
        %v6499 = vadd.s32 %v6498, %v4785
        %v6500 = vadd.s32 %v6499, %v4793
        %v6501 = vadd.s32 %v6500, %v4801
        %v6502 = vadd.s32 %v6501, %v4809
        %v6503 = vadd.s32 %v6502, %v4817
        %v6504 = vadd.s32 %v6503, %v4825
        %v6505 = vadd.s32 %v6504, %v4833
        %v6506 = vadd.s32 %v6505, %v4841
        %v6507 = vadd.s32 %v6506, %v4849
        %v6508 = vadd.s32 %v6507, %v4857
        %v6509 = vadd.s32 %v6508, %v4865
        %v6510 = vadd.s32 %v6509, %v4873
        %v6511 = vadd.s32 %v6510, %v4881
        %v6512 = vadd.s32 %v6511, %v4889
        %v6513 = vadd.s32 %v6512, %v4897
        %v6514 = vadd.s32 %v6513, %v4905
        %v6515 = vadd.s32 %v6514, %v4913
        %v6516 = vadd.s32 %v6515, %v4921
        %v6517 = vadd.s32 %v6516, %v4929
        %v6518 = vadd.s32 %v6517, %v4937
        %v6519 = vadd.s32 %v6518, %v4945
        %v6520 = vadd.s32 %v6519, %v4953
        %v6521 = vadd.s32 %v6520, %v4961
        %v6522 = vadd.s32 %v6521, %v4969
        %v6523 = vadd.s32 %v6522, %v4977
        %v6524 = vadd.s32 %v6523, %v4985
        %v6525 = vadd.s32 %v6524, %v4993
        %v6526 = vadd.s32 %v6525, %v5001
        %v6527 = vadd.s32 %v6526, %v5009
        %v6528 = vadd.s32 %v6527, %v5017
        %v6529 = vadd.s32 %v6528, %v5025
        %v6530 = vadd.s32 %v6529, %v5033
        %v6531 = vadd.s32 %v6530, %v5041
        %v6532 = vadd.s32 %v6531, %v5049
        %v6533 = vadd.s32 %v6532, %v5057
        %v6534 = vadd.s32 %v6533, %v5065
        %v6535 = vadd.s32 %v6534, %v5073
        %v6536 = vadd.s32 %v6535, %v5081
        %v6537 = vadd.s32 %v6536, %v5089
        %v6538 = vadd.s32 %v6537, %v5097
        %v6539 = vadd.s32 %v6538, %v5105
        %v6540 = vadd.s32 %v6539, %v5113
        %v6541 = vadd.s32 %v6540, %v5121
        %v6542 = vadd.s32 %v6541, %v5129
        %v6543 = vadd.s32 %v6542, %v5137
        %v6544 = vadd.s32 %v6543, %v5145
        %v6545 = vadd.s32 %v6544, %v5153
        %v6546 = vadd.s32 %v6545, %v5161
        %v6547 = vadd.s32 %v6546, %v5169
        %v6548 = vadd.s32 %v6547, %v5177
        %v6549 = vadd.s32 %v6548, %v5185
        %v6550 = vadd.s32 %v6549, %v5193
        %v6551 = vadd.s32 %v6550, %v5201
        %v6552 = vadd.s32 %v6551, %v5209
        %v6553 = vadd.s32 %v6552, %v5217
        %v6554 = vadd.s32 %v6553, %v5225
        %v6555 = vadd.s32 %v6554, %v5233
        %v6556 = vadd.s32 %v6555, %v5241
        %v6557 = vadd.s32 %v6556, %v5249
        %v6558 = vadd.s32 %v6557, %v5257
        %v6559 = vadd.s32 %v6558, %v5265
        %v6560 = vadd.s32 %v6559, %v5273
        %v6561 = vadd.s32 %v6560, %v5281
        %v6562 = vadd.s32 %v6561, %v5289
        %v6563 = vadd.s32 %v6562, %v5297
        %v6564 = vadd.s32 %v6563, %v5305
        %v6565 = vadd.s32 %v6564, %v5313
        %v6566 = vadd.s32 %v6565, %v5321
        %v6567 = vadd.s32 %v6566, %v5329
        %v6568 = vadd.s32 %v6567, %v5337
        %v6569 = vadd.s32 %v6568, %v5345
        %v6570 = vadd.s32 %v6569, %v5353
        %v6571 = vadd.s32 %v6570, %v5361
        %v6572 = vadd.s32 %v6571, %v5369
        %v6573 = vadd.s32 %v6572, %v5377
        %v6574 = vadd.s32 %v6573, %v5385
        %v6575 = vadd.s32 %v6574, %v5393
        %v6576 = vadd.s32 %v6575, %v5401
        %v6577 = vadd.s32 %v6576, %v5409
        %v6578 = vadd.s32 %v6577, %v5417
        %v6579 = vadd.s32 %v6578, %v5425
        %v6580 = vadd.s32 %v6579, %v5433
        %v6581 = vadd.s32 %v6580, %v5441
        %v6582 = vadd.s32 %v6581, %v5449
        %v6583 = vadd.s32 %v6582, %v5457
        %v6584 = vadd.s32 %v6583, %v5465
        %v6585 = vadd.s32 %v6584, %v5473
        %v6586 = vadd.s32 %v6585, %v5481
        %v6587 = vadd.s32 %v6586, %v5489
        %v6588 = vadd.s32 %v6587, %v5497
        %v6589 = vadd.s32 %v6588, %v5505
        %v6590 = vadd.s32 %v6589, %v5513
        %v6591 = vadd.s32 %v6590, %v5521
        %v6592 = vadd.s32 %v6591, %v5529
        %v6593 = vadd.s32 %v6592, %v5537
        %v6594 = vadd.s32 %v6593, %v5545
        %v6595 = vadd.s32 %v6594, %v5553
        %v6596 = vadd.s32 %v6595, %v5561
        %v6597 = vadd.s32 %v6596, %v5569
        %v6598 = vadd.s32 %v6597, %v5577
        %v6599 = vadd.s32 %v6598, %v5585
        %v6600 = vadd.s32 %v6599, %v5593
        %v6601 = vadd.s32 %v6600, %v5601
        %v6602 = vadd.s32 %v6601, %v5609
        %v6603 = vadd.s32 %v6602, %v5617
        %v6604 = vadd.s32 %v6603, %v5625
        %v6605 = vadd.s32 %v6604, %v5633
        %v6606 = vadd.s32 %v6605, %v5641
        %v6607 = vadd.s32 %v6606, %v5649
        %v6608 = vadd.s32 %v6607, %v5657
        %v6609 = vadd.s32 %v6608, %v5665
        %v6610 = vadd.s32 %v6609, %v5673
        %v6611 = vadd.s32 %v6610, %v5681
        %v6612 = vadd.s32 %v6611, %v5689
        %v6613 = vadd.s32 %v6612, %v5697
        %v6614 = vadd.s32 %v6613, %v5705
        %v6615 = vadd.s32 %v6614, %v5713
        %v6616 = vadd.s32 %v6615, %v5721
        %v6617 = vadd.s32 %v6616, %v5729
        %v6618 = vadd.s32 %v6617, %v5737
        %v6619 = vadd.s32 %v6618, %v5745
        %v6620 = vadd.s32 %v6619, %v5753
        %v6621 = vadd.s32 %v6620, %v5761
        %v6622 = vadd.s32 %v6621, %v5769
        %v6623 = vadd.s32 %v6622, %v5777
        %v6624 = vadd.s32 %v6623, %v5785
        %v6625 = vadd.s32 %v6624, %v5793
        %v6626 = vadd.s32 %v6625, %v5801
        %v6627 = vadd.s32 %v6626, %v5809
        %v6628 = vadd.s32 %v6627, %v5817
        %v6629 = vadd.s32 %v6628, %v5825
        %v6630 = vadd.s32 %v6629, %v5833
        %v6631 = vadd.s32 %v6630, %v5841
        %v6632 = vadd.s32 %v6631, %v5849
        %v6633 = vrot.slane %v6632, 4
        %v6634 = vadd.s32 %v6632, %v6633
        %v6635 = vrot.slane %v6634, 2
        %v6636 = vadd.s32 %v6634, %v6635
        %v6637 = vrot.slane %v6636, 1
        %v6638 = vadd.s32 %v6636, %v6637
        %v6639 = vadd.s32 %v3810, %v3818
        %v6640 = vadd.s32 %v6639, %v3826
        %v6641 = vadd.s32 %v6640, %v3834
        %v6642 = vadd.s32 %v6641, %v3842
        %v6643 = vadd.s32 %v6642, %v3850
        %v6644 = vadd.s32 %v6643, %v3858
        %v6645 = vadd.s32 %v6644, %v3866
        %v6646 = vadd.s32 %v6645, %v3874
        %v6647 = vadd.s32 %v6646, %v3882
        %v6648 = vadd.s32 %v6647, %v3890
        %v6649 = vadd.s32 %v6648, %v3898
        %v6650 = vadd.s32 %v6649, %v3906
        %v6651 = vadd.s32 %v6650, %v3914
        %v6652 = vadd.s32 %v6651, %v3922
        %v6653 = vadd.s32 %v6652, %v3930
        %v6654 = vadd.s32 %v6653, %v3938
        %v6655 = vadd.s32 %v6654, %v3946
        %v6656 = vadd.s32 %v6655, %v3954
        %v6657 = vadd.s32 %v6656, %v3962
        %v6658 = vadd.s32 %v6657, %v3970
        %v6659 = vadd.s32 %v6658, %v3978
        %v6660 = vadd.s32 %v6659, %v3986
        %v6661 = vadd.s32 %v6660, %v3994
        %v6662 = vadd.s32 %v6661, %v4002
        %v6663 = vadd.s32 %v6662, %v4010
        %v6664 = vadd.s32 %v6663, %v4018
        %v6665 = vadd.s32 %v6664, %v4026
        %v6666 = vadd.s32 %v6665, %v4034
        %v6667 = vadd.s32 %v6666, %v4042
        %v6668 = vadd.s32 %v6667, %v4050
        %v6669 = vadd.s32 %v6668, %v4058
        %v6670 = vadd.s32 %v6669, %v4066
        %v6671 = vadd.s32 %v6670, %v4074
        %v6672 = vadd.s32 %v6671, %v4082
        %v6673 = vadd.s32 %v6672, %v4090
        %v6674 = vadd.s32 %v6673, %v4098
        %v6675 = vadd.s32 %v6674, %v4106
        %v6676 = vadd.s32 %v6675, %v4114
        %v6677 = vadd.s32 %v6676, %v4122
        %v6678 = vadd.s32 %v6677, %v4130
        %v6679 = vadd.s32 %v6678, %v4138
        %v6680 = vadd.s32 %v6679, %v4146
        %v6681 = vadd.s32 %v6680, %v4154
        %v6682 = vadd.s32 %v6681, %v4162
        %v6683 = vadd.s32 %v6682, %v4170
        %v6684 = vadd.s32 %v6683, %v4178
        %v6685 = vadd.s32 %v6684, %v4186
        %v6686 = vadd.s32 %v6685, %v4194
        %v6687 = vadd.s32 %v6686, %v4202
        %v6688 = vadd.s32 %v6687, %v4210
        %v6689 = vadd.s32 %v6688, %v4218
        %v6690 = vadd.s32 %v6689, %v4226
        %v6691 = vadd.s32 %v6690, %v4234
        %v6692 = vadd.s32 %v6691, %v4242
        %v6693 = vadd.s32 %v6692, %v4250
        %v6694 = vadd.s32 %v6693, %v4258
        %v6695 = vadd.s32 %v6694, %v4266
        %v6696 = vadd.s32 %v6695, %v4274
        %v6697 = vadd.s32 %v6696, %v4282
        %v6698 = vadd.s32 %v6697, %v4290
        %v6699 = vadd.s32 %v6698, %v4298
        %v6700 = vadd.s32 %v6699, %v4306
        %v6701 = vadd.s32 %v6700, %v4314
        %v6702 = vadd.s32 %v6701, %v4322
        %v6703 = vadd.s32 %v6702, %v4330
        %v6704 = vadd.s32 %v6703, %v4338
        %v6705 = vadd.s32 %v6704, %v4346
        %v6706 = vadd.s32 %v6705, %v4354
        %v6707 = vadd.s32 %v6706, %v4362
        %v6708 = vadd.s32 %v6707, %v4370
        %v6709 = vadd.s32 %v6708, %v4378
        %v6710 = vadd.s32 %v6709, %v4386
        %v6711 = vadd.s32 %v6710, %v4394
        %v6712 = vadd.s32 %v6711, %v4402
        %v6713 = vadd.s32 %v6712, %v4410
        %v6714 = vadd.s32 %v6713, %v4418
        %v6715 = vadd.s32 %v6714, %v4426
        %v6716 = vadd.s32 %v6715, %v4434
        %v6717 = vadd.s32 %v6716, %v4442
        %v6718 = vadd.s32 %v6717, %v4450
        %v6719 = vadd.s32 %v6718, %v4458
        %v6720 = vadd.s32 %v6719, %v4466
        %v6721 = vadd.s32 %v6720, %v4474
        %v6722 = vadd.s32 %v6721, %v4482
        %v6723 = vadd.s32 %v6722, %v4490
        %v6724 = vadd.s32 %v6723, %v4498
        %v6725 = vadd.s32 %v6724, %v4506
        %v6726 = vadd.s32 %v6725, %v4514
        %v6727 = vadd.s32 %v6726, %v4522
        %v6728 = vadd.s32 %v6727, %v4530
        %v6729 = vadd.s32 %v6728, %v4538
        %v6730 = vadd.s32 %v6729, %v4546
        %v6731 = vadd.s32 %v6730, %v4554
        %v6732 = vadd.s32 %v6731, %v4562
        %v6733 = vadd.s32 %v6732, %v4570
        %v6734 = vadd.s32 %v6733, %v4578
        %v6735 = vadd.s32 %v6734, %v4586
        %v6736 = vadd.s32 %v6735, %v4594
        %v6737 = vadd.s32 %v6736, %v4602
        %v6738 = vadd.s32 %v6737, %v4610
        %v6739 = vadd.s32 %v6738, %v4618
        %v6740 = vadd.s32 %v6739, %v4626
        %v6741 = vadd.s32 %v6740, %v4634
        %v6742 = vadd.s32 %v6741, %v4642
        %v6743 = vadd.s32 %v6742, %v4650
        %v6744 = vadd.s32 %v6743, %v4658
        %v6745 = vadd.s32 %v6744, %v4666
        %v6746 = vadd.s32 %v6745, %v4674
        %v6747 = vadd.s32 %v6746, %v4682
        %v6748 = vadd.s32 %v6747, %v4690
        %v6749 = vadd.s32 %v6748, %v4698
        %v6750 = vadd.s32 %v6749, %v4706
        %v6751 = vadd.s32 %v6750, %v4714
        %v6752 = vadd.s32 %v6751, %v4722
        %v6753 = vadd.s32 %v6752, %v4730
        %v6754 = vadd.s32 %v6753, %v4738
        %v6755 = vadd.s32 %v6754, %v4746
        %v6756 = vadd.s32 %v6755, %v4754
        %v6757 = vadd.s32 %v6756, %v4762
        %v6758 = vadd.s32 %v6757, %v4770
        %v6759 = vadd.s32 %v6758, %v4778
        %v6760 = vadd.s32 %v6759, %v4786
        %v6761 = vadd.s32 %v6760, %v4794
        %v6762 = vadd.s32 %v6761, %v4802
        %v6763 = vadd.s32 %v6762, %v4810
        %v6764 = vadd.s32 %v6763, %v4818
        %v6765 = vadd.s32 %v6764, %v4826
        %v6766 = vadd.s32 %v6765, %v4834
        %v6767 = vadd.s32 %v6766, %v4842
        %v6768 = vadd.s32 %v6767, %v4850
        %v6769 = vadd.s32 %v6768, %v4858
        %v6770 = vadd.s32 %v6769, %v4866
        %v6771 = vadd.s32 %v6770, %v4874
        %v6772 = vadd.s32 %v6771, %v4882
        %v6773 = vadd.s32 %v6772, %v4890
        %v6774 = vadd.s32 %v6773, %v4898
        %v6775 = vadd.s32 %v6774, %v4906
        %v6776 = vadd.s32 %v6775, %v4914
        %v6777 = vadd.s32 %v6776, %v4922
        %v6778 = vadd.s32 %v6777, %v4930
        %v6779 = vadd.s32 %v6778, %v4938
        %v6780 = vadd.s32 %v6779, %v4946
        %v6781 = vadd.s32 %v6780, %v4954
        %v6782 = vadd.s32 %v6781, %v4962
        %v6783 = vadd.s32 %v6782, %v4970
        %v6784 = vadd.s32 %v6783, %v4978
        %v6785 = vadd.s32 %v6784, %v4986
        %v6786 = vadd.s32 %v6785, %v4994
        %v6787 = vadd.s32 %v6786, %v5002
        %v6788 = vadd.s32 %v6787, %v5010
        %v6789 = vadd.s32 %v6788, %v5018
        %v6790 = vadd.s32 %v6789, %v5026
        %v6791 = vadd.s32 %v6790, %v5034
        %v6792 = vadd.s32 %v6791, %v5042
        %v6793 = vadd.s32 %v6792, %v5050
        %v6794 = vadd.s32 %v6793, %v5058
        %v6795 = vadd.s32 %v6794, %v5066
        %v6796 = vadd.s32 %v6795, %v5074
        %v6797 = vadd.s32 %v6796, %v5082
        %v6798 = vadd.s32 %v6797, %v5090
        %v6799 = vadd.s32 %v6798, %v5098
        %v6800 = vadd.s32 %v6799, %v5106
        %v6801 = vadd.s32 %v6800, %v5114
        %v6802 = vadd.s32 %v6801, %v5122
        %v6803 = vadd.s32 %v6802, %v5130
        %v6804 = vadd.s32 %v6803, %v5138
        %v6805 = vadd.s32 %v6804, %v5146
        %v6806 = vadd.s32 %v6805, %v5154
        %v6807 = vadd.s32 %v6806, %v5162
        %v6808 = vadd.s32 %v6807, %v5170
        %v6809 = vadd.s32 %v6808, %v5178
        %v6810 = vadd.s32 %v6809, %v5186
        %v6811 = vadd.s32 %v6810, %v5194
        %v6812 = vadd.s32 %v6811, %v5202
        %v6813 = vadd.s32 %v6812, %v5210
        %v6814 = vadd.s32 %v6813, %v5218
        %v6815 = vadd.s32 %v6814, %v5226
        %v6816 = vadd.s32 %v6815, %v5234
        %v6817 = vadd.s32 %v6816, %v5242
        %v6818 = vadd.s32 %v6817, %v5250
        %v6819 = vadd.s32 %v6818, %v5258
        %v6820 = vadd.s32 %v6819, %v5266
        %v6821 = vadd.s32 %v6820, %v5274
        %v6822 = vadd.s32 %v6821, %v5282
        %v6823 = vadd.s32 %v6822, %v5290
        %v6824 = vadd.s32 %v6823, %v5298
        %v6825 = vadd.s32 %v6824, %v5306
        %v6826 = vadd.s32 %v6825, %v5314
        %v6827 = vadd.s32 %v6826, %v5322
        %v6828 = vadd.s32 %v6827, %v5330
        %v6829 = vadd.s32 %v6828, %v5338
        %v6830 = vadd.s32 %v6829, %v5346
        %v6831 = vadd.s32 %v6830, %v5354
        %v6832 = vadd.s32 %v6831, %v5362
        %v6833 = vadd.s32 %v6832, %v5370
        %v6834 = vadd.s32 %v6833, %v5378
        %v6835 = vadd.s32 %v6834, %v5386
        %v6836 = vadd.s32 %v6835, %v5394
        %v6837 = vadd.s32 %v6836, %v5402
        %v6838 = vadd.s32 %v6837, %v5410
        %v6839 = vadd.s32 %v6838, %v5418
        %v6840 = vadd.s32 %v6839, %v5426
        %v6841 = vadd.s32 %v6840, %v5434
        %v6842 = vadd.s32 %v6841, %v5442
        %v6843 = vadd.s32 %v6842, %v5450
        %v6844 = vadd.s32 %v6843, %v5458
        %v6845 = vadd.s32 %v6844, %v5466
        %v6846 = vadd.s32 %v6845, %v5474
        %v6847 = vadd.s32 %v6846, %v5482
        %v6848 = vadd.s32 %v6847, %v5490
        %v6849 = vadd.s32 %v6848, %v5498
        %v6850 = vadd.s32 %v6849, %v5506
        %v6851 = vadd.s32 %v6850, %v5514
        %v6852 = vadd.s32 %v6851, %v5522
        %v6853 = vadd.s32 %v6852, %v5530
        %v6854 = vadd.s32 %v6853, %v5538
        %v6855 = vadd.s32 %v6854, %v5546
        %v6856 = vadd.s32 %v6855, %v5554
        %v6857 = vadd.s32 %v6856, %v5562
        %v6858 = vadd.s32 %v6857, %v5570
        %v6859 = vadd.s32 %v6858, %v5578
        %v6860 = vadd.s32 %v6859, %v5586
        %v6861 = vadd.s32 %v6860, %v5594
        %v6862 = vadd.s32 %v6861, %v5602
        %v6863 = vadd.s32 %v6862, %v5610
        %v6864 = vadd.s32 %v6863, %v5618
        %v6865 = vadd.s32 %v6864, %v5626
        %v6866 = vadd.s32 %v6865, %v5634
        %v6867 = vadd.s32 %v6866, %v5642
        %v6868 = vadd.s32 %v6867, %v5650
        %v6869 = vadd.s32 %v6868, %v5658
        %v6870 = vadd.s32 %v6869, %v5666
        %v6871 = vadd.s32 %v6870, %v5674
        %v6872 = vadd.s32 %v6871, %v5682
        %v6873 = vadd.s32 %v6872, %v5690
        %v6874 = vadd.s32 %v6873, %v5698
        %v6875 = vadd.s32 %v6874, %v5706
        %v6876 = vadd.s32 %v6875, %v5714
        %v6877 = vadd.s32 %v6876, %v5722
        %v6878 = vadd.s32 %v6877, %v5730
        %v6879 = vadd.s32 %v6878, %v5738
        %v6880 = vadd.s32 %v6879, %v5746
        %v6881 = vadd.s32 %v6880, %v5754
        %v6882 = vadd.s32 %v6881, %v5762
        %v6883 = vadd.s32 %v6882, %v5770
        %v6884 = vadd.s32 %v6883, %v5778
        %v6885 = vadd.s32 %v6884, %v5786
        %v6886 = vadd.s32 %v6885, %v5794
        %v6887 = vadd.s32 %v6886, %v5802
        %v6888 = vadd.s32 %v6887, %v5810
        %v6889 = vadd.s32 %v6888, %v5818
        %v6890 = vadd.s32 %v6889, %v5826
        %v6891 = vadd.s32 %v6890, %v5834
        %v6892 = vadd.s32 %v6891, %v5842
        %v6893 = vadd.s32 %v6892, %v5850
        %v6894 = vrot.slane %v6893, 4
        %v6895 = vadd.s32 %v6893, %v6894
        %v6896 = vrot.slane %v6895, 2
        %v6897 = vadd.s32 %v6895, %v6896
        %v6898 = vrot.slane %v6897, 1
        %v6899 = vadd.s32 %v6897, %v6898
        %v6900 = vadd.s32 %v3811, %v3819
        %v6901 = vadd.s32 %v6900, %v3827
        %v6902 = vadd.s32 %v6901, %v3835
        %v6903 = vadd.s32 %v6902, %v3843
        %v6904 = vadd.s32 %v6903, %v3851
        %v6905 = vadd.s32 %v6904, %v3859
        %v6906 = vadd.s32 %v6905, %v3867
        %v6907 = vadd.s32 %v6906, %v3875
        %v6908 = vadd.s32 %v6907, %v3883
        %v6909 = vadd.s32 %v6908, %v3891
        %v6910 = vadd.s32 %v6909, %v3899
        %v6911 = vadd.s32 %v6910, %v3907
        %v6912 = vadd.s32 %v6911, %v3915
        %v6913 = vadd.s32 %v6912, %v3923
        %v6914 = vadd.s32 %v6913, %v3931
        %v6915 = vadd.s32 %v6914, %v3939
        %v6916 = vadd.s32 %v6915, %v3947
        %v6917 = vadd.s32 %v6916, %v3955
        %v6918 = vadd.s32 %v6917, %v3963
        %v6919 = vadd.s32 %v6918, %v3971
        %v6920 = vadd.s32 %v6919, %v3979
        %v6921 = vadd.s32 %v6920, %v3987
        %v6922 = vadd.s32 %v6921, %v3995
        %v6923 = vadd.s32 %v6922, %v4003
        %v6924 = vadd.s32 %v6923, %v4011
        %v6925 = vadd.s32 %v6924, %v4019
        %v6926 = vadd.s32 %v6925, %v4027
        %v6927 = vadd.s32 %v6926, %v4035
        %v6928 = vadd.s32 %v6927, %v4043
        %v6929 = vadd.s32 %v6928, %v4051
        %v6930 = vadd.s32 %v6929, %v4059
        %v6931 = vadd.s32 %v6930, %v4067
        %v6932 = vadd.s32 %v6931, %v4075
        %v6933 = vadd.s32 %v6932, %v4083
        %v6934 = vadd.s32 %v6933, %v4091
        %v6935 = vadd.s32 %v6934, %v4099
        %v6936 = vadd.s32 %v6935, %v4107
        %v6937 = vadd.s32 %v6936, %v4115
        %v6938 = vadd.s32 %v6937, %v4123
        %v6939 = vadd.s32 %v6938, %v4131
        %v6940 = vadd.s32 %v6939, %v4139
        %v6941 = vadd.s32 %v6940, %v4147
        %v6942 = vadd.s32 %v6941, %v4155
        %v6943 = vadd.s32 %v6942, %v4163
        %v6944 = vadd.s32 %v6943, %v4171
        %v6945 = vadd.s32 %v6944, %v4179
        %v6946 = vadd.s32 %v6945, %v4187
        %v6947 = vadd.s32 %v6946, %v4195
        %v6948 = vadd.s32 %v6947, %v4203
        %v6949 = vadd.s32 %v6948, %v4211
        %v6950 = vadd.s32 %v6949, %v4219
        %v6951 = vadd.s32 %v6950, %v4227
        %v6952 = vadd.s32 %v6951, %v4235
        %v6953 = vadd.s32 %v6952, %v4243
        %v6954 = vadd.s32 %v6953, %v4251
        %v6955 = vadd.s32 %v6954, %v4259
        %v6956 = vadd.s32 %v6955, %v4267
        %v6957 = vadd.s32 %v6956, %v4275
        %v6958 = vadd.s32 %v6957, %v4283
        %v6959 = vadd.s32 %v6958, %v4291
        %v6960 = vadd.s32 %v6959, %v4299
        %v6961 = vadd.s32 %v6960, %v4307
        %v6962 = vadd.s32 %v6961, %v4315
        %v6963 = vadd.s32 %v6962, %v4323
        %v6964 = vadd.s32 %v6963, %v4331
        %v6965 = vadd.s32 %v6964, %v4339
        %v6966 = vadd.s32 %v6965, %v4347
        %v6967 = vadd.s32 %v6966, %v4355
        %v6968 = vadd.s32 %v6967, %v4363
        %v6969 = vadd.s32 %v6968, %v4371
        %v6970 = vadd.s32 %v6969, %v4379
        %v6971 = vadd.s32 %v6970, %v4387
        %v6972 = vadd.s32 %v6971, %v4395
        %v6973 = vadd.s32 %v6972, %v4403
        %v6974 = vadd.s32 %v6973, %v4411
        %v6975 = vadd.s32 %v6974, %v4419
        %v6976 = vadd.s32 %v6975, %v4427
        %v6977 = vadd.s32 %v6976, %v4435
        %v6978 = vadd.s32 %v6977, %v4443
        %v6979 = vadd.s32 %v6978, %v4451
        %v6980 = vadd.s32 %v6979, %v4459
        %v6981 = vadd.s32 %v6980, %v4467
        %v6982 = vadd.s32 %v6981, %v4475
        %v6983 = vadd.s32 %v6982, %v4483
        %v6984 = vadd.s32 %v6983, %v4491
        %v6985 = vadd.s32 %v6984, %v4499
        %v6986 = vadd.s32 %v6985, %v4507
        %v6987 = vadd.s32 %v6986, %v4515
        %v6988 = vadd.s32 %v6987, %v4523
        %v6989 = vadd.s32 %v6988, %v4531
        %v6990 = vadd.s32 %v6989, %v4539
        %v6991 = vadd.s32 %v6990, %v4547
        %v6992 = vadd.s32 %v6991, %v4555
        %v6993 = vadd.s32 %v6992, %v4563
        %v6994 = vadd.s32 %v6993, %v4571
        %v6995 = vadd.s32 %v6994, %v4579
        %v6996 = vadd.s32 %v6995, %v4587
        %v6997 = vadd.s32 %v6996, %v4595
        %v6998 = vadd.s32 %v6997, %v4603
        %v6999 = vadd.s32 %v6998, %v4611
        %v7000 = vadd.s32 %v6999, %v4619
        %v7001 = vadd.s32 %v7000, %v4627
        %v7002 = vadd.s32 %v7001, %v4635
        %v7003 = vadd.s32 %v7002, %v4643
        %v7004 = vadd.s32 %v7003, %v4651
        %v7005 = vadd.s32 %v7004, %v4659
        %v7006 = vadd.s32 %v7005, %v4667
        %v7007 = vadd.s32 %v7006, %v4675
        %v7008 = vadd.s32 %v7007, %v4683
        %v7009 = vadd.s32 %v7008, %v4691
        %v7010 = vadd.s32 %v7009, %v4699
        %v7011 = vadd.s32 %v7010, %v4707
        %v7012 = vadd.s32 %v7011, %v4715
        %v7013 = vadd.s32 %v7012, %v4723
        %v7014 = vadd.s32 %v7013, %v4731
        %v7015 = vadd.s32 %v7014, %v4739
        %v7016 = vadd.s32 %v7015, %v4747
        %v7017 = vadd.s32 %v7016, %v4755
        %v7018 = vadd.s32 %v7017, %v4763
        %v7019 = vadd.s32 %v7018, %v4771
        %v7020 = vadd.s32 %v7019, %v4779
        %v7021 = vadd.s32 %v7020, %v4787
        %v7022 = vadd.s32 %v7021, %v4795
        %v7023 = vadd.s32 %v7022, %v4803
        %v7024 = vadd.s32 %v7023, %v4811
        %v7025 = vadd.s32 %v7024, %v4819
        %v7026 = vadd.s32 %v7025, %v4827
        %v7027 = vadd.s32 %v7026, %v4835
        %v7028 = vadd.s32 %v7027, %v4843
        %v7029 = vadd.s32 %v7028, %v4851
        %v7030 = vadd.s32 %v7029, %v4859
        %v7031 = vadd.s32 %v7030, %v4867
        %v7032 = vadd.s32 %v7031, %v4875
        %v7033 = vadd.s32 %v7032, %v4883
        %v7034 = vadd.s32 %v7033, %v4891
        %v7035 = vadd.s32 %v7034, %v4899
        %v7036 = vadd.s32 %v7035, %v4907
        %v7037 = vadd.s32 %v7036, %v4915
        %v7038 = vadd.s32 %v7037, %v4923
        %v7039 = vadd.s32 %v7038, %v4931
        %v7040 = vadd.s32 %v7039, %v4939
        %v7041 = vadd.s32 %v7040, %v4947
        %v7042 = vadd.s32 %v7041, %v4955
        %v7043 = vadd.s32 %v7042, %v4963
        %v7044 = vadd.s32 %v7043, %v4971
        %v7045 = vadd.s32 %v7044, %v4979
        %v7046 = vadd.s32 %v7045, %v4987
        %v7047 = vadd.s32 %v7046, %v4995
        %v7048 = vadd.s32 %v7047, %v5003
        %v7049 = vadd.s32 %v7048, %v5011
        %v7050 = vadd.s32 %v7049, %v5019
        %v7051 = vadd.s32 %v7050, %v5027
        %v7052 = vadd.s32 %v7051, %v5035
        %v7053 = vadd.s32 %v7052, %v5043
        %v7054 = vadd.s32 %v7053, %v5051
        %v7055 = vadd.s32 %v7054, %v5059
        %v7056 = vadd.s32 %v7055, %v5067
        %v7057 = vadd.s32 %v7056, %v5075
        %v7058 = vadd.s32 %v7057, %v5083
        %v7059 = vadd.s32 %v7058, %v5091
        %v7060 = vadd.s32 %v7059, %v5099
        %v7061 = vadd.s32 %v7060, %v5107
        %v7062 = vadd.s32 %v7061, %v5115
        %v7063 = vadd.s32 %v7062, %v5123
        %v7064 = vadd.s32 %v7063, %v5131
        %v7065 = vadd.s32 %v7064, %v5139
        %v7066 = vadd.s32 %v7065, %v5147
        %v7067 = vadd.s32 %v7066, %v5155
        %v7068 = vadd.s32 %v7067, %v5163
        %v7069 = vadd.s32 %v7068, %v5171
        %v7070 = vadd.s32 %v7069, %v5179
        %v7071 = vadd.s32 %v7070, %v5187
        %v7072 = vadd.s32 %v7071, %v5195
        %v7073 = vadd.s32 %v7072, %v5203
        %v7074 = vadd.s32 %v7073, %v5211
        %v7075 = vadd.s32 %v7074, %v5219
        %v7076 = vadd.s32 %v7075, %v5227
        %v7077 = vadd.s32 %v7076, %v5235
        %v7078 = vadd.s32 %v7077, %v5243
        %v7079 = vadd.s32 %v7078, %v5251
        %v7080 = vadd.s32 %v7079, %v5259
        %v7081 = vadd.s32 %v7080, %v5267
        %v7082 = vadd.s32 %v7081, %v5275
        %v7083 = vadd.s32 %v7082, %v5283
        %v7084 = vadd.s32 %v7083, %v5291
        %v7085 = vadd.s32 %v7084, %v5299
        %v7086 = vadd.s32 %v7085, %v5307
        %v7087 = vadd.s32 %v7086, %v5315
        %v7088 = vadd.s32 %v7087, %v5323
        %v7089 = vadd.s32 %v7088, %v5331
        %v7090 = vadd.s32 %v7089, %v5339
        %v7091 = vadd.s32 %v7090, %v5347
        %v7092 = vadd.s32 %v7091, %v5355
        %v7093 = vadd.s32 %v7092, %v5363
        %v7094 = vadd.s32 %v7093, %v5371
        %v7095 = vadd.s32 %v7094, %v5379
        %v7096 = vadd.s32 %v7095, %v5387
        %v7097 = vadd.s32 %v7096, %v5395
        %v7098 = vadd.s32 %v7097, %v5403
        %v7099 = vadd.s32 %v7098, %v5411
        %v7100 = vadd.s32 %v7099, %v5419
        %v7101 = vadd.s32 %v7100, %v5427
        %v7102 = vadd.s32 %v7101, %v5435
        %v7103 = vadd.s32 %v7102, %v5443
        %v7104 = vadd.s32 %v7103, %v5451
        %v7105 = vadd.s32 %v7104, %v5459
        %v7106 = vadd.s32 %v7105, %v5467
        %v7107 = vadd.s32 %v7106, %v5475
        %v7108 = vadd.s32 %v7107, %v5483
        %v7109 = vadd.s32 %v7108, %v5491
        %v7110 = vadd.s32 %v7109, %v5499
        %v7111 = vadd.s32 %v7110, %v5507
        %v7112 = vadd.s32 %v7111, %v5515
        %v7113 = vadd.s32 %v7112, %v5523
        %v7114 = vadd.s32 %v7113, %v5531
        %v7115 = vadd.s32 %v7114, %v5539
        %v7116 = vadd.s32 %v7115, %v5547
        %v7117 = vadd.s32 %v7116, %v5555
        %v7118 = vadd.s32 %v7117, %v5563
        %v7119 = vadd.s32 %v7118, %v5571
        %v7120 = vadd.s32 %v7119, %v5579
        %v7121 = vadd.s32 %v7120, %v5587
        %v7122 = vadd.s32 %v7121, %v5595
        %v7123 = vadd.s32 %v7122, %v5603
        %v7124 = vadd.s32 %v7123, %v5611
        %v7125 = vadd.s32 %v7124, %v5619
        %v7126 = vadd.s32 %v7125, %v5627
        %v7127 = vadd.s32 %v7126, %v5635
        %v7128 = vadd.s32 %v7127, %v5643
        %v7129 = vadd.s32 %v7128, %v5651
        %v7130 = vadd.s32 %v7129, %v5659
        %v7131 = vadd.s32 %v7130, %v5667
        %v7132 = vadd.s32 %v7131, %v5675
        %v7133 = vadd.s32 %v7132, %v5683
        %v7134 = vadd.s32 %v7133, %v5691
        %v7135 = vadd.s32 %v7134, %v5699
        %v7136 = vadd.s32 %v7135, %v5707
        %v7137 = vadd.s32 %v7136, %v5715
        %v7138 = vadd.s32 %v7137, %v5723
        %v7139 = vadd.s32 %v7138, %v5731
        %v7140 = vadd.s32 %v7139, %v5739
        %v7141 = vadd.s32 %v7140, %v5747
        %v7142 = vadd.s32 %v7141, %v5755
        %v7143 = vadd.s32 %v7142, %v5763
        %v7144 = vadd.s32 %v7143, %v5771
        %v7145 = vadd.s32 %v7144, %v5779
        %v7146 = vadd.s32 %v7145, %v5787
        %v7147 = vadd.s32 %v7146, %v5795
        %v7148 = vadd.s32 %v7147, %v5803
        %v7149 = vadd.s32 %v7148, %v5811
        %v7150 = vadd.s32 %v7149, %v5819
        %v7151 = vadd.s32 %v7150, %v5827
        %v7152 = vadd.s32 %v7151, %v5835
        %v7153 = vadd.s32 %v7152, %v5843
        %v7154 = vadd.s32 %v7153, %v5851
        %v7155 = vrot.slane %v7154, 4
        %v7156 = vadd.s32 %v7154, %v7155
        %v7157 = vrot.slane %v7156, 2
        %v7158 = vadd.s32 %v7156, %v7157
        %v7159 = vrot.slane %v7158, 1
        %v7160 = vadd.s32 %v7158, %v7159
        %v7161 = vadd.s32 %v3812, %v3820
        %v7162 = vadd.s32 %v7161, %v3828
        %v7163 = vadd.s32 %v7162, %v3836
        %v7164 = vadd.s32 %v7163, %v3844
        %v7165 = vadd.s32 %v7164, %v3852
        %v7166 = vadd.s32 %v7165, %v3860
        %v7167 = vadd.s32 %v7166, %v3868
        %v7168 = vadd.s32 %v7167, %v3876
        %v7169 = vadd.s32 %v7168, %v3884
        %v7170 = vadd.s32 %v7169, %v3892
        %v7171 = vadd.s32 %v7170, %v3900
        %v7172 = vadd.s32 %v7171, %v3908
        %v7173 = vadd.s32 %v7172, %v3916
        %v7174 = vadd.s32 %v7173, %v3924
        %v7175 = vadd.s32 %v7174, %v3932
        %v7176 = vadd.s32 %v7175, %v3940
        %v7177 = vadd.s32 %v7176, %v3948
        %v7178 = vadd.s32 %v7177, %v3956
        %v7179 = vadd.s32 %v7178, %v3964
        %v7180 = vadd.s32 %v7179, %v3972
        %v7181 = vadd.s32 %v7180, %v3980
        %v7182 = vadd.s32 %v7181, %v3988
        %v7183 = vadd.s32 %v7182, %v3996
        %v7184 = vadd.s32 %v7183, %v4004
        %v7185 = vadd.s32 %v7184, %v4012
        %v7186 = vadd.s32 %v7185, %v4020
        %v7187 = vadd.s32 %v7186, %v4028
        %v7188 = vadd.s32 %v7187, %v4036
        %v7189 = vadd.s32 %v7188, %v4044
        %v7190 = vadd.s32 %v7189, %v4052
        %v7191 = vadd.s32 %v7190, %v4060
        %v7192 = vadd.s32 %v7191, %v4068
        %v7193 = vadd.s32 %v7192, %v4076
        %v7194 = vadd.s32 %v7193, %v4084
        %v7195 = vadd.s32 %v7194, %v4092
        %v7196 = vadd.s32 %v7195, %v4100
        %v7197 = vadd.s32 %v7196, %v4108
        %v7198 = vadd.s32 %v7197, %v4116
        %v7199 = vadd.s32 %v7198, %v4124
        %v7200 = vadd.s32 %v7199, %v4132
        %v7201 = vadd.s32 %v7200, %v4140
        %v7202 = vadd.s32 %v7201, %v4148
        %v7203 = vadd.s32 %v7202, %v4156
        %v7204 = vadd.s32 %v7203, %v4164
        %v7205 = vadd.s32 %v7204, %v4172
        %v7206 = vadd.s32 %v7205, %v4180
        %v7207 = vadd.s32 %v7206, %v4188
        %v7208 = vadd.s32 %v7207, %v4196
        %v7209 = vadd.s32 %v7208, %v4204
        %v7210 = vadd.s32 %v7209, %v4212
        %v7211 = vadd.s32 %v7210, %v4220
        %v7212 = vadd.s32 %v7211, %v4228
        %v7213 = vadd.s32 %v7212, %v4236
        %v7214 = vadd.s32 %v7213, %v4244
        %v7215 = vadd.s32 %v7214, %v4252
        %v7216 = vadd.s32 %v7215, %v4260
        %v7217 = vadd.s32 %v7216, %v4268
        %v7218 = vadd.s32 %v7217, %v4276
        %v7219 = vadd.s32 %v7218, %v4284
        %v7220 = vadd.s32 %v7219, %v4292
        %v7221 = vadd.s32 %v7220, %v4300
        %v7222 = vadd.s32 %v7221, %v4308
        %v7223 = vadd.s32 %v7222, %v4316
        %v7224 = vadd.s32 %v7223, %v4324
        %v7225 = vadd.s32 %v7224, %v4332
        %v7226 = vadd.s32 %v7225, %v4340
        %v7227 = vadd.s32 %v7226, %v4348
        %v7228 = vadd.s32 %v7227, %v4356
        %v7229 = vadd.s32 %v7228, %v4364
        %v7230 = vadd.s32 %v7229, %v4372
        %v7231 = vadd.s32 %v7230, %v4380
        %v7232 = vadd.s32 %v7231, %v4388
        %v7233 = vadd.s32 %v7232, %v4396
        %v7234 = vadd.s32 %v7233, %v4404
        %v7235 = vadd.s32 %v7234, %v4412
        %v7236 = vadd.s32 %v7235, %v4420
        %v7237 = vadd.s32 %v7236, %v4428
        %v7238 = vadd.s32 %v7237, %v4436
        %v7239 = vadd.s32 %v7238, %v4444
        %v7240 = vadd.s32 %v7239, %v4452
        %v7241 = vadd.s32 %v7240, %v4460
        %v7242 = vadd.s32 %v7241, %v4468
        %v7243 = vadd.s32 %v7242, %v4476
        %v7244 = vadd.s32 %v7243, %v4484
        %v7245 = vadd.s32 %v7244, %v4492
        %v7246 = vadd.s32 %v7245, %v4500
        %v7247 = vadd.s32 %v7246, %v4508
        %v7248 = vadd.s32 %v7247, %v4516
        %v7249 = vadd.s32 %v7248, %v4524
        %v7250 = vadd.s32 %v7249, %v4532
        %v7251 = vadd.s32 %v7250, %v4540
        %v7252 = vadd.s32 %v7251, %v4548
        %v7253 = vadd.s32 %v7252, %v4556
        %v7254 = vadd.s32 %v7253, %v4564
        %v7255 = vadd.s32 %v7254, %v4572
        %v7256 = vadd.s32 %v7255, %v4580
        %v7257 = vadd.s32 %v7256, %v4588
        %v7258 = vadd.s32 %v7257, %v4596
        %v7259 = vadd.s32 %v7258, %v4604
        %v7260 = vadd.s32 %v7259, %v4612
        %v7261 = vadd.s32 %v7260, %v4620
        %v7262 = vadd.s32 %v7261, %v4628
        %v7263 = vadd.s32 %v7262, %v4636
        %v7264 = vadd.s32 %v7263, %v4644
        %v7265 = vadd.s32 %v7264, %v4652
        %v7266 = vadd.s32 %v7265, %v4660
        %v7267 = vadd.s32 %v7266, %v4668
        %v7268 = vadd.s32 %v7267, %v4676
        %v7269 = vadd.s32 %v7268, %v4684
        %v7270 = vadd.s32 %v7269, %v4692
        %v7271 = vadd.s32 %v7270, %v4700
        %v7272 = vadd.s32 %v7271, %v4708
        %v7273 = vadd.s32 %v7272, %v4716
        %v7274 = vadd.s32 %v7273, %v4724
        %v7275 = vadd.s32 %v7274, %v4732
        %v7276 = vadd.s32 %v7275, %v4740
        %v7277 = vadd.s32 %v7276, %v4748
        %v7278 = vadd.s32 %v7277, %v4756
        %v7279 = vadd.s32 %v7278, %v4764
        %v7280 = vadd.s32 %v7279, %v4772
        %v7281 = vadd.s32 %v7280, %v4780
        %v7282 = vadd.s32 %v7281, %v4788
        %v7283 = vadd.s32 %v7282, %v4796
        %v7284 = vadd.s32 %v7283, %v4804
        %v7285 = vadd.s32 %v7284, %v4812
        %v7286 = vadd.s32 %v7285, %v4820
        %v7287 = vadd.s32 %v7286, %v4828
        %v7288 = vadd.s32 %v7287, %v4836
        %v7289 = vadd.s32 %v7288, %v4844
        %v7290 = vadd.s32 %v7289, %v4852
        %v7291 = vadd.s32 %v7290, %v4860
        %v7292 = vadd.s32 %v7291, %v4868
        %v7293 = vadd.s32 %v7292, %v4876
        %v7294 = vadd.s32 %v7293, %v4884
        %v7295 = vadd.s32 %v7294, %v4892
        %v7296 = vadd.s32 %v7295, %v4900
        %v7297 = vadd.s32 %v7296, %v4908
        %v7298 = vadd.s32 %v7297, %v4916
        %v7299 = vadd.s32 %v7298, %v4924
        %v7300 = vadd.s32 %v7299, %v4932
        %v7301 = vadd.s32 %v7300, %v4940
        %v7302 = vadd.s32 %v7301, %v4948
        %v7303 = vadd.s32 %v7302, %v4956
        %v7304 = vadd.s32 %v7303, %v4964
        %v7305 = vadd.s32 %v7304, %v4972
        %v7306 = vadd.s32 %v7305, %v4980
        %v7307 = vadd.s32 %v7306, %v4988
        %v7308 = vadd.s32 %v7307, %v4996
        %v7309 = vadd.s32 %v7308, %v5004
        %v7310 = vadd.s32 %v7309, %v5012
        %v7311 = vadd.s32 %v7310, %v5020
        %v7312 = vadd.s32 %v7311, %v5028
        %v7313 = vadd.s32 %v7312, %v5036
        %v7314 = vadd.s32 %v7313, %v5044
        %v7315 = vadd.s32 %v7314, %v5052
        %v7316 = vadd.s32 %v7315, %v5060
        %v7317 = vadd.s32 %v7316, %v5068
        %v7318 = vadd.s32 %v7317, %v5076
        %v7319 = vadd.s32 %v7318, %v5084
        %v7320 = vadd.s32 %v7319, %v5092
        %v7321 = vadd.s32 %v7320, %v5100
        %v7322 = vadd.s32 %v7321, %v5108
        %v7323 = vadd.s32 %v7322, %v5116
        %v7324 = vadd.s32 %v7323, %v5124
        %v7325 = vadd.s32 %v7324, %v5132
        %v7326 = vadd.s32 %v7325, %v5140
        %v7327 = vadd.s32 %v7326, %v5148
        %v7328 = vadd.s32 %v7327, %v5156
        %v7329 = vadd.s32 %v7328, %v5164
        %v7330 = vadd.s32 %v7329, %v5172
        %v7331 = vadd.s32 %v7330, %v5180
        %v7332 = vadd.s32 %v7331, %v5188
        %v7333 = vadd.s32 %v7332, %v5196
        %v7334 = vadd.s32 %v7333, %v5204
        %v7335 = vadd.s32 %v7334, %v5212
        %v7336 = vadd.s32 %v7335, %v5220
        %v7337 = vadd.s32 %v7336, %v5228
        %v7338 = vadd.s32 %v7337, %v5236
        %v7339 = vadd.s32 %v7338, %v5244
        %v7340 = vadd.s32 %v7339, %v5252
        %v7341 = vadd.s32 %v7340, %v5260
        %v7342 = vadd.s32 %v7341, %v5268
        %v7343 = vadd.s32 %v7342, %v5276
        %v7344 = vadd.s32 %v7343, %v5284
        %v7345 = vadd.s32 %v7344, %v5292
        %v7346 = vadd.s32 %v7345, %v5300
        %v7347 = vadd.s32 %v7346, %v5308
        %v7348 = vadd.s32 %v7347, %v5316
        %v7349 = vadd.s32 %v7348, %v5324
        %v7350 = vadd.s32 %v7349, %v5332
        %v7351 = vadd.s32 %v7350, %v5340
        %v7352 = vadd.s32 %v7351, %v5348
        %v7353 = vadd.s32 %v7352, %v5356
        %v7354 = vadd.s32 %v7353, %v5364
        %v7355 = vadd.s32 %v7354, %v5372
        %v7356 = vadd.s32 %v7355, %v5380
        %v7357 = vadd.s32 %v7356, %v5388
        %v7358 = vadd.s32 %v7357, %v5396
        %v7359 = vadd.s32 %v7358, %v5404
        %v7360 = vadd.s32 %v7359, %v5412
        %v7361 = vadd.s32 %v7360, %v5420
        %v7362 = vadd.s32 %v7361, %v5428
        %v7363 = vadd.s32 %v7362, %v5436
        %v7364 = vadd.s32 %v7363, %v5444
        %v7365 = vadd.s32 %v7364, %v5452
        %v7366 = vadd.s32 %v7365, %v5460
        %v7367 = vadd.s32 %v7366, %v5468
        %v7368 = vadd.s32 %v7367, %v5476
        %v7369 = vadd.s32 %v7368, %v5484
        %v7370 = vadd.s32 %v7369, %v5492
        %v7371 = vadd.s32 %v7370, %v5500
        %v7372 = vadd.s32 %v7371, %v5508
        %v7373 = vadd.s32 %v7372, %v5516
        %v7374 = vadd.s32 %v7373, %v5524
        %v7375 = vadd.s32 %v7374, %v5532
        %v7376 = vadd.s32 %v7375, %v5540
        %v7377 = vadd.s32 %v7376, %v5548
        %v7378 = vadd.s32 %v7377, %v5556
        %v7379 = vadd.s32 %v7378, %v5564
        %v7380 = vadd.s32 %v7379, %v5572
        %v7381 = vadd.s32 %v7380, %v5580
        %v7382 = vadd.s32 %v7381, %v5588
        %v7383 = vadd.s32 %v7382, %v5596
        %v7384 = vadd.s32 %v7383, %v5604
        %v7385 = vadd.s32 %v7384, %v5612
        %v7386 = vadd.s32 %v7385, %v5620
        %v7387 = vadd.s32 %v7386, %v5628
        %v7388 = vadd.s32 %v7387, %v5636
        %v7389 = vadd.s32 %v7388, %v5644
        %v7390 = vadd.s32 %v7389, %v5652
        %v7391 = vadd.s32 %v7390, %v5660
        %v7392 = vadd.s32 %v7391, %v5668
        %v7393 = vadd.s32 %v7392, %v5676
        %v7394 = vadd.s32 %v7393, %v5684
        %v7395 = vadd.s32 %v7394, %v5692
        %v7396 = vadd.s32 %v7395, %v5700
        %v7397 = vadd.s32 %v7396, %v5708
        %v7398 = vadd.s32 %v7397, %v5716
        %v7399 = vadd.s32 %v7398, %v5724
        %v7400 = vadd.s32 %v7399, %v5732
        %v7401 = vadd.s32 %v7400, %v5740
        %v7402 = vadd.s32 %v7401, %v5748
        %v7403 = vadd.s32 %v7402, %v5756
        %v7404 = vadd.s32 %v7403, %v5764
        %v7405 = vadd.s32 %v7404, %v5772
        %v7406 = vadd.s32 %v7405, %v5780
        %v7407 = vadd.s32 %v7406, %v5788
        %v7408 = vadd.s32 %v7407, %v5796
        %v7409 = vadd.s32 %v7408, %v5804
        %v7410 = vadd.s32 %v7409, %v5812
        %v7411 = vadd.s32 %v7410, %v5820
        %v7412 = vadd.s32 %v7411, %v5828
        %v7413 = vadd.s32 %v7412, %v5836
        %v7414 = vadd.s32 %v7413, %v5844
        %v7415 = vadd.s32 %v7414, %v5852
        %v7416 = vrot.slane %v7415, 4
        %v7417 = vadd.s32 %v7415, %v7416
        %v7418 = vrot.slane %v7417, 2
        %v7419 = vadd.s32 %v7417, %v7418
        %v7420 = vrot.slane %v7419, 1
        %v7421 = vadd.s32 %v7419, %v7420
        %v7422 = vadd.s32 %v3813, %v3821
        %v7423 = vadd.s32 %v7422, %v3829
        %v7424 = vadd.s32 %v7423, %v3837
        %v7425 = vadd.s32 %v7424, %v3845
        %v7426 = vadd.s32 %v7425, %v3853
        %v7427 = vadd.s32 %v7426, %v3861
        %v7428 = vadd.s32 %v7427, %v3869
        %v7429 = vadd.s32 %v7428, %v3877
        %v7430 = vadd.s32 %v7429, %v3885
        %v7431 = vadd.s32 %v7430, %v3893
        %v7432 = vadd.s32 %v7431, %v3901
        %v7433 = vadd.s32 %v7432, %v3909
        %v7434 = vadd.s32 %v7433, %v3917
        %v7435 = vadd.s32 %v7434, %v3925
        %v7436 = vadd.s32 %v7435, %v3933
        %v7437 = vadd.s32 %v7436, %v3941
        %v7438 = vadd.s32 %v7437, %v3949
        %v7439 = vadd.s32 %v7438, %v3957
        %v7440 = vadd.s32 %v7439, %v3965
        %v7441 = vadd.s32 %v7440, %v3973
        %v7442 = vadd.s32 %v7441, %v3981
        %v7443 = vadd.s32 %v7442, %v3989
        %v7444 = vadd.s32 %v7443, %v3997
        %v7445 = vadd.s32 %v7444, %v4005
        %v7446 = vadd.s32 %v7445, %v4013
        %v7447 = vadd.s32 %v7446, %v4021
        %v7448 = vadd.s32 %v7447, %v4029
        %v7449 = vadd.s32 %v7448, %v4037
        %v7450 = vadd.s32 %v7449, %v4045
        %v7451 = vadd.s32 %v7450, %v4053
        %v7452 = vadd.s32 %v7451, %v4061
        %v7453 = vadd.s32 %v7452, %v4069
        %v7454 = vadd.s32 %v7453, %v4077
        %v7455 = vadd.s32 %v7454, %v4085
        %v7456 = vadd.s32 %v7455, %v4093
        %v7457 = vadd.s32 %v7456, %v4101
        %v7458 = vadd.s32 %v7457, %v4109
        %v7459 = vadd.s32 %v7458, %v4117
        %v7460 = vadd.s32 %v7459, %v4125
        %v7461 = vadd.s32 %v7460, %v4133
        %v7462 = vadd.s32 %v7461, %v4141
        %v7463 = vadd.s32 %v7462, %v4149
        %v7464 = vadd.s32 %v7463, %v4157
        %v7465 = vadd.s32 %v7464, %v4165
        %v7466 = vadd.s32 %v7465, %v4173
        %v7467 = vadd.s32 %v7466, %v4181
        %v7468 = vadd.s32 %v7467, %v4189
        %v7469 = vadd.s32 %v7468, %v4197
        %v7470 = vadd.s32 %v7469, %v4205
        %v7471 = vadd.s32 %v7470, %v4213
        %v7472 = vadd.s32 %v7471, %v4221
        %v7473 = vadd.s32 %v7472, %v4229
        %v7474 = vadd.s32 %v7473, %v4237
        %v7475 = vadd.s32 %v7474, %v4245
        %v7476 = vadd.s32 %v7475, %v4253
        %v7477 = vadd.s32 %v7476, %v4261
        %v7478 = vadd.s32 %v7477, %v4269
        %v7479 = vadd.s32 %v7478, %v4277
        %v7480 = vadd.s32 %v7479, %v4285
        %v7481 = vadd.s32 %v7480, %v4293
        %v7482 = vadd.s32 %v7481, %v4301
        %v7483 = vadd.s32 %v7482, %v4309
        %v7484 = vadd.s32 %v7483, %v4317
        %v7485 = vadd.s32 %v7484, %v4325
        %v7486 = vadd.s32 %v7485, %v4333
        %v7487 = vadd.s32 %v7486, %v4341
        %v7488 = vadd.s32 %v7487, %v4349
        %v7489 = vadd.s32 %v7488, %v4357
        %v7490 = vadd.s32 %v7489, %v4365
        %v7491 = vadd.s32 %v7490, %v4373
        %v7492 = vadd.s32 %v7491, %v4381
        %v7493 = vadd.s32 %v7492, %v4389
        %v7494 = vadd.s32 %v7493, %v4397
        %v7495 = vadd.s32 %v7494, %v4405
        %v7496 = vadd.s32 %v7495, %v4413
        %v7497 = vadd.s32 %v7496, %v4421
        %v7498 = vadd.s32 %v7497, %v4429
        %v7499 = vadd.s32 %v7498, %v4437
        %v7500 = vadd.s32 %v7499, %v4445
        %v7501 = vadd.s32 %v7500, %v4453
        %v7502 = vadd.s32 %v7501, %v4461
        %v7503 = vadd.s32 %v7502, %v4469
        %v7504 = vadd.s32 %v7503, %v4477
        %v7505 = vadd.s32 %v7504, %v4485
        %v7506 = vadd.s32 %v7505, %v4493
        %v7507 = vadd.s32 %v7506, %v4501
        %v7508 = vadd.s32 %v7507, %v4509
        %v7509 = vadd.s32 %v7508, %v4517
        %v7510 = vadd.s32 %v7509, %v4525
        %v7511 = vadd.s32 %v7510, %v4533
        %v7512 = vadd.s32 %v7511, %v4541
        %v7513 = vadd.s32 %v7512, %v4549
        %v7514 = vadd.s32 %v7513, %v4557
        %v7515 = vadd.s32 %v7514, %v4565
        %v7516 = vadd.s32 %v7515, %v4573
        %v7517 = vadd.s32 %v7516, %v4581
        %v7518 = vadd.s32 %v7517, %v4589
        %v7519 = vadd.s32 %v7518, %v4597
        %v7520 = vadd.s32 %v7519, %v4605
        %v7521 = vadd.s32 %v7520, %v4613
        %v7522 = vadd.s32 %v7521, %v4621
        %v7523 = vadd.s32 %v7522, %v4629
        %v7524 = vadd.s32 %v7523, %v4637
        %v7525 = vadd.s32 %v7524, %v4645
        %v7526 = vadd.s32 %v7525, %v4653
        %v7527 = vadd.s32 %v7526, %v4661
        %v7528 = vadd.s32 %v7527, %v4669
        %v7529 = vadd.s32 %v7528, %v4677
        %v7530 = vadd.s32 %v7529, %v4685
        %v7531 = vadd.s32 %v7530, %v4693
        %v7532 = vadd.s32 %v7531, %v4701
        %v7533 = vadd.s32 %v7532, %v4709
        %v7534 = vadd.s32 %v7533, %v4717
        %v7535 = vadd.s32 %v7534, %v4725
        %v7536 = vadd.s32 %v7535, %v4733
        %v7537 = vadd.s32 %v7536, %v4741
        %v7538 = vadd.s32 %v7537, %v4749
        %v7539 = vadd.s32 %v7538, %v4757
        %v7540 = vadd.s32 %v7539, %v4765
        %v7541 = vadd.s32 %v7540, %v4773
        %v7542 = vadd.s32 %v7541, %v4781
        %v7543 = vadd.s32 %v7542, %v4789
        %v7544 = vadd.s32 %v7543, %v4797
        %v7545 = vadd.s32 %v7544, %v4805
        %v7546 = vadd.s32 %v7545, %v4813
        %v7547 = vadd.s32 %v7546, %v4821
        %v7548 = vadd.s32 %v7547, %v4829
        %v7549 = vadd.s32 %v7548, %v4837
        %v7550 = vadd.s32 %v7549, %v4845
        %v7551 = vadd.s32 %v7550, %v4853
        %v7552 = vadd.s32 %v7551, %v4861
        %v7553 = vadd.s32 %v7552, %v4869
        %v7554 = vadd.s32 %v7553, %v4877
        %v7555 = vadd.s32 %v7554, %v4885
        %v7556 = vadd.s32 %v7555, %v4893
        %v7557 = vadd.s32 %v7556, %v4901
        %v7558 = vadd.s32 %v7557, %v4909
        %v7559 = vadd.s32 %v7558, %v4917
        %v7560 = vadd.s32 %v7559, %v4925
        %v7561 = vadd.s32 %v7560, %v4933
        %v7562 = vadd.s32 %v7561, %v4941
        %v7563 = vadd.s32 %v7562, %v4949
        %v7564 = vadd.s32 %v7563, %v4957
        %v7565 = vadd.s32 %v7564, %v4965
        %v7566 = vadd.s32 %v7565, %v4973
        %v7567 = vadd.s32 %v7566, %v4981
        %v7568 = vadd.s32 %v7567, %v4989
        %v7569 = vadd.s32 %v7568, %v4997
        %v7570 = vadd.s32 %v7569, %v5005
        %v7571 = vadd.s32 %v7570, %v5013
        %v7572 = vadd.s32 %v7571, %v5021
        %v7573 = vadd.s32 %v7572, %v5029
        %v7574 = vadd.s32 %v7573, %v5037
        %v7575 = vadd.s32 %v7574, %v5045
        %v7576 = vadd.s32 %v7575, %v5053
        %v7577 = vadd.s32 %v7576, %v5061
        %v7578 = vadd.s32 %v7577, %v5069
        %v7579 = vadd.s32 %v7578, %v5077
        %v7580 = vadd.s32 %v7579, %v5085
        %v7581 = vadd.s32 %v7580, %v5093
        %v7582 = vadd.s32 %v7581, %v5101
        %v7583 = vadd.s32 %v7582, %v5109
        %v7584 = vadd.s32 %v7583, %v5117
        %v7585 = vadd.s32 %v7584, %v5125
        %v7586 = vadd.s32 %v7585, %v5133
        %v7587 = vadd.s32 %v7586, %v5141
        %v7588 = vadd.s32 %v7587, %v5149
        %v7589 = vadd.s32 %v7588, %v5157
        %v7590 = vadd.s32 %v7589, %v5165
        %v7591 = vadd.s32 %v7590, %v5173
        %v7592 = vadd.s32 %v7591, %v5181
        %v7593 = vadd.s32 %v7592, %v5189
        %v7594 = vadd.s32 %v7593, %v5197
        %v7595 = vadd.s32 %v7594, %v5205
        %v7596 = vadd.s32 %v7595, %v5213
        %v7597 = vadd.s32 %v7596, %v5221
        %v7598 = vadd.s32 %v7597, %v5229
        %v7599 = vadd.s32 %v7598, %v5237
        %v7600 = vadd.s32 %v7599, %v5245
        %v7601 = vadd.s32 %v7600, %v5253
        %v7602 = vadd.s32 %v7601, %v5261
        %v7603 = vadd.s32 %v7602, %v5269
        %v7604 = vadd.s32 %v7603, %v5277
        %v7605 = vadd.s32 %v7604, %v5285
        %v7606 = vadd.s32 %v7605, %v5293
        %v7607 = vadd.s32 %v7606, %v5301
        %v7608 = vadd.s32 %v7607, %v5309
        %v7609 = vadd.s32 %v7608, %v5317
        %v7610 = vadd.s32 %v7609, %v5325
        %v7611 = vadd.s32 %v7610, %v5333
        %v7612 = vadd.s32 %v7611, %v5341
        %v7613 = vadd.s32 %v7612, %v5349
        %v7614 = vadd.s32 %v7613, %v5357
        %v7615 = vadd.s32 %v7614, %v5365
        %v7616 = vadd.s32 %v7615, %v5373
        %v7617 = vadd.s32 %v7616, %v5381
        %v7618 = vadd.s32 %v7617, %v5389
        %v7619 = vadd.s32 %v7618, %v5397
        %v7620 = vadd.s32 %v7619, %v5405
        %v7621 = vadd.s32 %v7620, %v5413
        %v7622 = vadd.s32 %v7621, %v5421
        %v7623 = vadd.s32 %v7622, %v5429
        %v7624 = vadd.s32 %v7623, %v5437
        %v7625 = vadd.s32 %v7624, %v5445
        %v7626 = vadd.s32 %v7625, %v5453
        %v7627 = vadd.s32 %v7626, %v5461
        %v7628 = vadd.s32 %v7627, %v5469
        %v7629 = vadd.s32 %v7628, %v5477
        %v7630 = vadd.s32 %v7629, %v5485
        %v7631 = vadd.s32 %v7630, %v5493
        %v7632 = vadd.s32 %v7631, %v5501
        %v7633 = vadd.s32 %v7632, %v5509
        %v7634 = vadd.s32 %v7633, %v5517
        %v7635 = vadd.s32 %v7634, %v5525
        %v7636 = vadd.s32 %v7635, %v5533
        %v7637 = vadd.s32 %v7636, %v5541
        %v7638 = vadd.s32 %v7637, %v5549
        %v7639 = vadd.s32 %v7638, %v5557
        %v7640 = vadd.s32 %v7639, %v5565
        %v7641 = vadd.s32 %v7640, %v5573
        %v7642 = vadd.s32 %v7641, %v5581
        %v7643 = vadd.s32 %v7642, %v5589
        %v7644 = vadd.s32 %v7643, %v5597
        %v7645 = vadd.s32 %v7644, %v5605
        %v7646 = vadd.s32 %v7645, %v5613
        %v7647 = vadd.s32 %v7646, %v5621
        %v7648 = vadd.s32 %v7647, %v5629
        %v7649 = vadd.s32 %v7648, %v5637
        %v7650 = vadd.s32 %v7649, %v5645
        %v7651 = vadd.s32 %v7650, %v5653
        %v7652 = vadd.s32 %v7651, %v5661
        %v7653 = vadd.s32 %v7652, %v5669
        %v7654 = vadd.s32 %v7653, %v5677
        %v7655 = vadd.s32 %v7654, %v5685
        %v7656 = vadd.s32 %v7655, %v5693
        %v7657 = vadd.s32 %v7656, %v5701
        %v7658 = vadd.s32 %v7657, %v5709
        %v7659 = vadd.s32 %v7658, %v5717
        %v7660 = vadd.s32 %v7659, %v5725
        %v7661 = vadd.s32 %v7660, %v5733
        %v7662 = vadd.s32 %v7661, %v5741
        %v7663 = vadd.s32 %v7662, %v5749
        %v7664 = vadd.s32 %v7663, %v5757
        %v7665 = vadd.s32 %v7664, %v5765
        %v7666 = vadd.s32 %v7665, %v5773
        %v7667 = vadd.s32 %v7666, %v5781
        %v7668 = vadd.s32 %v7667, %v5789
        %v7669 = vadd.s32 %v7668, %v5797
        %v7670 = vadd.s32 %v7669, %v5805
        %v7671 = vadd.s32 %v7670, %v5813
        %v7672 = vadd.s32 %v7671, %v5821
        %v7673 = vadd.s32 %v7672, %v5829
        %v7674 = vadd.s32 %v7673, %v5837
        %v7675 = vadd.s32 %v7674, %v5845
        %v7676 = vadd.s32 %v7675, %v5853
        %v7677 = vrot.slane %v7676, 4
        %v7678 = vadd.s32 %v7676, %v7677
        %v7679 = vrot.slane %v7678, 2
        %v7680 = vadd.s32 %v7678, %v7679
        %v7681 = vrot.slane %v7680, 1
        %v7682 = vadd.s32 %v7680, %v7681
        %v7683 = vadd.s32 %v3814, %v3822
        %v7684 = vadd.s32 %v7683, %v3830
        %v7685 = vadd.s32 %v7684, %v3838
        %v7686 = vadd.s32 %v7685, %v3846
        %v7687 = vadd.s32 %v7686, %v3854
        %v7688 = vadd.s32 %v7687, %v3862
        %v7689 = vadd.s32 %v7688, %v3870
        %v7690 = vadd.s32 %v7689, %v3878
        %v7691 = vadd.s32 %v7690, %v3886
        %v7692 = vadd.s32 %v7691, %v3894
        %v7693 = vadd.s32 %v7692, %v3902
        %v7694 = vadd.s32 %v7693, %v3910
        %v7695 = vadd.s32 %v7694, %v3918
        %v7696 = vadd.s32 %v7695, %v3926
        %v7697 = vadd.s32 %v7696, %v3934
        %v7698 = vadd.s32 %v7697, %v3942
        %v7699 = vadd.s32 %v7698, %v3950
        %v7700 = vadd.s32 %v7699, %v3958
        %v7701 = vadd.s32 %v7700, %v3966
        %v7702 = vadd.s32 %v7701, %v3974
        %v7703 = vadd.s32 %v7702, %v3982
        %v7704 = vadd.s32 %v7703, %v3990
        %v7705 = vadd.s32 %v7704, %v3998
        %v7706 = vadd.s32 %v7705, %v4006
        %v7707 = vadd.s32 %v7706, %v4014
        %v7708 = vadd.s32 %v7707, %v4022
        %v7709 = vadd.s32 %v7708, %v4030
        %v7710 = vadd.s32 %v7709, %v4038
        %v7711 = vadd.s32 %v7710, %v4046
        %v7712 = vadd.s32 %v7711, %v4054
        %v7713 = vadd.s32 %v7712, %v4062
        %v7714 = vadd.s32 %v7713, %v4070
        %v7715 = vadd.s32 %v7714, %v4078
        %v7716 = vadd.s32 %v7715, %v4086
        %v7717 = vadd.s32 %v7716, %v4094
        %v7718 = vadd.s32 %v7717, %v4102
        %v7719 = vadd.s32 %v7718, %v4110
        %v7720 = vadd.s32 %v7719, %v4118
        %v7721 = vadd.s32 %v7720, %v4126
        %v7722 = vadd.s32 %v7721, %v4134
        %v7723 = vadd.s32 %v7722, %v4142
        %v7724 = vadd.s32 %v7723, %v4150
        %v7725 = vadd.s32 %v7724, %v4158
        %v7726 = vadd.s32 %v7725, %v4166
        %v7727 = vadd.s32 %v7726, %v4174
        %v7728 = vadd.s32 %v7727, %v4182
        %v7729 = vadd.s32 %v7728, %v4190
        %v7730 = vadd.s32 %v7729, %v4198
        %v7731 = vadd.s32 %v7730, %v4206
        %v7732 = vadd.s32 %v7731, %v4214
        %v7733 = vadd.s32 %v7732, %v4222
        %v7734 = vadd.s32 %v7733, %v4230
        %v7735 = vadd.s32 %v7734, %v4238
        %v7736 = vadd.s32 %v7735, %v4246
        %v7737 = vadd.s32 %v7736, %v4254
        %v7738 = vadd.s32 %v7737, %v4262
        %v7739 = vadd.s32 %v7738, %v4270
        %v7740 = vadd.s32 %v7739, %v4278
        %v7741 = vadd.s32 %v7740, %v4286
        %v7742 = vadd.s32 %v7741, %v4294
        %v7743 = vadd.s32 %v7742, %v4302
        %v7744 = vadd.s32 %v7743, %v4310
        %v7745 = vadd.s32 %v7744, %v4318
        %v7746 = vadd.s32 %v7745, %v4326
        %v7747 = vadd.s32 %v7746, %v4334
        %v7748 = vadd.s32 %v7747, %v4342
        %v7749 = vadd.s32 %v7748, %v4350
        %v7750 = vadd.s32 %v7749, %v4358
        %v7751 = vadd.s32 %v7750, %v4366
        %v7752 = vadd.s32 %v7751, %v4374
        %v7753 = vadd.s32 %v7752, %v4382
        %v7754 = vadd.s32 %v7753, %v4390
        %v7755 = vadd.s32 %v7754, %v4398
        %v7756 = vadd.s32 %v7755, %v4406
        %v7757 = vadd.s32 %v7756, %v4414
        %v7758 = vadd.s32 %v7757, %v4422
        %v7759 = vadd.s32 %v7758, %v4430
        %v7760 = vadd.s32 %v7759, %v4438
        %v7761 = vadd.s32 %v7760, %v4446
        %v7762 = vadd.s32 %v7761, %v4454
        %v7763 = vadd.s32 %v7762, %v4462
        %v7764 = vadd.s32 %v7763, %v4470
        %v7765 = vadd.s32 %v7764, %v4478
        %v7766 = vadd.s32 %v7765, %v4486
        %v7767 = vadd.s32 %v7766, %v4494
        %v7768 = vadd.s32 %v7767, %v4502
        %v7769 = vadd.s32 %v7768, %v4510
        %v7770 = vadd.s32 %v7769, %v4518
        %v7771 = vadd.s32 %v7770, %v4526
        %v7772 = vadd.s32 %v7771, %v4534
        %v7773 = vadd.s32 %v7772, %v4542
        %v7774 = vadd.s32 %v7773, %v4550
        %v7775 = vadd.s32 %v7774, %v4558
        %v7776 = vadd.s32 %v7775, %v4566
        %v7777 = vadd.s32 %v7776, %v4574
        %v7778 = vadd.s32 %v7777, %v4582
        %v7779 = vadd.s32 %v7778, %v4590
        %v7780 = vadd.s32 %v7779, %v4598
        %v7781 = vadd.s32 %v7780, %v4606
        %v7782 = vadd.s32 %v7781, %v4614
        %v7783 = vadd.s32 %v7782, %v4622
        %v7784 = vadd.s32 %v7783, %v4630
        %v7785 = vadd.s32 %v7784, %v4638
        %v7786 = vadd.s32 %v7785, %v4646
        %v7787 = vadd.s32 %v7786, %v4654
        %v7788 = vadd.s32 %v7787, %v4662
        %v7789 = vadd.s32 %v7788, %v4670
        %v7790 = vadd.s32 %v7789, %v4678
        %v7791 = vadd.s32 %v7790, %v4686
        %v7792 = vadd.s32 %v7791, %v4694
        %v7793 = vadd.s32 %v7792, %v4702
        %v7794 = vadd.s32 %v7793, %v4710
        %v7795 = vadd.s32 %v7794, %v4718
        %v7796 = vadd.s32 %v7795, %v4726
        %v7797 = vadd.s32 %v7796, %v4734
        %v7798 = vadd.s32 %v7797, %v4742
        %v7799 = vadd.s32 %v7798, %v4750
        %v7800 = vadd.s32 %v7799, %v4758
        %v7801 = vadd.s32 %v7800, %v4766
        %v7802 = vadd.s32 %v7801, %v4774
        %v7803 = vadd.s32 %v7802, %v4782
        %v7804 = vadd.s32 %v7803, %v4790
        %v7805 = vadd.s32 %v7804, %v4798
        %v7806 = vadd.s32 %v7805, %v4806
        %v7807 = vadd.s32 %v7806, %v4814
        %v7808 = vadd.s32 %v7807, %v4822
        %v7809 = vadd.s32 %v7808, %v4830
        %v7810 = vadd.s32 %v7809, %v4838
        %v7811 = vadd.s32 %v7810, %v4846
        %v7812 = vadd.s32 %v7811, %v4854
        %v7813 = vadd.s32 %v7812, %v4862
        %v7814 = vadd.s32 %v7813, %v4870
        %v7815 = vadd.s32 %v7814, %v4878
        %v7816 = vadd.s32 %v7815, %v4886
        %v7817 = vadd.s32 %v7816, %v4894
        %v7818 = vadd.s32 %v7817, %v4902
        %v7819 = vadd.s32 %v7818, %v4910
        %v7820 = vadd.s32 %v7819, %v4918
        %v7821 = vadd.s32 %v7820, %v4926
        %v7822 = vadd.s32 %v7821, %v4934
        %v7823 = vadd.s32 %v7822, %v4942
        %v7824 = vadd.s32 %v7823, %v4950
        %v7825 = vadd.s32 %v7824, %v4958
        %v7826 = vadd.s32 %v7825, %v4966
        %v7827 = vadd.s32 %v7826, %v4974
        %v7828 = vadd.s32 %v7827, %v4982
        %v7829 = vadd.s32 %v7828, %v4990
        %v7830 = vadd.s32 %v7829, %v4998
        %v7831 = vadd.s32 %v7830, %v5006
        %v7832 = vadd.s32 %v7831, %v5014
        %v7833 = vadd.s32 %v7832, %v5022
        %v7834 = vadd.s32 %v7833, %v5030
        %v7835 = vadd.s32 %v7834, %v5038
        %v7836 = vadd.s32 %v7835, %v5046
        %v7837 = vadd.s32 %v7836, %v5054
        %v7838 = vadd.s32 %v7837, %v5062
        %v7839 = vadd.s32 %v7838, %v5070
        %v7840 = vadd.s32 %v7839, %v5078
        %v7841 = vadd.s32 %v7840, %v5086
        %v7842 = vadd.s32 %v7841, %v5094
        %v7843 = vadd.s32 %v7842, %v5102
        %v7844 = vadd.s32 %v7843, %v5110
        %v7845 = vadd.s32 %v7844, %v5118
        %v7846 = vadd.s32 %v7845, %v5126
        %v7847 = vadd.s32 %v7846, %v5134
        %v7848 = vadd.s32 %v7847, %v5142
        %v7849 = vadd.s32 %v7848, %v5150
        %v7850 = vadd.s32 %v7849, %v5158
        %v7851 = vadd.s32 %v7850, %v5166
        %v7852 = vadd.s32 %v7851, %v5174
        %v7853 = vadd.s32 %v7852, %v5182
        %v7854 = vadd.s32 %v7853, %v5190
        %v7855 = vadd.s32 %v7854, %v5198
        %v7856 = vadd.s32 %v7855, %v5206
        %v7857 = vadd.s32 %v7856, %v5214
        %v7858 = vadd.s32 %v7857, %v5222
        %v7859 = vadd.s32 %v7858, %v5230
        %v7860 = vadd.s32 %v7859, %v5238
        %v7861 = vadd.s32 %v7860, %v5246
        %v7862 = vadd.s32 %v7861, %v5254
        %v7863 = vadd.s32 %v7862, %v5262
        %v7864 = vadd.s32 %v7863, %v5270
        %v7865 = vadd.s32 %v7864, %v5278
        %v7866 = vadd.s32 %v7865, %v5286
        %v7867 = vadd.s32 %v7866, %v5294
        %v7868 = vadd.s32 %v7867, %v5302
        %v7869 = vadd.s32 %v7868, %v5310
        %v7870 = vadd.s32 %v7869, %v5318
        %v7871 = vadd.s32 %v7870, %v5326
        %v7872 = vadd.s32 %v7871, %v5334
        %v7873 = vadd.s32 %v7872, %v5342
        %v7874 = vadd.s32 %v7873, %v5350
        %v7875 = vadd.s32 %v7874, %v5358
        %v7876 = vadd.s32 %v7875, %v5366
        %v7877 = vadd.s32 %v7876, %v5374
        %v7878 = vadd.s32 %v7877, %v5382
        %v7879 = vadd.s32 %v7878, %v5390
        %v7880 = vadd.s32 %v7879, %v5398
        %v7881 = vadd.s32 %v7880, %v5406
        %v7882 = vadd.s32 %v7881, %v5414
        %v7883 = vadd.s32 %v7882, %v5422
        %v7884 = vadd.s32 %v7883, %v5430
        %v7885 = vadd.s32 %v7884, %v5438
        %v7886 = vadd.s32 %v7885, %v5446
        %v7887 = vadd.s32 %v7886, %v5454
        %v7888 = vadd.s32 %v7887, %v5462
        %v7889 = vadd.s32 %v7888, %v5470
        %v7890 = vadd.s32 %v7889, %v5478
        %v7891 = vadd.s32 %v7890, %v5486
        %v7892 = vadd.s32 %v7891, %v5494
        %v7893 = vadd.s32 %v7892, %v5502
        %v7894 = vadd.s32 %v7893, %v5510
        %v7895 = vadd.s32 %v7894, %v5518
        %v7896 = vadd.s32 %v7895, %v5526
        %v7897 = vadd.s32 %v7896, %v5534
        %v7898 = vadd.s32 %v7897, %v5542
        %v7899 = vadd.s32 %v7898, %v5550
        %v7900 = vadd.s32 %v7899, %v5558
        %v7901 = vadd.s32 %v7900, %v5566
        %v7902 = vadd.s32 %v7901, %v5574
        %v7903 = vadd.s32 %v7902, %v5582
        %v7904 = vadd.s32 %v7903, %v5590
        %v7905 = vadd.s32 %v7904, %v5598
        %v7906 = vadd.s32 %v7905, %v5606
        %v7907 = vadd.s32 %v7906, %v5614
        %v7908 = vadd.s32 %v7907, %v5622
        %v7909 = vadd.s32 %v7908, %v5630
        %v7910 = vadd.s32 %v7909, %v5638
        %v7911 = vadd.s32 %v7910, %v5646
        %v7912 = vadd.s32 %v7911, %v5654
        %v7913 = vadd.s32 %v7912, %v5662
        %v7914 = vadd.s32 %v7913, %v5670
        %v7915 = vadd.s32 %v7914, %v5678
        %v7916 = vadd.s32 %v7915, %v5686
        %v7917 = vadd.s32 %v7916, %v5694
        %v7918 = vadd.s32 %v7917, %v5702
        %v7919 = vadd.s32 %v7918, %v5710
        %v7920 = vadd.s32 %v7919, %v5718
        %v7921 = vadd.s32 %v7920, %v5726
        %v7922 = vadd.s32 %v7921, %v5734
        %v7923 = vadd.s32 %v7922, %v5742
        %v7924 = vadd.s32 %v7923, %v5750
        %v7925 = vadd.s32 %v7924, %v5758
        %v7926 = vadd.s32 %v7925, %v5766
        %v7927 = vadd.s32 %v7926, %v5774
        %v7928 = vadd.s32 %v7927, %v5782
        %v7929 = vadd.s32 %v7928, %v5790
        %v7930 = vadd.s32 %v7929, %v5798
        %v7931 = vadd.s32 %v7930, %v5806
        %v7932 = vadd.s32 %v7931, %v5814
        %v7933 = vadd.s32 %v7932, %v5822
        %v7934 = vadd.s32 %v7933, %v5830
        %v7935 = vadd.s32 %v7934, %v5838
        %v7936 = vadd.s32 %v7935, %v5846
        %v7937 = vadd.s32 %v7936, %v5854
        %v7938 = vrot.slane %v7937, 4
        %v7939 = vadd.s32 %v7937, %v7938
        %v7940 = vrot.slane %v7939, 2
        %v7941 = vadd.s32 %v7939, %v7940
        %v7942 = vrot.slane %v7941, 1
        %v7943 = vadd.s32 %v7941, %v7942
        %v7944 = vcombine.low %v6116, %v6377
        %v7945 = vcombine.low %v6638, %v6899
        %v7946 = vcombine.low %v7160, %v7421
        %v7947 = vcombine.low %v7682, %v7943
        %v7949 = vunpack.c.l.s4 1966171168
        %v7950 = vunpack.c.0.s8 %v7949
        %v7951 = vlaneseq
        %v7952 = vshrl.u32 %v7951, 7
        %v7953 = vsub.s32 %v7950, %v7952
        %v7954 = vrot.slane %v7944, %v7953
        %v7956 = vunpack.c.l.s4 1966171168
        %v7957 = vunpack.c.0.s8 %v7956
        %v7958 = vlaneseq
        %v7959 = vshrl.u32 %v7958, 7
        %v7960 = vsub.s32 %v7957, %v7959
        %v7961 = vrot.slane %v7945, %v7960
        %v7963 = vunpack.c.l.s4 1966171168
        %v7964 = vunpack.c.0.s8 %v7963
        %v7965 = vlaneseq
        %v7966 = vshrl.u32 %v7965, 7
        %v7967 = vsub.s32 %v7964, %v7966
        %v7968 = vrot.slane %v7946, %v7967
        %v7970 = vunpack.c.l.s4 1966171168
        %v7971 = vunpack.c.0.s8 %v7970
        %v7972 = vlaneseq
        %v7973 = vshrl.u32 %v7972, 7
        %v7974 = vsub.s32 %v7971, %v7973
        %v7975 = vrot.slane %v7947, %v7974
        %v7976 = vcombine.low %v7954, %v7961
        %v7977 = vcombine.low %v7968, %v7975
        %v7979 = vunpack.c.l.s4 1966171168
        %v7980 = vunpack.c.0.s8 %v7979
        %v7981 = vlaneseq
        %v7982 = vshrl.u32 %v7981, 7
        %v7983 = vsub.s32 %v7980, %v7982
        %v7984 = vrot.slane %v7976, %v7983
        %v7986 = vunpack.c.l.s4 1966171168
        %v7987 = vunpack.c.0.s8 %v7986
        %v7988 = vlaneseq
        %v7989 = vshrl.u32 %v7988, 7
        %v7990 = vsub.s32 %v7987, %v7989
        %v7991 = vrot.slane %v7977, %v7990
        %v7992 = vcombine.low %v7984, %v7991
        %v7993 = vadd.s32 %v5855, %v7992
        %7994 = vst [vmem:[%s163] sm:$0xff] %v7993
        %s7995 = sand.u32 %s88, 1
        %s7996 = scalar_lea.sflag [#allocation3], %s7995
        %s7997 = sand.u32 %s88, 1
        %s7998 = smul.addr %s7997, 8
        %s7999 = scalar_lea.vmem [#allocation2], %s7998
        // Predicated region
        $region33: #{tpu_custom_call.1} parent=27 // pred_check
          %p8000 = pneg %p98
        $region34: #{tpu_custom_call.1} parent=27 // pred_check_branch
          %8002 = sbr.rel (%p8000) target = $region36
        $region35: #{tpu_custom_call.1} parent=27 // pred_region
          %s8003 = smul.u32 8, %s20
          %s8005 = ssub.s32 128, 128
          %8006 = vsyncadd %s7996, %s8005
          %s8007 = smul.addr %s8003, 16
          %s8008 = scalar_lea.hbm %s2, %s8007
          %s8010 = sshll.u32 %s7999, 4
          %s8011 = int_to_ptr.vmem [resolvable:$true] %s8010
          %8013 = dma.vmem_to_hbm [thread:$0]  %s8011, 128, %s8008, %s7996
        $region36: #{tpu_custom_call.1} parent=27 // pred_fallthru
          _
      $region28: #{tpu_custom_call.1} parent=5 // pred_fallthru
        _
      %p8014 = scmp.le.s32.totalorder 2, %s11
      // Predicated region
      $region37: #{tpu_custom_call.1} parent=5 // pred_check
        %p8015 = pneg %p8014
      $region38: #{tpu_custom_call.1} parent=5 // pred_check_branch
        %8017 = sbr.rel (%p8015) target = $region40
      $region39: #{tpu_custom_call.1} parent=5 // pred_region
        %s8018 = ssub.s32 %s11, 2
        // Predicated region
        $region41: #{tpu_custom_call.1} parent=39 // pred_check
          %p8019 = pneg %p104
        $region42: #{tpu_custom_call.1} parent=39 // pred_check_branch
          %8021 = sbr.rel (%p8019) target = $region44
        $region43: #{tpu_custom_call.1} parent=39 // pred_region
          %s8022 = sand.u32 %s89, 1
          %s8023 = scalar_lea.sflag [#allocation3], %s8022
          %s8024 = sand.u32 %s89, 1
          %s8025 = smul.addr %s8024, 8
          %s8026 = scalar_lea.vmem [#allocation2], %s8025
          %8027 = dma.done %s8023, 128
        $region44: #{tpu_custom_call.1} parent=39 // pred_fallthru
          _
      $region40: #{tpu_custom_call.1} parent=5 // pred_fallthru
        _
    $region6: #{tpu_custom_call.1} parent=1 // loop_footer
      %s15 = sadd.s32 1, %s11
    $region7: #{tpu_custom_call.1} parent=1 // loop_footer_branch
      %10 = sbr.rel target = $region3
    $region8: #{tpu_custom_call.1} parent=1 // loop_exit
      _
    %8028 = vsyncpa [#allocation3], 1
    %s8029 = scalar_lea.sflag [#allocation3], 1
    %8030 = vsyncpa %s8029, 1

</llo_original>
